<compile_context>
chip_gen: v7x
topology: tpu7x:2x2x1
jax: 0.10.0
libtpu: 0.0.40
codegen_flags: <defaults>
</compile_context>

<pallas_src>
import math

import jax
import jax.numpy as jnp
import numpy as np
from jax.experimental import pallas as pl
from jax.experimental.pallas import tpu as pltpu


def _layernorm(x, gamma, beta, eps=1e-5):
    mean = jnp.mean(x, axis=-1, keepdims=True)
    var = jnp.mean(jnp.square(x - mean), axis=-1, keepdims=True)
    return (x - mean) * jax.lax.rsqrt(var + eps) * gamma + beta


def _make_kernel(num_heads, head_dim, hidden_size, hidden_chunk, with_mask):
    scale = 1.0 / math.sqrt(head_dim)
    E = num_heads * head_dim
    bf16 = jnp.bfloat16
    f32 = jnp.float32

    def body(v_ref, k_ref, q_ref, mask_ref,
             wq_ref, wk_ref, wv_ref, wo_ref, bo_ref,
             g1_ref, be1_ref,
             w1_ref, b1_ref, w2_ref, b2_ref,
             g2_ref, be2_ref,
             o_ref):
        v_in = v_ref[0]          # (S, E)  f32
        k_in = k_ref[0]          # (S, E)  f32
        q_in = q_ref[0]          # (tq, E) f32
        tq = q_in.shape[0]
        S = k_in.shape[0]

        # --- QKV projections: bf16 operands, f32 accumulation on the MXU ---
        qp = jnp.dot(q_in.astype(bf16), wq_ref[...], preferred_element_type=f32)
        kp = jnp.dot(k_in.astype(bf16), wk_ref[...], preferred_element_type=f32)
        vp = jnp.dot(v_in.astype(bf16), wv_ref[...], preferred_element_type=f32)

        # --- batched-head attention (head = dot_general batch dim) ---
        q3 = jnp.swapaxes(qp.reshape(tq, num_heads, head_dim), 0, 1).astype(bf16)  # (h, tq, d)
        k3 = jnp.swapaxes(kp.reshape(S, num_heads, head_dim), 0, 1).astype(bf16)   # (h, S, d)
        v3 = jnp.swapaxes(vp.reshape(S, num_heads, head_dim), 0, 1).astype(bf16)   # (h, S, d)

        scores = jnp.einsum('hqd,hkd->hqk', q3, k3,
                            preferred_element_type=f32) * scale          # (h, tq, S) f32
        if with_mask:
            m = mask_ref[0]                                              # (tq, S)
            scores = jnp.where(m[None] != 0.0, scores, -1e20)

        m_row = jnp.max(scores, axis=-1, keepdims=True)
        p = jnp.exp(scores - m_row)
        inv = pl.reciprocal(jnp.sum(p, axis=-1, keepdims=True), approx=True)
        attn = (p * inv).astype(bf16)

        ctx = jnp.einsum('hqk,hkd->hqd', attn, v3,
                         preferred_element_type=f32)                     # (h, tq, d)
        ctx = jnp.swapaxes(ctx, 0, 1).reshape(tq, E)                     # (tq, E)

        attn_out = jnp.dot(ctx.astype(bf16), wo_ref[...],
                           preferred_element_type=f32) + bo_ref[...]

        # --- AddNorm 1 (dropout = identity in eval) ---
        x = _layernorm(attn_out + q_in, g1_ref[...], be1_ref[...])
        x_bf = x.astype(bf16)

        # --- FFN (Linear -> ReLU -> Linear), chunked over the hidden dim ---
        ff = jnp.broadcast_to(b2_ref[...], (tq, E)).astype(f32)
        for lo in range(0, hidden_size, hidden_chunk):
            hi = min(hidden_size, lo + hidden_chunk)
            h = jnp.dot(x_bf, w1_ref[:, lo:hi],
                        preferred_element_type=f32) + b1_ref[:, lo:hi]
            h = jnp.maximum(h, 0.0).astype(bf16)
            ff = ff + jnp.dot(h, w2_ref[lo:hi, :], preferred_element_type=f32)

        # --- AddNorm 2 (dropout = identity in eval) ---
        out = _layernorm(ff + x, g2_ref[...], be2_ref[...])
        o_ref[0] = out.astype(o_ref.dtype)

    if with_mask:
        return body

    def kernel_no_mask(v_ref, k_ref, q_ref, *rest):
        return body(v_ref, k_ref, q_ref, None, *rest)

    return kernel_no_mask


def _pick_seq_tile(S, requested=None):
    if requested is not None:
        assert S % requested == 0, "seq_tile must divide S"
        assert requested == S or requested % 8 == 0, "seq_tile must be S or a multiple of 8"
        return requested
    if S <= 256:
        return S
    for t in range(256, 7, -8):
        if S % t == 0:
            return t
    return S


def _vmem_limit_bytes(S, E, H, tq, hidden_chunk):
    wbytes = (4 * E * E + 2 * E * H) * 2                  # bf16 weights
    pbytes = (2 * H + 10 * E) * 4                         # f32 biases / LN params
    iobytes = (2 * S * E + 2 * tq * E + tq * S) * 4       # K,V full + Q/out tiles + mask tile
    work = (4 * tq * S + tq * hidden_chunk + 8 * tq * E) * 4
    est = 2 * (wbytes + pbytes + iobytes) + work + (4 << 20)
    return int(min(max(est, 16 << 20), 64 << 20))


def transformer_block(value_input, key_input, query_input, params, mask=None, *,
                      num_heads, seq_tile=None, hidden_chunk=2048):
    B, S, E = query_input.shape
    assert E % num_heads == 0, "num_heads must divide embedding_size"
    head_dim = E // num_heads
    H = params["w1"].shape[1]                     # forward_expansion * E
    tq = _pick_seq_tile(S, seq_tile)
    n_sq = S // tq
    hidden_chunk = min(hidden_chunk, H)

    bf16 = jnp.bfloat16
    # MXU-facing weights are shipped in bf16 (halves weight DMA, native MXU dtype).
    wq = params["wq"].astype(bf16)
    wk = params["wk"].astype(bf16)
    wv = params["wv"].astype(bf16)
    wo = params["wo"].astype(bf16)
    w1 = params["w1"].astype(bf16)
    w2 = params["w2"].astype(bf16)

    def full(shape):
        return pl.BlockSpec(shape, lambda b, i: tuple(0 for _ in shape))

    kv_spec = pl.BlockSpec((1, S, E), lambda b, i: (b, 0, 0))
    q_spec = pl.BlockSpec((1, tq, E), lambda b, i: (b, i, 0))

    in_specs = [kv_spec, kv_spec, q_spec]
    args = [value_input, key_input, query_input]
    if mask is not None:
        in_specs.append(pl.BlockSpec((1, tq, S), lambda b, i: (b, i, 0)))
        args.append(mask)
    in_specs += [
        full((E, E)), full((E, E)), full((E, E)),        # Wq, Wk, Wv
        full((E, E)), full((1, E)),                      # Wo, bo
        full((1, E)), full((1, E)),                      # gamma1, beta1
        full((E, H)), full((1, H)),                      # W1, b1
        full((H, E)), full((1, E)),                      # W2, b2
        full((1, E)), full((1, E)),                      # gamma2, beta2
    ]
    args += [wq, wk, wv, wo, params["bo"],
             params["gamma1"], params["beta1"],
             w1, params["b1"], w2, params["b2"],
             params["gamma2"], params["beta2"]]

    kernel = _make_kernel(num_heads, head_dim, H, hidden_chunk, mask is not None)

    return pl.pallas_call(
        kernel,
        out_shape=jax.ShapeDtypeStruct((B, S, E), jnp.float32),
        grid=(B, n_sq),
        in_specs=in_specs,
        out_specs=pl.BlockSpec((1, tq, E), lambda b, i: (b, i, 0)),
        compiler_params=pltpu.CompilerParams(
            dimension_semantics=("parallel", "parallel"),
            vmem_limit_bytes=_vmem_limit_bytes(S, E, H, tq, hidden_chunk)),
    )(*args)


def init_params(key, embedding_size, num_heads, forward_expansion):
    E = embedding_size
    H = forward_expansion * E
    ks = jax.random.split(key, 8)
    s = 0.02
    return {
        "wq": jax.random.normal(ks[0], (E, E), jnp.float32) * s,
        "wk": jax.random.normal(ks[1], (E, E), jnp.float32) * s,
        "wv": jax.random.normal(ks[2], (E, E), jnp.float32) * s,
        "wo": jax.random.normal(ks[3], (E, E), jnp.float32) * s,
        "bo": jnp.zeros((1, E), jnp.float32),
        "gamma1": jnp.ones((1, E), jnp.float32),
        "beta1": jnp.zeros((1, E), jnp.float32),
        "w1": jax.random.normal(ks[4], (E, H), jnp.float32) * s,
        "b1": jax.random.normal(ks[5], (1, H), jnp.float32) * s,
        "w2": jax.random.normal(ks[6], (H, E), jnp.float32) * s,
        "b2": jax.random.normal(ks[7], (1, E), jnp.float32) * s,
        "gamma2": jnp.ones((1, E), jnp.float32),
        "beta2": jnp.zeros((1, E), jnp.float32),
    }


def transformer_block_reference(value_input, key_input, query_input, params, mask, num_heads):
    """Pure-JAX f32 reference with identical semantics."""
    B, S, E = query_input.shape
    hd = E // num_heads
    hp = jax.lax.Precision.HIGHEST
    qp = jnp.einsum('bse,ef->bsf', query_input, params['wq'], precision=hp)
    kp = jnp.einsum('bse,ef->bsf', key_input, params['wk'], precision=hp)
    vp = jnp.einsum('bse,ef->bsf', value_input, params['wv'], precision=hp)
    qh = qp.reshape(B, S, num_heads, hd).transpose(0, 2, 1, 3)
    kh = kp.reshape(B, S, num_heads, hd).transpose(0, 2, 1, 3)
    vh = vp.reshape(B, S, num_heads, hd).transpose(0, 2, 1, 3)
    scores = jnp.einsum('bhqd,bhkd->bhqk', qh, kh, precision=hp) / math.sqrt(hd)
    if mask is not None:
        scores = jnp.where(mask[:, None] != 0.0, scores, -1e20)
    attn = jax.nn.softmax(scores, axis=-1)
    ctx = jnp.einsum('bhqk,bhkd->bhqd', attn, vh, precision=hp)
    ctx = ctx.transpose(0, 2, 1, 3).reshape(B, S, E)
    attn_out = jnp.einsum('bse,ef->bsf', ctx, params['wo'], precision=hp) + params['bo']
    x = _layernorm(attn_out + query_input, params['gamma1'], params['beta1'])
    h = jax.nn.relu(jnp.einsum('bse,eh->bsh', x, params['w1'], precision=hp) + params['b1'])
    ff = jnp.einsum('bsh,he->bse', h, params['w2'], precision=hp) + params['b2']
    return _layernorm(ff + x, params['gamma2'], params['beta2'])


if __name__ == "__main__":
    # Small but lane-dense shapes (E multiple of 128) so output stores are unmasked.
    B, S, E = 2, 128, 128
    num_heads = 4
    forward_expansion = 4
    # dropout_prob is unused at inference time (eval mode -> identity)

    key = jax.random.PRNGKey(0)
    kv_, kk_, kq_, kp_ = jax.random.split(key, 4)
    value_input = jax.random.normal(kv_, (B, S, E), jnp.float32)
    key_input = jax.random.normal(kk_, (B, S, E), jnp.float32)
    query_input = jax.random.normal(kq_, (B, S, E), jnp.float32)

    params = init_params(kp_, E, num_heads, forward_expansion)

    # 1) mask=None path (kernel specialises away the mask load/select).
    out = transformer_block(value_input, key_input, query_input, params,
                            mask=None, num_heads=num_heads, seq_tile=64)
    out = jax.block_until_ready(out)
    assert out.shape == (B, S, E)
    ref = transformer_block_reference(value_input, key_input, query_input, params,
                                      mask=None, num_heads=num_heads)
    np.testing.assert_allclose(np.asarray(out), np.asarray(ref), atol=0.08, rtol=0.08)

    # 2) explicit (causal) mask path.
    causal = jnp.tril(jnp.ones((S, S), jnp.float32))
    mask = jnp.broadcast_to(causal, (B, S, S))
    out_m = transformer_block(value_input, key_input, query_input, params,
                              mask=mask, num_heads=num_heads, seq_tile=64)
    out_m = jax.block_until_ready(out_m)
    ref_m = transformer_block_reference(value_input, key_input, query_input, params,
                                        mask=mask, num_heads=num_heads)
    np.testing.assert_allclose(np.asarray(out_m), np.asarray(ref_m), atol=0.08, rtol=0.08)

    print("KERNEL_OK")
</pallas_src>

<mosaic_0001>
module attributes {stable_mosaic.version = 11 : i64} {
  func.func @kernel_no_mask(%arg0: i32, %arg1: i32, %arg2: memref<1x128x128xf32, #tpu.memory_space<vmem>>, %arg3: memref<1x128x128xf32, #tpu.memory_space<vmem>>, %arg4: memref<1x64x128xf32, #tpu.memory_space<vmem>>, %arg5: memref<128x128xbf16, #tpu.memory_space<vmem>>, %arg6: memref<128x128xbf16, #tpu.memory_space<vmem>>, %arg7: memref<128x128xbf16, #tpu.memory_space<vmem>>, %arg8: memref<128x128xbf16, #tpu.memory_space<vmem>>, %arg9: memref<1x128xf32, #tpu.memory_space<vmem>>, %arg10: memref<1x128xf32, #tpu.memory_space<vmem>>, %arg11: memref<1x128xf32, #tpu.memory_space<vmem>>, %arg12: memref<128x512xbf16, #tpu.memory_space<vmem>>, %arg13: memref<1x512xf32, #tpu.memory_space<vmem>>, %arg14: memref<512x128xbf16, #tpu.memory_space<vmem>>, %arg15: memref<1x128xf32, #tpu.memory_space<vmem>>, %arg16: memref<1x128xf32, #tpu.memory_space<vmem>>, %arg17: memref<1x128xf32, #tpu.memory_space<vmem>>, %arg18: memref<1x64x128xf32, #tpu.memory_space<vmem>>) attributes {dimension_semantics = [#tpu.dimension_semantics<parallel>, #tpu.dimension_semantics<parallel>], iteration_bounds = array<i64: 2, 2>, scalar_prefetch = 0 : i64, scratch_operands = 0 : i64, tpu.core_type = #tpu.core_type<tc>, window_params = [{transform_indices = @transform_0, window_bounds = array<i64: 1, 128, 128>}, {transform_indices = @transform_1, window_bounds = array<i64: 1, 128, 128>}, {transform_indices = @transform_2, window_bounds = array<i64: 1, 64, 128>}, {pipeline_mode = #tpu.pipeline_mode<synchronous>, transform_indices = @transform_3, window_bounds = array<i64: 128, 128>}, {pipeline_mode = #tpu.pipeline_mode<synchronous>, transform_indices = @transform_4, window_bounds = array<i64: 128, 128>}, {pipeline_mode = #tpu.pipeline_mode<synchronous>, transform_indices = @transform_5, window_bounds = array<i64: 128, 128>}, {pipeline_mode = #tpu.pipeline_mode<synchronous>, transform_indices = @transform_6, window_bounds = array<i64: 128, 128>}, {pipeline_mode = #tpu.pipeline_mode<synchronous>, transform_indices = @transform_7, window_bounds = array<i64: 1, 128>}, {pipeline_mode = #tpu.pipeline_mode<synchronous>, transform_indices = @transform_8, window_bounds = array<i64: 1, 128>}, {pipeline_mode = #tpu.pipeline_mode<synchronous>, transform_indices = @transform_9, window_bounds = array<i64: 1, 128>}, {pipeline_mode = #tpu.pipeline_mode<synchronous>, transform_indices = @transform_10, window_bounds = array<i64: 128, 512>}, {pipeline_mode = #tpu.pipeline_mode<synchronous>, transform_indices = @transform_11, window_bounds = array<i64: 1, 512>}, {pipeline_mode = #tpu.pipeline_mode<synchronous>, transform_indices = @transform_12, window_bounds = array<i64: 512, 128>}, {pipeline_mode = #tpu.pipeline_mode<synchronous>, transform_indices = @transform_13, window_bounds = array<i64: 1, 128>}, {pipeline_mode = #tpu.pipeline_mode<synchronous>, transform_indices = @transform_14, window_bounds = array<i64: 1, 128>}, {pipeline_mode = #tpu.pipeline_mode<synchronous>, transform_indices = @transform_15, window_bounds = array<i64: 1, 128>}, {transform_indices = @transform_16, window_bounds = array<i64: 1, 64, 128>}]} {
    %c0 = arith.constant 0 : index
    %c0_0 = arith.constant 0 : index
    %c0_1 = arith.constant 0 : index
    %0 = vector.load %arg2[%c0, %c0_0, %c0_1] : memref<1x128x128xf32, #tpu.memory_space<vmem>>, vector<1x128x128xf32>
    %1 = vector.shape_cast %0 : vector<1x128x128xf32> to vector<128x128xf32>
    %c0_2 = arith.constant 0 : index
    %c0_3 = arith.constant 0 : index
    %c0_4 = arith.constant 0 : index
    %2 = vector.load %arg3[%c0_2, %c0_3, %c0_4] : memref<1x128x128xf32, #tpu.memory_space<vmem>>, vector<1x128x128xf32>
    %3 = vector.shape_cast %2 : vector<1x128x128xf32> to vector<128x128xf32>
    %c0_5 = arith.constant 0 : index
    %c0_6 = arith.constant 0 : index
    %c0_7 = arith.constant 0 : index
    %4 = vector.load %arg4[%c0_5, %c0_6, %c0_7] : memref<1x64x128xf32, #tpu.memory_space<vmem>>, vector<1x64x128xf32>
    %5 = vector.shape_cast %4 : vector<1x64x128xf32> to vector<64x128xf32>
    %6 = arith.truncf %5 : vector<64x128xf32> to vector<64x128xbf16>
    %c0_8 = arith.constant 0 : index
    %c0_9 = arith.constant 0 : index
    %7 = vector.load %arg5[%c0_8, %c0_9] : memref<128x128xbf16, #tpu.memory_space<vmem>>, vector<128x128xbf16>
    %cst = arith.constant dense<0.000000e+00> : vector<64x128xf32>
    %8 = tpu.matmul %6, %7, %cst {dimension_numbers = #tpu.dot_dimension_numbers<[1], [0], [0], [1], [0, 0, 1, 1], [], []>} : vector<64x128xbf16>, vector<128x128xbf16>, vector<64x128xf32> -> vector<64x128xf32>
    %9 = arith.truncf %3 : vector<128x128xf32> to vector<128x128xbf16>
    %c0_10 = arith.constant 0 : index
    %c0_11 = arith.constant 0 : index
    %10 = vector.load %arg6[%c0_10, %c0_11] : memref<128x128xbf16, #tpu.memory_space<vmem>>, vector<128x128xbf16>
    %cst_12 = arith.constant dense<0.000000e+00> : vector<128x128xf32>
    %11 = tpu.matmul %9, %10, %cst_12 {dimension_numbers = #tpu.dot_dimension_numbers<[1], [0], [0], [1], [0, 0, 1, 1], [], []>} : vector<128x128xbf16>, vector<128x128xbf16>, vector<128x128xf32> -> vector<128x128xf32>
    %12 = arith.truncf %1 : vector<128x128xf32> to vector<128x128xbf16>
    %c0_13 = arith.constant 0 : index
    %c0_14 = arith.constant 0 : index
    %13 = vector.load %arg7[%c0_13, %c0_14] : memref<128x128xbf16, #tpu.memory_space<vmem>>, vector<128x128xbf16>
    %cst_15 = arith.constant dense<0.000000e+00> : vector<128x128xf32>
    %14 = tpu.matmul %12, %13, %cst_15 {dimension_numbers = #tpu.dot_dimension_numbers<[1], [0], [0], [1], [0, 0, 1, 1], [], []>} : vector<128x128xbf16>, vector<128x128xbf16>, vector<128x128xf32> -> vector<128x128xf32>
    %15 = vector.shape_cast %8 : vector<64x128xf32> to vector<64x4x32xf32>
    %16 = tpu.transpose %15, [1, 0, 2] : vector<64x4x32xf32> -> vector<4x64x32xf32>
    %17 = arith.truncf %16 : vector<4x64x32xf32> to vector<4x64x32xbf16>
    %18 = vector.shape_cast %11 : vector<128x128xf32> to vector<128x4x32xf32>
    %19 = tpu.transpose %18, [1, 0, 2] : vector<128x4x32xf32> -> vector<4x128x32xf32>
    %20 = arith.truncf %19 : vector<4x128x32xf32> to vector<4x128x32xbf16>
    %21 = vector.shape_cast %14 : vector<128x128xf32> to vector<128x4x32xf32>
    %22 = tpu.transpose %21, [1, 0, 2] : vector<128x4x32xf32> -> vector<4x128x32xf32>
    %23 = arith.truncf %22 : vector<4x128x32xf32> to vector<4x128x32xbf16>
    "tpu.trace_start"() <{level = 10 : i32, message = "hqd,hkd->hqk"}> : () -> ()
    %cst_16 = arith.constant dense<0.000000e+00> : vector<4x64x128xf32>
    %24 = tpu.matmul %17, %20, %cst_16 {dimension_numbers = #tpu.dot_dimension_numbers<[2], [2], [1], [1], [0, 0, 0, 1, 1, 1], [0], [0]>} : vector<4x64x32xbf16>, vector<4x128x32xbf16>, vector<4x64x128xf32> -> vector<4x64x128xf32>
    "tpu.trace_stop"() : () -> ()
    %cst_17 = arith.constant 0.176776692 : f32
    %25 = vector.broadcast %cst_17 : f32 to vector<4x64x128xf32>
    %26 = arith.mulf %24, %25 : vector<4x64x128xf32>
    %cst_18 = arith.constant dense<0xFF800000> : vector<4x64xf32>
    %27 = vector.multi_reduction <maximumf>, %26, %cst_18 [2] : vector<4x64x128xf32> to vector<4x64xf32>
    %28 = vector.shape_cast %27 : vector<4x64xf32> to vector<4x64x1xf32>
    %29 = vector.broadcast %28 : vector<4x64x1xf32> to vector<4x64x128xf32>
    %30 = arith.subf %26, %29 : vector<4x64x128xf32>
    %31 = math.exp %30 : vector<4x64x128xf32>
    %cst_19 = arith.constant dense<0.000000e+00> : vector<4x64xf32>
    %32 = vector.multi_reduction <add>, %31, %cst_19 [2] : vector<4x64x128xf32> to vector<4x64xf32>
    %33 = vector.shape_cast %32 : vector<4x64xf32> to vector<4x64x1xf32>
    %34 = tpu.reciprocal %33 {approx = true} : vector<4x64x1xf32> -> vector<4x64x1xf32>
    %35 = vector.broadcast %34 : vector<4x64x1xf32> to vector<4x64x128xf32>
    %36 = arith.mulf %31, %35 : vector<4x64x128xf32>
    %37 = arith.truncf %36 : vector<4x64x128xf32> to vector<4x64x128xbf16>
    "tpu.trace_start"() <{level = 10 : i32, message = "hqk,hkd->hqd"}> : () -> ()
    %cst_20 = arith.constant dense<0.000000e+00> : vector<4x64x32xf32>
    %38 = tpu.matmul %37, %23, %cst_20 {dimension_numbers = #tpu.dot_dimension_numbers<[2], [1], [1], [2], [0, 0, 0, 1, 1, 2], [0], [0]>} : vector<4x64x128xbf16>, vector<4x128x32xbf16>, vector<4x64x32xf32> -> vector<4x64x32xf32>
    "tpu.trace_stop"() : () -> ()
    %39 = tpu.transpose %38, [1, 0, 2] : vector<4x64x32xf32> -> vector<64x4x32xf32>
    %40 = vector.shape_cast %39 : vector<64x4x32xf32> to vector<64x128xf32>
    %41 = arith.truncf %40 : vector<64x128xf32> to vector<64x128xbf16>
    %c0_21 = arith.constant 0 : index
    %c0_22 = arith.constant 0 : index
    %42 = vector.load %arg8[%c0_21, %c0_22] : memref<128x128xbf16, #tpu.memory_space<vmem>>, vector<128x128xbf16>
    %cst_23 = arith.constant dense<0.000000e+00> : vector<64x128xf32>
    %43 = tpu.matmul %41, %42, %cst_23 {dimension_numbers = #tpu.dot_dimension_numbers<[1], [0], [0], [1], [0, 0, 1, 1], [], []>} : vector<64x128xbf16>, vector<128x128xbf16>, vector<64x128xf32> -> vector<64x128xf32>
    %c0_24 = arith.constant 0 : index
    %c0_25 = arith.constant 0 : index
    %44 = vector.load %arg9[%c0_24, %c0_25] : memref<1x128xf32, #tpu.memory_space<vmem>>, vector<1x128xf32>
    %45 = vector.broadcast %44 : vector<1x128xf32> to vector<64x128xf32>
    %46 = arith.addf %43, %45 : vector<64x128xf32>
    %47 = arith.addf %46, %5 : vector<64x128xf32>
    %c0_26 = arith.constant 0 : index
    %c0_27 = arith.constant 0 : index
    %48 = vector.load %arg10[%c0_26, %c0_27] : memref<1x128xf32, #tpu.memory_space<vmem>>, vector<1x128xf32>
    %c0_28 = arith.constant 0 : index
    %c0_29 = arith.constant 0 : index
    %49 = vector.load %arg11[%c0_28, %c0_29] : memref<1x128xf32, #tpu.memory_space<vmem>>, vector<1x128xf32>
    %cst_30 = arith.constant dense<0.000000e+00> : vector<64xf32>
    %50 = vector.multi_reduction <add>, %47, %cst_30 [1] : vector<64x128xf32> to vector<64xf32>
    %51 = vector.shape_cast %50 : vector<64xf32> to vector<64x1xf32>
    %cst_31 = arith.constant 1.280000e+02 : f32
    %52 = vector.broadcast %cst_31 : f32 to vector<64x1xf32>
    %53 = arith.divf %51, %52 : vector<64x1xf32>
    %54 = vector.broadcast %53 : vector<64x1xf32> to vector<64x128xf32>
    %55 = arith.subf %47, %54 : vector<64x128xf32>
    %56 = arith.mulf %55, %55 : vector<64x128xf32>
    %cst_32 = arith.constant dense<0.000000e+00> : vector<64xf32>
    %57 = vector.multi_reduction <add>, %56, %cst_32 [1] : vector<64x128xf32> to vector<64xf32>
    %58 = vector.shape_cast %57 : vector<64xf32> to vector<64x1xf32>
    %cst_33 = arith.constant 1.280000e+02 : f32
    %59 = vector.broadcast %cst_33 : f32 to vector<64x1xf32>
    %60 = arith.divf %58, %59 : vector<64x1xf32>
    %61 = vector.broadcast %53 : vector<64x1xf32> to vector<64x128xf32>
    %62 = arith.subf %47, %61 : vector<64x128xf32>
    %cst_34 = arith.constant 9.99999974E-6 : f32
    %63 = vector.broadcast %cst_34 : f32 to vector<64x1xf32>
    %64 = arith.addf %60, %63 : vector<64x1xf32>
    %65 = math.rsqrt %64 : vector<64x1xf32>
    %66 = vector.broadcast %65 : vector<64x1xf32> to vector<64x128xf32>
    %67 = arith.mulf %62, %66 : vector<64x128xf32>
    %68 = vector.broadcast %48 : vector<1x128xf32> to vector<64x128xf32>
    %69 = arith.mulf %67, %68 : vector<64x128xf32>
    %70 = vector.broadcast %49 : vector<1x128xf32> to vector<64x128xf32>
    %71 = arith.addf %69, %70 : vector<64x128xf32>
    %72 = arith.truncf %71 : vector<64x128xf32> to vector<64x128xbf16>
    %c0_35 = arith.constant 0 : index
    %c0_36 = arith.constant 0 : index
    %73 = vector.load %arg15[%c0_35, %c0_36] : memref<1x128xf32, #tpu.memory_space<vmem>>, vector<1x128xf32>
    %74 = vector.shape_cast %73 : vector<1x128xf32> to vector<1x128xf32>
    %75 = vector.broadcast %74 : vector<1x128xf32> to vector<64x128xf32>
    %c0_37 = arith.constant 0 : index
    %c0_38 = arith.constant 0 : index
    %76 = vector.load %arg12[%c0_37, %c0_38] : memref<128x512xbf16, #tpu.memory_space<vmem>>, vector<128x512xbf16>
    %cst_39 = arith.constant dense<0.000000e+00> : vector<64x512xf32>
    %77 = tpu.matmul %72, %76, %cst_39 {dimension_numbers = #tpu.dot_dimension_numbers<[1], [0], [0], [1], [0, 0, 1, 1], [], []>} : vector<64x128xbf16>, vector<128x512xbf16>, vector<64x512xf32> -> vector<64x512xf32>
    %c0_40 = arith.constant 0 : index
    %c0_41 = arith.constant 0 : index
    %78 = vector.load %arg13[%c0_40, %c0_41] : memref<1x512xf32, #tpu.memory_space<vmem>>, vector<1x512xf32>
    %79 = vector.broadcast %78 : vector<1x512xf32> to vector<64x512xf32>
    %80 = arith.addf %77, %79 : vector<64x512xf32>
    %cst_42 = arith.constant 0.000000e+00 : f32
    %81 = vector.broadcast %cst_42 : f32 to vector<64x512xf32>
    %82 = arith.maximumf %80, %81 : vector<64x512xf32>
    %83 = arith.truncf %82 : vector<64x512xf32> to vector<64x512xbf16>
    %c0_43 = arith.constant 0 : index
    %c0_44 = arith.constant 0 : index
    %84 = vector.load %arg14[%c0_43, %c0_44] : memref<512x128xbf16, #tpu.memory_space<vmem>>, vector<512x128xbf16>
    %cst_45 = arith.constant dense<0.000000e+00> : vector<64x128xf32>
    %85 = tpu.matmul %83, %84, %cst_45 {dimension_numbers = #tpu.dot_dimension_numbers<[1], [0], [0], [1], [0, 0, 1, 1], [], []>} : vector<64x512xbf16>, vector<512x128xbf16>, vector<64x128xf32> -> vector<64x128xf32>
    %86 = arith.addf %75, %85 : vector<64x128xf32>
    %87 = arith.addf %86, %71 : vector<64x128xf32>
    %c0_46 = arith.constant 0 : index
    %c0_47 = arith.constant 0 : index
    %88 = vector.load %arg16[%c0_46, %c0_47] : memref<1x128xf32, #tpu.memory_space<vmem>>, vector<1x128xf32>
    %c0_48 = arith.constant 0 : index
    %c0_49 = arith.constant 0 : index
    %89 = vector.load %arg17[%c0_48, %c0_49] : memref<1x128xf32, #tpu.memory_space<vmem>>, vector<1x128xf32>
    %cst_50 = arith.constant dense<0.000000e+00> : vector<64xf32>
    %90 = vector.multi_reduction <add>, %87, %cst_50 [1] : vector<64x128xf32> to vector<64xf32>
    %91 = vector.shape_cast %90 : vector<64xf32> to vector<64x1xf32>
    %cst_51 = arith.constant 1.280000e+02 : f32
    %92 = vector.broadcast %cst_51 : f32 to vector<64x1xf32>
    %93 = arith.divf %91, %92 : vector<64x1xf32>
    %94 = vector.broadcast %93 : vector<64x1xf32> to vector<64x128xf32>
    %95 = arith.subf %87, %94 : vector<64x128xf32>
    %96 = arith.mulf %95, %95 : vector<64x128xf32>
    %cst_52 = arith.constant dense<0.000000e+00> : vector<64xf32>
    %97 = vector.multi_reduction <add>, %96, %cst_52 [1] : vector<64x128xf32> to vector<64xf32>
    %98 = vector.shape_cast %97 : vector<64xf32> to vector<64x1xf32>
    %cst_53 = arith.constant 1.280000e+02 : f32
    %99 = vector.broadcast %cst_53 : f32 to vector<64x1xf32>
    %100 = arith.divf %98, %99 : vector<64x1xf32>
    %101 = vector.broadcast %93 : vector<64x1xf32> to vector<64x128xf32>
    %102 = arith.subf %87, %101 : vector<64x128xf32>
    %cst_54 = arith.constant 9.99999974E-6 : f32
    %103 = vector.broadcast %cst_54 : f32 to vector<64x1xf32>
    %104 = arith.addf %100, %103 : vector<64x1xf32>
    %105 = math.rsqrt %104 : vector<64x1xf32>
    %106 = vector.broadcast %105 : vector<64x1xf32> to vector<64x128xf32>
    %107 = arith.mulf %102, %106 : vector<64x128xf32>
    %108 = vector.broadcast %88 : vector<1x128xf32> to vector<64x128xf32>
    %109 = arith.mulf %107, %108 : vector<64x128xf32>
    %110 = vector.broadcast %89 : vector<1x128xf32> to vector<64x128xf32>
    %111 = arith.addf %109, %110 : vector<64x128xf32>
    %c0_55 = arith.constant 0 : index
    %c0_56 = arith.constant 0 : index
    %c0_57 = arith.constant 0 : index
    %112 = vector.load %arg18[%c0_55, %c0_56, %c0_57] : memref<1x64x128xf32, #tpu.memory_space<vmem>>, vector<1x64x128xf32>
    %113 = vector.shape_cast %112 : vector<1x64x128xf32> to vector<64x128xf32>
    %114 = vector.shape_cast %111 : vector<64x128xf32> to vector<1x64x128xf32>
    tpu.vector_store %arg18[%c0_55, %c0_56, %c0_57], %114 {strides = array<i32>} : memref<1x64x128xf32, #tpu.memory_space<vmem>>, vector<1x64x128xf32>,
    return
  }
  func.func @transform_0(%arg0: i32, %arg1: i32) -> (i32, i32, i32) {
    %c0_i32 = arith.constant 0 : i32
    %c0_i32_0 = arith.constant 0 : i32
    %c0_i32_1 = arith.constant 0 : i32
    return %arg0, %c0_i32, %c0_i32_0 : i32, i32, i32
  }
  func.func @transform_1(%arg0: i32, %arg1: i32) -> (i32, i32, i32) {
    %c0_i32 = arith.constant 0 : i32
    %c0_i32_0 = arith.constant 0 : i32
    %c0_i32_1 = arith.constant 0 : i32
    return %arg0, %c0_i32, %c0_i32_0 : i32, i32, i32
  }
  func.func @transform_2(%arg0: i32, %arg1: i32) -> (i32, i32, i32) {
    %c0_i32 = arith.constant 0 : i32
    %c0_i32_0 = arith.constant 0 : i32
    return %arg0, %arg1, %c0_i32 : i32, i32, i32
  }
  func.func @transform_3(%arg0: i32, %arg1: i32) -> (i32, i32) {
    %c0_i32 = arith.constant 0 : i32
    %c0_i32_0 = arith.constant 0 : i32
    %c0_i32_1 = arith.constant 0 : i32
    return %c0_i32, %c0_i32_0 : i32, i32
  }
  func.func @transform_4(%arg0: i32, %arg1: i32) -> (i32, i32) {
    %c0_i32 = arith.constant 0 : i32
    %c0_i32_0 = arith.constant 0 : i32
    %c0_i32_1 = arith.constant 0 : i32
    return %c0_i32, %c0_i32_0 : i32, i32
  }
  func.func @transform_5(%arg0: i32, %arg1: i32) -> (i32, i32) {
    %c0_i32 = arith.constant 0 : i32
    %c0_i32_0 = arith.constant 0 : i32
    %c0_i32_1 = arith.constant 0 : i32
    return %c0_i32, %c0_i32_0 : i32, i32
  }
  func.func @transform_6(%arg0: i32, %arg1: i32) -> (i32, i32) {
    %c0_i32 = arith.constant 0 : i32
    %c0_i32_0 = arith.constant 0 : i32
    %c0_i32_1 = arith.constant 0 : i32
    return %c0_i32, %c0_i32_0 : i32, i32
  }
  func.func @transform_7(%arg0: i32, %arg1: i32) -> (i32, i32) {
    %c0_i32 = arith.constant 0 : i32
    %c0_i32_0 = arith.constant 0 : i32
    %c0_i32_1 = arith.constant 0 : i32
    return %c0_i32, %c0_i32_0 : i32, i32
  }
  func.func @transform_8(%arg0: i32, %arg1: i32) -> (i32, i32) {
    %c0_i32 = arith.constant 0 : i32
    %c0_i32_0 = arith.constant 0 : i32
    %c0_i32_1 = arith.constant 0 : i32
    return %c0_i32, %c0_i32_0 : i32, i32
  }
  func.func @transform_9(%arg0: i32, %arg1: i32) -> (i32, i32) {
    %c0_i32 = arith.constant 0 : i32
    %c0_i32_0 = arith.constant 0 : i32
    %c0_i32_1 = arith.constant 0 : i32
    return %c0_i32, %c0_i32_0 : i32, i32
  }
  func.func @transform_10(%arg0: i32, %arg1: i32) -> (i32, i32) {
    %c0_i32 = arith.constant 0 : i32
    %c0_i32_0 = arith.constant 0 : i32
    %c0_i32_1 = arith.constant 0 : i32
    return %c0_i32, %c0_i32_0 : i32, i32
  }
  func.func @transform_11(%arg0: i32, %arg1: i32) -> (i32, i32) {
    %c0_i32 = arith.constant 0 : i32
    %c0_i32_0 = arith.constant 0 : i32
    %c0_i32_1 = arith.constant 0 : i32
    return %c0_i32, %c0_i32_0 : i32, i32
  }
  func.func @transform_12(%arg0: i32, %arg1: i32) -> (i32, i32) {
    %c0_i32 = arith.constant 0 : i32
    %c0_i32_0 = arith.constant 0 : i32
    %c0_i32_1 = arith.constant 0 : i32
    return %c0_i32, %c0_i32_0 : i32, i32
  }
  func.func @transform_13(%arg0: i32, %arg1: i32) -> (i32, i32) {
    %c0_i32 = arith.constant 0 : i32
    %c0_i32_0 = arith.constant 0 : i32
    %c0_i32_1 = arith.constant 0 : i32
    return %c0_i32, %c0_i32_0 : i32, i32
  }
  func.func @transform_14(%arg0: i32, %arg1: i32) -> (i32, i32) {
    %c0_i32 = arith.constant 0 : i32
    %c0_i32_0 = arith.constant 0 : i32
    %c0_i32_1 = arith.constant 0 : i32
    return %c0_i32, %c0_i32_0 : i32, i32
  }
  func.func @transform_15(%arg0: i32, %arg1: i32) -> (i32, i32) {
    %c0_i32 = arith.constant 0 : i32
    %c0_i32_0 = arith.constant 0 : i32
    %c0_i32_1 = arith.constant 0 : i32
    return %c0_i32, %c0_i32_0 : i32, i32
  }
  func.func @transform_16(%arg0: i32, %arg1: i32) -> (i32, i32, i32) {
    %c0_i32 = arith.constant 0 : i32
    %c0_i32_0 = arith.constant 0 : i32
    return %arg0, %arg1, %c0_i32 : i32, i32, i32
  }
}

</mosaic_0001>

<llo_original>
// kernel: tpu_custom_call.1
$region0: #{tpu_custom_call.1}
  #allocation0 [shape = 'u32[]', space=smem, size = 0x4, offset = 0x4, fixed_abs, tag = 'smem constant byte address 0x4 - core index']
  #allocation1 [shape = 'u32[144,128]{1,0:T(1,128)}', space=vmem, size = 0x12000, scoped, tag = 'internal scratch']
  %s0 = inlined_call_operand.hbm [shape: f32[2,128,128], index: 0, kind: input, shape index: {}]
  %s1 = inlined_call_operand.hbm [shape: f32[2,128,128], index: 1, kind: input, shape index: {}]
  %s2 = inlined_call_operand.hbm [shape: f32[2,128,128], index: 2, kind: input, shape index: {}]
  %s3 = inlined_call_operand.hbm [shape: bf16[128,128], index: 3, kind: input, shape index: {}]
  %s4 = inlined_call_operand.hbm [shape: bf16[128,128], index: 4, kind: input, shape index: {}]
  %s5 = inlined_call_operand.hbm [shape: bf16[128,128], index: 5, kind: input, shape index: {}]
  %s6 = inlined_call_operand.hbm [shape: bf16[128,128], index: 6, kind: input, shape index: {}]
  %s7 = inlined_call_operand.vmem [shape: f32[1,128], index: 7, kind: input, shape index: {}]
  %s8 = inlined_call_operand.vmem [shape: f32[1,128], index: 8, kind: input, shape index: {}]
  %s9 = inlined_call_operand.vmem [shape: f32[1,128], index: 9, kind: input, shape index: {}]
  %s10 = inlined_call_operand.hbm [shape: bf16[128,512], index: 10, kind: input, shape index: {}]
  %s11 = inlined_call_operand.vmem [shape: f32[1,512], index: 11, kind: input, shape index: {}]
  %s12 = inlined_call_operand.hbm [shape: bf16[512,128], index: 12, kind: input, shape index: {}]
  %s13 = inlined_call_operand.vmem [shape: f32[1,128], index: 13, kind: input, shape index: {}]
  %s14 = inlined_call_operand.vmem [shape: f32[1,128], index: 14, kind: input, shape index: {}]
  %s15 = inlined_call_operand.vmem [shape: f32[1,128], index: 15, kind: input, shape index: {}]
  %s16 = inlined_call_operand.hbm [shape: f32[2,128,128], index: 16, kind: output, shape index: {}]
  %s17 = sld [smem:[#allocation0]]
  $region133: #{tpu_custom_call.1} parent=0
    _
  %s19 = ssub.s32 1, %s17
  %s20 = scalar_select 0, %s19, %s17
  $region1: #{tpu_custom_call.1} parent=0
    #allocation2 [shape = 'u8[131072]{0}', space=vmem, size = 0x20000, scoped, tag = 'input window, operand 0']
    #allocation3 [shape = 's32[2]{0}', space=sflag, size = 0x8, scoped, tag = 'scoped memory for tpu_custom_call.1']
    #allocation4 [shape = 's32[2]{0}', space=sflag, size = 0x8, scoped, tag = 'scoped memory for tpu_custom_call.1']
    #allocation5 [shape = 'u8[131072]{0}', space=vmem, size = 0x20000, scoped, tag = 'input window, operand 1']
    #allocation6 [shape = 's32[2]{0}', space=sflag, size = 0x8, scoped, tag = 'scoped memory for tpu_custom_call.1']
    #allocation7 [shape = 'u8[65536]{0}', space=vmem, size = 0x10000, scoped, tag = 'input window, operand 2']
    #allocation8 [shape = 'u8[32768]{0}', space=vmem, size = 0x8000, scoped, tag = 'input window, operand 3, single buffered']
    #allocation9 [shape = 's32[1]{0}', space=sflag, size = 0x4, scoped, tag = 'scoped memory for tpu_custom_call.1']
    #allocation10 [shape = 'u8[32768]{0}', space=vmem, size = 0x8000, scoped, tag = 'input window, operand 4, single buffered']
    #allocation11 [shape = 'u8[32768]{0}', space=vmem, size = 0x8000, scoped, tag = 'input window, operand 5, single buffered']
    #allocation12 [shape = 's32[1]{0}', space=sflag, size = 0x4, scoped, tag = 'scoped memory for tpu_custom_call.1']
    #allocation13 [shape = 'u8[32768]{0}', space=vmem, size = 0x8000, scoped, tag = 'input window, operand 6, single buffered']
    #allocation14 [shape = 'u8[131072]{0}', space=vmem, size = 0x20000, scoped, tag = 'input window, operand 10, single buffered']
    #allocation15 [shape = 's32[1]{0}', space=sflag, size = 0x4, scoped, tag = 'scoped memory for tpu_custom_call.1']
    #allocation16 [shape = 'u8[131072]{0}', space=vmem, size = 0x20000, scoped, tag = 'input window, operand 12, single buffered']
    #allocation17 [shape = 'u8[65536]{0}', space=vmem, size = 0x10000, scoped, tag = 'output window, operand 0']
    %21 = vsyncpa [#allocation3], 0
    %s22 = scalar_lea.sflag [#allocation3], 1
    %23 = vsyncpa %s22, 0
    %24 = vsyncpa [#allocation6], 0
    %s25 = scalar_lea.sflag [#allocation6], 1
    %26 = vsyncpa %s25, 0
    %27 = vsyncpa [#allocation9], 0
    %28 = vsyncpa [#allocation12], 0
    %29 = vsyncpa [#allocation15], 0
    %30 = vsyncpa [#allocation4], 0
    %s31 = scalar_lea.sflag [#allocation4], 1
    %32 = vsyncpa %s31, 0
    loop: start=0, step=1, limit=6
    $region2: #{tpu_custom_call.1} parent=1 // loop_pre_header
      _
    $region3: #{tpu_custom_call.1} parent=1 // loop_header
      %s34 = sphi 0, %s38
      %p35 = scmp.ge.s32.totalorder %s34, 6
      %s41 = sphi 0, %s53
      %s42 = sphi 0, %s49
      %s43 = sphi 0, %s41
      %s44 = sphi 0, %s42
      %s45 = sphi 0, %s43
      %s46 = sphi 0, %s44
      %s56 = sphi 0, %s58
      %s59 = sphi 0, %s56
      %s60 = sphi 0, %s59
      %s76 = sphi 0, %s60
      %s82 = sphi 0, %s84
      %s85 = sphi 0, %s82
      %s86 = sphi 0, %s85
      %s102 = sphi 0, %s86
      %s110 = sphi 0, %s112
      %s113 = sphi 0, %s110
      %s114 = sphi 0, %s113
      %s130 = sphi 0, %s114
      %s134 = sphi 0, %s134
      %s136 = sphi 0, %s134
      %s137 = sphi 0, %s136
      %s151 = sphi 0, %s137
      %s155 = sphi 0, %s155
      %s157 = sphi 0, %s155
      %s158 = sphi 0, %s157
      %s172 = sphi 0, %s158
      %s176 = sphi 0, %s176
      %s178 = sphi 0, %s176
      %s179 = sphi 0, %s178
      %s193 = sphi 0, %s179
      %s197 = sphi 0, %s197
      %s199 = sphi 0, %s197
      %s200 = sphi 0, %s199
      %s214 = sphi 0, %s200
      %s218 = sphi 0, %s218
      %s220 = sphi 0, %s218
      %s221 = sphi 0, %s220
      %s235 = sphi 0, %s221
      %s239 = sphi 0, %s239
      %s241 = sphi 0, %s239
      %s242 = sphi 0, %s241
      %s256 = sphi 0, %s242
      %s260 = sphi 0, %s260
      %s262 = sphi 0, %s260
      %s263 = sphi 0, %s262
      %s277 = sphi 0, %s263
      %s281 = sphi 0, %s281
      %s283 = sphi 0, %s281
      %s284 = sphi 0, %s283
      %s298 = sphi 0, %s284
      %s302 = sphi 0, %s302
      %s304 = sphi 0, %s302
      %s305 = sphi 0, %s304
      %s319 = sphi 0, %s305
      %s323 = sphi 0, %s323
      %s325 = sphi 0, %s323
      %s326 = sphi 0, %s325
      %s340 = sphi 0, %s326
      %s344 = sphi 0, %s344
      %s346 = sphi 0, %s344
      %s347 = sphi 0, %s346
      %s361 = sphi 0, %s347
      %s365 = sphi 0, %s365
      %s367 = sphi 0, %s365
      %s368 = sphi 0, %s367
      %s382 = sphi 0, %s368
      %s386 = sphi 0, %s386
      %s388 = sphi 0, %s386
      %s389 = sphi 0, %s388
      %s403 = sphi 0, %s389
      %s411 = sphi 0, %s413
      %s414 = sphi 0, %s411
      %s415 = sphi 0, %s414
      %s431 = sphi 0, %s415
    $region4: #{tpu_custom_call.1} parent=1 // loop_header_branch
      %37 = sbr.rel (%p35) target = $region8
    $region5: #{tpu_custom_call.1} parent=1 // loop_body
      %s39 = ssub.s32 %s34, 1
      %s40 = ssub.s32 %s34, 2
      %s47 = sadd.s32 1, %s42
      %p48 = scmp.ge.s32.totalorder %s47, 2
      %s49 = scalar_select %p48, 0, %s47
      %s50 = sadd.s32 1, %s41
      %s51 = scalar_select %p48, %s50, %s41
      %p52 = scmp.ge.s32.totalorder %s51, 2
      %s53 = scalar_select %p52, 0, %s51
      %s54 = ssub.s32 %s41, %s53
      %p55 = scmp.eq.s32.totalorder %s54, 0
      %s57 = sadd.s32 %s56, 1
      %s58 = scalar_select %p55, %s56, %s57
      %p61 = pneg %p55
      %p62 = scmp.eq.s32.totalorder %s34, 3
      %p63 = por %p61, %p62
      %p64 = scmp.ne.s32.totalorder %s56, %s59
      %p65 = scmp.eq.s32.totalorder %s34, 0
      %p66 = por %p64, %p65
      %p67 = scmp.ne.s32.totalorder %s56, %s59
      %p68 = scmp.eq.s32.totalorder %s39, 3
      %p69 = por %p67, %p68
      %p70 = scmp.ne.s32.totalorder %s59, %s60
      %p71 = scmp.eq.s32.totalorder %s39, 0
      %p72 = por %p70, %p71
      %p73 = scmp.ne.s32.totalorder %s59, %s60
      %p74 = scmp.eq.s32.totalorder %s40, 3
      %p75 = por %p73, %p74
      %p77 = scmp.ne.s32.totalorder %s60, %s76
      %p78 = scmp.eq.s32.totalorder %s40, 0
      %p79 = por %p77, %p78
      %s80 = ssub.s32 %s41, %s53
      %p81 = scmp.eq.s32.totalorder %s80, 0
      %s83 = sadd.s32 %s82, 1
      %s84 = scalar_select %p81, %s82, %s83
      %p87 = pneg %p81
      %p88 = scmp.eq.s32.totalorder %s34, 3
      %p89 = por %p87, %p88
      %p90 = scmp.ne.s32.totalorder %s82, %s85
      %p91 = scmp.eq.s32.totalorder %s34, 0
      %p92 = por %p90, %p91
      %p93 = scmp.ne.s32.totalorder %s82, %s85
      %p94 = scmp.eq.s32.totalorder %s39, 3
      %p95 = por %p93, %p94
      %p96 = scmp.ne.s32.totalorder %s85, %s86
      %p97 = scmp.eq.s32.totalorder %s39, 0
      %p98 = por %p96, %p97
      %p99 = scmp.ne.s32.totalorder %s85, %s86
      %p100 = scmp.eq.s32.totalorder %s40, 3
      %p101 = por %p99, %p100
      %p103 = scmp.ne.s32.totalorder %s86, %s102
      %p104 = scmp.eq.s32.totalorder %s40, 0
      %p105 = por %p103, %p104
      %s106 = ssub.s32 %s41, %s53
      %s107 = ssub.s32 %s42, %s49
      %s108 = sor.u32 %s106, %s107
      %p109 = scmp.eq.s32.totalorder %s108, 0
      %s111 = sadd.s32 %s110, 1
      %s112 = scalar_select %p109, %s110, %s111
      %p115 = pneg %p109
      %p116 = scmp.eq.s32.totalorder %s34, 3
      %p117 = por %p115, %p116
      %p118 = scmp.ne.s32.totalorder %s110, %s113
      %p119 = scmp.eq.s32.totalorder %s34, 0
      %p120 = por %p118, %p119
      %p121 = scmp.ne.s32.totalorder %s110, %s113
      %p122 = scmp.eq.s32.totalorder %s39, 3
      %p123 = por %p121, %p122
      %p124 = scmp.ne.s32.totalorder %s113, %s114
      %p125 = scmp.eq.s32.totalorder %s39, 0
      %p126 = por %p124, %p125
      %p127 = scmp.ne.s32.totalorder %s113, %s114
      %p128 = scmp.eq.s32.totalorder %s40, 3
      %p129 = por %p127, %p128
      %p131 = scmp.ne.s32.totalorder %s114, %s130
      %p132 = scmp.eq.s32.totalorder %s40, 0
      %p133 = por %p131, %p132
      %s135 = sadd.s32 %s134, 1
      %p138 = scmp.eq.s32.totalorder %s34, 3
      %p139 = scmp.ne.s32.totalorder %s134, %s136
      %p140 = scmp.eq.s32.totalorder %s34, 0
      %p141 = por %p139, %p140
      %p142 = scmp.ne.s32.totalorder %s134, %s136
      %p143 = scmp.eq.s32.totalorder %s39, 3
      %p144 = por %p142, %p143
      %p145 = scmp.ne.s32.totalorder %s136, %s137
      %p146 = scmp.eq.s32.totalorder %s39, 0
      %p147 = por %p145, %p146
      %p148 = scmp.ne.s32.totalorder %s136, %s137
      %p149 = scmp.eq.s32.totalorder %s40, 3
      %p150 = por %p148, %p149
      %p152 = scmp.ne.s32.totalorder %s137, %s151
      %p153 = scmp.eq.s32.totalorder %s40, 0
      %p154 = por %p152, %p153
      %s156 = sadd.s32 %s155, 1
      %p159 = scmp.eq.s32.totalorder %s34, 3
      %p160 = scmp.ne.s32.totalorder %s155, %s157
      %p161 = scmp.eq.s32.totalorder %s34, 0
      %p162 = por %p160, %p161
      %p163 = scmp.ne.s32.totalorder %s155, %s157
      %p164 = scmp.eq.s32.totalorder %s39, 3
      %p165 = por %p163, %p164
      %p166 = scmp.ne.s32.totalorder %s157, %s158
      %p167 = scmp.eq.s32.totalorder %s39, 0
      %p168 = por %p166, %p167
      %p169 = scmp.ne.s32.totalorder %s157, %s158
      %p170 = scmp.eq.s32.totalorder %s40, 3
      %p171 = por %p169, %p170
      %p173 = scmp.ne.s32.totalorder %s158, %s172
      %p174 = scmp.eq.s32.totalorder %s40, 0
      %p175 = por %p173, %p174
      %s177 = sadd.s32 %s176, 1
      %p180 = scmp.eq.s32.totalorder %s34, 3
      %p181 = scmp.ne.s32.totalorder %s176, %s178
      %p182 = scmp.eq.s32.totalorder %s34, 0
      %p183 = por %p181, %p182
      %p184 = scmp.ne.s32.totalorder %s176, %s178
      %p185 = scmp.eq.s32.totalorder %s39, 3
      %p186 = por %p184, %p185
      %p187 = scmp.ne.s32.totalorder %s178, %s179
      %p188 = scmp.eq.s32.totalorder %s39, 0
      %p189 = por %p187, %p188
      %p190 = scmp.ne.s32.totalorder %s178, %s179
      %p191 = scmp.eq.s32.totalorder %s40, 3
      %p192 = por %p190, %p191
      %p194 = scmp.ne.s32.totalorder %s179, %s193
      %p195 = scmp.eq.s32.totalorder %s40, 0
      %p196 = por %p194, %p195
      %s198 = sadd.s32 %s197, 1
      %p201 = scmp.eq.s32.totalorder %s34, 3
      %p202 = scmp.ne.s32.totalorder %s197, %s199
      %p203 = scmp.eq.s32.totalorder %s34, 0
      %p204 = por %p202, %p203
      %p205 = scmp.ne.s32.totalorder %s197, %s199
      %p206 = scmp.eq.s32.totalorder %s39, 3
      %p207 = por %p205, %p206
      %p208 = scmp.ne.s32.totalorder %s199, %s200
      %p209 = scmp.eq.s32.totalorder %s39, 0
      %p210 = por %p208, %p209
      %p211 = scmp.ne.s32.totalorder %s199, %s200
      %p212 = scmp.eq.s32.totalorder %s40, 3
      %p213 = por %p211, %p212
      %p215 = scmp.ne.s32.totalorder %s200, %s214
      %p216 = scmp.eq.s32.totalorder %s40, 0
      %p217 = por %p215, %p216
      %s219 = sadd.s32 %s218, 1
      %p222 = scmp.eq.s32.totalorder %s34, 3
      %p223 = scmp.ne.s32.totalorder %s218, %s220
      %p224 = scmp.eq.s32.totalorder %s34, 0
      %p225 = por %p223, %p224
      %p226 = scmp.ne.s32.totalorder %s218, %s220
      %p227 = scmp.eq.s32.totalorder %s39, 3
      %p228 = por %p226, %p227
      %p229 = scmp.ne.s32.totalorder %s220, %s221
      %p230 = scmp.eq.s32.totalorder %s39, 0
      %p231 = por %p229, %p230
      %p232 = scmp.ne.s32.totalorder %s220, %s221
      %p233 = scmp.eq.s32.totalorder %s40, 3
      %p234 = por %p232, %p233
      %p236 = scmp.ne.s32.totalorder %s221, %s235
      %p237 = scmp.eq.s32.totalorder %s40, 0
      %p238 = por %p236, %p237
      %s240 = sadd.s32 %s239, 1
      %p243 = scmp.eq.s32.totalorder %s34, 3
      %p244 = scmp.ne.s32.totalorder %s239, %s241
      %p245 = scmp.eq.s32.totalorder %s34, 0
      %p246 = por %p244, %p245
      %p247 = scmp.ne.s32.totalorder %s239, %s241
      %p248 = scmp.eq.s32.totalorder %s39, 3
      %p249 = por %p247, %p248
      %p250 = scmp.ne.s32.totalorder %s241, %s242
      %p251 = scmp.eq.s32.totalorder %s39, 0
      %p252 = por %p250, %p251
      %p253 = scmp.ne.s32.totalorder %s241, %s242
      %p254 = scmp.eq.s32.totalorder %s40, 3
      %p255 = por %p253, %p254
      %p257 = scmp.ne.s32.totalorder %s242, %s256
      %p258 = scmp.eq.s32.totalorder %s40, 0
      %p259 = por %p257, %p258
      %s261 = sadd.s32 %s260, 1
      %p264 = scmp.eq.s32.totalorder %s34, 3
      %p265 = scmp.ne.s32.totalorder %s260, %s262
      %p266 = scmp.eq.s32.totalorder %s34, 0
      %p267 = por %p265, %p266
      %p268 = scmp.ne.s32.totalorder %s260, %s262
      %p269 = scmp.eq.s32.totalorder %s39, 3
      %p270 = por %p268, %p269
      %p271 = scmp.ne.s32.totalorder %s262, %s263
      %p272 = scmp.eq.s32.totalorder %s39, 0
      %p273 = por %p271, %p272
      %p274 = scmp.ne.s32.totalorder %s262, %s263
      %p275 = scmp.eq.s32.totalorder %s40, 3
      %p276 = por %p274, %p275
      %p278 = scmp.ne.s32.totalorder %s263, %s277
      %p279 = scmp.eq.s32.totalorder %s40, 0
      %p280 = por %p278, %p279
      %s282 = sadd.s32 %s281, 1
      %p285 = scmp.eq.s32.totalorder %s34, 3
      %p286 = scmp.ne.s32.totalorder %s281, %s283
      %p287 = scmp.eq.s32.totalorder %s34, 0
      %p288 = por %p286, %p287
      %p289 = scmp.ne.s32.totalorder %s281, %s283
      %p290 = scmp.eq.s32.totalorder %s39, 3
      %p291 = por %p289, %p290
      %p292 = scmp.ne.s32.totalorder %s283, %s284
      %p293 = scmp.eq.s32.totalorder %s39, 0
      %p294 = por %p292, %p293
      %p295 = scmp.ne.s32.totalorder %s283, %s284
      %p296 = scmp.eq.s32.totalorder %s40, 3
      %p297 = por %p295, %p296
      %p299 = scmp.ne.s32.totalorder %s284, %s298
      %p300 = scmp.eq.s32.totalorder %s40, 0
      %p301 = por %p299, %p300
      %s303 = sadd.s32 %s302, 1
      %p306 = scmp.eq.s32.totalorder %s34, 3
      %p307 = scmp.ne.s32.totalorder %s302, %s304
      %p308 = scmp.eq.s32.totalorder %s34, 0
      %p309 = por %p307, %p308
      %p310 = scmp.ne.s32.totalorder %s302, %s304
      %p311 = scmp.eq.s32.totalorder %s39, 3
      %p312 = por %p310, %p311
      %p313 = scmp.ne.s32.totalorder %s304, %s305
      %p314 = scmp.eq.s32.totalorder %s39, 0
      %p315 = por %p313, %p314
      %p316 = scmp.ne.s32.totalorder %s304, %s305
      %p317 = scmp.eq.s32.totalorder %s40, 3
      %p318 = por %p316, %p317
      %p320 = scmp.ne.s32.totalorder %s305, %s319
      %p321 = scmp.eq.s32.totalorder %s40, 0
      %p322 = por %p320, %p321
      %s324 = sadd.s32 %s323, 1
      %p327 = scmp.eq.s32.totalorder %s34, 3
      %p328 = scmp.ne.s32.totalorder %s323, %s325
      %p329 = scmp.eq.s32.totalorder %s34, 0
      %p330 = por %p328, %p329
      %p331 = scmp.ne.s32.totalorder %s323, %s325
      %p332 = scmp.eq.s32.totalorder %s39, 3
      %p333 = por %p331, %p332
      %p334 = scmp.ne.s32.totalorder %s325, %s326
      %p335 = scmp.eq.s32.totalorder %s39, 0
      %p336 = por %p334, %p335
      %p337 = scmp.ne.s32.totalorder %s325, %s326
      %p338 = scmp.eq.s32.totalorder %s40, 3
      %p339 = por %p337, %p338
      %p341 = scmp.ne.s32.totalorder %s326, %s340
      %p342 = scmp.eq.s32.totalorder %s40, 0
      %p343 = por %p341, %p342
      %s345 = sadd.s32 %s344, 1
      %p348 = scmp.eq.s32.totalorder %s34, 3
      %p349 = scmp.ne.s32.totalorder %s344, %s346
      %p350 = scmp.eq.s32.totalorder %s34, 0
      %p351 = por %p349, %p350
      %p352 = scmp.ne.s32.totalorder %s344, %s346
      %p353 = scmp.eq.s32.totalorder %s39, 3
      %p354 = por %p352, %p353
      %p355 = scmp.ne.s32.totalorder %s346, %s347
      %p356 = scmp.eq.s32.totalorder %s39, 0
      %p357 = por %p355, %p356
      %p358 = scmp.ne.s32.totalorder %s346, %s347
      %p359 = scmp.eq.s32.totalorder %s40, 3
      %p360 = por %p358, %p359
      %p362 = scmp.ne.s32.totalorder %s347, %s361
      %p363 = scmp.eq.s32.totalorder %s40, 0
      %p364 = por %p362, %p363
      %s366 = sadd.s32 %s365, 1
      %p369 = scmp.eq.s32.totalorder %s34, 3
      %p370 = scmp.ne.s32.totalorder %s365, %s367
      %p371 = scmp.eq.s32.totalorder %s34, 0
      %p372 = por %p370, %p371
      %p373 = scmp.ne.s32.totalorder %s365, %s367
      %p374 = scmp.eq.s32.totalorder %s39, 3
      %p375 = por %p373, %p374
      %p376 = scmp.ne.s32.totalorder %s367, %s368
      %p377 = scmp.eq.s32.totalorder %s39, 0
      %p378 = por %p376, %p377
      %p379 = scmp.ne.s32.totalorder %s367, %s368
      %p380 = scmp.eq.s32.totalorder %s40, 3
      %p381 = por %p379, %p380
      %p383 = scmp.ne.s32.totalorder %s368, %s382
      %p384 = scmp.eq.s32.totalorder %s40, 0
      %p385 = por %p383, %p384
      %s387 = sadd.s32 %s386, 1
      %p390 = scmp.eq.s32.totalorder %s34, 3
      %p391 = scmp.ne.s32.totalorder %s386, %s388
      %p392 = scmp.eq.s32.totalorder %s34, 0
      %p393 = por %p391, %p392
      %p394 = scmp.ne.s32.totalorder %s386, %s388
      %p395 = scmp.eq.s32.totalorder %s39, 3
      %p396 = por %p394, %p395
      %p397 = scmp.ne.s32.totalorder %s388, %s389
      %p398 = scmp.eq.s32.totalorder %s39, 0
      %p399 = por %p397, %p398
      %p400 = scmp.ne.s32.totalorder %s388, %s389
      %p401 = scmp.eq.s32.totalorder %s40, 3
      %p402 = por %p400, %p401
      %p404 = scmp.ne.s32.totalorder %s389, %s403
      %p405 = scmp.eq.s32.totalorder %s40, 0
      %p406 = por %p404, %p405
      %s407 = ssub.s32 %s41, %s53
      %s408 = ssub.s32 %s42, %s49
      %s409 = sor.u32 %s407, %s408
      %p410 = scmp.eq.s32.totalorder %s409, 0
      %s412 = sadd.s32 %s411, 1
      %s413 = scalar_select %p410, %s411, %s412
      %p416 = pneg %p410
      %p417 = scmp.eq.s32.totalorder %s34, 3
      %p418 = por %p416, %p417
      %p419 = scmp.ne.s32.totalorder %s411, %s414
      %p420 = scmp.eq.s32.totalorder %s34, 0
      %p421 = por %p419, %p420
      %p422 = scmp.ne.s32.totalorder %s411, %s414
      %p423 = scmp.eq.s32.totalorder %s39, 3
      %p424 = por %p422, %p423
      %p425 = scmp.ne.s32.totalorder %s414, %s415
      %p426 = scmp.eq.s32.totalorder %s39, 0
      %p427 = por %p425, %p426
      %p428 = scmp.ne.s32.totalorder %s414, %s415
      %p429 = scmp.eq.s32.totalorder %s40, 3
      %p430 = por %p428, %p429
      %p432 = scmp.ne.s32.totalorder %s415, %s431
      %p433 = scmp.eq.s32.totalorder %s40, 0
      %p434 = por %p432, %p433
      %p435 = scmp.le.s32.totalorder 1, %s34
      %p436 = scmp.lt.s32.totalorder %s34, 5
      %p437 = pnand %p435, %p436
      %p438 = pneg %p437
      // Predicated region
      $region9: #{tpu_custom_call.1} parent=5 // pred_check
        _
      $region10: #{tpu_custom_call.1} parent=5 // pred_check_branch
        %440 = sbr.rel (%p437) target = $region12
      $region11: #{tpu_custom_call.1} parent=5 // pred_region
        %s441 = ssub.s32 %s34, 1
        // Predicated region
        $region13: #{tpu_custom_call.1} parent=11 // pred_check
          %p442 = pneg %p147
        $region14: #{tpu_custom_call.1} parent=11 // pred_check_branch
          %444 = sbr.rel (%p442) target = $region16
        $region15: #{tpu_custom_call.1} parent=11 // pred_region
          %s446 = ssub.s32 1024, 1024
          %447 = vsyncadd [#allocation9], %s446
          %s448 = sshll.u32 [#allocation8], 4
          %s449 = int_to_ptr.vmem [resolvable:$true] %s448
          %454 = dma.hbm_to_vmem [thread:$0]  %s3, 1024, %s449, [#allocation9], 64, 64, 4
        $region16: #{tpu_custom_call.1} parent=11 // pred_fallthru
          _
        // Predicated region
        $region17: #{tpu_custom_call.1} parent=11 // pred_check
          %p455 = pneg %p168
        $region18: #{tpu_custom_call.1} parent=11 // pred_check_branch
          %457 = sbr.rel (%p455) target = $region20
        $region19: #{tpu_custom_call.1} parent=11 // pred_region
          %s459 = ssub.s32 1024, 1024
          %460 = vsyncadd [#allocation9], %s459
          %s461 = sshll.u32 [#allocation10], 4
          %s462 = int_to_ptr.vmem [resolvable:$true] %s461
          %467 = dma.hbm_to_vmem [thread:$0]  %s4, 1024, %s462, [#allocation9], 64, 64, 4
        $region20: #{tpu_custom_call.1} parent=11 // pred_fallthru
          _
        // Predicated region
        $region21: #{tpu_custom_call.1} parent=11 // pred_check
          %p468 = pneg %p189
        $region22: #{tpu_custom_call.1} parent=11 // pred_check_branch
          %470 = sbr.rel (%p468) target = $region24
        $region23: #{tpu_custom_call.1} parent=11 // pred_region
          %s472 = ssub.s32 1024, 1024
          %473 = vsyncadd [#allocation12], %s472
          %s474 = sshll.u32 [#allocation11], 4
          %s475 = int_to_ptr.vmem [resolvable:$true] %s474
          %480 = dma.hbm_to_vmem [thread:$0]  %s5, 1024, %s475, [#allocation12], 64, 64, 4
        $region24: #{tpu_custom_call.1} parent=11 // pred_fallthru
          _
        // Predicated region
        $region25: #{tpu_custom_call.1} parent=11 // pred_check
          %p481 = pneg %p210
        $region26: #{tpu_custom_call.1} parent=11 // pred_check_branch
          %483 = sbr.rel (%p481) target = $region28
        $region27: #{tpu_custom_call.1} parent=11 // pred_region
          %s485 = ssub.s32 1024, 1024
          %486 = vsyncadd [#allocation12], %s485
          %s487 = sshll.u32 [#allocation13], 4
          %s488 = int_to_ptr.vmem [resolvable:$true] %s487
          %493 = dma.hbm_to_vmem [thread:$0]  %s6, 1024, %s488, [#allocation12], 64, 64, 4
        $region28: #{tpu_custom_call.1} parent=11 // pred_fallthru
          _
        // Predicated region
        $region29: #{tpu_custom_call.1} parent=11 // pred_check
          %p494 = pneg %p231
        $region30: #{tpu_custom_call.1} parent=11 // pred_check_branch
          %496 = sbr.rel (%p494) target = $region32
        $region31: #{tpu_custom_call.1} parent=11 // pred_region
          _
        $region32: #{tpu_custom_call.1} parent=11 // pred_fallthru
          _
        // Predicated region
        $region33: #{tpu_custom_call.1} parent=11 // pred_check
          %p497 = pneg %p252
        $region34: #{tpu_custom_call.1} parent=11 // pred_check_branch
          %499 = sbr.rel (%p497) target = $region36
        $region35: #{tpu_custom_call.1} parent=11 // pred_region
          _
        $region36: #{tpu_custom_call.1} parent=11 // pred_fallthru
          _
        // Predicated region
        $region37: #{tpu_custom_call.1} parent=11 // pred_check
          %p500 = pneg %p273
        $region38: #{tpu_custom_call.1} parent=11 // pred_check_branch
          %502 = sbr.rel (%p500) target = $region40
        $region39: #{tpu_custom_call.1} parent=11 // pred_region
          _
        $region40: #{tpu_custom_call.1} parent=11 // pred_fallthru
          _
        // Predicated region
        $region41: #{tpu_custom_call.1} parent=11 // pred_check
          %p503 = pneg %p294
        $region42: #{tpu_custom_call.1} parent=11 // pred_check_branch
          %505 = sbr.rel (%p503) target = $region44
        $region43: #{tpu_custom_call.1} parent=11 // pred_region
          %s507 = ssub.s32 4096, 4096
          %508 = vsyncadd [#allocation15], %s507
          %s509 = sshll.u32 [#allocation14], 4
          %s510 = int_to_ptr.vmem [resolvable:$true] %s509
          %515 = dma.hbm_to_vmem [thread:$0]  %s10, 4096, %s510, [#allocation15], 256, 256, 16
        $region44: #{tpu_custom_call.1} parent=11 // pred_fallthru
          _
        // Predicated region
        $region45: #{tpu_custom_call.1} parent=11 // pred_check
          %p516 = pneg %p315
        $region46: #{tpu_custom_call.1} parent=11 // pred_check_branch
          %518 = sbr.rel (%p516) target = $region48
        $region47: #{tpu_custom_call.1} parent=11 // pred_region
          _
        $region48: #{tpu_custom_call.1} parent=11 // pred_fallthru
          _
        // Predicated region
        $region49: #{tpu_custom_call.1} parent=11 // pred_check
          %p519 = pneg %p336
        $region50: #{tpu_custom_call.1} parent=11 // pred_check_branch
          %521 = sbr.rel (%p519) target = $region52
        $region51: #{tpu_custom_call.1} parent=11 // pred_region
          %s523 = ssub.s32 4096, 4096
          %524 = vsyncadd [#allocation15], %s523
          %s525 = sshll.u32 [#allocation16], 4
          %s526 = int_to_ptr.vmem [resolvable:$true] %s525
          %531 = dma.hbm_to_vmem [thread:$0]  %s12, 4096, %s526, [#allocation15], 64, 64, 4
        $region52: #{tpu_custom_call.1} parent=11 // pred_fallthru
          _
        // Predicated region
        $region53: #{tpu_custom_call.1} parent=11 // pred_check
          %p532 = pneg %p357
        $region54: #{tpu_custom_call.1} parent=11 // pred_check_branch
          %534 = sbr.rel (%p532) target = $region56
        $region55: #{tpu_custom_call.1} parent=11 // pred_region
          _
        $region56: #{tpu_custom_call.1} parent=11 // pred_fallthru
          _
        // Predicated region
        $region57: #{tpu_custom_call.1} parent=11 // pred_check
          %p535 = pneg %p378
        $region58: #{tpu_custom_call.1} parent=11 // pred_check_branch
          %537 = sbr.rel (%p535) target = $region60
        $region59: #{tpu_custom_call.1} parent=11 // pred_region
          _
        $region60: #{tpu_custom_call.1} parent=11 // pred_fallthru
          _
        // Predicated region
        $region61: #{tpu_custom_call.1} parent=11 // pred_check
          %p538 = pneg %p399
        $region62: #{tpu_custom_call.1} parent=11 // pred_check_branch
          %540 = sbr.rel (%p538) target = $region64
        $region63: #{tpu_custom_call.1} parent=11 // pred_region
          _
        $region64: #{tpu_custom_call.1} parent=11 // pred_fallthru
          _
      $region12: #{tpu_custom_call.1} parent=5 // pred_fallthru
        _
      %p541 = scmp.lt.s32.totalorder %s34, 4
      // Predicated region
      $region65: #{tpu_custom_call.1} parent=5 // pred_check
        %p542 = pneg %p541
      $region66: #{tpu_custom_call.1} parent=5 // pred_check_branch
        %544 = sbr.rel (%p542) target = $region68
      $region67: #{tpu_custom_call.1} parent=5 // pred_region
        // Predicated region
        $region69: #{tpu_custom_call.1} parent=67 // pred_check
          %p545 = pneg %p66
        $region70: #{tpu_custom_call.1} parent=67 // pred_check_branch
          %547 = sbr.rel (%p545) target = $region72
        $region71: #{tpu_custom_call.1} parent=67 // pred_region
          %s548 = sand.u32 %s56, 1
          %s549 = scalar_lea.sflag [#allocation3], %s548
          %s550 = sand.u32 %s56, 1
          %s551 = smul.addr %s550, 128
          %s552 = scalar_lea.vmem [#allocation2], %s551
          %s554 = ssub.s32 2048, 2048
          %555 = vsyncadd %s549, %s554
          %s556 = smul.addr %s41, 16
          %s557 = smul.addr %s556, 128
          %s558 = scalar_lea.hbm %s0, %s557
          %s559 = sshll.u32 %s552, 4
          %s560 = int_to_ptr.vmem [resolvable:$true] %s559
          %565 = dma.hbm_to_vmem [thread:$0]  %s558, 2048, %s560, %s549, 128, 128, 8
        $region72: #{tpu_custom_call.1} parent=67 // pred_fallthru
          _
        // Predicated region
        $region73: #{tpu_custom_call.1} parent=67 // pred_check
          %p566 = pneg %p92
        $region74: #{tpu_custom_call.1} parent=67 // pred_check_branch
          %568 = sbr.rel (%p566) target = $region76
        $region75: #{tpu_custom_call.1} parent=67 // pred_region
          %s569 = sand.u32 %s34, 1
          %s570 = scalar_lea.sflag [#allocation6], %s569
          %s571 = sand.u32 %s82, 1
          %s572 = smul.addr %s571, 128
          %s573 = scalar_lea.vmem [#allocation5], %s572
          %s575 = ssub.s32 2048, 2048
          %576 = vsyncadd %s570, %s575
          %s577 = smul.addr %s41, 16
          %s578 = smul.addr %s577, 128
          %s579 = scalar_lea.hbm %s1, %s578
          %s580 = sshll.u32 %s573, 4
          %s581 = int_to_ptr.vmem [resolvable:$true] %s580
          %586 = dma.hbm_to_vmem [thread:$0]  %s579, 2048, %s581, %s570, 128, 128, 8
        $region76: #{tpu_custom_call.1} parent=67 // pred_fallthru
          _
        // Predicated region
        $region77: #{tpu_custom_call.1} parent=67 // pred_check
          %p587 = pneg %p120
        $region78: #{tpu_custom_call.1} parent=67 // pred_check_branch
          %589 = sbr.rel (%p587) target = $region80
        $region79: #{tpu_custom_call.1} parent=67 // pred_region
          %s590 = sand.u32 %s34, 1
          %s591 = scalar_lea.sflag [#allocation6], %s590
          %s592 = sand.u32 %s110, 1
          %s593 = smul.addr %s592, 64
          %s594 = scalar_lea.vmem [#allocation7], %s593
          %s595 = smul.u32 8, %s42
          %s597 = ssub.s32 1024, 1024
          %598 = vsyncadd %s591, %s597
          %s599 = smul.addr %s41, 16
          %s600 = sadd.s32 %s595, %s599
          %s601 = smul.addr %s600, 128
          %s602 = scalar_lea.hbm %s2, %s601
          %s603 = sshll.u32 %s594, 4
          %s604 = int_to_ptr.vmem [resolvable:$true] %s603
          %609 = dma.hbm_to_vmem [thread:$0]  %s602, 1024, %s604, %s591, 128, 128, 8
        $region80: #{tpu_custom_call.1} parent=67 // pred_fallthru
          _
      $region68: #{tpu_custom_call.1} parent=5 // pred_fallthru
        _
      %p610 = scmp.le.s32.totalorder 1, %s34
      %p611 = scmp.lt.s32.totalorder %s34, 5
      %p612 = pnand %p610, %p611
      %p613 = pneg %p612
      // Predicated region
      $region81: #{tpu_custom_call.1} parent=5 // pred_check
        _
      $region82: #{tpu_custom_call.1} parent=5 // pred_check_branch
        %615 = sbr.rel (%p612) target = $region84
      $region83: #{tpu_custom_call.1} parent=5 // pred_region
        %s616 = ssub.s32 %s34, 1
        %s617 = sand.u32 %s59, 1
        %s618 = scalar_lea.sflag [#allocation3], %s617
        %s619 = sand.u32 %s59, 1
        %s620 = smul.addr %s619, 128
        %s621 = scalar_lea.vmem [#allocation2], %s620
        // Predicated region
        $region85: #{tpu_custom_call.1} parent=83 // pred_check
          %p622 = pneg %p72
        $region86: #{tpu_custom_call.1} parent=83 // pred_check_branch
          %624 = sbr.rel (%p622) target = $region88
        $region87: #{tpu_custom_call.1} parent=83 // pred_region
          %625 = dma.done %s618, 2048
        $region88: #{tpu_custom_call.1} parent=83 // pred_fallthru
          _
        %s626 = sand.u32 %s39, 1
        %s627 = scalar_lea.sflag [#allocation6], %s626
        %s628 = sand.u32 %s85, 1
        %s629 = smul.addr %s628, 128
        %s630 = scalar_lea.vmem [#allocation5], %s629
        // Predicated region
        $region89: #{tpu_custom_call.1} parent=83 // pred_check
          %p631 = pneg %p98
        $region90: #{tpu_custom_call.1} parent=83 // pred_check_branch
          %633 = sbr.rel (%p631) target = $region92
        $region91: #{tpu_custom_call.1} parent=83 // pred_region
          %634 = dma.done %s627, 2048
        $region92: #{tpu_custom_call.1} parent=83 // pred_fallthru
          _
        %s635 = sand.u32 %s39, 1
        %s636 = scalar_lea.sflag [#allocation6], %s635
        %s637 = sand.u32 %s113, 1
        %s638 = smul.addr %s637, 64
        %s639 = scalar_lea.vmem [#allocation7], %s638
        // Predicated region
        $region93: #{tpu_custom_call.1} parent=83 // pred_check
          %p640 = pneg %p126
        $region94: #{tpu_custom_call.1} parent=83 // pred_check_branch
          %642 = sbr.rel (%p640) target = $region96
        $region95: #{tpu_custom_call.1} parent=83 // pred_region
          %643 = dma.done %s636, 1024
        $region96: #{tpu_custom_call.1} parent=83 // pred_fallthru
          _
        // Predicated region
        $region97: #{tpu_custom_call.1} parent=83 // pred_check
          %p644 = pneg %p147
        $region98: #{tpu_custom_call.1} parent=83 // pred_check_branch
          %646 = sbr.rel (%p644) target = $region100
        $region99: #{tpu_custom_call.1} parent=83 // pred_region
          %647 = dma.done [#allocation9], 1024
        $region100: #{tpu_custom_call.1} parent=83 // pred_fallthru
          _
        // Predicated region
        $region101: #{tpu_custom_call.1} parent=83 // pred_check
          %p648 = pneg %p168
        $region102: #{tpu_custom_call.1} parent=83 // pred_check_branch
          %650 = sbr.rel (%p648) target = $region104
        $region103: #{tpu_custom_call.1} parent=83 // pred_region
          %651 = dma.done [#allocation9], 1024
        $region104: #{tpu_custom_call.1} parent=83 // pred_fallthru
          _
        // Predicated region
        $region105: #{tpu_custom_call.1} parent=83 // pred_check
          %p652 = pneg %p189
        $region106: #{tpu_custom_call.1} parent=83 // pred_check_branch
          %654 = sbr.rel (%p652) target = $region108
        $region107: #{tpu_custom_call.1} parent=83 // pred_region
          %655 = dma.done [#allocation12], 1024
        $region108: #{tpu_custom_call.1} parent=83 // pred_fallthru
          _
        // Predicated region
        $region109: #{tpu_custom_call.1} parent=83 // pred_check
          %p656 = pneg %p210
        $region110: #{tpu_custom_call.1} parent=83 // pred_check_branch
          %658 = sbr.rel (%p656) target = $region112
        $region111: #{tpu_custom_call.1} parent=83 // pred_region
          %659 = dma.done [#allocation12], 1024
        $region112: #{tpu_custom_call.1} parent=83 // pred_fallthru
          _
        // Predicated region
        $region113: #{tpu_custom_call.1} parent=83 // pred_check
          %p660 = pneg %p294
        $region114: #{tpu_custom_call.1} parent=83 // pred_check_branch
          %662 = sbr.rel (%p660) target = $region116
        $region115: #{tpu_custom_call.1} parent=83 // pred_region
          %663 = dma.done [#allocation15], 4096
        $region116: #{tpu_custom_call.1} parent=83 // pred_fallthru
          _
        // Predicated region
        $region117: #{tpu_custom_call.1} parent=83 // pred_check
          %p664 = pneg %p336
        $region118: #{tpu_custom_call.1} parent=83 // pred_check_branch
          %666 = sbr.rel (%p664) target = $region120
        $region119: #{tpu_custom_call.1} parent=83 // pred_region
          %667 = dma.done [#allocation15], 4096
        $region120: #{tpu_custom_call.1} parent=83 // pred_fallthru
          _
        %s668 = sand.u32 %s59, 1
        %s669 = scalar_lea.sflag [#allocation3], %s668
        %s670 = sand.u32 %s59, 1
        %s671 = smul.addr %s670, 128
        %s672 = scalar_lea.vmem [#allocation2], %s671
        %p673 = pneg %p72
        %p674 = pneg %p69
        %s675 = sand.u32 %s39, 1
        %s676 = scalar_lea.sflag [#allocation6], %s675
        %s677 = sand.u32 %s85, 1
        %s678 = smul.addr %s677, 128
        %s679 = scalar_lea.vmem [#allocation5], %s678
        %p680 = pneg %p98
        %p681 = pneg %p95
        %s682 = sand.u32 %s39, 1
        %s683 = scalar_lea.sflag [#allocation6], %s682
        %s684 = sand.u32 %s113, 1
        %s685 = smul.addr %s684, 64
        %s686 = scalar_lea.vmem [#allocation7], %s685
        %p687 = pneg %p126
        %p688 = pneg %p123
        %p689 = pneg %p147
        %p690 = pneg %p144
        %p691 = pneg %p168
        %p692 = pneg %p165
        %p693 = pneg %p189
        %p694 = pneg %p186
        %p695 = pneg %p210
        %p696 = pneg %p207
        %p697 = pneg %p231
        %p698 = pneg %p228
        %p699 = pneg %p252
        %p700 = pneg %p249
        %p701 = pneg %p273
        %p702 = pneg %p270
        %p703 = pneg %p294
        %p704 = pneg %p291
        %p705 = pneg %p315
        %p706 = pneg %p312
        %p707 = pneg %p336
        %p708 = pneg %p333
        %p709 = pneg %p357
        %p710 = pneg %p354
        %p711 = pneg %p378
        %p712 = pneg %p375
        %p713 = pneg %p399
        %p714 = pneg %p396
        %p715 = pneg %p427
        %p716 = pneg %p424
        %s717 = sand.u32 %s414, 1
        %s718 = scalar_lea.sflag [#allocation4], %s717
        %s719 = sand.u32 %s414, 1
        %s720 = smul.addr %s719, 64
        %s721 = scalar_lea.vmem [#allocation17], %s720
        %s722 = smul.u32 8, %s44
        %s723 = smul.u32 8, %s44
        %v725 = vld [vmem:[%s621] sm:$0xff]
        %v726 = vld [vmem:[%s621 + $0x8] sm:$0xff]
        %v727 = vld [vmem:[%s621 + $0x10] sm:$0xff]
        %v728 = vld [vmem:[%s621 + $0x18] sm:$0xff]
        %v729 = vld [vmem:[%s621 + $0x20] sm:$0xff]
        %v730 = vld [vmem:[%s621 + $0x28] sm:$0xff]
        %v731 = vld [vmem:[%s621 + $0x30] sm:$0xff]
        %v732 = vld [vmem:[%s621 + $0x38] sm:$0xff]
        %v733 = vld [vmem:[%s621 + $0x40] sm:$0xff]
        %v734 = vld [vmem:[%s621 + $0x48] sm:$0xff]
        %v735 = vld [vmem:[%s621 + $0x50] sm:$0xff]
        %v736 = vld [vmem:[%s621 + $0x58] sm:$0xff]
        %v737 = vld [vmem:[%s621 + $0x60] sm:$0xff]
        %v738 = vld [vmem:[%s621 + $0x68] sm:$0xff]
        %v739 = vld [vmem:[%s621 + $0x70] sm:$0xff]
        %v740 = vld [vmem:[%s621 + $0x78] sm:$0xff]
        %v741 = vld [vmem:[%s630] sm:$0xff]
        %v742 = vld [vmem:[%s630 + $0x8] sm:$0xff]
        %v743 = vld [vmem:[%s630 + $0x10] sm:$0xff]
        %v744 = vld [vmem:[%s630 + $0x18] sm:$0xff]
        %v745 = vld [vmem:[%s630 + $0x20] sm:$0xff]
        %v746 = vld [vmem:[%s630 + $0x28] sm:$0xff]
        %v747 = vld [vmem:[%s630 + $0x30] sm:$0xff]
        %v748 = vld [vmem:[%s630 + $0x38] sm:$0xff]
        %v749 = vld [vmem:[%s630 + $0x40] sm:$0xff]
        %v750 = vld [vmem:[%s630 + $0x48] sm:$0xff]
        %v751 = vld [vmem:[%s630 + $0x50] sm:$0xff]
        %v752 = vld [vmem:[%s630 + $0x58] sm:$0xff]
        %v753 = vld [vmem:[%s630 + $0x60] sm:$0xff]
        %v754 = vld [vmem:[%s630 + $0x68] sm:$0xff]
        %v755 = vld [vmem:[%s630 + $0x70] sm:$0xff]
        %v756 = vld [vmem:[%s630 + $0x78] sm:$0xff]
        %v757 = vld [vmem:[%s639] sm:$0xff]
        %v758 = vld [vmem:[%s639 + $0x8] sm:$0xff]
        %v759 = vld [vmem:[%s639 + $0x10] sm:$0xff]
        %v760 = vld [vmem:[%s639 + $0x18] sm:$0xff]
        %v761 = vld [vmem:[%s639 + $0x20] sm:$0xff]
        %v762 = vld [vmem:[%s639 + $0x28] sm:$0xff]
        %v763 = vld [vmem:[%s639 + $0x30] sm:$0xff]
        %v764 = vld [vmem:[%s639 + $0x38] sm:$0xff]
        %v765 = vpack.c.bf16 %v758, %v757
        %v766 = vpack.c.bf16 %v760, %v759
        %v767 = vpack.c.bf16 %v762, %v761
        %v768 = vpack.c.bf16 %v764, %v763
        %v769 = vld [vmem:[#allocation8] sm:$0xf]
        %v770 = vld [vmem:[#allocation8 + $0x4] sm:$0xf]
        %v771 = vld [vmem:[#allocation8 + $0x8] sm:$0xf]
        %v772 = vld [vmem:[#allocation8 + $0xc] sm:$0xf]
        %v773 = vld [vmem:[#allocation8 + $0x10] sm:$0xf]
        %v774 = vld [vmem:[#allocation8 + $0x14] sm:$0xf]
        %v775 = vld [vmem:[#allocation8 + $0x18] sm:$0xf]
        %v776 = vld [vmem:[#allocation8 + $0x1c] sm:$0xf]
        %v777 = vld [vmem:[#allocation8 + $0x20] sm:$0xf]
        %v778 = vld [vmem:[#allocation8 + $0x24] sm:$0xf]
        %v779 = vld [vmem:[#allocation8 + $0x28] sm:$0xf]
        %v780 = vld [vmem:[#allocation8 + $0x2c] sm:$0xf]
        %v781 = vld [vmem:[#allocation8 + $0x30] sm:$0xf]
        %v782 = vld [vmem:[#allocation8 + $0x34] sm:$0xf]
        %v783 = vld [vmem:[#allocation8 + $0x38] sm:$0xf]
        %v784 = vld [vmem:[#allocation8 + $0x3c] sm:$0xf]
        %v801 = vunpack.c.l.b16 %v769
        %v802 = vunpack.c.l.b16 %v770
        %v803 = vunpack.c.l.b16 %v771
        %v804 = vunpack.c.l.b16 %v772
        %v805 = vunpack.c.l.b16 %v773
        %v806 = vunpack.c.l.b16 %v774
        %v807 = vunpack.c.l.b16 %v775
        %v808 = vunpack.c.l.b16 %v776
        %v809 = vunpack.c.l.b16 %v777
        %v810 = vunpack.c.l.b16 %v778
        %v811 = vunpack.c.l.b16 %v779
        %v812 = vunpack.c.l.b16 %v780
        %v813 = vunpack.c.l.b16 %v781
        %v814 = vunpack.c.l.b16 %v782
        %v815 = vunpack.c.l.b16 %v783
        %v816 = vunpack.c.l.b16 %v784
        %v817 = vpack.c.b16 %v802, %v801
        %v818 = vpack.c.b16 %v804, %v803
        %v819 = vpack.c.b16 %v806, %v805
        %v820 = vpack.c.b16 %v808, %v807
        %v821 = vpack.c.b16 %v810, %v809
        %v822 = vpack.c.b16 %v812, %v811
        %v823 = vpack.c.b16 %v814, %v813
        %v824 = vpack.c.b16 %v816, %v815
        %833 = vmatprep.subr.bf16.mxu0 0
        %834 = vmatpush1.bf16.msra.mxu0 %v817
        %835 = vmatprep.subr.bf16.mxu0 0
        %836 = vmatpush1.bf16.msra.mxu0 %v818
        %837 = vmatprep.subr.bf16.mxu0 0
        %838 = vmatpush1.bf16.msra.mxu0 %v819
        %839 = vmatprep.subr.bf16.mxu0 0
        %840 = vmatpush1.bf16.msra.mxu0 %v820
        %841 = vmatprep.subr.bf16.mxu0 0
        %842 = vmatpush1.bf16.msra.mxu0 %v821
        %843 = vmatprep.subr.bf16.mxu0 0
        %844 = vmatpush1.bf16.msra.mxu0 %v822
        %845 = vmatprep.subr.bf16.mxu0 0
        %846 = vmatpush1.bf16.msra.mxu0 %v823
        %847 = vmatprep.subr.bf16.mxu0 0
        %848 = vmatpush1.bf16.msra.mxu0 %v824
        %849 = vmatprep.subr.bf16.mxu0 0
        %850 = vmatpush1.bf16.msra.mxu0 0
        %851 = vmatprep.subr.bf16.mxu0 0
        %852 = vmatpush1.bf16.msra.mxu0 0
        %853 = vmatprep.subr.bf16.mxu0 0
        %854 = vmatpush1.bf16.msra.mxu0 0
        %855 = vmatprep.subr.bf16.mxu0 0
        %856 = vmatpush1.bf16.msra.mxu0 0
        %857 = vmatprep.subr.bf16.mxu0 0
        %858 = vmatpush1.bf16.msra.mxu0 0
        %859 = vmatprep.subr.bf16.mxu0 0
        %860 = vmatpush1.bf16.msra.mxu0 0
        %861 = vmatprep.subr.bf16.mxu0 0
        %862 = vmatpush1.bf16.msra.mxu0 0
        %863 = vmatprep.subr.bf16.mxu0 0
        %864 = vmatpush1.bf16.msra.mxu0 0
        %865 = vmatprep.mubr.bf16.mxu0 0
        %866 = vmatmul.mubr.bf16.gmra.mrb[0].mxu0 %v765
        %v867 = vpop.f32.mrb[0].mxu0
        %v868 = vadd.f32 0.0, %v867
        %v869 = vpop.f32.mrb[0].mxu0
        %v870 = vpop.f32.mrb[0].mxu0
        %v871 = vadd.f32 0.0, %v870
        %v872 = vpop.f32.mrb[0].mxu0
        %873 = vmatprep.mubr.bf16.mxu0 0
        %874 = vmatmul.mubr.bf16.gmra.mrb[0].mxu0 %v766
        %v875 = vpop.f32.mrb[0].mxu0
        %v876 = vadd.f32 0.0, %v875
        %v877 = vpop.f32.mrb[0].mxu0
        %v878 = vpop.f32.mrb[0].mxu0
        %v879 = vadd.f32 0.0, %v878
        %v880 = vpop.f32.mrb[0].mxu0
        %881 = vmatprep.mubr.bf16.mxu0 0
        %882 = vmatmul.mubr.bf16.gmra.mrb[0].mxu0 %v767
        %v883 = vpop.f32.mrb[0].mxu0
        %v884 = vadd.f32 0.0, %v883
        %v885 = vpop.f32.mrb[0].mxu0
        %v886 = vpop.f32.mrb[0].mxu0
        %v887 = vadd.f32 0.0, %v886
        %v888 = vpop.f32.mrb[0].mxu0
        %889 = vmatprep.mubr.bf16.mxu0 0
        %890 = vmatmul.mubr.bf16.gmra.mrb[0].mxu0 %v768
        %v891 = vpop.f32.mrb[0].mxu0
        %v892 = vadd.f32 0.0, %v891
        %v893 = vpop.f32.mrb[0].mxu0
        %v894 = vpop.f32.mrb[0].mxu0
        %v895 = vadd.f32 0.0, %v894
        %v896 = vpop.f32.mrb[0].mxu0
        %897 = vdwg.mxu0
        %v898 = vpack.c.bf16 %v742, %v741
        %v899 = vpack.c.bf16 %v744, %v743
        %v900 = vpack.c.bf16 %v746, %v745
        %v901 = vpack.c.bf16 %v748, %v747
        %v902 = vpack.c.bf16 %v750, %v749
        %v903 = vpack.c.bf16 %v752, %v751
        %v904 = vpack.c.bf16 %v754, %v753
        %v905 = vpack.c.bf16 %v756, %v755
        %v906 = vld [vmem:[#allocation10] sm:$0xf]
        %v907 = vld [vmem:[#allocation10 + $0x4] sm:$0xf]
        %v908 = vld [vmem:[#allocation10 + $0x8] sm:$0xf]
        %v909 = vld [vmem:[#allocation10 + $0xc] sm:$0xf]
        %v910 = vld [vmem:[#allocation10 + $0x10] sm:$0xf]
        %v911 = vld [vmem:[#allocation10 + $0x14] sm:$0xf]
        %v912 = vld [vmem:[#allocation10 + $0x18] sm:$0xf]
        %v913 = vld [vmem:[#allocation10 + $0x1c] sm:$0xf]
        %v914 = vld [vmem:[#allocation10 + $0x20] sm:$0xf]
        %v915 = vld [vmem:[#allocation10 + $0x24] sm:$0xf]
        %v916 = vld [vmem:[#allocation10 + $0x28] sm:$0xf]
        %v917 = vld [vmem:[#allocation10 + $0x2c] sm:$0xf]
        %v918 = vld [vmem:[#allocation10 + $0x30] sm:$0xf]
        %v919 = vld [vmem:[#allocation10 + $0x34] sm:$0xf]
        %v920 = vld [vmem:[#allocation10 + $0x38] sm:$0xf]
        %v921 = vld [vmem:[#allocation10 + $0x3c] sm:$0xf]
        %v938 = vunpack.c.l.b16 %v906
        %v939 = vunpack.c.l.b16 %v907
        %v940 = vunpack.c.l.b16 %v908
        %v941 = vunpack.c.l.b16 %v909
        %v942 = vunpack.c.l.b16 %v910
        %v943 = vunpack.c.l.b16 %v911
        %v944 = vunpack.c.l.b16 %v912
        %v945 = vunpack.c.l.b16 %v913
        %v946 = vunpack.c.l.b16 %v914
        %v947 = vunpack.c.l.b16 %v915
        %v948 = vunpack.c.l.b16 %v916
        %v949 = vunpack.c.l.b16 %v917
        %v950 = vunpack.c.l.b16 %v918
        %v951 = vunpack.c.l.b16 %v919
        %v952 = vunpack.c.l.b16 %v920
        %v953 = vunpack.c.l.b16 %v921
        %v954 = vpack.c.b16 %v939, %v938
        %v955 = vpack.c.b16 %v941, %v940
        %v956 = vpack.c.b16 %v943, %v942
        %v957 = vpack.c.b16 %v945, %v944
        %v958 = vpack.c.b16 %v947, %v946
        %v959 = vpack.c.b16 %v949, %v948
        %v960 = vpack.c.b16 %v951, %v950
        %v961 = vpack.c.b16 %v953, %v952
        %970 = vmatprep.subr.bf16.mxu0 0
        %971 = vmatpush1.bf16.msra.mxu0 %v954
        %972 = vmatprep.subr.bf16.mxu0 0
        %973 = vmatpush1.bf16.msra.mxu0 %v955
        %974 = vmatprep.subr.bf16.mxu0 0
        %975 = vmatpush1.bf16.msra.mxu0 %v956
        %976 = vmatprep.subr.bf16.mxu0 0
        %977 = vmatpush1.bf16.msra.mxu0 %v957
        %978 = vmatprep.subr.bf16.mxu0 0
        %979 = vmatpush1.bf16.msra.mxu0 %v958
        %980 = vmatprep.subr.bf16.mxu0 0
        %981 = vmatpush1.bf16.msra.mxu0 %v959
        %982 = vmatprep.subr.bf16.mxu0 0
        %983 = vmatpush1.bf16.msra.mxu0 %v960
        %984 = vmatprep.subr.bf16.mxu0 0
        %985 = vmatpush1.bf16.msra.mxu0 %v961
        %986 = vmatprep.subr.bf16.mxu0 0
        %987 = vmatpush1.bf16.msra.mxu0 0
        %988 = vmatprep.subr.bf16.mxu0 0
        %989 = vmatpush1.bf16.msra.mxu0 0
        %990 = vmatprep.subr.bf16.mxu0 0
        %991 = vmatpush1.bf16.msra.mxu0 0
        %992 = vmatprep.subr.bf16.mxu0 0
        %993 = vmatpush1.bf16.msra.mxu0 0
        %994 = vmatprep.subr.bf16.mxu0 0
        %995 = vmatpush1.bf16.msra.mxu0 0
        %996 = vmatprep.subr.bf16.mxu0 0
        %997 = vmatpush1.bf16.msra.mxu0 0
        %998 = vmatprep.subr.bf16.mxu0 0
        %999 = vmatpush1.bf16.msra.mxu0 0
        %1000 = vmatprep.subr.bf16.mxu0 0
        %1001 = vmatpush1.bf16.msra.mxu0 0
        %1002 = vmatprep.mubr.bf16.mxu0 0
        %1003 = vmatmul.mubr.bf16.gmra.mrb[0].mxu0 %v898
        %v1004 = vpop.f32.mrb[0].mxu0
        %v1005 = vadd.f32 0.0, %v1004
        %v1006 = vpop.f32.mrb[0].mxu0
        %v1007 = vpop.f32.mrb[0].mxu0
        %v1008 = vadd.f32 0.0, %v1007
        %v1009 = vpop.f32.mrb[0].mxu0
        %1010 = vmatprep.mubr.bf16.mxu0 0
        %1011 = vmatmul.mubr.bf16.gmra.mrb[0].mxu0 %v899
        %v1012 = vpop.f32.mrb[0].mxu0
        %v1013 = vadd.f32 0.0, %v1012
        %v1014 = vpop.f32.mrb[0].mxu0
        %v1015 = vpop.f32.mrb[0].mxu0
        %v1016 = vadd.f32 0.0, %v1015
        %v1017 = vpop.f32.mrb[0].mxu0
        %1018 = vmatprep.mubr.bf16.mxu0 0
        %1019 = vmatmul.mubr.bf16.gmra.mrb[0].mxu0 %v900
        %v1020 = vpop.f32.mrb[0].mxu0
        %v1021 = vadd.f32 0.0, %v1020
        %v1022 = vpop.f32.mrb[0].mxu0
        %v1023 = vpop.f32.mrb[0].mxu0
        %v1024 = vadd.f32 0.0, %v1023
        %v1025 = vpop.f32.mrb[0].mxu0
        %1026 = vmatprep.mubr.bf16.mxu0 0
        %1027 = vmatmul.mubr.bf16.gmra.mrb[0].mxu0 %v901
        %v1028 = vpop.f32.mrb[0].mxu0
        %v1029 = vadd.f32 0.0, %v1028
        %v1030 = vpop.f32.mrb[0].mxu0
        %v1031 = vpop.f32.mrb[0].mxu0
        %v1032 = vadd.f32 0.0, %v1031
        %v1033 = vpop.f32.mrb[0].mxu0
        %1034 = vmatprep.mubr.bf16.mxu0 0
        %1035 = vmatmul.mubr.bf16.gmra.mrb[0].mxu0 %v902
        %v1036 = vpop.f32.mrb[0].mxu0
        %v1037 = vadd.f32 0.0, %v1036
        %v1038 = vpop.f32.mrb[0].mxu0
        %v1039 = vpop.f32.mrb[0].mxu0
        %v1040 = vadd.f32 0.0, %v1039
        %v1041 = vpop.f32.mrb[0].mxu0
        %1042 = vmatprep.mubr.bf16.mxu0 0
        %1043 = vmatmul.mubr.bf16.gmra.mrb[0].mxu0 %v903
        %v1044 = vpop.f32.mrb[0].mxu0
        %v1045 = vadd.f32 0.0, %v1044
        %v1046 = vpop.f32.mrb[0].mxu0
        %v1047 = vpop.f32.mrb[0].mxu0
        %v1048 = vadd.f32 0.0, %v1047
        %v1049 = vpop.f32.mrb[0].mxu0
        %1050 = vmatprep.mubr.bf16.mxu0 0
        %1051 = vmatmul.mubr.bf16.gmra.mrb[0].mxu0 %v904
        %v1052 = vpop.f32.mrb[0].mxu0
        %v1053 = vadd.f32 0.0, %v1052
        %v1054 = vpop.f32.mrb[0].mxu0
        %v1055 = vpop.f32.mrb[0].mxu0
        %v1056 = vadd.f32 0.0, %v1055
        %v1057 = vpop.f32.mrb[0].mxu0
        %1058 = vmatprep.mubr.bf16.mxu0 0
        %1059 = vmatmul.mubr.bf16.gmra.mrb[0].mxu0 %v905
        %v1060 = vpop.f32.mrb[0].mxu0
        %v1061 = vadd.f32 0.0, %v1060
        %v1062 = vpop.f32.mrb[0].mxu0
        %v1063 = vpop.f32.mrb[0].mxu0
        %v1064 = vadd.f32 0.0, %v1063
        %v1065 = vpop.f32.mrb[0].mxu0
        %1066 = vdwg.mxu0
        %v1067 = vpack.c.bf16 %v726, %v725
        %v1068 = vpack.c.bf16 %v728, %v727
        %v1069 = vpack.c.bf16 %v730, %v729
        %v1070 = vpack.c.bf16 %v732, %v731
        %v1071 = vpack.c.bf16 %v734, %v733
        %v1072 = vpack.c.bf16 %v736, %v735
        %v1073 = vpack.c.bf16 %v738, %v737
        %v1074 = vpack.c.bf16 %v740, %v739
        %v1075 = vld [vmem:[#allocation11] sm:$0xf]
        %v1076 = vld [vmem:[#allocation11 + $0x4] sm:$0xf]
        %v1077 = vld [vmem:[#allocation11 + $0x8] sm:$0xf]
        %v1078 = vld [vmem:[#allocation11 + $0xc] sm:$0xf]
        %v1079 = vld [vmem:[#allocation11 + $0x10] sm:$0xf]
        %v1080 = vld [vmem:[#allocation11 + $0x14] sm:$0xf]
        %v1081 = vld [vmem:[#allocation11 + $0x18] sm:$0xf]
        %v1082 = vld [vmem:[#allocation11 + $0x1c] sm:$0xf]
        %v1083 = vld [vmem:[#allocation11 + $0x20] sm:$0xf]
        %v1084 = vld [vmem:[#allocation11 + $0x24] sm:$0xf]
        %v1085 = vld [vmem:[#allocation11 + $0x28] sm:$0xf]
        %v1086 = vld [vmem:[#allocation11 + $0x2c] sm:$0xf]
        %v1087 = vld [vmem:[#allocation11 + $0x30] sm:$0xf]
        %v1088 = vld [vmem:[#allocation11 + $0x34] sm:$0xf]
        %v1089 = vld [vmem:[#allocation11 + $0x38] sm:$0xf]
        %v1090 = vld [vmem:[#allocation11 + $0x3c] sm:$0xf]
        %v1107 = vunpack.c.l.b16 %v1075
        %v1108 = vunpack.c.l.b16 %v1076
        %v1109 = vunpack.c.l.b16 %v1077
        %v1110 = vunpack.c.l.b16 %v1078
        %v1111 = vunpack.c.l.b16 %v1079
        %v1112 = vunpack.c.l.b16 %v1080
        %v1113 = vunpack.c.l.b16 %v1081
        %v1114 = vunpack.c.l.b16 %v1082
        %v1115 = vunpack.c.l.b16 %v1083
        %v1116 = vunpack.c.l.b16 %v1084
        %v1117 = vunpack.c.l.b16 %v1085
        %v1118 = vunpack.c.l.b16 %v1086
        %v1119 = vunpack.c.l.b16 %v1087
        %v1120 = vunpack.c.l.b16 %v1088
        %v1121 = vunpack.c.l.b16 %v1089
        %v1122 = vunpack.c.l.b16 %v1090
        %v1123 = vpack.c.b16 %v1108, %v1107
        %v1124 = vpack.c.b16 %v1110, %v1109
        %v1125 = vpack.c.b16 %v1112, %v1111
        %v1126 = vpack.c.b16 %v1114, %v1113
        %v1127 = vpack.c.b16 %v1116, %v1115
        %v1128 = vpack.c.b16 %v1118, %v1117
        %v1129 = vpack.c.b16 %v1120, %v1119
        %v1130 = vpack.c.b16 %v1122, %v1121
        %1139 = vmatprep.subr.bf16.mxu0 0
        %1140 = vmatpush1.bf16.msra.mxu0 %v1123
        %1141 = vmatprep.subr.bf16.mxu0 0
        %1142 = vmatpush1.bf16.msra.mxu0 %v1124
        %1143 = vmatprep.subr.bf16.mxu0 0
        %1144 = vmatpush1.bf16.msra.mxu0 %v1125
        %1145 = vmatprep.subr.bf16.mxu0 0
        %1146 = vmatpush1.bf16.msra.mxu0 %v1126
        %1147 = vmatprep.subr.bf16.mxu0 0
        %1148 = vmatpush1.bf16.msra.mxu0 %v1127
        %1149 = vmatprep.subr.bf16.mxu0 0
        %1150 = vmatpush1.bf16.msra.mxu0 %v1128
        %1151 = vmatprep.subr.bf16.mxu0 0
        %1152 = vmatpush1.bf16.msra.mxu0 %v1129
        %1153 = vmatprep.subr.bf16.mxu0 0
        %1154 = vmatpush1.bf16.msra.mxu0 %v1130
        %1155 = vmatprep.subr.bf16.mxu0 0
        %1156 = vmatpush1.bf16.msra.mxu0 0
        %1157 = vmatprep.subr.bf16.mxu0 0
        %1158 = vmatpush1.bf16.msra.mxu0 0
        %1159 = vmatprep.subr.bf16.mxu0 0
        %1160 = vmatpush1.bf16.msra.mxu0 0
        %1161 = vmatprep.subr.bf16.mxu0 0
        %1162 = vmatpush1.bf16.msra.mxu0 0
        %1163 = vmatprep.subr.bf16.mxu0 0
        %1164 = vmatpush1.bf16.msra.mxu0 0
        %1165 = vmatprep.subr.bf16.mxu0 0
        %1166 = vmatpush1.bf16.msra.mxu0 0
        %1167 = vmatprep.subr.bf16.mxu0 0
        %1168 = vmatpush1.bf16.msra.mxu0 0
        %1169 = vmatprep.subr.bf16.mxu0 0
        %1170 = vmatpush1.bf16.msra.mxu0 0
        %1171 = vmatprep.mubr.bf16.mxu0 0
        %1172 = vmatmul.mubr.bf16.gmra.mrb[0].mxu0 %v1067
        %v1173 = vpop.f32.mrb[0].mxu0
        %v1174 = vadd.f32 0.0, %v1173
        %v1175 = vpop.f32.mrb[0].mxu0
        %v1176 = vpop.f32.mrb[0].mxu0
        %v1177 = vadd.f32 0.0, %v1176
        %v1178 = vpop.f32.mrb[0].mxu0
        %1179 = vmatprep.mubr.bf16.mxu0 0
        %1180 = vmatmul.mubr.bf16.gmra.mrb[0].mxu0 %v1068
        %v1181 = vpop.f32.mrb[0].mxu0
        %v1182 = vadd.f32 0.0, %v1181
        %v1183 = vpop.f32.mrb[0].mxu0
        %v1184 = vpop.f32.mrb[0].mxu0
        %v1185 = vadd.f32 0.0, %v1184
        %v1186 = vpop.f32.mrb[0].mxu0
        %1187 = vmatprep.mubr.bf16.mxu0 0
        %1188 = vmatmul.mubr.bf16.gmra.mrb[0].mxu0 %v1069
        %v1189 = vpop.f32.mrb[0].mxu0
        %v1190 = vadd.f32 0.0, %v1189
        %v1191 = vpop.f32.mrb[0].mxu0
        %v1192 = vpop.f32.mrb[0].mxu0
        %v1193 = vadd.f32 0.0, %v1192
        %v1194 = vpop.f32.mrb[0].mxu0
        %1195 = vmatprep.mubr.bf16.mxu0 0
        %1196 = vmatmul.mubr.bf16.gmra.mrb[0].mxu0 %v1070
        %v1197 = vpop.f32.mrb[0].mxu0
        %v1198 = vadd.f32 0.0, %v1197
        %v1199 = vpop.f32.mrb[0].mxu0
        %v1200 = vpop.f32.mrb[0].mxu0
        %v1201 = vadd.f32 0.0, %v1200
        %v1202 = vpop.f32.mrb[0].mxu0
        %1203 = vmatprep.mubr.bf16.mxu0 0
        %1204 = vmatmul.mubr.bf16.gmra.mrb[0].mxu0 %v1071
        %v1205 = vpop.f32.mrb[0].mxu0
        %v1206 = vadd.f32 0.0, %v1205
        %v1207 = vpop.f32.mrb[0].mxu0
        %v1208 = vpop.f32.mrb[0].mxu0
        %v1209 = vadd.f32 0.0, %v1208
        %v1210 = vpop.f32.mrb[0].mxu0
        %1211 = vmatprep.mubr.bf16.mxu0 0
        %1212 = vmatmul.mubr.bf16.gmra.mrb[0].mxu0 %v1072
        %v1213 = vpop.f32.mrb[0].mxu0
        %v1214 = vadd.f32 0.0, %v1213
        %v1215 = vpop.f32.mrb[0].mxu0
        %v1216 = vpop.f32.mrb[0].mxu0
        %v1217 = vadd.f32 0.0, %v1216
        %v1218 = vpop.f32.mrb[0].mxu0
        %1219 = vmatprep.mubr.bf16.mxu0 0
        %1220 = vmatmul.mubr.bf16.gmra.mrb[0].mxu0 %v1073
        %v1221 = vpop.f32.mrb[0].mxu0
        %v1222 = vadd.f32 0.0, %v1221
        %v1223 = vpop.f32.mrb[0].mxu0
        %v1224 = vpop.f32.mrb[0].mxu0
        %v1225 = vadd.f32 0.0, %v1224
        %v1226 = vpop.f32.mrb[0].mxu0
        %1227 = vmatprep.mubr.bf16.mxu0 0
        %1228 = vmatmul.mubr.bf16.gmra.mrb[0].mxu0 %v1074
        %v1229 = vpop.f32.mrb[0].mxu0
        %v1230 = vadd.f32 0.0, %v1229
        %v1231 = vpop.f32.mrb[0].mxu0
        %v1232 = vpop.f32.mrb[0].mxu0
        %v1233 = vadd.f32 0.0, %v1232
        %v1234 = vpop.f32.mrb[0].mxu0
        %1235 = vdwg.mxu0
        %1244 = vrot.lane.b32.xlu0 %v868, 96
        %v1245 = vpop.permute.xlu0 %1244
        %1246 = vrot.lane.b32.xlu0 %v871, 96
        %v1247 = vpop.permute.xlu0 %1246
        %1248 = vrot.lane.b32.xlu0 %v876, 96
        %v1249 = vpop.permute.xlu0 %1248
        %1250 = vrot.lane.b32.xlu0 %v879, 96
        %v1251 = vpop.permute.xlu0 %1250
        %1252 = vrot.lane.b32.xlu0 %v884, 96
        %v1253 = vpop.permute.xlu0 %1252
        %1254 = vrot.lane.b32.xlu0 %v887, 96
        %v1255 = vpop.permute.xlu0 %1254
        %1256 = vrot.lane.b32.xlu0 %v892, 96
        %v1257 = vpop.permute.xlu0 %1256
        %1258 = vrot.lane.b32.xlu0 %v895, 96
        %v1259 = vpop.permute.xlu0 %1258
        %1268 = vrot.lane.b32.xlu0 %v868, 64
        %v1269 = vpop.permute.xlu0 %1268
        %1270 = vrot.lane.b32.xlu0 %v871, 64
        %v1271 = vpop.permute.xlu0 %1270
        %1272 = vrot.lane.b32.xlu0 %v876, 64
        %v1273 = vpop.permute.xlu0 %1272
        %1274 = vrot.lane.b32.xlu0 %v879, 64
        %v1275 = vpop.permute.xlu0 %1274
        %1276 = vrot.lane.b32.xlu0 %v884, 64
        %v1277 = vpop.permute.xlu0 %1276
        %1278 = vrot.lane.b32.xlu0 %v887, 64
        %v1279 = vpop.permute.xlu0 %1278
        %1280 = vrot.lane.b32.xlu0 %v892, 64
        %v1281 = vpop.permute.xlu0 %1280
        %1282 = vrot.lane.b32.xlu0 %v895, 64
        %v1283 = vpop.permute.xlu0 %1282
        %1292 = vrot.lane.b32.xlu0 %v868, 32
        %v1293 = vpop.permute.xlu0 %1292
        %1294 = vrot.lane.b32.xlu0 %v871, 32
        %v1295 = vpop.permute.xlu0 %1294
        %1296 = vrot.lane.b32.xlu0 %v876, 32
        %v1297 = vpop.permute.xlu0 %1296
        %1298 = vrot.lane.b32.xlu0 %v879, 32
        %v1299 = vpop.permute.xlu0 %1298
        %1300 = vrot.lane.b32.xlu0 %v884, 32
        %v1301 = vpop.permute.xlu0 %1300
        %1302 = vrot.lane.b32.xlu0 %v887, 32
        %v1303 = vpop.permute.xlu0 %1302
        %1304 = vrot.lane.b32.xlu0 %v892, 32
        %v1305 = vpop.permute.xlu0 %1304
        %1306 = vrot.lane.b32.xlu0 %v895, 32
        %v1307 = vpop.permute.xlu0 %1306
        %v1316 = vcombine.low %v868, %v1269
        %v1317 = vcombine.high %v868, %v1269
        %v1319 = vunpack.c.l.s4 1983009808
        %v1320 = vunpack.c.0.s8 %v1319
        %v1321 = vlaneseq
        %v1322 = vshrl.u32 %v1321, 7
        %v1323 = vsub.s32 %v1320, %v1322
        %v1324 = vrot.slane %v1316, %v1323
        %v1326 = vunpack.c.l.s4 1983009808
        %v1327 = vunpack.c.0.s8 %v1326
        %v1328 = vlaneseq
        %v1329 = vshrl.u32 %v1328, 7
        %v1330 = vsub.s32 %v1327, %v1329
        %v1331 = vrot.slane %v1317, %v1330
        %v1332 = vcombine.low %v1245, %v1293
        %v1333 = vcombine.high %v1245, %v1293
        %v1335 = vunpack.c.l.s4 1983009808
        %v1336 = vunpack.c.0.s8 %v1335
        %v1337 = vlaneseq
        %v1338 = vshrl.u32 %v1337, 7
        %v1339 = vsub.s32 %v1336, %v1338
        %v1340 = vrot.slane %v1332, %v1339
        %v1342 = vunpack.c.l.s4 1983009808
        %v1343 = vunpack.c.0.s8 %v1342
        %v1344 = vlaneseq
        %v1345 = vshrl.u32 %v1344, 7
        %v1346 = vsub.s32 %v1343, %v1345
        %v1347 = vrot.slane %v1333, %v1346
        %v1348 = vcombine.low %v1324, %v1340
        %v1349 = vcombine.high %v1324, %v1340
        %v1351 = vunpack.c.l.s4 1934713408
        %v1352 = vunpack.c.0.s8 %v1351
        %v1353 = vlaneseq
        %v1354 = vshrl.u32 %v1353, 7
        %v1355 = vsub.s32 %v1352, %v1354
        %v1356 = vrot.slane %v1348, %v1355
        %v1358 = vunpack.c.l.s4 1934713408
        %v1359 = vunpack.c.0.s8 %v1358
        %v1360 = vlaneseq
        %v1361 = vshrl.u32 %v1360, 7
        %v1362 = vsub.s32 %v1359, %v1361
        %v1363 = vrot.slane %v1349, %v1362
        %v1364 = vcombine.low %v1331, %v1347
        %v1365 = vcombine.high %v1331, %v1347
        %v1367 = vunpack.c.l.s4 1934713408
        %v1368 = vunpack.c.0.s8 %v1367
        %v1369 = vlaneseq
        %v1370 = vshrl.u32 %v1369, 7
        %v1371 = vsub.s32 %v1368, %v1370
        %v1372 = vrot.slane %v1364, %v1371
        %v1374 = vunpack.c.l.s4 1934713408
        %v1375 = vunpack.c.0.s8 %v1374
        %v1376 = vlaneseq
        %v1377 = vshrl.u32 %v1376, 7
        %v1378 = vsub.s32 %v1375, %v1377
        %v1379 = vrot.slane %v1365, %v1378
        %v1380 = vcombine.high %v1356, 0.0
        %v1381 = vcombine.high %v1363, 0.0
        %v1382 = vcombine.high %v1372, 0.0
        %v1383 = vcombine.high %v1379, 0.0
        %v1384 = vcombine.low %v871, %v1271
        %v1385 = vcombine.high %v871, %v1271
        %v1387 = vunpack.c.l.s4 1983009808
        %v1388 = vunpack.c.0.s8 %v1387
        %v1389 = vlaneseq
        %v1390 = vshrl.u32 %v1389, 7
        %v1391 = vsub.s32 %v1388, %v1390
        %v1392 = vrot.slane %v1384, %v1391
        %v1394 = vunpack.c.l.s4 1983009808
        %v1395 = vunpack.c.0.s8 %v1394
        %v1396 = vlaneseq
        %v1397 = vshrl.u32 %v1396, 7
        %v1398 = vsub.s32 %v1395, %v1397
        %v1399 = vrot.slane %v1385, %v1398
        %v1400 = vcombine.low %v1247, %v1295
        %v1401 = vcombine.high %v1247, %v1295
        %v1403 = vunpack.c.l.s4 1983009808
        %v1404 = vunpack.c.0.s8 %v1403
        %v1405 = vlaneseq
        %v1406 = vshrl.u32 %v1405, 7
        %v1407 = vsub.s32 %v1404, %v1406
        %v1408 = vrot.slane %v1400, %v1407
        %v1410 = vunpack.c.l.s4 1983009808
        %v1411 = vunpack.c.0.s8 %v1410
        %v1412 = vlaneseq
        %v1413 = vshrl.u32 %v1412, 7
        %v1414 = vsub.s32 %v1411, %v1413
        %v1415 = vrot.slane %v1401, %v1414
        %v1416 = vcombine.low %v1392, %v1408
        %v1417 = vcombine.high %v1392, %v1408
        %v1419 = vunpack.c.l.s4 1934713408
        %v1420 = vunpack.c.0.s8 %v1419
        %v1421 = vlaneseq
        %v1422 = vshrl.u32 %v1421, 7
        %v1423 = vsub.s32 %v1420, %v1422
        %v1424 = vrot.slane %v1416, %v1423
        %v1426 = vunpack.c.l.s4 1934713408
        %v1427 = vunpack.c.0.s8 %v1426
        %v1428 = vlaneseq
        %v1429 = vshrl.u32 %v1428, 7
        %v1430 = vsub.s32 %v1427, %v1429
        %v1431 = vrot.slane %v1417, %v1430
        %v1432 = vcombine.low %v1399, %v1415
        %v1433 = vcombine.high %v1399, %v1415
        %v1435 = vunpack.c.l.s4 1934713408
        %v1436 = vunpack.c.0.s8 %v1435
        %v1437 = vlaneseq
        %v1438 = vshrl.u32 %v1437, 7
        %v1439 = vsub.s32 %v1436, %v1438
        %v1440 = vrot.slane %v1432, %v1439
        %v1442 = vunpack.c.l.s4 1934713408
        %v1443 = vunpack.c.0.s8 %v1442
        %v1444 = vlaneseq
        %v1445 = vshrl.u32 %v1444, 7
        %v1446 = vsub.s32 %v1443, %v1445
        %v1447 = vrot.slane %v1433, %v1446
        %v1448 = vcombine.high %v1424, 0.0
        %v1449 = vcombine.high %v1431, 0.0
        %v1450 = vcombine.high %v1440, 0.0
        %v1451 = vcombine.high %v1447, 0.0
        %v1452 = vcombine.low %v876, %v1273
        %v1453 = vcombine.high %v876, %v1273
        %v1455 = vunpack.c.l.s4 1983009808
        %v1456 = vunpack.c.0.s8 %v1455
        %v1457 = vlaneseq
        %v1458 = vshrl.u32 %v1457, 7
        %v1459 = vsub.s32 %v1456, %v1458
        %v1460 = vrot.slane %v1452, %v1459
        %v1462 = vunpack.c.l.s4 1983009808
        %v1463 = vunpack.c.0.s8 %v1462
        %v1464 = vlaneseq
        %v1465 = vshrl.u32 %v1464, 7
        %v1466 = vsub.s32 %v1463, %v1465
        %v1467 = vrot.slane %v1453, %v1466
        %v1468 = vcombine.low %v1249, %v1297
        %v1469 = vcombine.high %v1249, %v1297
        %v1471 = vunpack.c.l.s4 1983009808
        %v1472 = vunpack.c.0.s8 %v1471
        %v1473 = vlaneseq
        %v1474 = vshrl.u32 %v1473, 7
        %v1475 = vsub.s32 %v1472, %v1474
        %v1476 = vrot.slane %v1468, %v1475
        %v1478 = vunpack.c.l.s4 1983009808
        %v1479 = vunpack.c.0.s8 %v1478
        %v1480 = vlaneseq
        %v1481 = vshrl.u32 %v1480, 7
        %v1482 = vsub.s32 %v1479, %v1481
        %v1483 = vrot.slane %v1469, %v1482
        %v1484 = vcombine.low %v1460, %v1476
        %v1485 = vcombine.high %v1460, %v1476
        %v1487 = vunpack.c.l.s4 1934713408
        %v1488 = vunpack.c.0.s8 %v1487
        %v1489 = vlaneseq
        %v1490 = vshrl.u32 %v1489, 7
        %v1491 = vsub.s32 %v1488, %v1490
        %v1492 = vrot.slane %v1484, %v1491
        %v1494 = vunpack.c.l.s4 1934713408
        %v1495 = vunpack.c.0.s8 %v1494
        %v1496 = vlaneseq
        %v1497 = vshrl.u32 %v1496, 7
        %v1498 = vsub.s32 %v1495, %v1497
        %v1499 = vrot.slane %v1485, %v1498
        %v1500 = vcombine.low %v1467, %v1483
        %v1501 = vcombine.high %v1467, %v1483
        %v1503 = vunpack.c.l.s4 1934713408
        %v1504 = vunpack.c.0.s8 %v1503
        %v1505 = vlaneseq
        %v1506 = vshrl.u32 %v1505, 7
        %v1507 = vsub.s32 %v1504, %v1506
        %v1508 = vrot.slane %v1500, %v1507
        %v1510 = vunpack.c.l.s4 1934713408
        %v1511 = vunpack.c.0.s8 %v1510
        %v1512 = vlaneseq
        %v1513 = vshrl.u32 %v1512, 7
        %v1514 = vsub.s32 %v1511, %v1513
        %v1515 = vrot.slane %v1501, %v1514
        %v1516 = vcombine.high %v1492, 0.0
        %v1517 = vcombine.high %v1499, 0.0
        %v1518 = vcombine.high %v1508, 0.0
        %v1519 = vcombine.high %v1515, 0.0
        %v1520 = vcombine.low %v879, %v1275
        %v1521 = vcombine.high %v879, %v1275
        %v1523 = vunpack.c.l.s4 1983009808
        %v1524 = vunpack.c.0.s8 %v1523
        %v1525 = vlaneseq
        %v1526 = vshrl.u32 %v1525, 7
        %v1527 = vsub.s32 %v1524, %v1526
        %v1528 = vrot.slane %v1520, %v1527
        %v1530 = vunpack.c.l.s4 1983009808
        %v1531 = vunpack.c.0.s8 %v1530
        %v1532 = vlaneseq
        %v1533 = vshrl.u32 %v1532, 7
        %v1534 = vsub.s32 %v1531, %v1533
        %v1535 = vrot.slane %v1521, %v1534
        %v1536 = vcombine.low %v1251, %v1299
        %v1537 = vcombine.high %v1251, %v1299
        %v1539 = vunpack.c.l.s4 1983009808
        %v1540 = vunpack.c.0.s8 %v1539
        %v1541 = vlaneseq
        %v1542 = vshrl.u32 %v1541, 7
        %v1543 = vsub.s32 %v1540, %v1542
        %v1544 = vrot.slane %v1536, %v1543
        %v1546 = vunpack.c.l.s4 1983009808
        %v1547 = vunpack.c.0.s8 %v1546
        %v1548 = vlaneseq
        %v1549 = vshrl.u32 %v1548, 7
        %v1550 = vsub.s32 %v1547, %v1549
        %v1551 = vrot.slane %v1537, %v1550
        %v1552 = vcombine.low %v1528, %v1544
        %v1553 = vcombine.high %v1528, %v1544
        %v1555 = vunpack.c.l.s4 1934713408
        %v1556 = vunpack.c.0.s8 %v1555
        %v1557 = vlaneseq
        %v1558 = vshrl.u32 %v1557, 7
        %v1559 = vsub.s32 %v1556, %v1558
        %v1560 = vrot.slane %v1552, %v1559
        %v1562 = vunpack.c.l.s4 1934713408
        %v1563 = vunpack.c.0.s8 %v1562
        %v1564 = vlaneseq
        %v1565 = vshrl.u32 %v1564, 7
        %v1566 = vsub.s32 %v1563, %v1565
        %v1567 = vrot.slane %v1553, %v1566
        %v1568 = vcombine.low %v1535, %v1551
        %v1569 = vcombine.high %v1535, %v1551
        %v1571 = vunpack.c.l.s4 1934713408
        %v1572 = vunpack.c.0.s8 %v1571
        %v1573 = vlaneseq
        %v1574 = vshrl.u32 %v1573, 7
        %v1575 = vsub.s32 %v1572, %v1574
        %v1576 = vrot.slane %v1568, %v1575
        %v1578 = vunpack.c.l.s4 1934713408
        %v1579 = vunpack.c.0.s8 %v1578
        %v1580 = vlaneseq
        %v1581 = vshrl.u32 %v1580, 7
        %v1582 = vsub.s32 %v1579, %v1581
        %v1583 = vrot.slane %v1569, %v1582
        %v1584 = vcombine.high %v1560, 0.0
        %v1585 = vcombine.high %v1567, 0.0
        %v1586 = vcombine.high %v1576, 0.0
        %v1587 = vcombine.high %v1583, 0.0
        %v1588 = vcombine.low %v884, %v1277
        %v1589 = vcombine.high %v884, %v1277
        %v1591 = vunpack.c.l.s4 1983009808
        %v1592 = vunpack.c.0.s8 %v1591
        %v1593 = vlaneseq
        %v1594 = vshrl.u32 %v1593, 7
        %v1595 = vsub.s32 %v1592, %v1594
        %v1596 = vrot.slane %v1588, %v1595
        %v1598 = vunpack.c.l.s4 1983009808
        %v1599 = vunpack.c.0.s8 %v1598
        %v1600 = vlaneseq
        %v1601 = vshrl.u32 %v1600, 7
        %v1602 = vsub.s32 %v1599, %v1601
        %v1603 = vrot.slane %v1589, %v1602
        %v1604 = vcombine.low %v1253, %v1301
        %v1605 = vcombine.high %v1253, %v1301
        %v1607 = vunpack.c.l.s4 1983009808
        %v1608 = vunpack.c.0.s8 %v1607
        %v1609 = vlaneseq
        %v1610 = vshrl.u32 %v1609, 7
        %v1611 = vsub.s32 %v1608, %v1610
        %v1612 = vrot.slane %v1604, %v1611
        %v1614 = vunpack.c.l.s4 1983009808
        %v1615 = vunpack.c.0.s8 %v1614
        %v1616 = vlaneseq
        %v1617 = vshrl.u32 %v1616, 7
        %v1618 = vsub.s32 %v1615, %v1617
        %v1619 = vrot.slane %v1605, %v1618
        %v1620 = vcombine.low %v1596, %v1612
        %v1621 = vcombine.high %v1596, %v1612
        %v1623 = vunpack.c.l.s4 1934713408
        %v1624 = vunpack.c.0.s8 %v1623
        %v1625 = vlaneseq
        %v1626 = vshrl.u32 %v1625, 7
        %v1627 = vsub.s32 %v1624, %v1626
        %v1628 = vrot.slane %v1620, %v1627
        %v1630 = vunpack.c.l.s4 1934713408
        %v1631 = vunpack.c.0.s8 %v1630
        %v1632 = vlaneseq
        %v1633 = vshrl.u32 %v1632, 7
        %v1634 = vsub.s32 %v1631, %v1633
        %v1635 = vrot.slane %v1621, %v1634
        %v1636 = vcombine.low %v1603, %v1619
        %v1637 = vcombine.high %v1603, %v1619
        %v1639 = vunpack.c.l.s4 1934713408
        %v1640 = vunpack.c.0.s8 %v1639
        %v1641 = vlaneseq
        %v1642 = vshrl.u32 %v1641, 7
        %v1643 = vsub.s32 %v1640, %v1642
        %v1644 = vrot.slane %v1636, %v1643
        %v1646 = vunpack.c.l.s4 1934713408
        %v1647 = vunpack.c.0.s8 %v1646
        %v1648 = vlaneseq
        %v1649 = vshrl.u32 %v1648, 7
        %v1650 = vsub.s32 %v1647, %v1649
        %v1651 = vrot.slane %v1637, %v1650
        %v1652 = vcombine.high %v1628, 0.0
        %v1653 = vcombine.high %v1635, 0.0
        %v1654 = vcombine.high %v1644, 0.0
        %v1655 = vcombine.high %v1651, 0.0
        %v1656 = vcombine.low %v887, %v1279
        %v1657 = vcombine.high %v887, %v1279
        %v1659 = vunpack.c.l.s4 1983009808
        %v1660 = vunpack.c.0.s8 %v1659
        %v1661 = vlaneseq
        %v1662 = vshrl.u32 %v1661, 7
        %v1663 = vsub.s32 %v1660, %v1662
        %v1664 = vrot.slane %v1656, %v1663
        %v1666 = vunpack.c.l.s4 1983009808
        %v1667 = vunpack.c.0.s8 %v1666
        %v1668 = vlaneseq
        %v1669 = vshrl.u32 %v1668, 7
        %v1670 = vsub.s32 %v1667, %v1669
        %v1671 = vrot.slane %v1657, %v1670
        %v1672 = vcombine.low %v1255, %v1303
        %v1673 = vcombine.high %v1255, %v1303
        %v1675 = vunpack.c.l.s4 1983009808
        %v1676 = vunpack.c.0.s8 %v1675
        %v1677 = vlaneseq
        %v1678 = vshrl.u32 %v1677, 7
        %v1679 = vsub.s32 %v1676, %v1678
        %v1680 = vrot.slane %v1672, %v1679
        %v1682 = vunpack.c.l.s4 1983009808
        %v1683 = vunpack.c.0.s8 %v1682
        %v1684 = vlaneseq
        %v1685 = vshrl.u32 %v1684, 7
        %v1686 = vsub.s32 %v1683, %v1685
        %v1687 = vrot.slane %v1673, %v1686
        %v1688 = vcombine.low %v1664, %v1680
        %v1689 = vcombine.high %v1664, %v1680
        %v1691 = vunpack.c.l.s4 1934713408
        %v1692 = vunpack.c.0.s8 %v1691
        %v1693 = vlaneseq
        %v1694 = vshrl.u32 %v1693, 7
        %v1695 = vsub.s32 %v1692, %v1694
        %v1696 = vrot.slane %v1688, %v1695
        %v1698 = vunpack.c.l.s4 1934713408
        %v1699 = vunpack.c.0.s8 %v1698
        %v1700 = vlaneseq
        %v1701 = vshrl.u32 %v1700, 7
        %v1702 = vsub.s32 %v1699, %v1701
        %v1703 = vrot.slane %v1689, %v1702
        %v1704 = vcombine.low %v1671, %v1687
        %v1705 = vcombine.high %v1671, %v1687
        %v1707 = vunpack.c.l.s4 1934713408
        %v1708 = vunpack.c.0.s8 %v1707
        %v1709 = vlaneseq
        %v1710 = vshrl.u32 %v1709, 7
        %v1711 = vsub.s32 %v1708, %v1710
        %v1712 = vrot.slane %v1704, %v1711
        %v1714 = vunpack.c.l.s4 1934713408
        %v1715 = vunpack.c.0.s8 %v1714
        %v1716 = vlaneseq
        %v1717 = vshrl.u32 %v1716, 7
        %v1718 = vsub.s32 %v1715, %v1717
        %v1719 = vrot.slane %v1705, %v1718
        %v1720 = vcombine.high %v1696, 0.0
        %v1721 = vcombine.high %v1703, 0.0
        %v1722 = vcombine.high %v1712, 0.0
        %v1723 = vcombine.high %v1719, 0.0
        %v1724 = vcombine.low %v892, %v1281
        %v1725 = vcombine.high %v892, %v1281
        %v1727 = vunpack.c.l.s4 1983009808
        %v1728 = vunpack.c.0.s8 %v1727
        %v1729 = vlaneseq
        %v1730 = vshrl.u32 %v1729, 7
        %v1731 = vsub.s32 %v1728, %v1730
        %v1732 = vrot.slane %v1724, %v1731
        %v1734 = vunpack.c.l.s4 1983009808
        %v1735 = vunpack.c.0.s8 %v1734
        %v1736 = vlaneseq
        %v1737 = vshrl.u32 %v1736, 7
        %v1738 = vsub.s32 %v1735, %v1737
        %v1739 = vrot.slane %v1725, %v1738
        %v1740 = vcombine.low %v1257, %v1305
        %v1741 = vcombine.high %v1257, %v1305
        %v1743 = vunpack.c.l.s4 1983009808
        %v1744 = vunpack.c.0.s8 %v1743
        %v1745 = vlaneseq
        %v1746 = vshrl.u32 %v1745, 7
        %v1747 = vsub.s32 %v1744, %v1746
        %v1748 = vrot.slane %v1740, %v1747
        %v1750 = vunpack.c.l.s4 1983009808
        %v1751 = vunpack.c.0.s8 %v1750
        %v1752 = vlaneseq
        %v1753 = vshrl.u32 %v1752, 7
        %v1754 = vsub.s32 %v1751, %v1753
        %v1755 = vrot.slane %v1741, %v1754
        %v1756 = vcombine.low %v1732, %v1748
        %v1757 = vcombine.high %v1732, %v1748
        %v1759 = vunpack.c.l.s4 1934713408
        %v1760 = vunpack.c.0.s8 %v1759
        %v1761 = vlaneseq
        %v1762 = vshrl.u32 %v1761, 7
        %v1763 = vsub.s32 %v1760, %v1762
        %v1764 = vrot.slane %v1756, %v1763
        %v1766 = vunpack.c.l.s4 1934713408
        %v1767 = vunpack.c.0.s8 %v1766
        %v1768 = vlaneseq
        %v1769 = vshrl.u32 %v1768, 7
        %v1770 = vsub.s32 %v1767, %v1769
        %v1771 = vrot.slane %v1757, %v1770
        %v1772 = vcombine.low %v1739, %v1755
        %v1773 = vcombine.high %v1739, %v1755
        %v1775 = vunpack.c.l.s4 1934713408
        %v1776 = vunpack.c.0.s8 %v1775
        %v1777 = vlaneseq
        %v1778 = vshrl.u32 %v1777, 7
        %v1779 = vsub.s32 %v1776, %v1778
        %v1780 = vrot.slane %v1772, %v1779
        %v1782 = vunpack.c.l.s4 1934713408
        %v1783 = vunpack.c.0.s8 %v1782
        %v1784 = vlaneseq
        %v1785 = vshrl.u32 %v1784, 7
        %v1786 = vsub.s32 %v1783, %v1785
        %v1787 = vrot.slane %v1773, %v1786
        %v1788 = vcombine.high %v1764, 0.0
        %v1789 = vcombine.high %v1771, 0.0
        %v1790 = vcombine.high %v1780, 0.0
        %v1791 = vcombine.high %v1787, 0.0
        %v1792 = vcombine.low %v895, %v1283
        %v1793 = vcombine.high %v895, %v1283
        %v1795 = vunpack.c.l.s4 1983009808
        %v1796 = vunpack.c.0.s8 %v1795
        %v1797 = vlaneseq
        %v1798 = vshrl.u32 %v1797, 7
        %v1799 = vsub.s32 %v1796, %v1798
        %v1800 = vrot.slane %v1792, %v1799
        %v1802 = vunpack.c.l.s4 1983009808
        %v1803 = vunpack.c.0.s8 %v1802
        %v1804 = vlaneseq
        %v1805 = vshrl.u32 %v1804, 7
        %v1806 = vsub.s32 %v1803, %v1805
        %v1807 = vrot.slane %v1793, %v1806
        %v1808 = vcombine.low %v1259, %v1307
        %v1809 = vcombine.high %v1259, %v1307
        %v1811 = vunpack.c.l.s4 1983009808
        %v1812 = vunpack.c.0.s8 %v1811
        %v1813 = vlaneseq
        %v1814 = vshrl.u32 %v1813, 7
        %v1815 = vsub.s32 %v1812, %v1814
        %v1816 = vrot.slane %v1808, %v1815
        %v1818 = vunpack.c.l.s4 1983009808
        %v1819 = vunpack.c.0.s8 %v1818
        %v1820 = vlaneseq
        %v1821 = vshrl.u32 %v1820, 7
        %v1822 = vsub.s32 %v1819, %v1821
        %v1823 = vrot.slane %v1809, %v1822
        %v1824 = vcombine.low %v1800, %v1816
        %v1825 = vcombine.high %v1800, %v1816
        %v1827 = vunpack.c.l.s4 1934713408
        %v1828 = vunpack.c.0.s8 %v1827
        %v1829 = vlaneseq
        %v1830 = vshrl.u32 %v1829, 7
        %v1831 = vsub.s32 %v1828, %v1830
        %v1832 = vrot.slane %v1824, %v1831
        %v1834 = vunpack.c.l.s4 1934713408
        %v1835 = vunpack.c.0.s8 %v1834
        %v1836 = vlaneseq
        %v1837 = vshrl.u32 %v1836, 7
        %v1838 = vsub.s32 %v1835, %v1837
        %v1839 = vrot.slane %v1825, %v1838
        %v1840 = vcombine.low %v1807, %v1823
        %v1841 = vcombine.high %v1807, %v1823
        %v1843 = vunpack.c.l.s4 1934713408
        %v1844 = vunpack.c.0.s8 %v1843
        %v1845 = vlaneseq
        %v1846 = vshrl.u32 %v1845, 7
        %v1847 = vsub.s32 %v1844, %v1846
        %v1848 = vrot.slane %v1840, %v1847
        %v1850 = vunpack.c.l.s4 1934713408
        %v1851 = vunpack.c.0.s8 %v1850
        %v1852 = vlaneseq
        %v1853 = vshrl.u32 %v1852, 7
        %v1854 = vsub.s32 %v1851, %v1853
        %v1855 = vrot.slane %v1841, %v1854
        %v1856 = vcombine.high %v1832, 0.0
        %v1857 = vcombine.high %v1839, 0.0
        %v1858 = vcombine.high %v1848, 0.0
        %v1859 = vcombine.high %v1855, 0.0
        %v1860 = vcombine.low %v1356, %v1363
        %v1862 = vunpack.c.l.s4 1983009808
        %v1863 = vunpack.c.0.s8 %v1862
        %v1864 = vlaneseq
        %v1865 = vshrl.u32 %v1864, 7
        %v1866 = vsub.s32 %v1863, %v1865
        %v1867 = vrot.slane %v1860, %v1866
        %v1868 = vcombine.low %v1380, %v1381
        %v1870 = vunpack.c.l.s4 1983009808
        %v1871 = vunpack.c.0.s8 %v1870
        %v1872 = vlaneseq
        %v1873 = vshrl.u32 %v1872, 7
        %v1874 = vsub.s32 %v1871, %v1873
        %v1875 = vrot.slane %v1868, %v1874
        %v1876 = vcombine.low %v1372, %v1379
        %v1878 = vunpack.c.l.s4 1983009808
        %v1879 = vunpack.c.0.s8 %v1878
        %v1880 = vlaneseq
        %v1881 = vshrl.u32 %v1880, 7
        %v1882 = vsub.s32 %v1879, %v1881
        %v1883 = vrot.slane %v1876, %v1882
        %v1884 = vcombine.low %v1382, %v1383
        %v1886 = vunpack.c.l.s4 1983009808
        %v1887 = vunpack.c.0.s8 %v1886
        %v1888 = vlaneseq
        %v1889 = vshrl.u32 %v1888, 7
        %v1890 = vsub.s32 %v1887, %v1889
        %v1891 = vrot.slane %v1884, %v1890
        %v1892 = vcombine.low %v1867, %v1875
        %v1893 = vcombine.high %v1867, %v1875
        %v1895 = vunpack.c.l.s4 1934713408
        %v1896 = vunpack.c.0.s8 %v1895
        %v1897 = vlaneseq
        %v1898 = vshrl.u32 %v1897, 7
        %v1899 = vsub.s32 %v1896, %v1898
        %v1900 = vrot.slane %v1892, %v1899
        %v1902 = vunpack.c.l.s4 1934713408
        %v1903 = vunpack.c.0.s8 %v1902
        %v1904 = vlaneseq
        %v1905 = vshrl.u32 %v1904, 7
        %v1906 = vsub.s32 %v1903, %v1905
        %v1907 = vrot.slane %v1893, %v1906
        %v1908 = vcombine.low %v1883, %v1891
        %v1909 = vcombine.high %v1883, %v1891
        %v1911 = vunpack.c.l.s4 1934713408
        %v1912 = vunpack.c.0.s8 %v1911
        %v1913 = vlaneseq
        %v1914 = vshrl.u32 %v1913, 7
        %v1915 = vsub.s32 %v1912, %v1914
        %v1916 = vrot.slane %v1908, %v1915
        %v1918 = vunpack.c.l.s4 1934713408
        %v1919 = vunpack.c.0.s8 %v1918
        %v1920 = vlaneseq
        %v1921 = vshrl.u32 %v1920, 7
        %v1922 = vsub.s32 %v1919, %v1921
        %v1923 = vrot.slane %v1909, %v1922
        %v1924 = vcombine.low %v1900, %v1916
        %v1925 = vcombine.high %v1900, %v1916
        %v1926 = vcombine.low %v1907, %v1923
        %v1927 = vcombine.high %v1907, %v1923
        %v1928 = vcombine.low %v1424, %v1431
        %v1930 = vunpack.c.l.s4 1983009808
        %v1931 = vunpack.c.0.s8 %v1930
        %v1932 = vlaneseq
        %v1933 = vshrl.u32 %v1932, 7
        %v1934 = vsub.s32 %v1931, %v1933
        %v1935 = vrot.slane %v1928, %v1934
        %v1936 = vcombine.low %v1448, %v1449
        %v1938 = vunpack.c.l.s4 1983009808
        %v1939 = vunpack.c.0.s8 %v1938
        %v1940 = vlaneseq
        %v1941 = vshrl.u32 %v1940, 7
        %v1942 = vsub.s32 %v1939, %v1941
        %v1943 = vrot.slane %v1936, %v1942
        %v1944 = vcombine.low %v1440, %v1447
        %v1946 = vunpack.c.l.s4 1983009808
        %v1947 = vunpack.c.0.s8 %v1946
        %v1948 = vlaneseq
        %v1949 = vshrl.u32 %v1948, 7
        %v1950 = vsub.s32 %v1947, %v1949
        %v1951 = vrot.slane %v1944, %v1950
        %v1952 = vcombine.low %v1450, %v1451
        %v1954 = vunpack.c.l.s4 1983009808
        %v1955 = vunpack.c.0.s8 %v1954
        %v1956 = vlaneseq
        %v1957 = vshrl.u32 %v1956, 7
        %v1958 = vsub.s32 %v1955, %v1957
        %v1959 = vrot.slane %v1952, %v1958
        %v1960 = vcombine.low %v1935, %v1943
        %v1961 = vcombine.high %v1935, %v1943
        %v1963 = vunpack.c.l.s4 1934713408
        %v1964 = vunpack.c.0.s8 %v1963
        %v1965 = vlaneseq
        %v1966 = vshrl.u32 %v1965, 7
        %v1967 = vsub.s32 %v1964, %v1966
        %v1968 = vrot.slane %v1960, %v1967
        %v1970 = vunpack.c.l.s4 1934713408
        %v1971 = vunpack.c.0.s8 %v1970
        %v1972 = vlaneseq
        %v1973 = vshrl.u32 %v1972, 7
        %v1974 = vsub.s32 %v1971, %v1973
        %v1975 = vrot.slane %v1961, %v1974
        %v1976 = vcombine.low %v1951, %v1959
        %v1977 = vcombine.high %v1951, %v1959
        %v1979 = vunpack.c.l.s4 1934713408
        %v1980 = vunpack.c.0.s8 %v1979
        %v1981 = vlaneseq
        %v1982 = vshrl.u32 %v1981, 7
        %v1983 = vsub.s32 %v1980, %v1982
        %v1984 = vrot.slane %v1976, %v1983
        %v1986 = vunpack.c.l.s4 1934713408
        %v1987 = vunpack.c.0.s8 %v1986
        %v1988 = vlaneseq
        %v1989 = vshrl.u32 %v1988, 7
        %v1990 = vsub.s32 %v1987, %v1989
        %v1991 = vrot.slane %v1977, %v1990
        %v1992 = vcombine.low %v1968, %v1984
        %v1993 = vcombine.high %v1968, %v1984
        %v1994 = vcombine.low %v1975, %v1991
        %v1995 = vcombine.high %v1975, %v1991
        %v1996 = vcombine.low %v1492, %v1499
        %v1998 = vunpack.c.l.s4 1983009808
        %v1999 = vunpack.c.0.s8 %v1998
        %v2000 = vlaneseq
        %v2001 = vshrl.u32 %v2000, 7
        %v2002 = vsub.s32 %v1999, %v2001
        %v2003 = vrot.slane %v1996, %v2002
        %v2004 = vcombine.low %v1516, %v1517
        %v2006 = vunpack.c.l.s4 1983009808
        %v2007 = vunpack.c.0.s8 %v2006
        %v2008 = vlaneseq
        %v2009 = vshrl.u32 %v2008, 7
        %v2010 = vsub.s32 %v2007, %v2009
        %v2011 = vrot.slane %v2004, %v2010
        %v2012 = vcombine.low %v1508, %v1515
        %v2014 = vunpack.c.l.s4 1983009808
        %v2015 = vunpack.c.0.s8 %v2014
        %v2016 = vlaneseq
        %v2017 = vshrl.u32 %v2016, 7
        %v2018 = vsub.s32 %v2015, %v2017
        %v2019 = vrot.slane %v2012, %v2018
        %v2020 = vcombine.low %v1518, %v1519
        %v2022 = vunpack.c.l.s4 1983009808
        %v2023 = vunpack.c.0.s8 %v2022
        %v2024 = vlaneseq
        %v2025 = vshrl.u32 %v2024, 7
        %v2026 = vsub.s32 %v2023, %v2025
        %v2027 = vrot.slane %v2020, %v2026
        %v2028 = vcombine.low %v2003, %v2011
        %v2029 = vcombine.high %v2003, %v2011
        %v2031 = vunpack.c.l.s4 1934713408
        %v2032 = vunpack.c.0.s8 %v2031
        %v2033 = vlaneseq
        %v2034 = vshrl.u32 %v2033, 7
        %v2035 = vsub.s32 %v2032, %v2034
        %v2036 = vrot.slane %v2028, %v2035
        %v2038 = vunpack.c.l.s4 1934713408
        %v2039 = vunpack.c.0.s8 %v2038
        %v2040 = vlaneseq
        %v2041 = vshrl.u32 %v2040, 7
        %v2042 = vsub.s32 %v2039, %v2041
        %v2043 = vrot.slane %v2029, %v2042
        %v2044 = vcombine.low %v2019, %v2027
        %v2045 = vcombine.high %v2019, %v2027
        %v2047 = vunpack.c.l.s4 1934713408
        %v2048 = vunpack.c.0.s8 %v2047
        %v2049 = vlaneseq
        %v2050 = vshrl.u32 %v2049, 7
        %v2051 = vsub.s32 %v2048, %v2050
        %v2052 = vrot.slane %v2044, %v2051
        %v2054 = vunpack.c.l.s4 1934713408
        %v2055 = vunpack.c.0.s8 %v2054
        %v2056 = vlaneseq
        %v2057 = vshrl.u32 %v2056, 7
        %v2058 = vsub.s32 %v2055, %v2057
        %v2059 = vrot.slane %v2045, %v2058
        %v2060 = vcombine.low %v2036, %v2052
        %v2061 = vcombine.high %v2036, %v2052
        %v2062 = vcombine.low %v2043, %v2059
        %v2063 = vcombine.high %v2043, %v2059
        %v2064 = vcombine.low %v1560, %v1567
        %v2066 = vunpack.c.l.s4 1983009808
        %v2067 = vunpack.c.0.s8 %v2066
        %v2068 = vlaneseq
        %v2069 = vshrl.u32 %v2068, 7
        %v2070 = vsub.s32 %v2067, %v2069
        %v2071 = vrot.slane %v2064, %v2070
        %v2072 = vcombine.low %v1584, %v1585
        %v2074 = vunpack.c.l.s4 1983009808
        %v2075 = vunpack.c.0.s8 %v2074
        %v2076 = vlaneseq
        %v2077 = vshrl.u32 %v2076, 7
        %v2078 = vsub.s32 %v2075, %v2077
        %v2079 = vrot.slane %v2072, %v2078
        %v2080 = vcombine.low %v1576, %v1583
        %v2082 = vunpack.c.l.s4 1983009808
        %v2083 = vunpack.c.0.s8 %v2082
        %v2084 = vlaneseq
        %v2085 = vshrl.u32 %v2084, 7
        %v2086 = vsub.s32 %v2083, %v2085
        %v2087 = vrot.slane %v2080, %v2086
        %v2088 = vcombine.low %v1586, %v1587
        %v2090 = vunpack.c.l.s4 1983009808
        %v2091 = vunpack.c.0.s8 %v2090
        %v2092 = vlaneseq
        %v2093 = vshrl.u32 %v2092, 7
        %v2094 = vsub.s32 %v2091, %v2093
        %v2095 = vrot.slane %v2088, %v2094
        %v2096 = vcombine.low %v2071, %v2079
        %v2097 = vcombine.high %v2071, %v2079
        %v2099 = vunpack.c.l.s4 1934713408
        %v2100 = vunpack.c.0.s8 %v2099
        %v2101 = vlaneseq
        %v2102 = vshrl.u32 %v2101, 7
        %v2103 = vsub.s32 %v2100, %v2102
        %v2104 = vrot.slane %v2096, %v2103
        %v2106 = vunpack.c.l.s4 1934713408
        %v2107 = vunpack.c.0.s8 %v2106
        %v2108 = vlaneseq
        %v2109 = vshrl.u32 %v2108, 7
        %v2110 = vsub.s32 %v2107, %v2109
        %v2111 = vrot.slane %v2097, %v2110
        %v2112 = vcombine.low %v2087, %v2095
        %v2113 = vcombine.high %v2087, %v2095
        %v2115 = vunpack.c.l.s4 1934713408
        %v2116 = vunpack.c.0.s8 %v2115
        %v2117 = vlaneseq
        %v2118 = vshrl.u32 %v2117, 7
        %v2119 = vsub.s32 %v2116, %v2118
        %v2120 = vrot.slane %v2112, %v2119
        %v2122 = vunpack.c.l.s4 1934713408
        %v2123 = vunpack.c.0.s8 %v2122
        %v2124 = vlaneseq
        %v2125 = vshrl.u32 %v2124, 7
        %v2126 = vsub.s32 %v2123, %v2125
        %v2127 = vrot.slane %v2113, %v2126
        %v2128 = vcombine.low %v2104, %v2120
        %v2129 = vcombine.high %v2104, %v2120
        %v2130 = vcombine.low %v2111, %v2127
        %v2131 = vcombine.high %v2111, %v2127
        %v2132 = vcombine.low %v1628, %v1635
        %v2134 = vunpack.c.l.s4 1983009808
        %v2135 = vunpack.c.0.s8 %v2134
        %v2136 = vlaneseq
        %v2137 = vshrl.u32 %v2136, 7
        %v2138 = vsub.s32 %v2135, %v2137
        %v2139 = vrot.slane %v2132, %v2138
        %v2140 = vcombine.low %v1652, %v1653
        %v2142 = vunpack.c.l.s4 1983009808
        %v2143 = vunpack.c.0.s8 %v2142
        %v2144 = vlaneseq
        %v2145 = vshrl.u32 %v2144, 7
        %v2146 = vsub.s32 %v2143, %v2145
        %v2147 = vrot.slane %v2140, %v2146
        %v2148 = vcombine.low %v1644, %v1651
        %v2150 = vunpack.c.l.s4 1983009808
        %v2151 = vunpack.c.0.s8 %v2150
        %v2152 = vlaneseq
        %v2153 = vshrl.u32 %v2152, 7
        %v2154 = vsub.s32 %v2151, %v2153
        %v2155 = vrot.slane %v2148, %v2154
        %v2156 = vcombine.low %v1654, %v1655
        %v2158 = vunpack.c.l.s4 1983009808
        %v2159 = vunpack.c.0.s8 %v2158
        %v2160 = vlaneseq
        %v2161 = vshrl.u32 %v2160, 7
        %v2162 = vsub.s32 %v2159, %v2161
        %v2163 = vrot.slane %v2156, %v2162
        %v2164 = vcombine.low %v2139, %v2147
        %v2165 = vcombine.high %v2139, %v2147
        %v2167 = vunpack.c.l.s4 1934713408
        %v2168 = vunpack.c.0.s8 %v2167
        %v2169 = vlaneseq
        %v2170 = vshrl.u32 %v2169, 7
        %v2171 = vsub.s32 %v2168, %v2170
        %v2172 = vrot.slane %v2164, %v2171
        %v2174 = vunpack.c.l.s4 1934713408
        %v2175 = vunpack.c.0.s8 %v2174
        %v2176 = vlaneseq
        %v2177 = vshrl.u32 %v2176, 7
        %v2178 = vsub.s32 %v2175, %v2177
        %v2179 = vrot.slane %v2165, %v2178
        %v2180 = vcombine.low %v2155, %v2163
        %v2181 = vcombine.high %v2155, %v2163
        %v2183 = vunpack.c.l.s4 1934713408
        %v2184 = vunpack.c.0.s8 %v2183
        %v2185 = vlaneseq
        %v2186 = vshrl.u32 %v2185, 7
        %v2187 = vsub.s32 %v2184, %v2186
        %v2188 = vrot.slane %v2180, %v2187
        %v2190 = vunpack.c.l.s4 1934713408
        %v2191 = vunpack.c.0.s8 %v2190
        %v2192 = vlaneseq
        %v2193 = vshrl.u32 %v2192, 7
        %v2194 = vsub.s32 %v2191, %v2193
        %v2195 = vrot.slane %v2181, %v2194
        %v2196 = vcombine.low %v2172, %v2188
        %v2197 = vcombine.high %v2172, %v2188
        %v2198 = vcombine.low %v2179, %v2195
        %v2199 = vcombine.high %v2179, %v2195
        %v2200 = vcombine.low %v1696, %v1703
        %v2202 = vunpack.c.l.s4 1983009808
        %v2203 = vunpack.c.0.s8 %v2202
        %v2204 = vlaneseq
        %v2205 = vshrl.u32 %v2204, 7
        %v2206 = vsub.s32 %v2203, %v2205
        %v2207 = vrot.slane %v2200, %v2206
        %v2208 = vcombine.low %v1720, %v1721
        %v2210 = vunpack.c.l.s4 1983009808
        %v2211 = vunpack.c.0.s8 %v2210
        %v2212 = vlaneseq
        %v2213 = vshrl.u32 %v2212, 7
        %v2214 = vsub.s32 %v2211, %v2213
        %v2215 = vrot.slane %v2208, %v2214
        %v2216 = vcombine.low %v1712, %v1719
        %v2218 = vunpack.c.l.s4 1983009808
        %v2219 = vunpack.c.0.s8 %v2218
        %v2220 = vlaneseq
        %v2221 = vshrl.u32 %v2220, 7
        %v2222 = vsub.s32 %v2219, %v2221
        %v2223 = vrot.slane %v2216, %v2222
        %v2224 = vcombine.low %v1722, %v1723
        %v2226 = vunpack.c.l.s4 1983009808
        %v2227 = vunpack.c.0.s8 %v2226
        %v2228 = vlaneseq
        %v2229 = vshrl.u32 %v2228, 7
        %v2230 = vsub.s32 %v2227, %v2229
        %v2231 = vrot.slane %v2224, %v2230
        %v2232 = vcombine.low %v2207, %v2215
        %v2233 = vcombine.high %v2207, %v2215
        %v2235 = vunpack.c.l.s4 1934713408
        %v2236 = vunpack.c.0.s8 %v2235
        %v2237 = vlaneseq
        %v2238 = vshrl.u32 %v2237, 7
        %v2239 = vsub.s32 %v2236, %v2238
        %v2240 = vrot.slane %v2232, %v2239
        %v2242 = vunpack.c.l.s4 1934713408
        %v2243 = vunpack.c.0.s8 %v2242
        %v2244 = vlaneseq
        %v2245 = vshrl.u32 %v2244, 7
        %v2246 = vsub.s32 %v2243, %v2245
        %v2247 = vrot.slane %v2233, %v2246
        %v2248 = vcombine.low %v2223, %v2231
        %v2249 = vcombine.high %v2223, %v2231
        %v2251 = vunpack.c.l.s4 1934713408
        %v2252 = vunpack.c.0.s8 %v2251
        %v2253 = vlaneseq
        %v2254 = vshrl.u32 %v2253, 7
        %v2255 = vsub.s32 %v2252, %v2254
        %v2256 = vrot.slane %v2248, %v2255
        %v2258 = vunpack.c.l.s4 1934713408
        %v2259 = vunpack.c.0.s8 %v2258
        %v2260 = vlaneseq
        %v2261 = vshrl.u32 %v2260, 7
        %v2262 = vsub.s32 %v2259, %v2261
        %v2263 = vrot.slane %v2249, %v2262
        %v2264 = vcombine.low %v2240, %v2256
        %v2265 = vcombine.high %v2240, %v2256
        %v2266 = vcombine.low %v2247, %v2263
        %v2267 = vcombine.high %v2247, %v2263
        %v2268 = vcombine.low %v1764, %v1771
        %v2270 = vunpack.c.l.s4 1983009808
        %v2271 = vunpack.c.0.s8 %v2270
        %v2272 = vlaneseq
        %v2273 = vshrl.u32 %v2272, 7
        %v2274 = vsub.s32 %v2271, %v2273
        %v2275 = vrot.slane %v2268, %v2274
        %v2276 = vcombine.low %v1788, %v1789
        %v2278 = vunpack.c.l.s4 1983009808
        %v2279 = vunpack.c.0.s8 %v2278
        %v2280 = vlaneseq
        %v2281 = vshrl.u32 %v2280, 7
        %v2282 = vsub.s32 %v2279, %v2281
        %v2283 = vrot.slane %v2276, %v2282
        %v2284 = vcombine.low %v1780, %v1787
        %v2286 = vunpack.c.l.s4 1983009808
        %v2287 = vunpack.c.0.s8 %v2286
        %v2288 = vlaneseq
        %v2289 = vshrl.u32 %v2288, 7
        %v2290 = vsub.s32 %v2287, %v2289
        %v2291 = vrot.slane %v2284, %v2290
        %v2292 = vcombine.low %v1790, %v1791
        %v2294 = vunpack.c.l.s4 1983009808
        %v2295 = vunpack.c.0.s8 %v2294
        %v2296 = vlaneseq
        %v2297 = vshrl.u32 %v2296, 7
        %v2298 = vsub.s32 %v2295, %v2297
        %v2299 = vrot.slane %v2292, %v2298
        %v2300 = vcombine.low %v2275, %v2283
        %v2301 = vcombine.high %v2275, %v2283
        %v2303 = vunpack.c.l.s4 1934713408
        %v2304 = vunpack.c.0.s8 %v2303
        %v2305 = vlaneseq
        %v2306 = vshrl.u32 %v2305, 7
        %v2307 = vsub.s32 %v2304, %v2306
        %v2308 = vrot.slane %v2300, %v2307
        %v2310 = vunpack.c.l.s4 1934713408
        %v2311 = vunpack.c.0.s8 %v2310
        %v2312 = vlaneseq
        %v2313 = vshrl.u32 %v2312, 7
        %v2314 = vsub.s32 %v2311, %v2313
        %v2315 = vrot.slane %v2301, %v2314
        %v2316 = vcombine.low %v2291, %v2299
        %v2317 = vcombine.high %v2291, %v2299
        %v2319 = vunpack.c.l.s4 1934713408
        %v2320 = vunpack.c.0.s8 %v2319
        %v2321 = vlaneseq
        %v2322 = vshrl.u32 %v2321, 7
        %v2323 = vsub.s32 %v2320, %v2322
        %v2324 = vrot.slane %v2316, %v2323
        %v2326 = vunpack.c.l.s4 1934713408
        %v2327 = vunpack.c.0.s8 %v2326
        %v2328 = vlaneseq
        %v2329 = vshrl.u32 %v2328, 7
        %v2330 = vsub.s32 %v2327, %v2329
        %v2331 = vrot.slane %v2317, %v2330
        %v2332 = vcombine.low %v2308, %v2324
        %v2333 = vcombine.high %v2308, %v2324
        %v2334 = vcombine.low %v2315, %v2331
        %v2335 = vcombine.high %v2315, %v2331
        %v2336 = vcombine.low %v1832, %v1839
        %v2338 = vunpack.c.l.s4 1983009808
        %v2339 = vunpack.c.0.s8 %v2338
        %v2340 = vlaneseq
        %v2341 = vshrl.u32 %v2340, 7
        %v2342 = vsub.s32 %v2339, %v2341
        %v2343 = vrot.slane %v2336, %v2342
        %v2344 = vcombine.low %v1856, %v1857
        %v2346 = vunpack.c.l.s4 1983009808
        %v2347 = vunpack.c.0.s8 %v2346
        %v2348 = vlaneseq
        %v2349 = vshrl.u32 %v2348, 7
        %v2350 = vsub.s32 %v2347, %v2349
        %v2351 = vrot.slane %v2344, %v2350
        %v2352 = vcombine.low %v1848, %v1855
        %v2354 = vunpack.c.l.s4 1983009808
        %v2355 = vunpack.c.0.s8 %v2354
        %v2356 = vlaneseq
        %v2357 = vshrl.u32 %v2356, 7
        %v2358 = vsub.s32 %v2355, %v2357
        %v2359 = vrot.slane %v2352, %v2358
        %v2360 = vcombine.low %v1858, %v1859
        %v2362 = vunpack.c.l.s4 1983009808
        %v2363 = vunpack.c.0.s8 %v2362
        %v2364 = vlaneseq
        %v2365 = vshrl.u32 %v2364, 7
        %v2366 = vsub.s32 %v2363, %v2365
        %v2367 = vrot.slane %v2360, %v2366
        %v2368 = vcombine.low %v2343, %v2351
        %v2369 = vcombine.high %v2343, %v2351
        %v2371 = vunpack.c.l.s4 1934713408
        %v2372 = vunpack.c.0.s8 %v2371
        %v2373 = vlaneseq
        %v2374 = vshrl.u32 %v2373, 7
        %v2375 = vsub.s32 %v2372, %v2374
        %v2376 = vrot.slane %v2368, %v2375
        %v2378 = vunpack.c.l.s4 1934713408
        %v2379 = vunpack.c.0.s8 %v2378
        %v2380 = vlaneseq
        %v2381 = vshrl.u32 %v2380, 7
        %v2382 = vsub.s32 %v2379, %v2381
        %v2383 = vrot.slane %v2369, %v2382
        %v2384 = vcombine.low %v2359, %v2367
        %v2385 = vcombine.high %v2359, %v2367
        %v2387 = vunpack.c.l.s4 1934713408
        %v2388 = vunpack.c.0.s8 %v2387
        %v2389 = vlaneseq
        %v2390 = vshrl.u32 %v2389, 7
        %v2391 = vsub.s32 %v2388, %v2390
        %v2392 = vrot.slane %v2384, %v2391
        %v2394 = vunpack.c.l.s4 1934713408
        %v2395 = vunpack.c.0.s8 %v2394
        %v2396 = vlaneseq
        %v2397 = vshrl.u32 %v2396, 7
        %v2398 = vsub.s32 %v2395, %v2397
        %v2399 = vrot.slane %v2385, %v2398
        %v2400 = vcombine.low %v2376, %v2392
        %v2401 = vcombine.high %v2376, %v2392
        %v2402 = vcombine.low %v2383, %v2399
        %v2403 = vcombine.high %v2383, %v2399
        %v2404 = vpack.c.bf16 %v1992, %v1924
        %v2405 = vpack.c.bf16 %v2128, %v2060
        %v2406 = vpack.c.bf16 %v2264, %v2196
        %v2407 = vpack.c.bf16 %v2400, %v2332
        %v2408 = vpack.c.bf16 %v1993, %v1925
        %v2409 = vpack.c.bf16 %v2129, %v2061
        %v2410 = vpack.c.bf16 %v2265, %v2197
        %v2411 = vpack.c.bf16 %v2401, %v2333
        %v2412 = vpack.c.bf16 %v1994, %v1926
        %v2413 = vpack.c.bf16 %v2130, %v2062
        %v2414 = vpack.c.bf16 %v2266, %v2198
        %v2415 = vpack.c.bf16 %v2402, %v2334
        %v2416 = vpack.c.bf16 %v1995, %v1927
        %v2417 = vpack.c.bf16 %v2131, %v2063
        %v2418 = vpack.c.bf16 %v2267, %v2199
        %v2419 = vpack.c.bf16 %v2403, %v2335
        %2436 = vrot.lane.b32.xlu0 %v1005, 96
        %v2437 = vpop.permute.xlu0 %2436
        %2438 = vrot.lane.b32.xlu0 %v1008, 96
        %v2439 = vpop.permute.xlu0 %2438
        %2440 = vrot.lane.b32.xlu0 %v1013, 96
        %v2441 = vpop.permute.xlu0 %2440
        %2442 = vrot.lane.b32.xlu0 %v1016, 96
        %v2443 = vpop.permute.xlu0 %2442
        %2444 = vrot.lane.b32.xlu0 %v1021, 96
        %v2445 = vpop.permute.xlu0 %2444
        %2446 = vrot.lane.b32.xlu0 %v1024, 96
        %v2447 = vpop.permute.xlu0 %2446
        %2448 = vrot.lane.b32.xlu0 %v1029, 96
        %v2449 = vpop.permute.xlu0 %2448
        %2450 = vrot.lane.b32.xlu0 %v1032, 96
        %v2451 = vpop.permute.xlu0 %2450
        %2452 = vrot.lane.b32.xlu0 %v1037, 96
        %v2453 = vpop.permute.xlu0 %2452
        %2454 = vrot.lane.b32.xlu0 %v1040, 96
        %v2455 = vpop.permute.xlu0 %2454
        %2456 = vrot.lane.b32.xlu0 %v1045, 96
        %v2457 = vpop.permute.xlu0 %2456
        %2458 = vrot.lane.b32.xlu0 %v1048, 96
        %v2459 = vpop.permute.xlu0 %2458
        %2460 = vrot.lane.b32.xlu0 %v1053, 96
        %v2461 = vpop.permute.xlu0 %2460
        %2462 = vrot.lane.b32.xlu0 %v1056, 96
        %v2463 = vpop.permute.xlu0 %2462
        %2464 = vrot.lane.b32.xlu0 %v1061, 96
        %v2465 = vpop.permute.xlu0 %2464
        %2466 = vrot.lane.b32.xlu0 %v1064, 96
        %v2467 = vpop.permute.xlu0 %2466
        %2484 = vrot.lane.b32.xlu0 %v1005, 64
        %v2485 = vpop.permute.xlu0 %2484
        %2486 = vrot.lane.b32.xlu0 %v1008, 64
        %v2487 = vpop.permute.xlu0 %2486
        %2488 = vrot.lane.b32.xlu0 %v1013, 64
        %v2489 = vpop.permute.xlu0 %2488
        %2490 = vrot.lane.b32.xlu0 %v1016, 64
        %v2491 = vpop.permute.xlu0 %2490
        %2492 = vrot.lane.b32.xlu0 %v1021, 64
        %v2493 = vpop.permute.xlu0 %2492
        %2494 = vrot.lane.b32.xlu0 %v1024, 64
        %v2495 = vpop.permute.xlu0 %2494
        %2496 = vrot.lane.b32.xlu0 %v1029, 64
        %v2497 = vpop.permute.xlu0 %2496
        %2498 = vrot.lane.b32.xlu0 %v1032, 64
        %v2499 = vpop.permute.xlu0 %2498
        %2500 = vrot.lane.b32.xlu0 %v1037, 64
        %v2501 = vpop.permute.xlu0 %2500
        %2502 = vrot.lane.b32.xlu0 %v1040, 64
        %v2503 = vpop.permute.xlu0 %2502
        %2504 = vrot.lane.b32.xlu0 %v1045, 64
        %v2505 = vpop.permute.xlu0 %2504
        %2506 = vrot.lane.b32.xlu0 %v1048, 64
        %v2507 = vpop.permute.xlu0 %2506
        %2508 = vrot.lane.b32.xlu0 %v1053, 64
        %v2509 = vpop.permute.xlu0 %2508
        %2510 = vrot.lane.b32.xlu0 %v1056, 64
        %v2511 = vpop.permute.xlu0 %2510
        %2512 = vrot.lane.b32.xlu0 %v1061, 64
        %v2513 = vpop.permute.xlu0 %2512
        %2514 = vrot.lane.b32.xlu0 %v1064, 64
        %v2515 = vpop.permute.xlu0 %2514
        %2532 = vrot.lane.b32.xlu0 %v1005, 32
        %v2533 = vpop.permute.xlu0 %2532
        %2534 = vrot.lane.b32.xlu0 %v1008, 32
        %v2535 = vpop.permute.xlu0 %2534
        %2536 = vrot.lane.b32.xlu0 %v1013, 32
        %v2537 = vpop.permute.xlu0 %2536
        %2538 = vrot.lane.b32.xlu0 %v1016, 32
        %v2539 = vpop.permute.xlu0 %2538
        %2540 = vrot.lane.b32.xlu0 %v1021, 32
        %v2541 = vpop.permute.xlu0 %2540
        %2542 = vrot.lane.b32.xlu0 %v1024, 32
        %v2543 = vpop.permute.xlu0 %2542
        %2544 = vrot.lane.b32.xlu0 %v1029, 32
        %v2545 = vpop.permute.xlu0 %2544
        %2546 = vrot.lane.b32.xlu0 %v1032, 32
        %v2547 = vpop.permute.xlu0 %2546
        %2548 = vrot.lane.b32.xlu0 %v1037, 32
        %v2549 = vpop.permute.xlu0 %2548
        %2550 = vrot.lane.b32.xlu0 %v1040, 32
        %v2551 = vpop.permute.xlu0 %2550
        %2552 = vrot.lane.b32.xlu0 %v1045, 32
        %v2553 = vpop.permute.xlu0 %2552
        %2554 = vrot.lane.b32.xlu0 %v1048, 32
        %v2555 = vpop.permute.xlu0 %2554
        %2556 = vrot.lane.b32.xlu0 %v1053, 32
        %v2557 = vpop.permute.xlu0 %2556
        %2558 = vrot.lane.b32.xlu0 %v1056, 32
        %v2559 = vpop.permute.xlu0 %2558
        %2560 = vrot.lane.b32.xlu0 %v1061, 32
        %v2561 = vpop.permute.xlu0 %2560
        %2562 = vrot.lane.b32.xlu0 %v1064, 32
        %v2563 = vpop.permute.xlu0 %2562
        %v2580 = vcombine.low %v1005, %v2485
        %v2581 = vcombine.high %v1005, %v2485
        %v2583 = vunpack.c.l.s4 1983009808
        %v2584 = vunpack.c.0.s8 %v2583
        %v2585 = vlaneseq
        %v2586 = vshrl.u32 %v2585, 7
        %v2587 = vsub.s32 %v2584, %v2586
        %v2588 = vrot.slane %v2580, %v2587
        %v2590 = vunpack.c.l.s4 1983009808
        %v2591 = vunpack.c.0.s8 %v2590
        %v2592 = vlaneseq
        %v2593 = vshrl.u32 %v2592, 7
        %v2594 = vsub.s32 %v2591, %v2593
        %v2595 = vrot.slane %v2581, %v2594
        %v2596 = vcombine.low %v2437, %v2533
        %v2597 = vcombine.high %v2437, %v2533
        %v2599 = vunpack.c.l.s4 1983009808
        %v2600 = vunpack.c.0.s8 %v2599
        %v2601 = vlaneseq
        %v2602 = vshrl.u32 %v2601, 7
        %v2603 = vsub.s32 %v2600, %v2602
        %v2604 = vrot.slane %v2596, %v2603
        %v2606 = vunpack.c.l.s4 1983009808
        %v2607 = vunpack.c.0.s8 %v2606
        %v2608 = vlaneseq
        %v2609 = vshrl.u32 %v2608, 7
        %v2610 = vsub.s32 %v2607, %v2609
        %v2611 = vrot.slane %v2597, %v2610
        %v2612 = vcombine.low %v2588, %v2604
        %v2613 = vcombine.high %v2588, %v2604
        %v2615 = vunpack.c.l.s4 1934713408
        %v2616 = vunpack.c.0.s8 %v2615
        %v2617 = vlaneseq
        %v2618 = vshrl.u32 %v2617, 7
        %v2619 = vsub.s32 %v2616, %v2618
        %v2620 = vrot.slane %v2612, %v2619
        %v2622 = vunpack.c.l.s4 1934713408
        %v2623 = vunpack.c.0.s8 %v2622
        %v2624 = vlaneseq
        %v2625 = vshrl.u32 %v2624, 7
        %v2626 = vsub.s32 %v2623, %v2625
        %v2627 = vrot.slane %v2613, %v2626
        %v2628 = vcombine.low %v2595, %v2611
        %v2629 = vcombine.high %v2595, %v2611
        %v2631 = vunpack.c.l.s4 1934713408
        %v2632 = vunpack.c.0.s8 %v2631
        %v2633 = vlaneseq
        %v2634 = vshrl.u32 %v2633, 7
        %v2635 = vsub.s32 %v2632, %v2634
        %v2636 = vrot.slane %v2628, %v2635
        %v2638 = vunpack.c.l.s4 1934713408
        %v2639 = vunpack.c.0.s8 %v2638
        %v2640 = vlaneseq
        %v2641 = vshrl.u32 %v2640, 7
        %v2642 = vsub.s32 %v2639, %v2641
        %v2643 = vrot.slane %v2629, %v2642
        %v2644 = vcombine.high %v2620, 0.0
        %v2645 = vcombine.high %v2627, 0.0
        %v2646 = vcombine.high %v2636, 0.0
        %v2647 = vcombine.high %v2643, 0.0
        %v2648 = vcombine.low %v1008, %v2487
        %v2649 = vcombine.high %v1008, %v2487
        %v2651 = vunpack.c.l.s4 1983009808
        %v2652 = vunpack.c.0.s8 %v2651
        %v2653 = vlaneseq
        %v2654 = vshrl.u32 %v2653, 7
        %v2655 = vsub.s32 %v2652, %v2654
        %v2656 = vrot.slane %v2648, %v2655
        %v2658 = vunpack.c.l.s4 1983009808
        %v2659 = vunpack.c.0.s8 %v2658
        %v2660 = vlaneseq
        %v2661 = vshrl.u32 %v2660, 7
        %v2662 = vsub.s32 %v2659, %v2661
        %v2663 = vrot.slane %v2649, %v2662
        %v2664 = vcombine.low %v2439, %v2535
        %v2665 = vcombine.high %v2439, %v2535
        %v2667 = vunpack.c.l.s4 1983009808
        %v2668 = vunpack.c.0.s8 %v2667
        %v2669 = vlaneseq
        %v2670 = vshrl.u32 %v2669, 7
        %v2671 = vsub.s32 %v2668, %v2670
        %v2672 = vrot.slane %v2664, %v2671
        %v2674 = vunpack.c.l.s4 1983009808
        %v2675 = vunpack.c.0.s8 %v2674
        %v2676 = vlaneseq
        %v2677 = vshrl.u32 %v2676, 7
        %v2678 = vsub.s32 %v2675, %v2677
        %v2679 = vrot.slane %v2665, %v2678
        %v2680 = vcombine.low %v2656, %v2672
        %v2681 = vcombine.high %v2656, %v2672
        %v2683 = vunpack.c.l.s4 1934713408
        %v2684 = vunpack.c.0.s8 %v2683
        %v2685 = vlaneseq
        %v2686 = vshrl.u32 %v2685, 7
        %v2687 = vsub.s32 %v2684, %v2686
        %v2688 = vrot.slane %v2680, %v2687
        %v2690 = vunpack.c.l.s4 1934713408
        %v2691 = vunpack.c.0.s8 %v2690
        %v2692 = vlaneseq
        %v2693 = vshrl.u32 %v2692, 7
        %v2694 = vsub.s32 %v2691, %v2693
        %v2695 = vrot.slane %v2681, %v2694
        %v2696 = vcombine.low %v2663, %v2679
        %v2697 = vcombine.high %v2663, %v2679
        %v2699 = vunpack.c.l.s4 1934713408
        %v2700 = vunpack.c.0.s8 %v2699
        %v2701 = vlaneseq
        %v2702 = vshrl.u32 %v2701, 7
        %v2703 = vsub.s32 %v2700, %v2702
        %v2704 = vrot.slane %v2696, %v2703
        %v2706 = vunpack.c.l.s4 1934713408
        %v2707 = vunpack.c.0.s8 %v2706
        %v2708 = vlaneseq
        %v2709 = vshrl.u32 %v2708, 7
        %v2710 = vsub.s32 %v2707, %v2709
        %v2711 = vrot.slane %v2697, %v2710
        %v2712 = vcombine.high %v2688, 0.0
        %v2713 = vcombine.high %v2695, 0.0
        %v2714 = vcombine.high %v2704, 0.0
        %v2715 = vcombine.high %v2711, 0.0
        %v2716 = vcombine.low %v1013, %v2489
        %v2717 = vcombine.high %v1013, %v2489
        %v2719 = vunpack.c.l.s4 1983009808
        %v2720 = vunpack.c.0.s8 %v2719
        %v2721 = vlaneseq
        %v2722 = vshrl.u32 %v2721, 7
        %v2723 = vsub.s32 %v2720, %v2722
        %v2724 = vrot.slane %v2716, %v2723
        %v2726 = vunpack.c.l.s4 1983009808
        %v2727 = vunpack.c.0.s8 %v2726
        %v2728 = vlaneseq
        %v2729 = vshrl.u32 %v2728, 7
        %v2730 = vsub.s32 %v2727, %v2729
        %v2731 = vrot.slane %v2717, %v2730
        %v2732 = vcombine.low %v2441, %v2537
        %v2733 = vcombine.high %v2441, %v2537
        %v2735 = vunpack.c.l.s4 1983009808
        %v2736 = vunpack.c.0.s8 %v2735
        %v2737 = vlaneseq
        %v2738 = vshrl.u32 %v2737, 7
        %v2739 = vsub.s32 %v2736, %v2738
        %v2740 = vrot.slane %v2732, %v2739
        %v2742 = vunpack.c.l.s4 1983009808
        %v2743 = vunpack.c.0.s8 %v2742
        %v2744 = vlaneseq
        %v2745 = vshrl.u32 %v2744, 7
        %v2746 = vsub.s32 %v2743, %v2745
        %v2747 = vrot.slane %v2733, %v2746
        %v2748 = vcombine.low %v2724, %v2740
        %v2749 = vcombine.high %v2724, %v2740
        %v2751 = vunpack.c.l.s4 1934713408
        %v2752 = vunpack.c.0.s8 %v2751
        %v2753 = vlaneseq
        %v2754 = vshrl.u32 %v2753, 7
        %v2755 = vsub.s32 %v2752, %v2754
        %v2756 = vrot.slane %v2748, %v2755
        %v2758 = vunpack.c.l.s4 1934713408
        %v2759 = vunpack.c.0.s8 %v2758
        %v2760 = vlaneseq
        %v2761 = vshrl.u32 %v2760, 7
        %v2762 = vsub.s32 %v2759, %v2761
        %v2763 = vrot.slane %v2749, %v2762
        %v2764 = vcombine.low %v2731, %v2747
        %v2765 = vcombine.high %v2731, %v2747
        %v2767 = vunpack.c.l.s4 1934713408
        %v2768 = vunpack.c.0.s8 %v2767
        %v2769 = vlaneseq
        %v2770 = vshrl.u32 %v2769, 7
        %v2771 = vsub.s32 %v2768, %v2770
        %v2772 = vrot.slane %v2764, %v2771
        %v2774 = vunpack.c.l.s4 1934713408
        %v2775 = vunpack.c.0.s8 %v2774
        %v2776 = vlaneseq
        %v2777 = vshrl.u32 %v2776, 7
        %v2778 = vsub.s32 %v2775, %v2777
        %v2779 = vrot.slane %v2765, %v2778
        %v2780 = vcombine.high %v2756, 0.0
        %v2781 = vcombine.high %v2763, 0.0
        %v2782 = vcombine.high %v2772, 0.0
        %v2783 = vcombine.high %v2779, 0.0
        %v2784 = vcombine.low %v1016, %v2491
        %v2785 = vcombine.high %v1016, %v2491
        %v2787 = vunpack.c.l.s4 1983009808
        %v2788 = vunpack.c.0.s8 %v2787
        %v2789 = vlaneseq
        %v2790 = vshrl.u32 %v2789, 7
        %v2791 = vsub.s32 %v2788, %v2790
        %v2792 = vrot.slane %v2784, %v2791
        %v2794 = vunpack.c.l.s4 1983009808
        %v2795 = vunpack.c.0.s8 %v2794
        %v2796 = vlaneseq
        %v2797 = vshrl.u32 %v2796, 7
        %v2798 = vsub.s32 %v2795, %v2797
        %v2799 = vrot.slane %v2785, %v2798
        %v2800 = vcombine.low %v2443, %v2539
        %v2801 = vcombine.high %v2443, %v2539
        %v2803 = vunpack.c.l.s4 1983009808
        %v2804 = vunpack.c.0.s8 %v2803
        %v2805 = vlaneseq
        %v2806 = vshrl.u32 %v2805, 7
        %v2807 = vsub.s32 %v2804, %v2806
        %v2808 = vrot.slane %v2800, %v2807
        %v2810 = vunpack.c.l.s4 1983009808
        %v2811 = vunpack.c.0.s8 %v2810
        %v2812 = vlaneseq
        %v2813 = vshrl.u32 %v2812, 7
        %v2814 = vsub.s32 %v2811, %v2813
        %v2815 = vrot.slane %v2801, %v2814
        %v2816 = vcombine.low %v2792, %v2808
        %v2817 = vcombine.high %v2792, %v2808
        %v2819 = vunpack.c.l.s4 1934713408
        %v2820 = vunpack.c.0.s8 %v2819
        %v2821 = vlaneseq
        %v2822 = vshrl.u32 %v2821, 7
        %v2823 = vsub.s32 %v2820, %v2822
        %v2824 = vrot.slane %v2816, %v2823
        %v2826 = vunpack.c.l.s4 1934713408
        %v2827 = vunpack.c.0.s8 %v2826
        %v2828 = vlaneseq
        %v2829 = vshrl.u32 %v2828, 7
        %v2830 = vsub.s32 %v2827, %v2829
        %v2831 = vrot.slane %v2817, %v2830
        %v2832 = vcombine.low %v2799, %v2815
        %v2833 = vcombine.high %v2799, %v2815
        %v2835 = vunpack.c.l.s4 1934713408
        %v2836 = vunpack.c.0.s8 %v2835
        %v2837 = vlaneseq
        %v2838 = vshrl.u32 %v2837, 7
        %v2839 = vsub.s32 %v2836, %v2838
        %v2840 = vrot.slane %v2832, %v2839
        %v2842 = vunpack.c.l.s4 1934713408
        %v2843 = vunpack.c.0.s8 %v2842
        %v2844 = vlaneseq
        %v2845 = vshrl.u32 %v2844, 7
        %v2846 = vsub.s32 %v2843, %v2845
        %v2847 = vrot.slane %v2833, %v2846
        %v2848 = vcombine.high %v2824, 0.0
        %v2849 = vcombine.high %v2831, 0.0
        %v2850 = vcombine.high %v2840, 0.0
        %v2851 = vcombine.high %v2847, 0.0
        %v2852 = vcombine.low %v1021, %v2493
        %v2853 = vcombine.high %v1021, %v2493
        %v2855 = vunpack.c.l.s4 1983009808
        %v2856 = vunpack.c.0.s8 %v2855
        %v2857 = vlaneseq
        %v2858 = vshrl.u32 %v2857, 7
        %v2859 = vsub.s32 %v2856, %v2858
        %v2860 = vrot.slane %v2852, %v2859
        %v2862 = vunpack.c.l.s4 1983009808
        %v2863 = vunpack.c.0.s8 %v2862
        %v2864 = vlaneseq
        %v2865 = vshrl.u32 %v2864, 7
        %v2866 = vsub.s32 %v2863, %v2865
        %v2867 = vrot.slane %v2853, %v2866
        %v2868 = vcombine.low %v2445, %v2541
        %v2869 = vcombine.high %v2445, %v2541
        %v2871 = vunpack.c.l.s4 1983009808
        %v2872 = vunpack.c.0.s8 %v2871
        %v2873 = vlaneseq
        %v2874 = vshrl.u32 %v2873, 7
        %v2875 = vsub.s32 %v2872, %v2874
        %v2876 = vrot.slane %v2868, %v2875
        %v2878 = vunpack.c.l.s4 1983009808
        %v2879 = vunpack.c.0.s8 %v2878
        %v2880 = vlaneseq
        %v2881 = vshrl.u32 %v2880, 7
        %v2882 = vsub.s32 %v2879, %v2881
        %v2883 = vrot.slane %v2869, %v2882
        %v2884 = vcombine.low %v2860, %v2876
        %v2885 = vcombine.high %v2860, %v2876
        %v2887 = vunpack.c.l.s4 1934713408
        %v2888 = vunpack.c.0.s8 %v2887
        %v2889 = vlaneseq
        %v2890 = vshrl.u32 %v2889, 7
        %v2891 = vsub.s32 %v2888, %v2890
        %v2892 = vrot.slane %v2884, %v2891
        %v2894 = vunpack.c.l.s4 1934713408
        %v2895 = vunpack.c.0.s8 %v2894
        %v2896 = vlaneseq
        %v2897 = vshrl.u32 %v2896, 7
        %v2898 = vsub.s32 %v2895, %v2897
        %v2899 = vrot.slane %v2885, %v2898
        %v2900 = vcombine.low %v2867, %v2883
        %v2901 = vcombine.high %v2867, %v2883
        %v2903 = vunpack.c.l.s4 1934713408
        %v2904 = vunpack.c.0.s8 %v2903
        %v2905 = vlaneseq
        %v2906 = vshrl.u32 %v2905, 7
        %v2907 = vsub.s32 %v2904, %v2906
        %v2908 = vrot.slane %v2900, %v2907
        %v2910 = vunpack.c.l.s4 1934713408
        %v2911 = vunpack.c.0.s8 %v2910
        %v2912 = vlaneseq
        %v2913 = vshrl.u32 %v2912, 7
        %v2914 = vsub.s32 %v2911, %v2913
        %v2915 = vrot.slane %v2901, %v2914
        %v2916 = vcombine.high %v2892, 0.0
        %v2917 = vcombine.high %v2899, 0.0
        %v2918 = vcombine.high %v2908, 0.0
        %v2919 = vcombine.high %v2915, 0.0
        %v2920 = vcombine.low %v1024, %v2495
        %v2921 = vcombine.high %v1024, %v2495
        %v2923 = vunpack.c.l.s4 1983009808
        %v2924 = vunpack.c.0.s8 %v2923
        %v2925 = vlaneseq
        %v2926 = vshrl.u32 %v2925, 7
        %v2927 = vsub.s32 %v2924, %v2926
        %v2928 = vrot.slane %v2920, %v2927
        %v2930 = vunpack.c.l.s4 1983009808
        %v2931 = vunpack.c.0.s8 %v2930
        %v2932 = vlaneseq
        %v2933 = vshrl.u32 %v2932, 7
        %v2934 = vsub.s32 %v2931, %v2933
        %v2935 = vrot.slane %v2921, %v2934
        %v2936 = vcombine.low %v2447, %v2543
        %v2937 = vcombine.high %v2447, %v2543
        %v2939 = vunpack.c.l.s4 1983009808
        %v2940 = vunpack.c.0.s8 %v2939
        %v2941 = vlaneseq
        %v2942 = vshrl.u32 %v2941, 7
        %v2943 = vsub.s32 %v2940, %v2942
        %v2944 = vrot.slane %v2936, %v2943
        %v2946 = vunpack.c.l.s4 1983009808
        %v2947 = vunpack.c.0.s8 %v2946
        %v2948 = vlaneseq
        %v2949 = vshrl.u32 %v2948, 7
        %v2950 = vsub.s32 %v2947, %v2949
        %v2951 = vrot.slane %v2937, %v2950
        %v2952 = vcombine.low %v2928, %v2944
        %v2953 = vcombine.high %v2928, %v2944
        %v2955 = vunpack.c.l.s4 1934713408
        %v2956 = vunpack.c.0.s8 %v2955
        %v2957 = vlaneseq
        %v2958 = vshrl.u32 %v2957, 7
        %v2959 = vsub.s32 %v2956, %v2958
        %v2960 = vrot.slane %v2952, %v2959
        %v2962 = vunpack.c.l.s4 1934713408
        %v2963 = vunpack.c.0.s8 %v2962
        %v2964 = vlaneseq
        %v2965 = vshrl.u32 %v2964, 7
        %v2966 = vsub.s32 %v2963, %v2965
        %v2967 = vrot.slane %v2953, %v2966
        %v2968 = vcombine.low %v2935, %v2951
        %v2969 = vcombine.high %v2935, %v2951
        %v2971 = vunpack.c.l.s4 1934713408
        %v2972 = vunpack.c.0.s8 %v2971
        %v2973 = vlaneseq
        %v2974 = vshrl.u32 %v2973, 7
        %v2975 = vsub.s32 %v2972, %v2974
        %v2976 = vrot.slane %v2968, %v2975
        %v2978 = vunpack.c.l.s4 1934713408
        %v2979 = vunpack.c.0.s8 %v2978
        %v2980 = vlaneseq
        %v2981 = vshrl.u32 %v2980, 7
        %v2982 = vsub.s32 %v2979, %v2981
        %v2983 = vrot.slane %v2969, %v2982
        %v2984 = vcombine.high %v2960, 0.0
        %v2985 = vcombine.high %v2967, 0.0
        %v2986 = vcombine.high %v2976, 0.0
        %v2987 = vcombine.high %v2983, 0.0
        %v2988 = vcombine.low %v1029, %v2497
        %v2989 = vcombine.high %v1029, %v2497
        %v2991 = vunpack.c.l.s4 1983009808
        %v2992 = vunpack.c.0.s8 %v2991
        %v2993 = vlaneseq
        %v2994 = vshrl.u32 %v2993, 7
        %v2995 = vsub.s32 %v2992, %v2994
        %v2996 = vrot.slane %v2988, %v2995
        %v2998 = vunpack.c.l.s4 1983009808
        %v2999 = vunpack.c.0.s8 %v2998
        %v3000 = vlaneseq
        %v3001 = vshrl.u32 %v3000, 7
        %v3002 = vsub.s32 %v2999, %v3001
        %v3003 = vrot.slane %v2989, %v3002
        %v3004 = vcombine.low %v2449, %v2545
        %v3005 = vcombine.high %v2449, %v2545
        %v3007 = vunpack.c.l.s4 1983009808
        %v3008 = vunpack.c.0.s8 %v3007
        %v3009 = vlaneseq
        %v3010 = vshrl.u32 %v3009, 7
        %v3011 = vsub.s32 %v3008, %v3010
        %v3012 = vrot.slane %v3004, %v3011
        %v3014 = vunpack.c.l.s4 1983009808
        %v3015 = vunpack.c.0.s8 %v3014
        %v3016 = vlaneseq
        %v3017 = vshrl.u32 %v3016, 7
        %v3018 = vsub.s32 %v3015, %v3017
        %v3019 = vrot.slane %v3005, %v3018
        %v3020 = vcombine.low %v2996, %v3012
        %v3021 = vcombine.high %v2996, %v3012
        %v3023 = vunpack.c.l.s4 1934713408
        %v3024 = vunpack.c.0.s8 %v3023
        %v3025 = vlaneseq
        %v3026 = vshrl.u32 %v3025, 7
        %v3027 = vsub.s32 %v3024, %v3026
        %v3028 = vrot.slane %v3020, %v3027
        %v3030 = vunpack.c.l.s4 1934713408
        %v3031 = vunpack.c.0.s8 %v3030
        %v3032 = vlaneseq
        %v3033 = vshrl.u32 %v3032, 7
        %v3034 = vsub.s32 %v3031, %v3033
        %v3035 = vrot.slane %v3021, %v3034
        %v3036 = vcombine.low %v3003, %v3019
        %v3037 = vcombine.high %v3003, %v3019
        %v3039 = vunpack.c.l.s4 1934713408
        %v3040 = vunpack.c.0.s8 %v3039
        %v3041 = vlaneseq
        %v3042 = vshrl.u32 %v3041, 7
        %v3043 = vsub.s32 %v3040, %v3042
        %v3044 = vrot.slane %v3036, %v3043
        %v3046 = vunpack.c.l.s4 1934713408
        %v3047 = vunpack.c.0.s8 %v3046
        %v3048 = vlaneseq
        %v3049 = vshrl.u32 %v3048, 7
        %v3050 = vsub.s32 %v3047, %v3049
        %v3051 = vrot.slane %v3037, %v3050
        %v3052 = vcombine.high %v3028, 0.0
        %v3053 = vcombine.high %v3035, 0.0
        %v3054 = vcombine.high %v3044, 0.0
        %v3055 = vcombine.high %v3051, 0.0
        %v3056 = vcombine.low %v1032, %v2499
        %v3057 = vcombine.high %v1032, %v2499
        %v3059 = vunpack.c.l.s4 1983009808
        %v3060 = vunpack.c.0.s8 %v3059
        %v3061 = vlaneseq
        %v3062 = vshrl.u32 %v3061, 7
        %v3063 = vsub.s32 %v3060, %v3062
        %v3064 = vrot.slane %v3056, %v3063
        %v3066 = vunpack.c.l.s4 1983009808
        %v3067 = vunpack.c.0.s8 %v3066
        %v3068 = vlaneseq
        %v3069 = vshrl.u32 %v3068, 7
        %v3070 = vsub.s32 %v3067, %v3069
        %v3071 = vrot.slane %v3057, %v3070
        %v3072 = vcombine.low %v2451, %v2547
        %v3073 = vcombine.high %v2451, %v2547
        %v3075 = vunpack.c.l.s4 1983009808
        %v3076 = vunpack.c.0.s8 %v3075
        %v3077 = vlaneseq
        %v3078 = vshrl.u32 %v3077, 7
        %v3079 = vsub.s32 %v3076, %v3078
        %v3080 = vrot.slane %v3072, %v3079
        %v3082 = vunpack.c.l.s4 1983009808
        %v3083 = vunpack.c.0.s8 %v3082
        %v3084 = vlaneseq
        %v3085 = vshrl.u32 %v3084, 7
        %v3086 = vsub.s32 %v3083, %v3085
        %v3087 = vrot.slane %v3073, %v3086
        %v3088 = vcombine.low %v3064, %v3080
        %v3089 = vcombine.high %v3064, %v3080
        %v3091 = vunpack.c.l.s4 1934713408
        %v3092 = vunpack.c.0.s8 %v3091
        %v3093 = vlaneseq
        %v3094 = vshrl.u32 %v3093, 7
        %v3095 = vsub.s32 %v3092, %v3094
        %v3096 = vrot.slane %v3088, %v3095
        %v3098 = vunpack.c.l.s4 1934713408
        %v3099 = vunpack.c.0.s8 %v3098
        %v3100 = vlaneseq
        %v3101 = vshrl.u32 %v3100, 7
        %v3102 = vsub.s32 %v3099, %v3101
        %v3103 = vrot.slane %v3089, %v3102
        %v3104 = vcombine.low %v3071, %v3087
        %v3105 = vcombine.high %v3071, %v3087
        %v3107 = vunpack.c.l.s4 1934713408
        %v3108 = vunpack.c.0.s8 %v3107
        %v3109 = vlaneseq
        %v3110 = vshrl.u32 %v3109, 7
        %v3111 = vsub.s32 %v3108, %v3110
        %v3112 = vrot.slane %v3104, %v3111
        %v3114 = vunpack.c.l.s4 1934713408
        %v3115 = vunpack.c.0.s8 %v3114
        %v3116 = vlaneseq
        %v3117 = vshrl.u32 %v3116, 7
        %v3118 = vsub.s32 %v3115, %v3117
        %v3119 = vrot.slane %v3105, %v3118
        %v3120 = vcombine.high %v3096, 0.0
        %v3121 = vcombine.high %v3103, 0.0
        %v3122 = vcombine.high %v3112, 0.0
        %v3123 = vcombine.high %v3119, 0.0
        %v3124 = vcombine.low %v1037, %v2501
        %v3125 = vcombine.high %v1037, %v2501
        %v3127 = vunpack.c.l.s4 1983009808
        %v3128 = vunpack.c.0.s8 %v3127
        %v3129 = vlaneseq
        %v3130 = vshrl.u32 %v3129, 7
        %v3131 = vsub.s32 %v3128, %v3130
        %v3132 = vrot.slane %v3124, %v3131
        %v3134 = vunpack.c.l.s4 1983009808
        %v3135 = vunpack.c.0.s8 %v3134
        %v3136 = vlaneseq
        %v3137 = vshrl.u32 %v3136, 7
        %v3138 = vsub.s32 %v3135, %v3137
        %v3139 = vrot.slane %v3125, %v3138
        %v3140 = vcombine.low %v2453, %v2549
        %v3141 = vcombine.high %v2453, %v2549
        %v3143 = vunpack.c.l.s4 1983009808
        %v3144 = vunpack.c.0.s8 %v3143
        %v3145 = vlaneseq
        %v3146 = vshrl.u32 %v3145, 7
        %v3147 = vsub.s32 %v3144, %v3146
        %v3148 = vrot.slane %v3140, %v3147
        %v3150 = vunpack.c.l.s4 1983009808
        %v3151 = vunpack.c.0.s8 %v3150
        %v3152 = vlaneseq
        %v3153 = vshrl.u32 %v3152, 7
        %v3154 = vsub.s32 %v3151, %v3153
        %v3155 = vrot.slane %v3141, %v3154
        %v3156 = vcombine.low %v3132, %v3148
        %v3157 = vcombine.high %v3132, %v3148
        %v3159 = vunpack.c.l.s4 1934713408
        %v3160 = vunpack.c.0.s8 %v3159
        %v3161 = vlaneseq
        %v3162 = vshrl.u32 %v3161, 7
        %v3163 = vsub.s32 %v3160, %v3162
        %v3164 = vrot.slane %v3156, %v3163
        %v3166 = vunpack.c.l.s4 1934713408
        %v3167 = vunpack.c.0.s8 %v3166
        %v3168 = vlaneseq
        %v3169 = vshrl.u32 %v3168, 7
        %v3170 = vsub.s32 %v3167, %v3169
        %v3171 = vrot.slane %v3157, %v3170
        %v3172 = vcombine.low %v3139, %v3155
        %v3173 = vcombine.high %v3139, %v3155
        %v3175 = vunpack.c.l.s4 1934713408
        %v3176 = vunpack.c.0.s8 %v3175
        %v3177 = vlaneseq
        %v3178 = vshrl.u32 %v3177, 7
        %v3179 = vsub.s32 %v3176, %v3178
        %v3180 = vrot.slane %v3172, %v3179
        %v3182 = vunpack.c.l.s4 1934713408
        %v3183 = vunpack.c.0.s8 %v3182
        %v3184 = vlaneseq
        %v3185 = vshrl.u32 %v3184, 7
        %v3186 = vsub.s32 %v3183, %v3185
        %v3187 = vrot.slane %v3173, %v3186
        %v3188 = vcombine.high %v3164, 0.0
        %v3189 = vcombine.high %v3171, 0.0
        %v3190 = vcombine.high %v3180, 0.0
        %v3191 = vcombine.high %v3187, 0.0
        %v3192 = vcombine.low %v1040, %v2503
        %v3193 = vcombine.high %v1040, %v2503
        %v3195 = vunpack.c.l.s4 1983009808
        %v3196 = vunpack.c.0.s8 %v3195
        %v3197 = vlaneseq
        %v3198 = vshrl.u32 %v3197, 7
        %v3199 = vsub.s32 %v3196, %v3198
        %v3200 = vrot.slane %v3192, %v3199
        %v3202 = vunpack.c.l.s4 1983009808
        %v3203 = vunpack.c.0.s8 %v3202
        %v3204 = vlaneseq
        %v3205 = vshrl.u32 %v3204, 7
        %v3206 = vsub.s32 %v3203, %v3205
        %v3207 = vrot.slane %v3193, %v3206
        %v3208 = vcombine.low %v2455, %v2551
        %v3209 = vcombine.high %v2455, %v2551
        %v3211 = vunpack.c.l.s4 1983009808
        %v3212 = vunpack.c.0.s8 %v3211
        %v3213 = vlaneseq
        %v3214 = vshrl.u32 %v3213, 7
        %v3215 = vsub.s32 %v3212, %v3214
        %v3216 = vrot.slane %v3208, %v3215
        %v3218 = vunpack.c.l.s4 1983009808
        %v3219 = vunpack.c.0.s8 %v3218
        %v3220 = vlaneseq
        %v3221 = vshrl.u32 %v3220, 7
        %v3222 = vsub.s32 %v3219, %v3221
        %v3223 = vrot.slane %v3209, %v3222
        %v3224 = vcombine.low %v3200, %v3216
        %v3225 = vcombine.high %v3200, %v3216
        %v3227 = vunpack.c.l.s4 1934713408
        %v3228 = vunpack.c.0.s8 %v3227
        %v3229 = vlaneseq
        %v3230 = vshrl.u32 %v3229, 7
        %v3231 = vsub.s32 %v3228, %v3230
        %v3232 = vrot.slane %v3224, %v3231
        %v3234 = vunpack.c.l.s4 1934713408
        %v3235 = vunpack.c.0.s8 %v3234
        %v3236 = vlaneseq
        %v3237 = vshrl.u32 %v3236, 7
        %v3238 = vsub.s32 %v3235, %v3237
        %v3239 = vrot.slane %v3225, %v3238
        %v3240 = vcombine.low %v3207, %v3223
        %v3241 = vcombine.high %v3207, %v3223
        %v3243 = vunpack.c.l.s4 1934713408
        %v3244 = vunpack.c.0.s8 %v3243
        %v3245 = vlaneseq
        %v3246 = vshrl.u32 %v3245, 7
        %v3247 = vsub.s32 %v3244, %v3246
        %v3248 = vrot.slane %v3240, %v3247
        %v3250 = vunpack.c.l.s4 1934713408
        %v3251 = vunpack.c.0.s8 %v3250
        %v3252 = vlaneseq
        %v3253 = vshrl.u32 %v3252, 7
        %v3254 = vsub.s32 %v3251, %v3253
        %v3255 = vrot.slane %v3241, %v3254
        %v3256 = vcombine.high %v3232, 0.0
        %v3257 = vcombine.high %v3239, 0.0
        %v3258 = vcombine.high %v3248, 0.0
        %v3259 = vcombine.high %v3255, 0.0
        %v3260 = vcombine.low %v1045, %v2505
        %v3261 = vcombine.high %v1045, %v2505
        %v3263 = vunpack.c.l.s4 1983009808
        %v3264 = vunpack.c.0.s8 %v3263
        %v3265 = vlaneseq
        %v3266 = vshrl.u32 %v3265, 7
        %v3267 = vsub.s32 %v3264, %v3266
        %v3268 = vrot.slane %v3260, %v3267
        %v3270 = vunpack.c.l.s4 1983009808
        %v3271 = vunpack.c.0.s8 %v3270
        %v3272 = vlaneseq
        %v3273 = vshrl.u32 %v3272, 7
        %v3274 = vsub.s32 %v3271, %v3273
        %v3275 = vrot.slane %v3261, %v3274
        %v3276 = vcombine.low %v2457, %v2553
        %v3277 = vcombine.high %v2457, %v2553
        %v3279 = vunpack.c.l.s4 1983009808
        %v3280 = vunpack.c.0.s8 %v3279
        %v3281 = vlaneseq
        %v3282 = vshrl.u32 %v3281, 7
        %v3283 = vsub.s32 %v3280, %v3282
        %v3284 = vrot.slane %v3276, %v3283
        %v3286 = vunpack.c.l.s4 1983009808
        %v3287 = vunpack.c.0.s8 %v3286
        %v3288 = vlaneseq
        %v3289 = vshrl.u32 %v3288, 7
        %v3290 = vsub.s32 %v3287, %v3289
        %v3291 = vrot.slane %v3277, %v3290
        %v3292 = vcombine.low %v3268, %v3284
        %v3293 = vcombine.high %v3268, %v3284
        %v3295 = vunpack.c.l.s4 1934713408
        %v3296 = vunpack.c.0.s8 %v3295
        %v3297 = vlaneseq
        %v3298 = vshrl.u32 %v3297, 7
        %v3299 = vsub.s32 %v3296, %v3298
        %v3300 = vrot.slane %v3292, %v3299
        %v3302 = vunpack.c.l.s4 1934713408
        %v3303 = vunpack.c.0.s8 %v3302
        %v3304 = vlaneseq
        %v3305 = vshrl.u32 %v3304, 7
        %v3306 = vsub.s32 %v3303, %v3305
        %v3307 = vrot.slane %v3293, %v3306
        %v3308 = vcombine.low %v3275, %v3291
        %v3309 = vcombine.high %v3275, %v3291
        %v3311 = vunpack.c.l.s4 1934713408
        %v3312 = vunpack.c.0.s8 %v3311
        %v3313 = vlaneseq
        %v3314 = vshrl.u32 %v3313, 7
        %v3315 = vsub.s32 %v3312, %v3314
        %v3316 = vrot.slane %v3308, %v3315
        %v3318 = vunpack.c.l.s4 1934713408
        %v3319 = vunpack.c.0.s8 %v3318
        %v3320 = vlaneseq
        %v3321 = vshrl.u32 %v3320, 7
        %v3322 = vsub.s32 %v3319, %v3321
        %v3323 = vrot.slane %v3309, %v3322
        %v3324 = vcombine.high %v3300, 0.0
        %v3325 = vcombine.high %v3307, 0.0
        %v3326 = vcombine.high %v3316, 0.0
        %v3327 = vcombine.high %v3323, 0.0
        %v3328 = vcombine.low %v1048, %v2507
        %v3329 = vcombine.high %v1048, %v2507
        %v3331 = vunpack.c.l.s4 1983009808
        %v3332 = vunpack.c.0.s8 %v3331
        %v3333 = vlaneseq
        %v3334 = vshrl.u32 %v3333, 7
        %v3335 = vsub.s32 %v3332, %v3334
        %v3336 = vrot.slane %v3328, %v3335
        %v3338 = vunpack.c.l.s4 1983009808
        %v3339 = vunpack.c.0.s8 %v3338
        %v3340 = vlaneseq
        %v3341 = vshrl.u32 %v3340, 7
        %v3342 = vsub.s32 %v3339, %v3341
        %v3343 = vrot.slane %v3329, %v3342
        %v3344 = vcombine.low %v2459, %v2555
        %v3345 = vcombine.high %v2459, %v2555
        %v3347 = vunpack.c.l.s4 1983009808
        %v3348 = vunpack.c.0.s8 %v3347
        %v3349 = vlaneseq
        %v3350 = vshrl.u32 %v3349, 7
        %v3351 = vsub.s32 %v3348, %v3350
        %v3352 = vrot.slane %v3344, %v3351
        %v3354 = vunpack.c.l.s4 1983009808
        %v3355 = vunpack.c.0.s8 %v3354
        %v3356 = vlaneseq
        %v3357 = vshrl.u32 %v3356, 7
        %v3358 = vsub.s32 %v3355, %v3357
        %v3359 = vrot.slane %v3345, %v3358
        %v3360 = vcombine.low %v3336, %v3352
        %v3361 = vcombine.high %v3336, %v3352
        %v3363 = vunpack.c.l.s4 1934713408
        %v3364 = vunpack.c.0.s8 %v3363
        %v3365 = vlaneseq
        %v3366 = vshrl.u32 %v3365, 7
        %v3367 = vsub.s32 %v3364, %v3366
        %v3368 = vrot.slane %v3360, %v3367
        %v3370 = vunpack.c.l.s4 1934713408
        %v3371 = vunpack.c.0.s8 %v3370
        %v3372 = vlaneseq
        %v3373 = vshrl.u32 %v3372, 7
        %v3374 = vsub.s32 %v3371, %v3373
        %v3375 = vrot.slane %v3361, %v3374
        %v3376 = vcombine.low %v3343, %v3359
        %v3377 = vcombine.high %v3343, %v3359
        %v3379 = vunpack.c.l.s4 1934713408
        %v3380 = vunpack.c.0.s8 %v3379
        %v3381 = vlaneseq
        %v3382 = vshrl.u32 %v3381, 7
        %v3383 = vsub.s32 %v3380, %v3382
        %v3384 = vrot.slane %v3376, %v3383
        %v3386 = vunpack.c.l.s4 1934713408
        %v3387 = vunpack.c.0.s8 %v3386
        %v3388 = vlaneseq
        %v3389 = vshrl.u32 %v3388, 7
        %v3390 = vsub.s32 %v3387, %v3389
        %v3391 = vrot.slane %v3377, %v3390
        %v3392 = vcombine.high %v3368, 0.0
        %v3393 = vcombine.high %v3375, 0.0
        %v3394 = vcombine.high %v3384, 0.0
        %v3395 = vcombine.high %v3391, 0.0
        %v3396 = vcombine.low %v1053, %v2509
        %v3397 = vcombine.high %v1053, %v2509
        %v3399 = vunpack.c.l.s4 1983009808
        %v3400 = vunpack.c.0.s8 %v3399
        %v3401 = vlaneseq
        %v3402 = vshrl.u32 %v3401, 7
        %v3403 = vsub.s32 %v3400, %v3402
        %v3404 = vrot.slane %v3396, %v3403
        %v3406 = vunpack.c.l.s4 1983009808
        %v3407 = vunpack.c.0.s8 %v3406
        %v3408 = vlaneseq
        %v3409 = vshrl.u32 %v3408, 7
        %v3410 = vsub.s32 %v3407, %v3409
        %v3411 = vrot.slane %v3397, %v3410
        %v3412 = vcombine.low %v2461, %v2557
        %v3413 = vcombine.high %v2461, %v2557
        %v3415 = vunpack.c.l.s4 1983009808
        %v3416 = vunpack.c.0.s8 %v3415
        %v3417 = vlaneseq
        %v3418 = vshrl.u32 %v3417, 7
        %v3419 = vsub.s32 %v3416, %v3418
        %v3420 = vrot.slane %v3412, %v3419
        %v3422 = vunpack.c.l.s4 1983009808
        %v3423 = vunpack.c.0.s8 %v3422
        %v3424 = vlaneseq
        %v3425 = vshrl.u32 %v3424, 7
        %v3426 = vsub.s32 %v3423, %v3425
        %v3427 = vrot.slane %v3413, %v3426
        %v3428 = vcombine.low %v3404, %v3420
        %v3429 = vcombine.high %v3404, %v3420
        %v3431 = vunpack.c.l.s4 1934713408
        %v3432 = vunpack.c.0.s8 %v3431
        %v3433 = vlaneseq
        %v3434 = vshrl.u32 %v3433, 7
        %v3435 = vsub.s32 %v3432, %v3434
        %v3436 = vrot.slane %v3428, %v3435
        %v3438 = vunpack.c.l.s4 1934713408
        %v3439 = vunpack.c.0.s8 %v3438
        %v3440 = vlaneseq
        %v3441 = vshrl.u32 %v3440, 7
        %v3442 = vsub.s32 %v3439, %v3441
        %v3443 = vrot.slane %v3429, %v3442
        %v3444 = vcombine.low %v3411, %v3427
        %v3445 = vcombine.high %v3411, %v3427
        %v3447 = vunpack.c.l.s4 1934713408
        %v3448 = vunpack.c.0.s8 %v3447
        %v3449 = vlaneseq
        %v3450 = vshrl.u32 %v3449, 7
        %v3451 = vsub.s32 %v3448, %v3450
        %v3452 = vrot.slane %v3444, %v3451
        %v3454 = vunpack.c.l.s4 1934713408
        %v3455 = vunpack.c.0.s8 %v3454
        %v3456 = vlaneseq
        %v3457 = vshrl.u32 %v3456, 7
        %v3458 = vsub.s32 %v3455, %v3457
        %v3459 = vrot.slane %v3445, %v3458
        %v3460 = vcombine.high %v3436, 0.0
        %v3461 = vcombine.high %v3443, 0.0
        %v3462 = vcombine.high %v3452, 0.0
        %v3463 = vcombine.high %v3459, 0.0
        %v3464 = vcombine.low %v1056, %v2511
        %v3465 = vcombine.high %v1056, %v2511
        %v3467 = vunpack.c.l.s4 1983009808
        %v3468 = vunpack.c.0.s8 %v3467
        %v3469 = vlaneseq
        %v3470 = vshrl.u32 %v3469, 7
        %v3471 = vsub.s32 %v3468, %v3470
        %v3472 = vrot.slane %v3464, %v3471
        %v3474 = vunpack.c.l.s4 1983009808
        %v3475 = vunpack.c.0.s8 %v3474
        %v3476 = vlaneseq
        %v3477 = vshrl.u32 %v3476, 7
        %v3478 = vsub.s32 %v3475, %v3477
        %v3479 = vrot.slane %v3465, %v3478
        %v3480 = vcombine.low %v2463, %v2559
        %v3481 = vcombine.high %v2463, %v2559
        %v3483 = vunpack.c.l.s4 1983009808
        %v3484 = vunpack.c.0.s8 %v3483
        %v3485 = vlaneseq
        %v3486 = vshrl.u32 %v3485, 7
        %v3487 = vsub.s32 %v3484, %v3486
        %v3488 = vrot.slane %v3480, %v3487
        %v3490 = vunpack.c.l.s4 1983009808
        %v3491 = vunpack.c.0.s8 %v3490
        %v3492 = vlaneseq
        %v3493 = vshrl.u32 %v3492, 7
        %v3494 = vsub.s32 %v3491, %v3493
        %v3495 = vrot.slane %v3481, %v3494
        %v3496 = vcombine.low %v3472, %v3488
        %v3497 = vcombine.high %v3472, %v3488
        %v3499 = vunpack.c.l.s4 1934713408
        %v3500 = vunpack.c.0.s8 %v3499
        %v3501 = vlaneseq
        %v3502 = vshrl.u32 %v3501, 7
        %v3503 = vsub.s32 %v3500, %v3502
        %v3504 = vrot.slane %v3496, %v3503
        %v3506 = vunpack.c.l.s4 1934713408
        %v3507 = vunpack.c.0.s8 %v3506
        %v3508 = vlaneseq
        %v3509 = vshrl.u32 %v3508, 7
        %v3510 = vsub.s32 %v3507, %v3509
        %v3511 = vrot.slane %v3497, %v3510
        %v3512 = vcombine.low %v3479, %v3495
        %v3513 = vcombine.high %v3479, %v3495
        %v3515 = vunpack.c.l.s4 1934713408
        %v3516 = vunpack.c.0.s8 %v3515
        %v3517 = vlaneseq
        %v3518 = vshrl.u32 %v3517, 7
        %v3519 = vsub.s32 %v3516, %v3518
        %v3520 = vrot.slane %v3512, %v3519
        %v3522 = vunpack.c.l.s4 1934713408
        %v3523 = vunpack.c.0.s8 %v3522
        %v3524 = vlaneseq
        %v3525 = vshrl.u32 %v3524, 7
        %v3526 = vsub.s32 %v3523, %v3525
        %v3527 = vrot.slane %v3513, %v3526
        %v3528 = vcombine.high %v3504, 0.0
        %v3529 = vcombine.high %v3511, 0.0
        %v3530 = vcombine.high %v3520, 0.0
        %v3531 = vcombine.high %v3527, 0.0
        %v3532 = vcombine.low %v1061, %v2513
        %v3533 = vcombine.high %v1061, %v2513
        %v3535 = vunpack.c.l.s4 1983009808
        %v3536 = vunpack.c.0.s8 %v3535
        %v3537 = vlaneseq
        %v3538 = vshrl.u32 %v3537, 7
        %v3539 = vsub.s32 %v3536, %v3538
        %v3540 = vrot.slane %v3532, %v3539
        %v3542 = vunpack.c.l.s4 1983009808
        %v3543 = vunpack.c.0.s8 %v3542
        %v3544 = vlaneseq
        %v3545 = vshrl.u32 %v3544, 7
        %v3546 = vsub.s32 %v3543, %v3545
        %v3547 = vrot.slane %v3533, %v3546
        %v3548 = vcombine.low %v2465, %v2561
        %v3549 = vcombine.high %v2465, %v2561
        %v3551 = vunpack.c.l.s4 1983009808
        %v3552 = vunpack.c.0.s8 %v3551
        %v3553 = vlaneseq
        %v3554 = vshrl.u32 %v3553, 7
        %v3555 = vsub.s32 %v3552, %v3554
        %v3556 = vrot.slane %v3548, %v3555
        %v3558 = vunpack.c.l.s4 1983009808
        %v3559 = vunpack.c.0.s8 %v3558
        %v3560 = vlaneseq
        %v3561 = vshrl.u32 %v3560, 7
        %v3562 = vsub.s32 %v3559, %v3561
        %v3563 = vrot.slane %v3549, %v3562
        %v3564 = vcombine.low %v3540, %v3556
        %v3565 = vcombine.high %v3540, %v3556
        %v3567 = vunpack.c.l.s4 1934713408
        %v3568 = vunpack.c.0.s8 %v3567
        %v3569 = vlaneseq
        %v3570 = vshrl.u32 %v3569, 7
        %v3571 = vsub.s32 %v3568, %v3570
        %v3572 = vrot.slane %v3564, %v3571
        %v3574 = vunpack.c.l.s4 1934713408
        %v3575 = vunpack.c.0.s8 %v3574
        %v3576 = vlaneseq
        %v3577 = vshrl.u32 %v3576, 7
        %v3578 = vsub.s32 %v3575, %v3577
        %v3579 = vrot.slane %v3565, %v3578
        %v3580 = vcombine.low %v3547, %v3563
        %v3581 = vcombine.high %v3547, %v3563
        %v3583 = vunpack.c.l.s4 1934713408
        %v3584 = vunpack.c.0.s8 %v3583
        %v3585 = vlaneseq
        %v3586 = vshrl.u32 %v3585, 7
        %v3587 = vsub.s32 %v3584, %v3586
        %v3588 = vrot.slane %v3580, %v3587
        %v3590 = vunpack.c.l.s4 1934713408
        %v3591 = vunpack.c.0.s8 %v3590
        %v3592 = vlaneseq
        %v3593 = vshrl.u32 %v3592, 7
        %v3594 = vsub.s32 %v3591, %v3593
        %v3595 = vrot.slane %v3581, %v3594
        %v3596 = vcombine.high %v3572, 0.0
        %v3597 = vcombine.high %v3579, 0.0
        %v3598 = vcombine.high %v3588, 0.0
        %v3599 = vcombine.high %v3595, 0.0
        %v3600 = vcombine.low %v1064, %v2515
        %v3601 = vcombine.high %v1064, %v2515
        %v3603 = vunpack.c.l.s4 1983009808
        %v3604 = vunpack.c.0.s8 %v3603
        %v3605 = vlaneseq
        %v3606 = vshrl.u32 %v3605, 7
        %v3607 = vsub.s32 %v3604, %v3606
        %v3608 = vrot.slane %v3600, %v3607
        %v3610 = vunpack.c.l.s4 1983009808
        %v3611 = vunpack.c.0.s8 %v3610
        %v3612 = vlaneseq
        %v3613 = vshrl.u32 %v3612, 7
        %v3614 = vsub.s32 %v3611, %v3613
        %v3615 = vrot.slane %v3601, %v3614
        %v3616 = vcombine.low %v2467, %v2563
        %v3617 = vcombine.high %v2467, %v2563
        %v3619 = vunpack.c.l.s4 1983009808
        %v3620 = vunpack.c.0.s8 %v3619
        %v3621 = vlaneseq
        %v3622 = vshrl.u32 %v3621, 7
        %v3623 = vsub.s32 %v3620, %v3622
        %v3624 = vrot.slane %v3616, %v3623
        %v3626 = vunpack.c.l.s4 1983009808
        %v3627 = vunpack.c.0.s8 %v3626
        %v3628 = vlaneseq
        %v3629 = vshrl.u32 %v3628, 7
        %v3630 = vsub.s32 %v3627, %v3629
        %v3631 = vrot.slane %v3617, %v3630
        %v3632 = vcombine.low %v3608, %v3624
        %v3633 = vcombine.high %v3608, %v3624
        %v3635 = vunpack.c.l.s4 1934713408
        %v3636 = vunpack.c.0.s8 %v3635
        %v3637 = vlaneseq
        %v3638 = vshrl.u32 %v3637, 7
        %v3639 = vsub.s32 %v3636, %v3638
        %v3640 = vrot.slane %v3632, %v3639
        %v3642 = vunpack.c.l.s4 1934713408
        %v3643 = vunpack.c.0.s8 %v3642
        %v3644 = vlaneseq
        %v3645 = vshrl.u32 %v3644, 7
        %v3646 = vsub.s32 %v3643, %v3645
        %v3647 = vrot.slane %v3633, %v3646
        %v3648 = vcombine.low %v3615, %v3631
        %v3649 = vcombine.high %v3615, %v3631
        %v3651 = vunpack.c.l.s4 1934713408
        %v3652 = vunpack.c.0.s8 %v3651
        %v3653 = vlaneseq
        %v3654 = vshrl.u32 %v3653, 7
        %v3655 = vsub.s32 %v3652, %v3654
        %v3656 = vrot.slane %v3648, %v3655
        %v3658 = vunpack.c.l.s4 1934713408
        %v3659 = vunpack.c.0.s8 %v3658
        %v3660 = vlaneseq
        %v3661 = vshrl.u32 %v3660, 7
        %v3662 = vsub.s32 %v3659, %v3661
        %v3663 = vrot.slane %v3649, %v3662
        %v3664 = vcombine.high %v3640, 0.0
        %v3665 = vcombine.high %v3647, 0.0
        %v3666 = vcombine.high %v3656, 0.0
        %v3667 = vcombine.high %v3663, 0.0
        %v3668 = vcombine.low %v2620, %v2627
        %v3670 = vunpack.c.l.s4 1983009808
        %v3671 = vunpack.c.0.s8 %v3670
        %v3672 = vlaneseq
        %v3673 = vshrl.u32 %v3672, 7
        %v3674 = vsub.s32 %v3671, %v3673
        %v3675 = vrot.slane %v3668, %v3674
        %v3676 = vcombine.low %v2644, %v2645
        %v3678 = vunpack.c.l.s4 1983009808
        %v3679 = vunpack.c.0.s8 %v3678
        %v3680 = vlaneseq
        %v3681 = vshrl.u32 %v3680, 7
        %v3682 = vsub.s32 %v3679, %v3681
        %v3683 = vrot.slane %v3676, %v3682
        %v3684 = vcombine.low %v2636, %v2643
        %v3686 = vunpack.c.l.s4 1983009808
        %v3687 = vunpack.c.0.s8 %v3686
        %v3688 = vlaneseq
        %v3689 = vshrl.u32 %v3688, 7
        %v3690 = vsub.s32 %v3687, %v3689
        %v3691 = vrot.slane %v3684, %v3690
        %v3692 = vcombine.low %v2646, %v2647
        %v3694 = vunpack.c.l.s4 1983009808
        %v3695 = vunpack.c.0.s8 %v3694
        %v3696 = vlaneseq
        %v3697 = vshrl.u32 %v3696, 7
        %v3698 = vsub.s32 %v3695, %v3697
        %v3699 = vrot.slane %v3692, %v3698
        %v3700 = vcombine.low %v3675, %v3683
        %v3701 = vcombine.high %v3675, %v3683
        %v3703 = vunpack.c.l.s4 1934713408
        %v3704 = vunpack.c.0.s8 %v3703
        %v3705 = vlaneseq
        %v3706 = vshrl.u32 %v3705, 7
        %v3707 = vsub.s32 %v3704, %v3706
        %v3708 = vrot.slane %v3700, %v3707
        %v3710 = vunpack.c.l.s4 1934713408
        %v3711 = vunpack.c.0.s8 %v3710
        %v3712 = vlaneseq
        %v3713 = vshrl.u32 %v3712, 7
        %v3714 = vsub.s32 %v3711, %v3713
        %v3715 = vrot.slane %v3701, %v3714
        %v3716 = vcombine.low %v3691, %v3699
        %v3717 = vcombine.high %v3691, %v3699
        %v3719 = vunpack.c.l.s4 1934713408
        %v3720 = vunpack.c.0.s8 %v3719
        %v3721 = vlaneseq
        %v3722 = vshrl.u32 %v3721, 7
        %v3723 = vsub.s32 %v3720, %v3722
        %v3724 = vrot.slane %v3716, %v3723
        %v3726 = vunpack.c.l.s4 1934713408
        %v3727 = vunpack.c.0.s8 %v3726
        %v3728 = vlaneseq
        %v3729 = vshrl.u32 %v3728, 7
        %v3730 = vsub.s32 %v3727, %v3729
        %v3731 = vrot.slane %v3717, %v3730
        %v3732 = vcombine.low %v3708, %v3724
        %v3733 = vcombine.high %v3708, %v3724
        %v3734 = vcombine.low %v3715, %v3731
        %v3735 = vcombine.high %v3715, %v3731
        %v3736 = vcombine.low %v2688, %v2695
        %v3738 = vunpack.c.l.s4 1983009808
        %v3739 = vunpack.c.0.s8 %v3738
        %v3740 = vlaneseq
        %v3741 = vshrl.u32 %v3740, 7
        %v3742 = vsub.s32 %v3739, %v3741
        %v3743 = vrot.slane %v3736, %v3742
        %v3744 = vcombine.low %v2712, %v2713
        %v3746 = vunpack.c.l.s4 1983009808
        %v3747 = vunpack.c.0.s8 %v3746
        %v3748 = vlaneseq
        %v3749 = vshrl.u32 %v3748, 7
        %v3750 = vsub.s32 %v3747, %v3749
        %v3751 = vrot.slane %v3744, %v3750
        %v3752 = vcombine.low %v2704, %v2711
        %v3754 = vunpack.c.l.s4 1983009808
        %v3755 = vunpack.c.0.s8 %v3754
        %v3756 = vlaneseq
        %v3757 = vshrl.u32 %v3756, 7
        %v3758 = vsub.s32 %v3755, %v3757
        %v3759 = vrot.slane %v3752, %v3758
        %v3760 = vcombine.low %v2714, %v2715
        %v3762 = vunpack.c.l.s4 1983009808
        %v3763 = vunpack.c.0.s8 %v3762
        %v3764 = vlaneseq
        %v3765 = vshrl.u32 %v3764, 7
        %v3766 = vsub.s32 %v3763, %v3765
        %v3767 = vrot.slane %v3760, %v3766
        %v3768 = vcombine.low %v3743, %v3751
        %v3769 = vcombine.high %v3743, %v3751
        %v3771 = vunpack.c.l.s4 1934713408
        %v3772 = vunpack.c.0.s8 %v3771
        %v3773 = vlaneseq
        %v3774 = vshrl.u32 %v3773, 7
        %v3775 = vsub.s32 %v3772, %v3774
        %v3776 = vrot.slane %v3768, %v3775
        %v3778 = vunpack.c.l.s4 1934713408
        %v3779 = vunpack.c.0.s8 %v3778
        %v3780 = vlaneseq
        %v3781 = vshrl.u32 %v3780, 7
        %v3782 = vsub.s32 %v3779, %v3781
        %v3783 = vrot.slane %v3769, %v3782
        %v3784 = vcombine.low %v3759, %v3767
        %v3785 = vcombine.high %v3759, %v3767
        %v3787 = vunpack.c.l.s4 1934713408
        %v3788 = vunpack.c.0.s8 %v3787
        %v3789 = vlaneseq
        %v3790 = vshrl.u32 %v3789, 7
        %v3791 = vsub.s32 %v3788, %v3790
        %v3792 = vrot.slane %v3784, %v3791
        %v3794 = vunpack.c.l.s4 1934713408
        %v3795 = vunpack.c.0.s8 %v3794
        %v3796 = vlaneseq
        %v3797 = vshrl.u32 %v3796, 7
        %v3798 = vsub.s32 %v3795, %v3797
        %v3799 = vrot.slane %v3785, %v3798
        %v3800 = vcombine.low %v3776, %v3792
        %v3801 = vcombine.high %v3776, %v3792
        %v3802 = vcombine.low %v3783, %v3799
        %v3803 = vcombine.high %v3783, %v3799
        %v3804 = vcombine.low %v2756, %v2763
        %v3806 = vunpack.c.l.s4 1983009808
        %v3807 = vunpack.c.0.s8 %v3806
        %v3808 = vlaneseq
        %v3809 = vshrl.u32 %v3808, 7
        %v3810 = vsub.s32 %v3807, %v3809
        %v3811 = vrot.slane %v3804, %v3810
        %v3812 = vcombine.low %v2780, %v2781
        %v3814 = vunpack.c.l.s4 1983009808
        %v3815 = vunpack.c.0.s8 %v3814
        %v3816 = vlaneseq
        %v3817 = vshrl.u32 %v3816, 7
        %v3818 = vsub.s32 %v3815, %v3817
        %v3819 = vrot.slane %v3812, %v3818
        %v3820 = vcombine.low %v2772, %v2779
        %v3822 = vunpack.c.l.s4 1983009808
        %v3823 = vunpack.c.0.s8 %v3822
        %v3824 = vlaneseq
        %v3825 = vshrl.u32 %v3824, 7
        %v3826 = vsub.s32 %v3823, %v3825
        %v3827 = vrot.slane %v3820, %v3826
        %v3828 = vcombine.low %v2782, %v2783
        %v3830 = vunpack.c.l.s4 1983009808
        %v3831 = vunpack.c.0.s8 %v3830
        %v3832 = vlaneseq
        %v3833 = vshrl.u32 %v3832, 7
        %v3834 = vsub.s32 %v3831, %v3833
        %v3835 = vrot.slane %v3828, %v3834
        %v3836 = vcombine.low %v3811, %v3819
        %v3837 = vcombine.high %v3811, %v3819
        %v3839 = vunpack.c.l.s4 1934713408
        %v3840 = vunpack.c.0.s8 %v3839
        %v3841 = vlaneseq
        %v3842 = vshrl.u32 %v3841, 7
        %v3843 = vsub.s32 %v3840, %v3842
        %v3844 = vrot.slane %v3836, %v3843
        %v3846 = vunpack.c.l.s4 1934713408
        %v3847 = vunpack.c.0.s8 %v3846
        %v3848 = vlaneseq
        %v3849 = vshrl.u32 %v3848, 7
        %v3850 = vsub.s32 %v3847, %v3849
        %v3851 = vrot.slane %v3837, %v3850
        %v3852 = vcombine.low %v3827, %v3835
        %v3853 = vcombine.high %v3827, %v3835
        %v3855 = vunpack.c.l.s4 1934713408
        %v3856 = vunpack.c.0.s8 %v3855
        %v3857 = vlaneseq
        %v3858 = vshrl.u32 %v3857, 7
        %v3859 = vsub.s32 %v3856, %v3858
        %v3860 = vrot.slane %v3852, %v3859
        %v3862 = vunpack.c.l.s4 1934713408
        %v3863 = vunpack.c.0.s8 %v3862
        %v3864 = vlaneseq
        %v3865 = vshrl.u32 %v3864, 7
        %v3866 = vsub.s32 %v3863, %v3865
        %v3867 = vrot.slane %v3853, %v3866
        %v3868 = vcombine.low %v3844, %v3860
        %v3869 = vcombine.high %v3844, %v3860
        %v3870 = vcombine.low %v3851, %v3867
        %v3871 = vcombine.high %v3851, %v3867
        %v3872 = vcombine.low %v2824, %v2831
        %v3874 = vunpack.c.l.s4 1983009808
        %v3875 = vunpack.c.0.s8 %v3874
        %v3876 = vlaneseq
        %v3877 = vshrl.u32 %v3876, 7
        %v3878 = vsub.s32 %v3875, %v3877
        %v3879 = vrot.slane %v3872, %v3878
        %v3880 = vcombine.low %v2848, %v2849
        %v3882 = vunpack.c.l.s4 1983009808
        %v3883 = vunpack.c.0.s8 %v3882
        %v3884 = vlaneseq
        %v3885 = vshrl.u32 %v3884, 7
        %v3886 = vsub.s32 %v3883, %v3885
        %v3887 = vrot.slane %v3880, %v3886
        %v3888 = vcombine.low %v2840, %v2847
        %v3890 = vunpack.c.l.s4 1983009808
        %v3891 = vunpack.c.0.s8 %v3890
        %v3892 = vlaneseq
        %v3893 = vshrl.u32 %v3892, 7
        %v3894 = vsub.s32 %v3891, %v3893
        %v3895 = vrot.slane %v3888, %v3894
        %v3896 = vcombine.low %v2850, %v2851
        %v3898 = vunpack.c.l.s4 1983009808
        %v3899 = vunpack.c.0.s8 %v3898
        %v3900 = vlaneseq
        %v3901 = vshrl.u32 %v3900, 7
        %v3902 = vsub.s32 %v3899, %v3901
        %v3903 = vrot.slane %v3896, %v3902
        %v3904 = vcombine.low %v3879, %v3887
        %v3905 = vcombine.high %v3879, %v3887
        %v3907 = vunpack.c.l.s4 1934713408
        %v3908 = vunpack.c.0.s8 %v3907
        %v3909 = vlaneseq
        %v3910 = vshrl.u32 %v3909, 7
        %v3911 = vsub.s32 %v3908, %v3910
        %v3912 = vrot.slane %v3904, %v3911
        %v3914 = vunpack.c.l.s4 1934713408
        %v3915 = vunpack.c.0.s8 %v3914
        %v3916 = vlaneseq
        %v3917 = vshrl.u32 %v3916, 7
        %v3918 = vsub.s32 %v3915, %v3917
        %v3919 = vrot.slane %v3905, %v3918
        %v3920 = vcombine.low %v3895, %v3903
        %v3921 = vcombine.high %v3895, %v3903
        %v3923 = vunpack.c.l.s4 1934713408
        %v3924 = vunpack.c.0.s8 %v3923
        %v3925 = vlaneseq
        %v3926 = vshrl.u32 %v3925, 7
        %v3927 = vsub.s32 %v3924, %v3926
        %v3928 = vrot.slane %v3920, %v3927
        %v3930 = vunpack.c.l.s4 1934713408
        %v3931 = vunpack.c.0.s8 %v3930
        %v3932 = vlaneseq
        %v3933 = vshrl.u32 %v3932, 7
        %v3934 = vsub.s32 %v3931, %v3933
        %v3935 = vrot.slane %v3921, %v3934
        %v3936 = vcombine.low %v3912, %v3928
        %v3937 = vcombine.high %v3912, %v3928
        %v3938 = vcombine.low %v3919, %v3935
        %v3939 = vcombine.high %v3919, %v3935
        %v3940 = vcombine.low %v2892, %v2899
        %v3942 = vunpack.c.l.s4 1983009808
        %v3943 = vunpack.c.0.s8 %v3942
        %v3944 = vlaneseq
        %v3945 = vshrl.u32 %v3944, 7
        %v3946 = vsub.s32 %v3943, %v3945
        %v3947 = vrot.slane %v3940, %v3946
        %v3948 = vcombine.low %v2916, %v2917
        %v3950 = vunpack.c.l.s4 1983009808
        %v3951 = vunpack.c.0.s8 %v3950
        %v3952 = vlaneseq
        %v3953 = vshrl.u32 %v3952, 7
        %v3954 = vsub.s32 %v3951, %v3953
        %v3955 = vrot.slane %v3948, %v3954
        %v3956 = vcombine.low %v2908, %v2915
        %v3958 = vunpack.c.l.s4 1983009808
        %v3959 = vunpack.c.0.s8 %v3958
        %v3960 = vlaneseq
        %v3961 = vshrl.u32 %v3960, 7
        %v3962 = vsub.s32 %v3959, %v3961
        %v3963 = vrot.slane %v3956, %v3962
        %v3964 = vcombine.low %v2918, %v2919
        %v3966 = vunpack.c.l.s4 1983009808
        %v3967 = vunpack.c.0.s8 %v3966
        %v3968 = vlaneseq
        %v3969 = vshrl.u32 %v3968, 7
        %v3970 = vsub.s32 %v3967, %v3969
        %v3971 = vrot.slane %v3964, %v3970
        %v3972 = vcombine.low %v3947, %v3955
        %v3973 = vcombine.high %v3947, %v3955
        %v3975 = vunpack.c.l.s4 1934713408
        %v3976 = vunpack.c.0.s8 %v3975
        %v3977 = vlaneseq
        %v3978 = vshrl.u32 %v3977, 7
        %v3979 = vsub.s32 %v3976, %v3978
        %v3980 = vrot.slane %v3972, %v3979
        %v3982 = vunpack.c.l.s4 1934713408
        %v3983 = vunpack.c.0.s8 %v3982
        %v3984 = vlaneseq
        %v3985 = vshrl.u32 %v3984, 7
        %v3986 = vsub.s32 %v3983, %v3985
        %v3987 = vrot.slane %v3973, %v3986
        %v3988 = vcombine.low %v3963, %v3971
        %v3989 = vcombine.high %v3963, %v3971
        %v3991 = vunpack.c.l.s4 1934713408
        %v3992 = vunpack.c.0.s8 %v3991
        %v3993 = vlaneseq
        %v3994 = vshrl.u32 %v3993, 7
        %v3995 = vsub.s32 %v3992, %v3994
        %v3996 = vrot.slane %v3988, %v3995
        %v3998 = vunpack.c.l.s4 1934713408
        %v3999 = vunpack.c.0.s8 %v3998
        %v4000 = vlaneseq
        %v4001 = vshrl.u32 %v4000, 7
        %v4002 = vsub.s32 %v3999, %v4001
        %v4003 = vrot.slane %v3989, %v4002
        %v4004 = vcombine.low %v3980, %v3996
        %v4005 = vcombine.high %v3980, %v3996
        %v4006 = vcombine.low %v3987, %v4003
        %v4007 = vcombine.high %v3987, %v4003
        %v4008 = vcombine.low %v2960, %v2967
        %v4010 = vunpack.c.l.s4 1983009808
        %v4011 = vunpack.c.0.s8 %v4010
        %v4012 = vlaneseq
        %v4013 = vshrl.u32 %v4012, 7
        %v4014 = vsub.s32 %v4011, %v4013
        %v4015 = vrot.slane %v4008, %v4014
        %v4016 = vcombine.low %v2984, %v2985
        %v4018 = vunpack.c.l.s4 1983009808
        %v4019 = vunpack.c.0.s8 %v4018
        %v4020 = vlaneseq
        %v4021 = vshrl.u32 %v4020, 7
        %v4022 = vsub.s32 %v4019, %v4021
        %v4023 = vrot.slane %v4016, %v4022
        %v4024 = vcombine.low %v2976, %v2983
        %v4026 = vunpack.c.l.s4 1983009808
        %v4027 = vunpack.c.0.s8 %v4026
        %v4028 = vlaneseq
        %v4029 = vshrl.u32 %v4028, 7
        %v4030 = vsub.s32 %v4027, %v4029
        %v4031 = vrot.slane %v4024, %v4030
        %v4032 = vcombine.low %v2986, %v2987
        %v4034 = vunpack.c.l.s4 1983009808
        %v4035 = vunpack.c.0.s8 %v4034
        %v4036 = vlaneseq
        %v4037 = vshrl.u32 %v4036, 7
        %v4038 = vsub.s32 %v4035, %v4037
        %v4039 = vrot.slane %v4032, %v4038
        %v4040 = vcombine.low %v4015, %v4023
        %v4041 = vcombine.high %v4015, %v4023
        %v4043 = vunpack.c.l.s4 1934713408
        %v4044 = vunpack.c.0.s8 %v4043
        %v4045 = vlaneseq
        %v4046 = vshrl.u32 %v4045, 7
        %v4047 = vsub.s32 %v4044, %v4046
        %v4048 = vrot.slane %v4040, %v4047
        %v4050 = vunpack.c.l.s4 1934713408
        %v4051 = vunpack.c.0.s8 %v4050
        %v4052 = vlaneseq
        %v4053 = vshrl.u32 %v4052, 7
        %v4054 = vsub.s32 %v4051, %v4053
        %v4055 = vrot.slane %v4041, %v4054
        %v4056 = vcombine.low %v4031, %v4039
        %v4057 = vcombine.high %v4031, %v4039
        %v4059 = vunpack.c.l.s4 1934713408
        %v4060 = vunpack.c.0.s8 %v4059
        %v4061 = vlaneseq
        %v4062 = vshrl.u32 %v4061, 7
        %v4063 = vsub.s32 %v4060, %v4062
        %v4064 = vrot.slane %v4056, %v4063
        %v4066 = vunpack.c.l.s4 1934713408
        %v4067 = vunpack.c.0.s8 %v4066
        %v4068 = vlaneseq
        %v4069 = vshrl.u32 %v4068, 7
        %v4070 = vsub.s32 %v4067, %v4069
        %v4071 = vrot.slane %v4057, %v4070
        %v4072 = vcombine.low %v4048, %v4064
        %v4073 = vcombine.high %v4048, %v4064
        %v4074 = vcombine.low %v4055, %v4071
        %v4075 = vcombine.high %v4055, %v4071
        %v4076 = vcombine.low %v3028, %v3035
        %v4078 = vunpack.c.l.s4 1983009808
        %v4079 = vunpack.c.0.s8 %v4078
        %v4080 = vlaneseq
        %v4081 = vshrl.u32 %v4080, 7
        %v4082 = vsub.s32 %v4079, %v4081
        %v4083 = vrot.slane %v4076, %v4082
        %v4084 = vcombine.low %v3052, %v3053
        %v4086 = vunpack.c.l.s4 1983009808
        %v4087 = vunpack.c.0.s8 %v4086
        %v4088 = vlaneseq
        %v4089 = vshrl.u32 %v4088, 7
        %v4090 = vsub.s32 %v4087, %v4089
        %v4091 = vrot.slane %v4084, %v4090
        %v4092 = vcombine.low %v3044, %v3051
        %v4094 = vunpack.c.l.s4 1983009808
        %v4095 = vunpack.c.0.s8 %v4094
        %v4096 = vlaneseq
        %v4097 = vshrl.u32 %v4096, 7
        %v4098 = vsub.s32 %v4095, %v4097
        %v4099 = vrot.slane %v4092, %v4098
        %v4100 = vcombine.low %v3054, %v3055
        %v4102 = vunpack.c.l.s4 1983009808
        %v4103 = vunpack.c.0.s8 %v4102
        %v4104 = vlaneseq
        %v4105 = vshrl.u32 %v4104, 7
        %v4106 = vsub.s32 %v4103, %v4105
        %v4107 = vrot.slane %v4100, %v4106
        %v4108 = vcombine.low %v4083, %v4091
        %v4109 = vcombine.high %v4083, %v4091
        %v4111 = vunpack.c.l.s4 1934713408
        %v4112 = vunpack.c.0.s8 %v4111
        %v4113 = vlaneseq
        %v4114 = vshrl.u32 %v4113, 7
        %v4115 = vsub.s32 %v4112, %v4114
        %v4116 = vrot.slane %v4108, %v4115
        %v4118 = vunpack.c.l.s4 1934713408
        %v4119 = vunpack.c.0.s8 %v4118
        %v4120 = vlaneseq
        %v4121 = vshrl.u32 %v4120, 7
        %v4122 = vsub.s32 %v4119, %v4121
        %v4123 = vrot.slane %v4109, %v4122
        %v4124 = vcombine.low %v4099, %v4107
        %v4125 = vcombine.high %v4099, %v4107
        %v4127 = vunpack.c.l.s4 1934713408
        %v4128 = vunpack.c.0.s8 %v4127
        %v4129 = vlaneseq
        %v4130 = vshrl.u32 %v4129, 7
        %v4131 = vsub.s32 %v4128, %v4130
        %v4132 = vrot.slane %v4124, %v4131
        %v4134 = vunpack.c.l.s4 1934713408
        %v4135 = vunpack.c.0.s8 %v4134
        %v4136 = vlaneseq
        %v4137 = vshrl.u32 %v4136, 7
        %v4138 = vsub.s32 %v4135, %v4137
        %v4139 = vrot.slane %v4125, %v4138
        %v4140 = vcombine.low %v4116, %v4132
        %v4141 = vcombine.high %v4116, %v4132
        %v4142 = vcombine.low %v4123, %v4139
        %v4143 = vcombine.high %v4123, %v4139
        %v4144 = vcombine.low %v3096, %v3103
        %v4146 = vunpack.c.l.s4 1983009808
        %v4147 = vunpack.c.0.s8 %v4146
        %v4148 = vlaneseq
        %v4149 = vshrl.u32 %v4148, 7
        %v4150 = vsub.s32 %v4147, %v4149
        %v4151 = vrot.slane %v4144, %v4150
        %v4152 = vcombine.low %v3120, %v3121
        %v4154 = vunpack.c.l.s4 1983009808
        %v4155 = vunpack.c.0.s8 %v4154
        %v4156 = vlaneseq
        %v4157 = vshrl.u32 %v4156, 7
        %v4158 = vsub.s32 %v4155, %v4157
        %v4159 = vrot.slane %v4152, %v4158
        %v4160 = vcombine.low %v3112, %v3119
        %v4162 = vunpack.c.l.s4 1983009808
        %v4163 = vunpack.c.0.s8 %v4162
        %v4164 = vlaneseq
        %v4165 = vshrl.u32 %v4164, 7
        %v4166 = vsub.s32 %v4163, %v4165
        %v4167 = vrot.slane %v4160, %v4166
        %v4168 = vcombine.low %v3122, %v3123
        %v4170 = vunpack.c.l.s4 1983009808
        %v4171 = vunpack.c.0.s8 %v4170
        %v4172 = vlaneseq
        %v4173 = vshrl.u32 %v4172, 7
        %v4174 = vsub.s32 %v4171, %v4173
        %v4175 = vrot.slane %v4168, %v4174
        %v4176 = vcombine.low %v4151, %v4159
        %v4177 = vcombine.high %v4151, %v4159
        %v4179 = vunpack.c.l.s4 1934713408
        %v4180 = vunpack.c.0.s8 %v4179
        %v4181 = vlaneseq
        %v4182 = vshrl.u32 %v4181, 7
        %v4183 = vsub.s32 %v4180, %v4182
        %v4184 = vrot.slane %v4176, %v4183
        %v4186 = vunpack.c.l.s4 1934713408
        %v4187 = vunpack.c.0.s8 %v4186
        %v4188 = vlaneseq
        %v4189 = vshrl.u32 %v4188, 7
        %v4190 = vsub.s32 %v4187, %v4189
        %v4191 = vrot.slane %v4177, %v4190
        %v4192 = vcombine.low %v4167, %v4175
        %v4193 = vcombine.high %v4167, %v4175
        %v4195 = vunpack.c.l.s4 1934713408
        %v4196 = vunpack.c.0.s8 %v4195
        %v4197 = vlaneseq
        %v4198 = vshrl.u32 %v4197, 7
        %v4199 = vsub.s32 %v4196, %v4198
        %v4200 = vrot.slane %v4192, %v4199
        %v4202 = vunpack.c.l.s4 1934713408
        %v4203 = vunpack.c.0.s8 %v4202
        %v4204 = vlaneseq
        %v4205 = vshrl.u32 %v4204, 7
        %v4206 = vsub.s32 %v4203, %v4205
        %v4207 = vrot.slane %v4193, %v4206
        %v4208 = vcombine.low %v4184, %v4200
        %v4209 = vcombine.high %v4184, %v4200
        %v4210 = vcombine.low %v4191, %v4207
        %v4211 = vcombine.high %v4191, %v4207
        %v4212 = vcombine.low %v3164, %v3171
        %v4214 = vunpack.c.l.s4 1983009808
        %v4215 = vunpack.c.0.s8 %v4214
        %v4216 = vlaneseq
        %v4217 = vshrl.u32 %v4216, 7
        %v4218 = vsub.s32 %v4215, %v4217
        %v4219 = vrot.slane %v4212, %v4218
        %v4220 = vcombine.low %v3188, %v3189
        %v4222 = vunpack.c.l.s4 1983009808
        %v4223 = vunpack.c.0.s8 %v4222
        %v4224 = vlaneseq
        %v4225 = vshrl.u32 %v4224, 7
        %v4226 = vsub.s32 %v4223, %v4225
        %v4227 = vrot.slane %v4220, %v4226
        %v4228 = vcombine.low %v3180, %v3187
        %v4230 = vunpack.c.l.s4 1983009808
        %v4231 = vunpack.c.0.s8 %v4230
        %v4232 = vlaneseq
        %v4233 = vshrl.u32 %v4232, 7
        %v4234 = vsub.s32 %v4231, %v4233
        %v4235 = vrot.slane %v4228, %v4234
        %v4236 = vcombine.low %v3190, %v3191
        %v4238 = vunpack.c.l.s4 1983009808
        %v4239 = vunpack.c.0.s8 %v4238
        %v4240 = vlaneseq
        %v4241 = vshrl.u32 %v4240, 7
        %v4242 = vsub.s32 %v4239, %v4241
        %v4243 = vrot.slane %v4236, %v4242
        %v4244 = vcombine.low %v4219, %v4227
        %v4245 = vcombine.high %v4219, %v4227
        %v4247 = vunpack.c.l.s4 1934713408
        %v4248 = vunpack.c.0.s8 %v4247
        %v4249 = vlaneseq
        %v4250 = vshrl.u32 %v4249, 7
        %v4251 = vsub.s32 %v4248, %v4250
        %v4252 = vrot.slane %v4244, %v4251
        %v4254 = vunpack.c.l.s4 1934713408
        %v4255 = vunpack.c.0.s8 %v4254
        %v4256 = vlaneseq
        %v4257 = vshrl.u32 %v4256, 7
        %v4258 = vsub.s32 %v4255, %v4257
        %v4259 = vrot.slane %v4245, %v4258
        %v4260 = vcombine.low %v4235, %v4243
        %v4261 = vcombine.high %v4235, %v4243
        %v4263 = vunpack.c.l.s4 1934713408
        %v4264 = vunpack.c.0.s8 %v4263
        %v4265 = vlaneseq
        %v4266 = vshrl.u32 %v4265, 7
        %v4267 = vsub.s32 %v4264, %v4266
        %v4268 = vrot.slane %v4260, %v4267
        %v4270 = vunpack.c.l.s4 1934713408
        %v4271 = vunpack.c.0.s8 %v4270
        %v4272 = vlaneseq
        %v4273 = vshrl.u32 %v4272, 7
        %v4274 = vsub.s32 %v4271, %v4273
        %v4275 = vrot.slane %v4261, %v4274
        %v4276 = vcombine.low %v4252, %v4268
        %v4277 = vcombine.high %v4252, %v4268
        %v4278 = vcombine.low %v4259, %v4275
        %v4279 = vcombine.high %v4259, %v4275
        %v4280 = vcombine.low %v3232, %v3239
        %v4282 = vunpack.c.l.s4 1983009808
        %v4283 = vunpack.c.0.s8 %v4282
        %v4284 = vlaneseq
        %v4285 = vshrl.u32 %v4284, 7
        %v4286 = vsub.s32 %v4283, %v4285
        %v4287 = vrot.slane %v4280, %v4286
        %v4288 = vcombine.low %v3256, %v3257
        %v4290 = vunpack.c.l.s4 1983009808
        %v4291 = vunpack.c.0.s8 %v4290
        %v4292 = vlaneseq
        %v4293 = vshrl.u32 %v4292, 7
        %v4294 = vsub.s32 %v4291, %v4293
        %v4295 = vrot.slane %v4288, %v4294
        %v4296 = vcombine.low %v3248, %v3255
        %v4298 = vunpack.c.l.s4 1983009808
        %v4299 = vunpack.c.0.s8 %v4298
        %v4300 = vlaneseq
        %v4301 = vshrl.u32 %v4300, 7
        %v4302 = vsub.s32 %v4299, %v4301
        %v4303 = vrot.slane %v4296, %v4302
        %v4304 = vcombine.low %v3258, %v3259
        %v4306 = vunpack.c.l.s4 1983009808
        %v4307 = vunpack.c.0.s8 %v4306
        %v4308 = vlaneseq
        %v4309 = vshrl.u32 %v4308, 7
        %v4310 = vsub.s32 %v4307, %v4309
        %v4311 = vrot.slane %v4304, %v4310
        %v4312 = vcombine.low %v4287, %v4295
        %v4313 = vcombine.high %v4287, %v4295
        %v4315 = vunpack.c.l.s4 1934713408
        %v4316 = vunpack.c.0.s8 %v4315
        %v4317 = vlaneseq
        %v4318 = vshrl.u32 %v4317, 7
        %v4319 = vsub.s32 %v4316, %v4318
        %v4320 = vrot.slane %v4312, %v4319
        %v4322 = vunpack.c.l.s4 1934713408
        %v4323 = vunpack.c.0.s8 %v4322
        %v4324 = vlaneseq
        %v4325 = vshrl.u32 %v4324, 7
        %v4326 = vsub.s32 %v4323, %v4325
        %v4327 = vrot.slane %v4313, %v4326
        %v4328 = vcombine.low %v4303, %v4311
        %v4329 = vcombine.high %v4303, %v4311
        %v4331 = vunpack.c.l.s4 1934713408
        %v4332 = vunpack.c.0.s8 %v4331
        %v4333 = vlaneseq
        %v4334 = vshrl.u32 %v4333, 7
        %v4335 = vsub.s32 %v4332, %v4334
        %v4336 = vrot.slane %v4328, %v4335
        %v4338 = vunpack.c.l.s4 1934713408
        %v4339 = vunpack.c.0.s8 %v4338
        %v4340 = vlaneseq
        %v4341 = vshrl.u32 %v4340, 7
        %v4342 = vsub.s32 %v4339, %v4341
        %v4343 = vrot.slane %v4329, %v4342
        %v4344 = vcombine.low %v4320, %v4336
        %v4345 = vcombine.high %v4320, %v4336
        %v4346 = vcombine.low %v4327, %v4343
        %v4347 = vcombine.high %v4327, %v4343
        %v4348 = vcombine.low %v3300, %v3307
        %v4350 = vunpack.c.l.s4 1983009808
        %v4351 = vunpack.c.0.s8 %v4350
        %v4352 = vlaneseq
        %v4353 = vshrl.u32 %v4352, 7
        %v4354 = vsub.s32 %v4351, %v4353
        %v4355 = vrot.slane %v4348, %v4354
        %v4356 = vcombine.low %v3324, %v3325
        %v4358 = vunpack.c.l.s4 1983009808
        %v4359 = vunpack.c.0.s8 %v4358
        %v4360 = vlaneseq
        %v4361 = vshrl.u32 %v4360, 7
        %v4362 = vsub.s32 %v4359, %v4361
        %v4363 = vrot.slane %v4356, %v4362
        %v4364 = vcombine.low %v3316, %v3323
        %v4366 = vunpack.c.l.s4 1983009808
        %v4367 = vunpack.c.0.s8 %v4366
        %v4368 = vlaneseq
        %v4369 = vshrl.u32 %v4368, 7
        %v4370 = vsub.s32 %v4367, %v4369
        %v4371 = vrot.slane %v4364, %v4370
        %v4372 = vcombine.low %v3326, %v3327
        %v4374 = vunpack.c.l.s4 1983009808
        %v4375 = vunpack.c.0.s8 %v4374
        %v4376 = vlaneseq
        %v4377 = vshrl.u32 %v4376, 7
        %v4378 = vsub.s32 %v4375, %v4377
        %v4379 = vrot.slane %v4372, %v4378
        %v4380 = vcombine.low %v4355, %v4363
        %v4381 = vcombine.high %v4355, %v4363
        %v4383 = vunpack.c.l.s4 1934713408
        %v4384 = vunpack.c.0.s8 %v4383
        %v4385 = vlaneseq
        %v4386 = vshrl.u32 %v4385, 7
        %v4387 = vsub.s32 %v4384, %v4386
        %v4388 = vrot.slane %v4380, %v4387
        %v4390 = vunpack.c.l.s4 1934713408
        %v4391 = vunpack.c.0.s8 %v4390
        %v4392 = vlaneseq
        %v4393 = vshrl.u32 %v4392, 7
        %v4394 = vsub.s32 %v4391, %v4393
        %v4395 = vrot.slane %v4381, %v4394
        %v4396 = vcombine.low %v4371, %v4379
        %v4397 = vcombine.high %v4371, %v4379
        %v4399 = vunpack.c.l.s4 1934713408
        %v4400 = vunpack.c.0.s8 %v4399
        %v4401 = vlaneseq
        %v4402 = vshrl.u32 %v4401, 7
        %v4403 = vsub.s32 %v4400, %v4402
        %v4404 = vrot.slane %v4396, %v4403
        %v4406 = vunpack.c.l.s4 1934713408
        %v4407 = vunpack.c.0.s8 %v4406
        %v4408 = vlaneseq
        %v4409 = vshrl.u32 %v4408, 7
        %v4410 = vsub.s32 %v4407, %v4409
        %v4411 = vrot.slane %v4397, %v4410
        %v4412 = vcombine.low %v4388, %v4404
        %v4413 = vcombine.high %v4388, %v4404
        %v4414 = vcombine.low %v4395, %v4411
        %v4415 = vcombine.high %v4395, %v4411
        %v4416 = vcombine.low %v3368, %v3375
        %v4418 = vunpack.c.l.s4 1983009808
        %v4419 = vunpack.c.0.s8 %v4418
        %v4420 = vlaneseq
        %v4421 = vshrl.u32 %v4420, 7
        %v4422 = vsub.s32 %v4419, %v4421
        %v4423 = vrot.slane %v4416, %v4422
        %v4424 = vcombine.low %v3392, %v3393
        %v4426 = vunpack.c.l.s4 1983009808
        %v4427 = vunpack.c.0.s8 %v4426
        %v4428 = vlaneseq
        %v4429 = vshrl.u32 %v4428, 7
        %v4430 = vsub.s32 %v4427, %v4429
        %v4431 = vrot.slane %v4424, %v4430
        %v4432 = vcombine.low %v3384, %v3391
        %v4434 = vunpack.c.l.s4 1983009808
        %v4435 = vunpack.c.0.s8 %v4434
        %v4436 = vlaneseq
        %v4437 = vshrl.u32 %v4436, 7
        %v4438 = vsub.s32 %v4435, %v4437
        %v4439 = vrot.slane %v4432, %v4438
        %v4440 = vcombine.low %v3394, %v3395
        %v4442 = vunpack.c.l.s4 1983009808
        %v4443 = vunpack.c.0.s8 %v4442
        %v4444 = vlaneseq
        %v4445 = vshrl.u32 %v4444, 7
        %v4446 = vsub.s32 %v4443, %v4445
        %v4447 = vrot.slane %v4440, %v4446
        %v4448 = vcombine.low %v4423, %v4431
        %v4449 = vcombine.high %v4423, %v4431
        %v4451 = vunpack.c.l.s4 1934713408
        %v4452 = vunpack.c.0.s8 %v4451
        %v4453 = vlaneseq
        %v4454 = vshrl.u32 %v4453, 7
        %v4455 = vsub.s32 %v4452, %v4454
        %v4456 = vrot.slane %v4448, %v4455
        %v4458 = vunpack.c.l.s4 1934713408
        %v4459 = vunpack.c.0.s8 %v4458
        %v4460 = vlaneseq
        %v4461 = vshrl.u32 %v4460, 7
        %v4462 = vsub.s32 %v4459, %v4461
        %v4463 = vrot.slane %v4449, %v4462
        %v4464 = vcombine.low %v4439, %v4447
        %v4465 = vcombine.high %v4439, %v4447
        %v4467 = vunpack.c.l.s4 1934713408
        %v4468 = vunpack.c.0.s8 %v4467
        %v4469 = vlaneseq
        %v4470 = vshrl.u32 %v4469, 7
        %v4471 = vsub.s32 %v4468, %v4470
        %v4472 = vrot.slane %v4464, %v4471
        %v4474 = vunpack.c.l.s4 1934713408
        %v4475 = vunpack.c.0.s8 %v4474
        %v4476 = vlaneseq
        %v4477 = vshrl.u32 %v4476, 7
        %v4478 = vsub.s32 %v4475, %v4477
        %v4479 = vrot.slane %v4465, %v4478
        %v4480 = vcombine.low %v4456, %v4472
        %v4481 = vcombine.high %v4456, %v4472
        %v4482 = vcombine.low %v4463, %v4479
        %v4483 = vcombine.high %v4463, %v4479
        %v4484 = vcombine.low %v3436, %v3443
        %v4486 = vunpack.c.l.s4 1983009808
        %v4487 = vunpack.c.0.s8 %v4486
        %v4488 = vlaneseq
        %v4489 = vshrl.u32 %v4488, 7
        %v4490 = vsub.s32 %v4487, %v4489
        %v4491 = vrot.slane %v4484, %v4490
        %v4492 = vcombine.low %v3460, %v3461
        %v4494 = vunpack.c.l.s4 1983009808
        %v4495 = vunpack.c.0.s8 %v4494
        %v4496 = vlaneseq
        %v4497 = vshrl.u32 %v4496, 7
        %v4498 = vsub.s32 %v4495, %v4497
        %v4499 = vrot.slane %v4492, %v4498
        %v4500 = vcombine.low %v3452, %v3459
        %v4502 = vunpack.c.l.s4 1983009808
        %v4503 = vunpack.c.0.s8 %v4502
        %v4504 = vlaneseq
        %v4505 = vshrl.u32 %v4504, 7
        %v4506 = vsub.s32 %v4503, %v4505
        %v4507 = vrot.slane %v4500, %v4506
        %v4508 = vcombine.low %v3462, %v3463
        %v4510 = vunpack.c.l.s4 1983009808
        %v4511 = vunpack.c.0.s8 %v4510
        %v4512 = vlaneseq
        %v4513 = vshrl.u32 %v4512, 7
        %v4514 = vsub.s32 %v4511, %v4513
        %v4515 = vrot.slane %v4508, %v4514
        %v4516 = vcombine.low %v4491, %v4499
        %v4517 = vcombine.high %v4491, %v4499
        %v4519 = vunpack.c.l.s4 1934713408
        %v4520 = vunpack.c.0.s8 %v4519
        %v4521 = vlaneseq
        %v4522 = vshrl.u32 %v4521, 7
        %v4523 = vsub.s32 %v4520, %v4522
        %v4524 = vrot.slane %v4516, %v4523
        %v4526 = vunpack.c.l.s4 1934713408
        %v4527 = vunpack.c.0.s8 %v4526
        %v4528 = vlaneseq
        %v4529 = vshrl.u32 %v4528, 7
        %v4530 = vsub.s32 %v4527, %v4529
        %v4531 = vrot.slane %v4517, %v4530
        %v4532 = vcombine.low %v4507, %v4515
        %v4533 = vcombine.high %v4507, %v4515
        %v4535 = vunpack.c.l.s4 1934713408
        %v4536 = vunpack.c.0.s8 %v4535
        %v4537 = vlaneseq
        %v4538 = vshrl.u32 %v4537, 7
        %v4539 = vsub.s32 %v4536, %v4538
        %v4540 = vrot.slane %v4532, %v4539
        %v4542 = vunpack.c.l.s4 1934713408
        %v4543 = vunpack.c.0.s8 %v4542
        %v4544 = vlaneseq
        %v4545 = vshrl.u32 %v4544, 7
        %v4546 = vsub.s32 %v4543, %v4545
        %v4547 = vrot.slane %v4533, %v4546
        %v4548 = vcombine.low %v4524, %v4540
        %v4549 = vcombine.high %v4524, %v4540
        %v4550 = vcombine.low %v4531, %v4547
        %v4551 = vcombine.high %v4531, %v4547
        %v4552 = vcombine.low %v3504, %v3511
        %v4554 = vunpack.c.l.s4 1983009808
        %v4555 = vunpack.c.0.s8 %v4554
        %v4556 = vlaneseq
        %v4557 = vshrl.u32 %v4556, 7
        %v4558 = vsub.s32 %v4555, %v4557
        %v4559 = vrot.slane %v4552, %v4558
        %v4560 = vcombine.low %v3528, %v3529
        %v4562 = vunpack.c.l.s4 1983009808
        %v4563 = vunpack.c.0.s8 %v4562
        %v4564 = vlaneseq
        %v4565 = vshrl.u32 %v4564, 7
        %v4566 = vsub.s32 %v4563, %v4565
        %v4567 = vrot.slane %v4560, %v4566
        %v4568 = vcombine.low %v3520, %v3527
        %v4570 = vunpack.c.l.s4 1983009808
        %v4571 = vunpack.c.0.s8 %v4570
        %v4572 = vlaneseq
        %v4573 = vshrl.u32 %v4572, 7
        %v4574 = vsub.s32 %v4571, %v4573
        %v4575 = vrot.slane %v4568, %v4574
        %v4576 = vcombine.low %v3530, %v3531
        %v4578 = vunpack.c.l.s4 1983009808
        %v4579 = vunpack.c.0.s8 %v4578
        %v4580 = vlaneseq
        %v4581 = vshrl.u32 %v4580, 7
        %v4582 = vsub.s32 %v4579, %v4581
        %v4583 = vrot.slane %v4576, %v4582
        %v4584 = vcombine.low %v4559, %v4567
        %v4585 = vcombine.high %v4559, %v4567
        %v4587 = vunpack.c.l.s4 1934713408
        %v4588 = vunpack.c.0.s8 %v4587
        %v4589 = vlaneseq
        %v4590 = vshrl.u32 %v4589, 7
        %v4591 = vsub.s32 %v4588, %v4590
        %v4592 = vrot.slane %v4584, %v4591
        %v4594 = vunpack.c.l.s4 1934713408
        %v4595 = vunpack.c.0.s8 %v4594
        %v4596 = vlaneseq
        %v4597 = vshrl.u32 %v4596, 7
        %v4598 = vsub.s32 %v4595, %v4597
        %v4599 = vrot.slane %v4585, %v4598
        %v4600 = vcombine.low %v4575, %v4583
        %v4601 = vcombine.high %v4575, %v4583
        %v4603 = vunpack.c.l.s4 1934713408
        %v4604 = vunpack.c.0.s8 %v4603
        %v4605 = vlaneseq
        %v4606 = vshrl.u32 %v4605, 7
        %v4607 = vsub.s32 %v4604, %v4606
        %v4608 = vrot.slane %v4600, %v4607
        %v4610 = vunpack.c.l.s4 1934713408
        %v4611 = vunpack.c.0.s8 %v4610
        %v4612 = vlaneseq
        %v4613 = vshrl.u32 %v4612, 7
        %v4614 = vsub.s32 %v4611, %v4613
        %v4615 = vrot.slane %v4601, %v4614
        %v4616 = vcombine.low %v4592, %v4608
        %v4617 = vcombine.high %v4592, %v4608
        %v4618 = vcombine.low %v4599, %v4615
        %v4619 = vcombine.high %v4599, %v4615
        %v4620 = vcombine.low %v3572, %v3579
        %v4622 = vunpack.c.l.s4 1983009808
        %v4623 = vunpack.c.0.s8 %v4622
        %v4624 = vlaneseq
        %v4625 = vshrl.u32 %v4624, 7
        %v4626 = vsub.s32 %v4623, %v4625
        %v4627 = vrot.slane %v4620, %v4626
        %v4628 = vcombine.low %v3596, %v3597
        %v4630 = vunpack.c.l.s4 1983009808
        %v4631 = vunpack.c.0.s8 %v4630
        %v4632 = vlaneseq
        %v4633 = vshrl.u32 %v4632, 7
        %v4634 = vsub.s32 %v4631, %v4633
        %v4635 = vrot.slane %v4628, %v4634
        %v4636 = vcombine.low %v3588, %v3595
        %v4638 = vunpack.c.l.s4 1983009808
        %v4639 = vunpack.c.0.s8 %v4638
        %v4640 = vlaneseq
        %v4641 = vshrl.u32 %v4640, 7
        %v4642 = vsub.s32 %v4639, %v4641
        %v4643 = vrot.slane %v4636, %v4642
        %v4644 = vcombine.low %v3598, %v3599
        %v4646 = vunpack.c.l.s4 1983009808
        %v4647 = vunpack.c.0.s8 %v4646
        %v4648 = vlaneseq
        %v4649 = vshrl.u32 %v4648, 7
        %v4650 = vsub.s32 %v4647, %v4649
        %v4651 = vrot.slane %v4644, %v4650
        %v4652 = vcombine.low %v4627, %v4635
        %v4653 = vcombine.high %v4627, %v4635
        %v4655 = vunpack.c.l.s4 1934713408
        %v4656 = vunpack.c.0.s8 %v4655
        %v4657 = vlaneseq
        %v4658 = vshrl.u32 %v4657, 7
        %v4659 = vsub.s32 %v4656, %v4658
        %v4660 = vrot.slane %v4652, %v4659
        %v4662 = vunpack.c.l.s4 1934713408
        %v4663 = vunpack.c.0.s8 %v4662
        %v4664 = vlaneseq
        %v4665 = vshrl.u32 %v4664, 7
        %v4666 = vsub.s32 %v4663, %v4665
        %v4667 = vrot.slane %v4653, %v4666
        %v4668 = vcombine.low %v4643, %v4651
        %v4669 = vcombine.high %v4643, %v4651
        %v4671 = vunpack.c.l.s4 1934713408
        %v4672 = vunpack.c.0.s8 %v4671
        %v4673 = vlaneseq
        %v4674 = vshrl.u32 %v4673, 7
        %v4675 = vsub.s32 %v4672, %v4674
        %v4676 = vrot.slane %v4668, %v4675
        %v4678 = vunpack.c.l.s4 1934713408
        %v4679 = vunpack.c.0.s8 %v4678
        %v4680 = vlaneseq
        %v4681 = vshrl.u32 %v4680, 7
        %v4682 = vsub.s32 %v4679, %v4681
        %v4683 = vrot.slane %v4669, %v4682
        %v4684 = vcombine.low %v4660, %v4676
        %v4685 = vcombine.high %v4660, %v4676
        %v4686 = vcombine.low %v4667, %v4683
        %v4687 = vcombine.high %v4667, %v4683
        %v4688 = vcombine.low %v3640, %v3647
        %v4690 = vunpack.c.l.s4 1983009808
        %v4691 = vunpack.c.0.s8 %v4690
        %v4692 = vlaneseq
        %v4693 = vshrl.u32 %v4692, 7
        %v4694 = vsub.s32 %v4691, %v4693
        %v4695 = vrot.slane %v4688, %v4694
        %v4696 = vcombine.low %v3664, %v3665
        %v4698 = vunpack.c.l.s4 1983009808
        %v4699 = vunpack.c.0.s8 %v4698
        %v4700 = vlaneseq
        %v4701 = vshrl.u32 %v4700, 7
        %v4702 = vsub.s32 %v4699, %v4701
        %v4703 = vrot.slane %v4696, %v4702
        %v4704 = vcombine.low %v3656, %v3663
        %v4706 = vunpack.c.l.s4 1983009808
        %v4707 = vunpack.c.0.s8 %v4706
        %v4708 = vlaneseq
        %v4709 = vshrl.u32 %v4708, 7
        %v4710 = vsub.s32 %v4707, %v4709
        %v4711 = vrot.slane %v4704, %v4710
        %v4712 = vcombine.low %v3666, %v3667
        %v4714 = vunpack.c.l.s4 1983009808
        %v4715 = vunpack.c.0.s8 %v4714
        %v4716 = vlaneseq
        %v4717 = vshrl.u32 %v4716, 7
        %v4718 = vsub.s32 %v4715, %v4717
        %v4719 = vrot.slane %v4712, %v4718
        %v4720 = vcombine.low %v4695, %v4703
        %v4721 = vcombine.high %v4695, %v4703
        %v4723 = vunpack.c.l.s4 1934713408
        %v4724 = vunpack.c.0.s8 %v4723
        %v4725 = vlaneseq
        %v4726 = vshrl.u32 %v4725, 7
        %v4727 = vsub.s32 %v4724, %v4726
        %v4728 = vrot.slane %v4720, %v4727
        %v4730 = vunpack.c.l.s4 1934713408
        %v4731 = vunpack.c.0.s8 %v4730
        %v4732 = vlaneseq
        %v4733 = vshrl.u32 %v4732, 7
        %v4734 = vsub.s32 %v4731, %v4733
        %v4735 = vrot.slane %v4721, %v4734
        %v4736 = vcombine.low %v4711, %v4719
        %v4737 = vcombine.high %v4711, %v4719
        %v4739 = vunpack.c.l.s4 1934713408
        %v4740 = vunpack.c.0.s8 %v4739
        %v4741 = vlaneseq
        %v4742 = vshrl.u32 %v4741, 7
        %v4743 = vsub.s32 %v4740, %v4742
        %v4744 = vrot.slane %v4736, %v4743
        %v4746 = vunpack.c.l.s4 1934713408
        %v4747 = vunpack.c.0.s8 %v4746
        %v4748 = vlaneseq
        %v4749 = vshrl.u32 %v4748, 7
        %v4750 = vsub.s32 %v4747, %v4749
        %v4751 = vrot.slane %v4737, %v4750
        %v4752 = vcombine.low %v4728, %v4744
        %v4753 = vcombine.high %v4728, %v4744
        %v4754 = vcombine.low %v4735, %v4751
        %v4755 = vcombine.high %v4735, %v4751
        %v4756 = vpack.c.bf16 %v3800, %v3732
        %v4757 = vpack.c.bf16 %v3936, %v3868
        %v4758 = vpack.c.bf16 %v4072, %v4004
        %v4759 = vpack.c.bf16 %v4208, %v4140
        %v4760 = vpack.c.bf16 %v4344, %v4276
        %v4761 = vpack.c.bf16 %v4480, %v4412
        %v4762 = vpack.c.bf16 %v4616, %v4548
        %v4763 = vpack.c.bf16 %v4752, %v4684
        %v4764 = vpack.c.bf16 %v3801, %v3733
        %v4765 = vpack.c.bf16 %v3937, %v3869
        %v4766 = vpack.c.bf16 %v4073, %v4005
        %v4767 = vpack.c.bf16 %v4209, %v4141
        %v4768 = vpack.c.bf16 %v4345, %v4277
        %v4769 = vpack.c.bf16 %v4481, %v4413
        %v4770 = vpack.c.bf16 %v4617, %v4549
        %v4771 = vpack.c.bf16 %v4753, %v4685
        %v4772 = vpack.c.bf16 %v3802, %v3734
        %v4773 = vpack.c.bf16 %v3938, %v3870
        %v4774 = vpack.c.bf16 %v4074, %v4006
        %v4775 = vpack.c.bf16 %v4210, %v4142
        %v4776 = vpack.c.bf16 %v4346, %v4278
        %v4777 = vpack.c.bf16 %v4482, %v4414
        %v4778 = vpack.c.bf16 %v4618, %v4550
        %v4779 = vpack.c.bf16 %v4754, %v4686
        %v4780 = vpack.c.bf16 %v3803, %v3735
        %v4781 = vpack.c.bf16 %v3939, %v3871
        %v4782 = vpack.c.bf16 %v4075, %v4007
        %v4783 = vpack.c.bf16 %v4211, %v4143
        %v4784 = vpack.c.bf16 %v4347, %v4279
        %v4785 = vpack.c.bf16 %v4483, %v4415
        %v4786 = vpack.c.bf16 %v4619, %v4551
        %v4787 = vpack.c.bf16 %v4755, %v4687
        %4804 = vrot.lane.b32.xlu0 %v1174, 96
        %v4805 = vpop.permute.xlu0 %4804
        %4806 = vrot.lane.b32.xlu0 %v1177, 96
        %v4807 = vpop.permute.xlu0 %4806
        %4808 = vrot.lane.b32.xlu0 %v1182, 96
        %v4809 = vpop.permute.xlu0 %4808
        %4810 = vrot.lane.b32.xlu0 %v1185, 96
        %v4811 = vpop.permute.xlu0 %4810
        %4812 = vrot.lane.b32.xlu0 %v1190, 96
        %v4813 = vpop.permute.xlu0 %4812
        %4814 = vrot.lane.b32.xlu0 %v1193, 96
        %v4815 = vpop.permute.xlu0 %4814
        %4816 = vrot.lane.b32.xlu0 %v1198, 96
        %v4817 = vpop.permute.xlu0 %4816
        %4818 = vrot.lane.b32.xlu0 %v1201, 96
        %v4819 = vpop.permute.xlu0 %4818
        %4820 = vrot.lane.b32.xlu0 %v1206, 96
        %v4821 = vpop.permute.xlu0 %4820
        %4822 = vrot.lane.b32.xlu0 %v1209, 96
        %v4823 = vpop.permute.xlu0 %4822
        %4824 = vrot.lane.b32.xlu0 %v1214, 96
        %v4825 = vpop.permute.xlu0 %4824
        %4826 = vrot.lane.b32.xlu0 %v1217, 96
        %v4827 = vpop.permute.xlu0 %4826
        %4828 = vrot.lane.b32.xlu0 %v1222, 96
        %v4829 = vpop.permute.xlu0 %4828
        %4830 = vrot.lane.b32.xlu0 %v1225, 96
        %v4831 = vpop.permute.xlu0 %4830
        %4832 = vrot.lane.b32.xlu0 %v1230, 96
        %v4833 = vpop.permute.xlu0 %4832
        %4834 = vrot.lane.b32.xlu0 %v1233, 96
        %v4835 = vpop.permute.xlu0 %4834
        %4852 = vrot.lane.b32.xlu0 %v1174, 64
        %v4853 = vpop.permute.xlu0 %4852
        %4854 = vrot.lane.b32.xlu0 %v1177, 64
        %v4855 = vpop.permute.xlu0 %4854
        %4856 = vrot.lane.b32.xlu0 %v1182, 64
        %v4857 = vpop.permute.xlu0 %4856
        %4858 = vrot.lane.b32.xlu0 %v1185, 64
        %v4859 = vpop.permute.xlu0 %4858
        %4860 = vrot.lane.b32.xlu0 %v1190, 64
        %v4861 = vpop.permute.xlu0 %4860
        %4862 = vrot.lane.b32.xlu0 %v1193, 64
        %v4863 = vpop.permute.xlu0 %4862
        %4864 = vrot.lane.b32.xlu0 %v1198, 64
        %v4865 = vpop.permute.xlu0 %4864
        %4866 = vrot.lane.b32.xlu0 %v1201, 64
        %v4867 = vpop.permute.xlu0 %4866
        %4868 = vrot.lane.b32.xlu0 %v1206, 64
        %v4869 = vpop.permute.xlu0 %4868
        %4870 = vrot.lane.b32.xlu0 %v1209, 64
        %v4871 = vpop.permute.xlu0 %4870
        %4872 = vrot.lane.b32.xlu0 %v1214, 64
        %v4873 = vpop.permute.xlu0 %4872
        %4874 = vrot.lane.b32.xlu0 %v1217, 64
        %v4875 = vpop.permute.xlu0 %4874
        %4876 = vrot.lane.b32.xlu0 %v1222, 64
        %v4877 = vpop.permute.xlu0 %4876
        %4878 = vrot.lane.b32.xlu0 %v1225, 64
        %v4879 = vpop.permute.xlu0 %4878
        %4880 = vrot.lane.b32.xlu0 %v1230, 64
        %v4881 = vpop.permute.xlu0 %4880
        %4882 = vrot.lane.b32.xlu0 %v1233, 64
        %v4883 = vpop.permute.xlu0 %4882
        %4900 = vrot.lane.b32.xlu0 %v1174, 32
        %v4901 = vpop.permute.xlu0 %4900
        %4902 = vrot.lane.b32.xlu0 %v1177, 32
        %v4903 = vpop.permute.xlu0 %4902
        %4904 = vrot.lane.b32.xlu0 %v1182, 32
        %v4905 = vpop.permute.xlu0 %4904
        %4906 = vrot.lane.b32.xlu0 %v1185, 32
        %v4907 = vpop.permute.xlu0 %4906
        %4908 = vrot.lane.b32.xlu0 %v1190, 32
        %v4909 = vpop.permute.xlu0 %4908
        %4910 = vrot.lane.b32.xlu0 %v1193, 32
        %v4911 = vpop.permute.xlu0 %4910
        %4912 = vrot.lane.b32.xlu0 %v1198, 32
        %v4913 = vpop.permute.xlu0 %4912
        %4914 = vrot.lane.b32.xlu0 %v1201, 32
        %v4915 = vpop.permute.xlu0 %4914
        %4916 = vrot.lane.b32.xlu0 %v1206, 32
        %v4917 = vpop.permute.xlu0 %4916
        %4918 = vrot.lane.b32.xlu0 %v1209, 32
        %v4919 = vpop.permute.xlu0 %4918
        %4920 = vrot.lane.b32.xlu0 %v1214, 32
        %v4921 = vpop.permute.xlu0 %4920
        %4922 = vrot.lane.b32.xlu0 %v1217, 32
        %v4923 = vpop.permute.xlu0 %4922
        %4924 = vrot.lane.b32.xlu0 %v1222, 32
        %v4925 = vpop.permute.xlu0 %4924
        %4926 = vrot.lane.b32.xlu0 %v1225, 32
        %v4927 = vpop.permute.xlu0 %4926
        %4928 = vrot.lane.b32.xlu0 %v1230, 32
        %v4929 = vpop.permute.xlu0 %4928
        %4930 = vrot.lane.b32.xlu0 %v1233, 32
        %v4931 = vpop.permute.xlu0 %4930
        %v4948 = vcombine.low %v1174, %v4853
        %v4949 = vcombine.high %v1174, %v4853
        %v4951 = vunpack.c.l.s4 1983009808
        %v4952 = vunpack.c.0.s8 %v4951
        %v4953 = vlaneseq
        %v4954 = vshrl.u32 %v4953, 7
        %v4955 = vsub.s32 %v4952, %v4954
        %v4956 = vrot.slane %v4948, %v4955
        %v4958 = vunpack.c.l.s4 1983009808
        %v4959 = vunpack.c.0.s8 %v4958
        %v4960 = vlaneseq
        %v4961 = vshrl.u32 %v4960, 7
        %v4962 = vsub.s32 %v4959, %v4961
        %v4963 = vrot.slane %v4949, %v4962
        %v4964 = vcombine.low %v4805, %v4901
        %v4965 = vcombine.high %v4805, %v4901
        %v4967 = vunpack.c.l.s4 1983009808
        %v4968 = vunpack.c.0.s8 %v4967
        %v4969 = vlaneseq
        %v4970 = vshrl.u32 %v4969, 7
        %v4971 = vsub.s32 %v4968, %v4970
        %v4972 = vrot.slane %v4964, %v4971
        %v4974 = vunpack.c.l.s4 1983009808
        %v4975 = vunpack.c.0.s8 %v4974
        %v4976 = vlaneseq
        %v4977 = vshrl.u32 %v4976, 7
        %v4978 = vsub.s32 %v4975, %v4977
        %v4979 = vrot.slane %v4965, %v4978
        %v4980 = vcombine.low %v4956, %v4972
        %v4981 = vcombine.high %v4956, %v4972
        %v4983 = vunpack.c.l.s4 1934713408
        %v4984 = vunpack.c.0.s8 %v4983
        %v4985 = vlaneseq
        %v4986 = vshrl.u32 %v4985, 7
        %v4987 = vsub.s32 %v4984, %v4986
        %v4988 = vrot.slane %v4980, %v4987
        %v4990 = vunpack.c.l.s4 1934713408
        %v4991 = vunpack.c.0.s8 %v4990
        %v4992 = vlaneseq
        %v4993 = vshrl.u32 %v4992, 7
        %v4994 = vsub.s32 %v4991, %v4993
        %v4995 = vrot.slane %v4981, %v4994
        %v4996 = vcombine.low %v4963, %v4979
        %v4997 = vcombine.high %v4963, %v4979
        %v4999 = vunpack.c.l.s4 1934713408
        %v5000 = vunpack.c.0.s8 %v4999
        %v5001 = vlaneseq
        %v5002 = vshrl.u32 %v5001, 7
        %v5003 = vsub.s32 %v5000, %v5002
        %v5004 = vrot.slane %v4996, %v5003
        %v5006 = vunpack.c.l.s4 1934713408
        %v5007 = vunpack.c.0.s8 %v5006
        %v5008 = vlaneseq
        %v5009 = vshrl.u32 %v5008, 7
        %v5010 = vsub.s32 %v5007, %v5009
        %v5011 = vrot.slane %v4997, %v5010
        %v5012 = vcombine.high %v4988, 0.0
        %v5013 = vcombine.high %v4995, 0.0
        %v5014 = vcombine.high %v5004, 0.0
        %v5015 = vcombine.high %v5011, 0.0
        %v5016 = vcombine.low %v1177, %v4855
        %v5017 = vcombine.high %v1177, %v4855
        %v5019 = vunpack.c.l.s4 1983009808
        %v5020 = vunpack.c.0.s8 %v5019
        %v5021 = vlaneseq
        %v5022 = vshrl.u32 %v5021, 7
        %v5023 = vsub.s32 %v5020, %v5022
        %v5024 = vrot.slane %v5016, %v5023
        %v5026 = vunpack.c.l.s4 1983009808
        %v5027 = vunpack.c.0.s8 %v5026
        %v5028 = vlaneseq
        %v5029 = vshrl.u32 %v5028, 7
        %v5030 = vsub.s32 %v5027, %v5029
        %v5031 = vrot.slane %v5017, %v5030
        %v5032 = vcombine.low %v4807, %v4903
        %v5033 = vcombine.high %v4807, %v4903
        %v5035 = vunpack.c.l.s4 1983009808
        %v5036 = vunpack.c.0.s8 %v5035
        %v5037 = vlaneseq
        %v5038 = vshrl.u32 %v5037, 7
        %v5039 = vsub.s32 %v5036, %v5038
        %v5040 = vrot.slane %v5032, %v5039
        %v5042 = vunpack.c.l.s4 1983009808
        %v5043 = vunpack.c.0.s8 %v5042
        %v5044 = vlaneseq
        %v5045 = vshrl.u32 %v5044, 7
        %v5046 = vsub.s32 %v5043, %v5045
        %v5047 = vrot.slane %v5033, %v5046
        %v5048 = vcombine.low %v5024, %v5040
        %v5049 = vcombine.high %v5024, %v5040
        %v5051 = vunpack.c.l.s4 1934713408
        %v5052 = vunpack.c.0.s8 %v5051
        %v5053 = vlaneseq
        %v5054 = vshrl.u32 %v5053, 7
        %v5055 = vsub.s32 %v5052, %v5054
        %v5056 = vrot.slane %v5048, %v5055
        %v5058 = vunpack.c.l.s4 1934713408
        %v5059 = vunpack.c.0.s8 %v5058
        %v5060 = vlaneseq
        %v5061 = vshrl.u32 %v5060, 7
        %v5062 = vsub.s32 %v5059, %v5061
        %v5063 = vrot.slane %v5049, %v5062
        %v5064 = vcombine.low %v5031, %v5047
        %v5065 = vcombine.high %v5031, %v5047
        %v5067 = vunpack.c.l.s4 1934713408
        %v5068 = vunpack.c.0.s8 %v5067
        %v5069 = vlaneseq
        %v5070 = vshrl.u32 %v5069, 7
        %v5071 = vsub.s32 %v5068, %v5070
        %v5072 = vrot.slane %v5064, %v5071
        %v5074 = vunpack.c.l.s4 1934713408
        %v5075 = vunpack.c.0.s8 %v5074
        %v5076 = vlaneseq
        %v5077 = vshrl.u32 %v5076, 7
        %v5078 = vsub.s32 %v5075, %v5077
        %v5079 = vrot.slane %v5065, %v5078
        %v5080 = vcombine.high %v5056, 0.0
        %v5081 = vcombine.high %v5063, 0.0
        %v5082 = vcombine.high %v5072, 0.0
        %v5083 = vcombine.high %v5079, 0.0
        %v5084 = vcombine.low %v1182, %v4857
        %v5085 = vcombine.high %v1182, %v4857
        %v5087 = vunpack.c.l.s4 1983009808
        %v5088 = vunpack.c.0.s8 %v5087
        %v5089 = vlaneseq
        %v5090 = vshrl.u32 %v5089, 7
        %v5091 = vsub.s32 %v5088, %v5090
        %v5092 = vrot.slane %v5084, %v5091
        %v5094 = vunpack.c.l.s4 1983009808
        %v5095 = vunpack.c.0.s8 %v5094
        %v5096 = vlaneseq
        %v5097 = vshrl.u32 %v5096, 7
        %v5098 = vsub.s32 %v5095, %v5097
        %v5099 = vrot.slane %v5085, %v5098
        %v5100 = vcombine.low %v4809, %v4905
        %v5101 = vcombine.high %v4809, %v4905
        %v5103 = vunpack.c.l.s4 1983009808
        %v5104 = vunpack.c.0.s8 %v5103
        %v5105 = vlaneseq
        %v5106 = vshrl.u32 %v5105, 7
        %v5107 = vsub.s32 %v5104, %v5106
        %v5108 = vrot.slane %v5100, %v5107
        %v5110 = vunpack.c.l.s4 1983009808
        %v5111 = vunpack.c.0.s8 %v5110
        %v5112 = vlaneseq
        %v5113 = vshrl.u32 %v5112, 7
        %v5114 = vsub.s32 %v5111, %v5113
        %v5115 = vrot.slane %v5101, %v5114
        %v5116 = vcombine.low %v5092, %v5108
        %v5117 = vcombine.high %v5092, %v5108
        %v5119 = vunpack.c.l.s4 1934713408
        %v5120 = vunpack.c.0.s8 %v5119
        %v5121 = vlaneseq
        %v5122 = vshrl.u32 %v5121, 7
        %v5123 = vsub.s32 %v5120, %v5122
        %v5124 = vrot.slane %v5116, %v5123
        %v5126 = vunpack.c.l.s4 1934713408
        %v5127 = vunpack.c.0.s8 %v5126
        %v5128 = vlaneseq
        %v5129 = vshrl.u32 %v5128, 7
        %v5130 = vsub.s32 %v5127, %v5129
        %v5131 = vrot.slane %v5117, %v5130
        %v5132 = vcombine.low %v5099, %v5115
        %v5133 = vcombine.high %v5099, %v5115
        %v5135 = vunpack.c.l.s4 1934713408
        %v5136 = vunpack.c.0.s8 %v5135
        %v5137 = vlaneseq
        %v5138 = vshrl.u32 %v5137, 7
        %v5139 = vsub.s32 %v5136, %v5138
        %v5140 = vrot.slane %v5132, %v5139
        %v5142 = vunpack.c.l.s4 1934713408
        %v5143 = vunpack.c.0.s8 %v5142
        %v5144 = vlaneseq
        %v5145 = vshrl.u32 %v5144, 7
        %v5146 = vsub.s32 %v5143, %v5145
        %v5147 = vrot.slane %v5133, %v5146
        %v5148 = vcombine.high %v5124, 0.0
        %v5149 = vcombine.high %v5131, 0.0
        %v5150 = vcombine.high %v5140, 0.0
        %v5151 = vcombine.high %v5147, 0.0
        %v5152 = vcombine.low %v1185, %v4859
        %v5153 = vcombine.high %v1185, %v4859
        %v5155 = vunpack.c.l.s4 1983009808
        %v5156 = vunpack.c.0.s8 %v5155
        %v5157 = vlaneseq
        %v5158 = vshrl.u32 %v5157, 7
        %v5159 = vsub.s32 %v5156, %v5158
        %v5160 = vrot.slane %v5152, %v5159
        %v5162 = vunpack.c.l.s4 1983009808
        %v5163 = vunpack.c.0.s8 %v5162
        %v5164 = vlaneseq
        %v5165 = vshrl.u32 %v5164, 7
        %v5166 = vsub.s32 %v5163, %v5165
        %v5167 = vrot.slane %v5153, %v5166
        %v5168 = vcombine.low %v4811, %v4907
        %v5169 = vcombine.high %v4811, %v4907
        %v5171 = vunpack.c.l.s4 1983009808
        %v5172 = vunpack.c.0.s8 %v5171
        %v5173 = vlaneseq
        %v5174 = vshrl.u32 %v5173, 7
        %v5175 = vsub.s32 %v5172, %v5174
        %v5176 = vrot.slane %v5168, %v5175
        %v5178 = vunpack.c.l.s4 1983009808
        %v5179 = vunpack.c.0.s8 %v5178
        %v5180 = vlaneseq
        %v5181 = vshrl.u32 %v5180, 7
        %v5182 = vsub.s32 %v5179, %v5181
        %v5183 = vrot.slane %v5169, %v5182
        %v5184 = vcombine.low %v5160, %v5176
        %v5185 = vcombine.high %v5160, %v5176
        %v5187 = vunpack.c.l.s4 1934713408
        %v5188 = vunpack.c.0.s8 %v5187
        %v5189 = vlaneseq
        %v5190 = vshrl.u32 %v5189, 7
        %v5191 = vsub.s32 %v5188, %v5190
        %v5192 = vrot.slane %v5184, %v5191
        %v5194 = vunpack.c.l.s4 1934713408
        %v5195 = vunpack.c.0.s8 %v5194
        %v5196 = vlaneseq
        %v5197 = vshrl.u32 %v5196, 7
        %v5198 = vsub.s32 %v5195, %v5197
        %v5199 = vrot.slane %v5185, %v5198
        %v5200 = vcombine.low %v5167, %v5183
        %v5201 = vcombine.high %v5167, %v5183
        %v5203 = vunpack.c.l.s4 1934713408
        %v5204 = vunpack.c.0.s8 %v5203
        %v5205 = vlaneseq
        %v5206 = vshrl.u32 %v5205, 7
        %v5207 = vsub.s32 %v5204, %v5206
        %v5208 = vrot.slane %v5200, %v5207
        %v5210 = vunpack.c.l.s4 1934713408
        %v5211 = vunpack.c.0.s8 %v5210
        %v5212 = vlaneseq
        %v5213 = vshrl.u32 %v5212, 7
        %v5214 = vsub.s32 %v5211, %v5213
        %v5215 = vrot.slane %v5201, %v5214
        %v5216 = vcombine.high %v5192, 0.0
        %v5217 = vcombine.high %v5199, 0.0
        %v5218 = vcombine.high %v5208, 0.0
        %v5219 = vcombine.high %v5215, 0.0
        %v5220 = vcombine.low %v1190, %v4861
        %v5221 = vcombine.high %v1190, %v4861
        %v5223 = vunpack.c.l.s4 1983009808
        %v5224 = vunpack.c.0.s8 %v5223
        %v5225 = vlaneseq
        %v5226 = vshrl.u32 %v5225, 7
        %v5227 = vsub.s32 %v5224, %v5226
        %v5228 = vrot.slane %v5220, %v5227
        %v5230 = vunpack.c.l.s4 1983009808
        %v5231 = vunpack.c.0.s8 %v5230
        %v5232 = vlaneseq
        %v5233 = vshrl.u32 %v5232, 7
        %v5234 = vsub.s32 %v5231, %v5233
        %v5235 = vrot.slane %v5221, %v5234
        %v5236 = vcombine.low %v4813, %v4909
        %v5237 = vcombine.high %v4813, %v4909
        %v5239 = vunpack.c.l.s4 1983009808
        %v5240 = vunpack.c.0.s8 %v5239
        %v5241 = vlaneseq
        %v5242 = vshrl.u32 %v5241, 7
        %v5243 = vsub.s32 %v5240, %v5242
        %v5244 = vrot.slane %v5236, %v5243
        %v5246 = vunpack.c.l.s4 1983009808
        %v5247 = vunpack.c.0.s8 %v5246
        %v5248 = vlaneseq
        %v5249 = vshrl.u32 %v5248, 7
        %v5250 = vsub.s32 %v5247, %v5249
        %v5251 = vrot.slane %v5237, %v5250
        %v5252 = vcombine.low %v5228, %v5244
        %v5253 = vcombine.high %v5228, %v5244
        %v5255 = vunpack.c.l.s4 1934713408
        %v5256 = vunpack.c.0.s8 %v5255
        %v5257 = vlaneseq
        %v5258 = vshrl.u32 %v5257, 7
        %v5259 = vsub.s32 %v5256, %v5258
        %v5260 = vrot.slane %v5252, %v5259
        %v5262 = vunpack.c.l.s4 1934713408
        %v5263 = vunpack.c.0.s8 %v5262
        %v5264 = vlaneseq
        %v5265 = vshrl.u32 %v5264, 7
        %v5266 = vsub.s32 %v5263, %v5265
        %v5267 = vrot.slane %v5253, %v5266
        %v5268 = vcombine.low %v5235, %v5251
        %v5269 = vcombine.high %v5235, %v5251
        %v5271 = vunpack.c.l.s4 1934713408
        %v5272 = vunpack.c.0.s8 %v5271
        %v5273 = vlaneseq
        %v5274 = vshrl.u32 %v5273, 7
        %v5275 = vsub.s32 %v5272, %v5274
        %v5276 = vrot.slane %v5268, %v5275
        %v5278 = vunpack.c.l.s4 1934713408
        %v5279 = vunpack.c.0.s8 %v5278
        %v5280 = vlaneseq
        %v5281 = vshrl.u32 %v5280, 7
        %v5282 = vsub.s32 %v5279, %v5281
        %v5283 = vrot.slane %v5269, %v5282
        %v5284 = vcombine.high %v5260, 0.0
        %v5285 = vcombine.high %v5267, 0.0
        %v5286 = vcombine.high %v5276, 0.0
        %v5287 = vcombine.high %v5283, 0.0
        %v5288 = vcombine.low %v1193, %v4863
        %v5289 = vcombine.high %v1193, %v4863
        %v5291 = vunpack.c.l.s4 1983009808
        %v5292 = vunpack.c.0.s8 %v5291
        %v5293 = vlaneseq
        %v5294 = vshrl.u32 %v5293, 7
        %v5295 = vsub.s32 %v5292, %v5294
        %v5296 = vrot.slane %v5288, %v5295
        %v5298 = vunpack.c.l.s4 1983009808
        %v5299 = vunpack.c.0.s8 %v5298
        %v5300 = vlaneseq
        %v5301 = vshrl.u32 %v5300, 7
        %v5302 = vsub.s32 %v5299, %v5301
        %v5303 = vrot.slane %v5289, %v5302
        %v5304 = vcombine.low %v4815, %v4911
        %v5305 = vcombine.high %v4815, %v4911
        %v5307 = vunpack.c.l.s4 1983009808
        %v5308 = vunpack.c.0.s8 %v5307
        %v5309 = vlaneseq
        %v5310 = vshrl.u32 %v5309, 7
        %v5311 = vsub.s32 %v5308, %v5310
        %v5312 = vrot.slane %v5304, %v5311
        %v5314 = vunpack.c.l.s4 1983009808
        %v5315 = vunpack.c.0.s8 %v5314
        %v5316 = vlaneseq
        %v5317 = vshrl.u32 %v5316, 7
        %v5318 = vsub.s32 %v5315, %v5317
        %v5319 = vrot.slane %v5305, %v5318
        %v5320 = vcombine.low %v5296, %v5312
        %v5321 = vcombine.high %v5296, %v5312
        %v5323 = vunpack.c.l.s4 1934713408
        %v5324 = vunpack.c.0.s8 %v5323
        %v5325 = vlaneseq
        %v5326 = vshrl.u32 %v5325, 7
        %v5327 = vsub.s32 %v5324, %v5326
        %v5328 = vrot.slane %v5320, %v5327
        %v5330 = vunpack.c.l.s4 1934713408
        %v5331 = vunpack.c.0.s8 %v5330
        %v5332 = vlaneseq
        %v5333 = vshrl.u32 %v5332, 7
        %v5334 = vsub.s32 %v5331, %v5333
        %v5335 = vrot.slane %v5321, %v5334
        %v5336 = vcombine.low %v5303, %v5319
        %v5337 = vcombine.high %v5303, %v5319
        %v5339 = vunpack.c.l.s4 1934713408
        %v5340 = vunpack.c.0.s8 %v5339
        %v5341 = vlaneseq
        %v5342 = vshrl.u32 %v5341, 7
        %v5343 = vsub.s32 %v5340, %v5342
        %v5344 = vrot.slane %v5336, %v5343
        %v5346 = vunpack.c.l.s4 1934713408
        %v5347 = vunpack.c.0.s8 %v5346
        %v5348 = vlaneseq
        %v5349 = vshrl.u32 %v5348, 7
        %v5350 = vsub.s32 %v5347, %v5349
        %v5351 = vrot.slane %v5337, %v5350
        %v5352 = vcombine.high %v5328, 0.0
        %v5353 = vcombine.high %v5335, 0.0
        %v5354 = vcombine.high %v5344, 0.0
        %v5355 = vcombine.high %v5351, 0.0
        %v5356 = vcombine.low %v1198, %v4865
        %v5357 = vcombine.high %v1198, %v4865
        %v5359 = vunpack.c.l.s4 1983009808
        %v5360 = vunpack.c.0.s8 %v5359
        %v5361 = vlaneseq
        %v5362 = vshrl.u32 %v5361, 7
        %v5363 = vsub.s32 %v5360, %v5362
        %v5364 = vrot.slane %v5356, %v5363
        %v5366 = vunpack.c.l.s4 1983009808
        %v5367 = vunpack.c.0.s8 %v5366
        %v5368 = vlaneseq
        %v5369 = vshrl.u32 %v5368, 7
        %v5370 = vsub.s32 %v5367, %v5369
        %v5371 = vrot.slane %v5357, %v5370
        %v5372 = vcombine.low %v4817, %v4913
        %v5373 = vcombine.high %v4817, %v4913
        %v5375 = vunpack.c.l.s4 1983009808
        %v5376 = vunpack.c.0.s8 %v5375
        %v5377 = vlaneseq
        %v5378 = vshrl.u32 %v5377, 7
        %v5379 = vsub.s32 %v5376, %v5378
        %v5380 = vrot.slane %v5372, %v5379
        %v5382 = vunpack.c.l.s4 1983009808
        %v5383 = vunpack.c.0.s8 %v5382
        %v5384 = vlaneseq
        %v5385 = vshrl.u32 %v5384, 7
        %v5386 = vsub.s32 %v5383, %v5385
        %v5387 = vrot.slane %v5373, %v5386
        %v5388 = vcombine.low %v5364, %v5380
        %v5389 = vcombine.high %v5364, %v5380
        %v5391 = vunpack.c.l.s4 1934713408
        %v5392 = vunpack.c.0.s8 %v5391
        %v5393 = vlaneseq
        %v5394 = vshrl.u32 %v5393, 7
        %v5395 = vsub.s32 %v5392, %v5394
        %v5396 = vrot.slane %v5388, %v5395
        %v5398 = vunpack.c.l.s4 1934713408
        %v5399 = vunpack.c.0.s8 %v5398
        %v5400 = vlaneseq
        %v5401 = vshrl.u32 %v5400, 7
        %v5402 = vsub.s32 %v5399, %v5401
        %v5403 = vrot.slane %v5389, %v5402
        %v5404 = vcombine.low %v5371, %v5387
        %v5405 = vcombine.high %v5371, %v5387
        %v5407 = vunpack.c.l.s4 1934713408
        %v5408 = vunpack.c.0.s8 %v5407
        %v5409 = vlaneseq
        %v5410 = vshrl.u32 %v5409, 7
        %v5411 = vsub.s32 %v5408, %v5410
        %v5412 = vrot.slane %v5404, %v5411
        %v5414 = vunpack.c.l.s4 1934713408
        %v5415 = vunpack.c.0.s8 %v5414
        %v5416 = vlaneseq
        %v5417 = vshrl.u32 %v5416, 7
        %v5418 = vsub.s32 %v5415, %v5417
        %v5419 = vrot.slane %v5405, %v5418
        %v5420 = vcombine.high %v5396, 0.0
        %v5421 = vcombine.high %v5403, 0.0
        %v5422 = vcombine.high %v5412, 0.0
        %v5423 = vcombine.high %v5419, 0.0
        %v5424 = vcombine.low %v1201, %v4867
        %v5425 = vcombine.high %v1201, %v4867
        %v5427 = vunpack.c.l.s4 1983009808
        %v5428 = vunpack.c.0.s8 %v5427
        %v5429 = vlaneseq
        %v5430 = vshrl.u32 %v5429, 7
        %v5431 = vsub.s32 %v5428, %v5430
        %v5432 = vrot.slane %v5424, %v5431
        %v5434 = vunpack.c.l.s4 1983009808
        %v5435 = vunpack.c.0.s8 %v5434
        %v5436 = vlaneseq
        %v5437 = vshrl.u32 %v5436, 7
        %v5438 = vsub.s32 %v5435, %v5437
        %v5439 = vrot.slane %v5425, %v5438
        %v5440 = vcombine.low %v4819, %v4915
        %v5441 = vcombine.high %v4819, %v4915
        %v5443 = vunpack.c.l.s4 1983009808
        %v5444 = vunpack.c.0.s8 %v5443
        %v5445 = vlaneseq
        %v5446 = vshrl.u32 %v5445, 7
        %v5447 = vsub.s32 %v5444, %v5446
        %v5448 = vrot.slane %v5440, %v5447
        %v5450 = vunpack.c.l.s4 1983009808
        %v5451 = vunpack.c.0.s8 %v5450
        %v5452 = vlaneseq
        %v5453 = vshrl.u32 %v5452, 7
        %v5454 = vsub.s32 %v5451, %v5453
        %v5455 = vrot.slane %v5441, %v5454
        %v5456 = vcombine.low %v5432, %v5448
        %v5457 = vcombine.high %v5432, %v5448
        %v5459 = vunpack.c.l.s4 1934713408
        %v5460 = vunpack.c.0.s8 %v5459
        %v5461 = vlaneseq
        %v5462 = vshrl.u32 %v5461, 7
        %v5463 = vsub.s32 %v5460, %v5462
        %v5464 = vrot.slane %v5456, %v5463
        %v5466 = vunpack.c.l.s4 1934713408
        %v5467 = vunpack.c.0.s8 %v5466
        %v5468 = vlaneseq
        %v5469 = vshrl.u32 %v5468, 7
        %v5470 = vsub.s32 %v5467, %v5469
        %v5471 = vrot.slane %v5457, %v5470
        %v5472 = vcombine.low %v5439, %v5455
        %v5473 = vcombine.high %v5439, %v5455
        %v5475 = vunpack.c.l.s4 1934713408
        %v5476 = vunpack.c.0.s8 %v5475
        %v5477 = vlaneseq
        %v5478 = vshrl.u32 %v5477, 7
        %v5479 = vsub.s32 %v5476, %v5478
        %v5480 = vrot.slane %v5472, %v5479
        %v5482 = vunpack.c.l.s4 1934713408
        %v5483 = vunpack.c.0.s8 %v5482
        %v5484 = vlaneseq
        %v5485 = vshrl.u32 %v5484, 7
        %v5486 = vsub.s32 %v5483, %v5485
        %v5487 = vrot.slane %v5473, %v5486
        %v5488 = vcombine.high %v5464, 0.0
        %v5489 = vcombine.high %v5471, 0.0
        %v5490 = vcombine.high %v5480, 0.0
        %v5491 = vcombine.high %v5487, 0.0
        %v5492 = vcombine.low %v1206, %v4869
        %v5493 = vcombine.high %v1206, %v4869
        %v5495 = vunpack.c.l.s4 1983009808
        %v5496 = vunpack.c.0.s8 %v5495
        %v5497 = vlaneseq
        %v5498 = vshrl.u32 %v5497, 7
        %v5499 = vsub.s32 %v5496, %v5498
        %v5500 = vrot.slane %v5492, %v5499
        %v5502 = vunpack.c.l.s4 1983009808
        %v5503 = vunpack.c.0.s8 %v5502
        %v5504 = vlaneseq
        %v5505 = vshrl.u32 %v5504, 7
        %v5506 = vsub.s32 %v5503, %v5505
        %v5507 = vrot.slane %v5493, %v5506
        %v5508 = vcombine.low %v4821, %v4917
        %v5509 = vcombine.high %v4821, %v4917
        %v5511 = vunpack.c.l.s4 1983009808
        %v5512 = vunpack.c.0.s8 %v5511
        %v5513 = vlaneseq
        %v5514 = vshrl.u32 %v5513, 7
        %v5515 = vsub.s32 %v5512, %v5514
        %v5516 = vrot.slane %v5508, %v5515
        %v5518 = vunpack.c.l.s4 1983009808
        %v5519 = vunpack.c.0.s8 %v5518
        %v5520 = vlaneseq
        %v5521 = vshrl.u32 %v5520, 7
        %v5522 = vsub.s32 %v5519, %v5521
        %v5523 = vrot.slane %v5509, %v5522
        %v5524 = vcombine.low %v5500, %v5516
        %v5525 = vcombine.high %v5500, %v5516
        %v5527 = vunpack.c.l.s4 1934713408
        %v5528 = vunpack.c.0.s8 %v5527
        %v5529 = vlaneseq
        %v5530 = vshrl.u32 %v5529, 7
        %v5531 = vsub.s32 %v5528, %v5530
        %v5532 = vrot.slane %v5524, %v5531
        %v5534 = vunpack.c.l.s4 1934713408
        %v5535 = vunpack.c.0.s8 %v5534
        %v5536 = vlaneseq
        %v5537 = vshrl.u32 %v5536, 7
        %v5538 = vsub.s32 %v5535, %v5537
        %v5539 = vrot.slane %v5525, %v5538
        %v5540 = vcombine.low %v5507, %v5523
        %v5541 = vcombine.high %v5507, %v5523
        %v5543 = vunpack.c.l.s4 1934713408
        %v5544 = vunpack.c.0.s8 %v5543
        %v5545 = vlaneseq
        %v5546 = vshrl.u32 %v5545, 7
        %v5547 = vsub.s32 %v5544, %v5546
        %v5548 = vrot.slane %v5540, %v5547
        %v5550 = vunpack.c.l.s4 1934713408
        %v5551 = vunpack.c.0.s8 %v5550
        %v5552 = vlaneseq
        %v5553 = vshrl.u32 %v5552, 7
        %v5554 = vsub.s32 %v5551, %v5553
        %v5555 = vrot.slane %v5541, %v5554
        %v5556 = vcombine.high %v5532, 0.0
        %v5557 = vcombine.high %v5539, 0.0
        %v5558 = vcombine.high %v5548, 0.0
        %v5559 = vcombine.high %v5555, 0.0
        %v5560 = vcombine.low %v1209, %v4871
        %v5561 = vcombine.high %v1209, %v4871
        %v5563 = vunpack.c.l.s4 1983009808
        %v5564 = vunpack.c.0.s8 %v5563
        %v5565 = vlaneseq
        %v5566 = vshrl.u32 %v5565, 7
        %v5567 = vsub.s32 %v5564, %v5566
        %v5568 = vrot.slane %v5560, %v5567
        %v5570 = vunpack.c.l.s4 1983009808
        %v5571 = vunpack.c.0.s8 %v5570
        %v5572 = vlaneseq
        %v5573 = vshrl.u32 %v5572, 7
        %v5574 = vsub.s32 %v5571, %v5573
        %v5575 = vrot.slane %v5561, %v5574
        %v5576 = vcombine.low %v4823, %v4919
        %v5577 = vcombine.high %v4823, %v4919
        %v5579 = vunpack.c.l.s4 1983009808
        %v5580 = vunpack.c.0.s8 %v5579
        %v5581 = vlaneseq
        %v5582 = vshrl.u32 %v5581, 7
        %v5583 = vsub.s32 %v5580, %v5582
        %v5584 = vrot.slane %v5576, %v5583
        %v5586 = vunpack.c.l.s4 1983009808
        %v5587 = vunpack.c.0.s8 %v5586
        %v5588 = vlaneseq
        %v5589 = vshrl.u32 %v5588, 7
        %v5590 = vsub.s32 %v5587, %v5589
        %v5591 = vrot.slane %v5577, %v5590
        %v5592 = vcombine.low %v5568, %v5584
        %v5593 = vcombine.high %v5568, %v5584
        %v5595 = vunpack.c.l.s4 1934713408
        %v5596 = vunpack.c.0.s8 %v5595
        %v5597 = vlaneseq
        %v5598 = vshrl.u32 %v5597, 7
        %v5599 = vsub.s32 %v5596, %v5598
        %v5600 = vrot.slane %v5592, %v5599
        %v5602 = vunpack.c.l.s4 1934713408
        %v5603 = vunpack.c.0.s8 %v5602
        %v5604 = vlaneseq
        %v5605 = vshrl.u32 %v5604, 7
        %v5606 = vsub.s32 %v5603, %v5605
        %v5607 = vrot.slane %v5593, %v5606
        %v5608 = vcombine.low %v5575, %v5591
        %v5609 = vcombine.high %v5575, %v5591
        %v5611 = vunpack.c.l.s4 1934713408
        %v5612 = vunpack.c.0.s8 %v5611
        %v5613 = vlaneseq
        %v5614 = vshrl.u32 %v5613, 7
        %v5615 = vsub.s32 %v5612, %v5614
        %v5616 = vrot.slane %v5608, %v5615
        %v5618 = vunpack.c.l.s4 1934713408
        %v5619 = vunpack.c.0.s8 %v5618
        %v5620 = vlaneseq
        %v5621 = vshrl.u32 %v5620, 7
        %v5622 = vsub.s32 %v5619, %v5621
        %v5623 = vrot.slane %v5609, %v5622
        %v5624 = vcombine.high %v5600, 0.0
        %v5625 = vcombine.high %v5607, 0.0
        %v5626 = vcombine.high %v5616, 0.0
        %v5627 = vcombine.high %v5623, 0.0
        %v5628 = vcombine.low %v1214, %v4873
        %v5629 = vcombine.high %v1214, %v4873
        %v5631 = vunpack.c.l.s4 1983009808
        %v5632 = vunpack.c.0.s8 %v5631
        %v5633 = vlaneseq
        %v5634 = vshrl.u32 %v5633, 7
        %v5635 = vsub.s32 %v5632, %v5634
        %v5636 = vrot.slane %v5628, %v5635
        %v5638 = vunpack.c.l.s4 1983009808
        %v5639 = vunpack.c.0.s8 %v5638
        %v5640 = vlaneseq
        %v5641 = vshrl.u32 %v5640, 7
        %v5642 = vsub.s32 %v5639, %v5641
        %v5643 = vrot.slane %v5629, %v5642
        %v5644 = vcombine.low %v4825, %v4921
        %v5645 = vcombine.high %v4825, %v4921
        %v5647 = vunpack.c.l.s4 1983009808
        %v5648 = vunpack.c.0.s8 %v5647
        %v5649 = vlaneseq
        %v5650 = vshrl.u32 %v5649, 7
        %v5651 = vsub.s32 %v5648, %v5650
        %v5652 = vrot.slane %v5644, %v5651
        %v5654 = vunpack.c.l.s4 1983009808
        %v5655 = vunpack.c.0.s8 %v5654
        %v5656 = vlaneseq
        %v5657 = vshrl.u32 %v5656, 7
        %v5658 = vsub.s32 %v5655, %v5657
        %v5659 = vrot.slane %v5645, %v5658
        %v5660 = vcombine.low %v5636, %v5652
        %v5661 = vcombine.high %v5636, %v5652
        %v5663 = vunpack.c.l.s4 1934713408
        %v5664 = vunpack.c.0.s8 %v5663
        %v5665 = vlaneseq
        %v5666 = vshrl.u32 %v5665, 7
        %v5667 = vsub.s32 %v5664, %v5666
        %v5668 = vrot.slane %v5660, %v5667
        %v5670 = vunpack.c.l.s4 1934713408
        %v5671 = vunpack.c.0.s8 %v5670
        %v5672 = vlaneseq
        %v5673 = vshrl.u32 %v5672, 7
        %v5674 = vsub.s32 %v5671, %v5673
        %v5675 = vrot.slane %v5661, %v5674
        %v5676 = vcombine.low %v5643, %v5659
        %v5677 = vcombine.high %v5643, %v5659
        %v5679 = vunpack.c.l.s4 1934713408
        %v5680 = vunpack.c.0.s8 %v5679
        %v5681 = vlaneseq
        %v5682 = vshrl.u32 %v5681, 7
        %v5683 = vsub.s32 %v5680, %v5682
        %v5684 = vrot.slane %v5676, %v5683
        %v5686 = vunpack.c.l.s4 1934713408
        %v5687 = vunpack.c.0.s8 %v5686
        %v5688 = vlaneseq
        %v5689 = vshrl.u32 %v5688, 7
        %v5690 = vsub.s32 %v5687, %v5689
        %v5691 = vrot.slane %v5677, %v5690
        %v5692 = vcombine.high %v5668, 0.0
        %v5693 = vcombine.high %v5675, 0.0
        %v5694 = vcombine.high %v5684, 0.0
        %v5695 = vcombine.high %v5691, 0.0
        %v5696 = vcombine.low %v1217, %v4875
        %v5697 = vcombine.high %v1217, %v4875
        %v5699 = vunpack.c.l.s4 1983009808
        %v5700 = vunpack.c.0.s8 %v5699
        %v5701 = vlaneseq
        %v5702 = vshrl.u32 %v5701, 7
        %v5703 = vsub.s32 %v5700, %v5702
        %v5704 = vrot.slane %v5696, %v5703
        %v5706 = vunpack.c.l.s4 1983009808
        %v5707 = vunpack.c.0.s8 %v5706
        %v5708 = vlaneseq
        %v5709 = vshrl.u32 %v5708, 7
        %v5710 = vsub.s32 %v5707, %v5709
        %v5711 = vrot.slane %v5697, %v5710
        %v5712 = vcombine.low %v4827, %v4923
        %v5713 = vcombine.high %v4827, %v4923
        %v5715 = vunpack.c.l.s4 1983009808
        %v5716 = vunpack.c.0.s8 %v5715
        %v5717 = vlaneseq
        %v5718 = vshrl.u32 %v5717, 7
        %v5719 = vsub.s32 %v5716, %v5718
        %v5720 = vrot.slane %v5712, %v5719
        %v5722 = vunpack.c.l.s4 1983009808
        %v5723 = vunpack.c.0.s8 %v5722
        %v5724 = vlaneseq
        %v5725 = vshrl.u32 %v5724, 7
        %v5726 = vsub.s32 %v5723, %v5725
        %v5727 = vrot.slane %v5713, %v5726
        %v5728 = vcombine.low %v5704, %v5720
        %v5729 = vcombine.high %v5704, %v5720
        %v5731 = vunpack.c.l.s4 1934713408
        %v5732 = vunpack.c.0.s8 %v5731
        %v5733 = vlaneseq
        %v5734 = vshrl.u32 %v5733, 7
        %v5735 = vsub.s32 %v5732, %v5734
        %v5736 = vrot.slane %v5728, %v5735
        %v5738 = vunpack.c.l.s4 1934713408
        %v5739 = vunpack.c.0.s8 %v5738
        %v5740 = vlaneseq
        %v5741 = vshrl.u32 %v5740, 7
        %v5742 = vsub.s32 %v5739, %v5741
        %v5743 = vrot.slane %v5729, %v5742
        %v5744 = vcombine.low %v5711, %v5727
        %v5745 = vcombine.high %v5711, %v5727
        %v5747 = vunpack.c.l.s4 1934713408
        %v5748 = vunpack.c.0.s8 %v5747
        %v5749 = vlaneseq
        %v5750 = vshrl.u32 %v5749, 7
        %v5751 = vsub.s32 %v5748, %v5750
        %v5752 = vrot.slane %v5744, %v5751
        %v5754 = vunpack.c.l.s4 1934713408
        %v5755 = vunpack.c.0.s8 %v5754
        %v5756 = vlaneseq
        %v5757 = vshrl.u32 %v5756, 7
        %v5758 = vsub.s32 %v5755, %v5757
        %v5759 = vrot.slane %v5745, %v5758
        %v5760 = vcombine.high %v5736, 0.0
        %v5761 = vcombine.high %v5743, 0.0
        %v5762 = vcombine.high %v5752, 0.0
        %v5763 = vcombine.high %v5759, 0.0
        %v5764 = vcombine.low %v1222, %v4877
        %v5765 = vcombine.high %v1222, %v4877
        %v5767 = vunpack.c.l.s4 1983009808
        %v5768 = vunpack.c.0.s8 %v5767
        %v5769 = vlaneseq
        %v5770 = vshrl.u32 %v5769, 7
        %v5771 = vsub.s32 %v5768, %v5770
        %v5772 = vrot.slane %v5764, %v5771
        %v5774 = vunpack.c.l.s4 1983009808
        %v5775 = vunpack.c.0.s8 %v5774
        %v5776 = vlaneseq
        %v5777 = vshrl.u32 %v5776, 7
        %v5778 = vsub.s32 %v5775, %v5777
        %v5779 = vrot.slane %v5765, %v5778
        %v5780 = vcombine.low %v4829, %v4925
        %v5781 = vcombine.high %v4829, %v4925
        %v5783 = vunpack.c.l.s4 1983009808
        %v5784 = vunpack.c.0.s8 %v5783
        %v5785 = vlaneseq
        %v5786 = vshrl.u32 %v5785, 7
        %v5787 = vsub.s32 %v5784, %v5786
        %v5788 = vrot.slane %v5780, %v5787
        %v5790 = vunpack.c.l.s4 1983009808
        %v5791 = vunpack.c.0.s8 %v5790
        %v5792 = vlaneseq
        %v5793 = vshrl.u32 %v5792, 7
        %v5794 = vsub.s32 %v5791, %v5793
        %v5795 = vrot.slane %v5781, %v5794
        %v5796 = vcombine.low %v5772, %v5788
        %v5797 = vcombine.high %v5772, %v5788
        %v5799 = vunpack.c.l.s4 1934713408
        %v5800 = vunpack.c.0.s8 %v5799
        %v5801 = vlaneseq
        %v5802 = vshrl.u32 %v5801, 7
        %v5803 = vsub.s32 %v5800, %v5802
        %v5804 = vrot.slane %v5796, %v5803
        %v5806 = vunpack.c.l.s4 1934713408
        %v5807 = vunpack.c.0.s8 %v5806
        %v5808 = vlaneseq
        %v5809 = vshrl.u32 %v5808, 7
        %v5810 = vsub.s32 %v5807, %v5809
        %v5811 = vrot.slane %v5797, %v5810
        %v5812 = vcombine.low %v5779, %v5795
        %v5813 = vcombine.high %v5779, %v5795
        %v5815 = vunpack.c.l.s4 1934713408
        %v5816 = vunpack.c.0.s8 %v5815
        %v5817 = vlaneseq
        %v5818 = vshrl.u32 %v5817, 7
        %v5819 = vsub.s32 %v5816, %v5818
        %v5820 = vrot.slane %v5812, %v5819
        %v5822 = vunpack.c.l.s4 1934713408
        %v5823 = vunpack.c.0.s8 %v5822
        %v5824 = vlaneseq
        %v5825 = vshrl.u32 %v5824, 7
        %v5826 = vsub.s32 %v5823, %v5825
        %v5827 = vrot.slane %v5813, %v5826
        %v5828 = vcombine.high %v5804, 0.0
        %v5829 = vcombine.high %v5811, 0.0
        %v5830 = vcombine.high %v5820, 0.0
        %v5831 = vcombine.high %v5827, 0.0
        %v5832 = vcombine.low %v1225, %v4879
        %v5833 = vcombine.high %v1225, %v4879
        %v5835 = vunpack.c.l.s4 1983009808
        %v5836 = vunpack.c.0.s8 %v5835
        %v5837 = vlaneseq
        %v5838 = vshrl.u32 %v5837, 7
        %v5839 = vsub.s32 %v5836, %v5838
        %v5840 = vrot.slane %v5832, %v5839
        %v5842 = vunpack.c.l.s4 1983009808
        %v5843 = vunpack.c.0.s8 %v5842
        %v5844 = vlaneseq
        %v5845 = vshrl.u32 %v5844, 7
        %v5846 = vsub.s32 %v5843, %v5845
        %v5847 = vrot.slane %v5833, %v5846
        %v5848 = vcombine.low %v4831, %v4927
        %v5849 = vcombine.high %v4831, %v4927
        %v5851 = vunpack.c.l.s4 1983009808
        %v5852 = vunpack.c.0.s8 %v5851
        %v5853 = vlaneseq
        %v5854 = vshrl.u32 %v5853, 7
        %v5855 = vsub.s32 %v5852, %v5854
        %v5856 = vrot.slane %v5848, %v5855
        %v5858 = vunpack.c.l.s4 1983009808
        %v5859 = vunpack.c.0.s8 %v5858
        %v5860 = vlaneseq
        %v5861 = vshrl.u32 %v5860, 7
        %v5862 = vsub.s32 %v5859, %v5861
        %v5863 = vrot.slane %v5849, %v5862
        %v5864 = vcombine.low %v5840, %v5856
        %v5865 = vcombine.high %v5840, %v5856
        %v5867 = vunpack.c.l.s4 1934713408
        %v5868 = vunpack.c.0.s8 %v5867
        %v5869 = vlaneseq
        %v5870 = vshrl.u32 %v5869, 7
        %v5871 = vsub.s32 %v5868, %v5870
        %v5872 = vrot.slane %v5864, %v5871
        %v5874 = vunpack.c.l.s4 1934713408
        %v5875 = vunpack.c.0.s8 %v5874
        %v5876 = vlaneseq
        %v5877 = vshrl.u32 %v5876, 7
        %v5878 = vsub.s32 %v5875, %v5877
        %v5879 = vrot.slane %v5865, %v5878
        %v5880 = vcombine.low %v5847, %v5863
        %v5881 = vcombine.high %v5847, %v5863
        %v5883 = vunpack.c.l.s4 1934713408
        %v5884 = vunpack.c.0.s8 %v5883
        %v5885 = vlaneseq
        %v5886 = vshrl.u32 %v5885, 7
        %v5887 = vsub.s32 %v5884, %v5886
        %v5888 = vrot.slane %v5880, %v5887
        %v5890 = vunpack.c.l.s4 1934713408
        %v5891 = vunpack.c.0.s8 %v5890
        %v5892 = vlaneseq
        %v5893 = vshrl.u32 %v5892, 7
        %v5894 = vsub.s32 %v5891, %v5893
        %v5895 = vrot.slane %v5881, %v5894
        %v5896 = vcombine.high %v5872, 0.0
        %v5897 = vcombine.high %v5879, 0.0
        %v5898 = vcombine.high %v5888, 0.0
        %v5899 = vcombine.high %v5895, 0.0
        %v5900 = vcombine.low %v1230, %v4881
        %v5901 = vcombine.high %v1230, %v4881
        %v5903 = vunpack.c.l.s4 1983009808
        %v5904 = vunpack.c.0.s8 %v5903
        %v5905 = vlaneseq
        %v5906 = vshrl.u32 %v5905, 7
        %v5907 = vsub.s32 %v5904, %v5906
        %v5908 = vrot.slane %v5900, %v5907
        %v5910 = vunpack.c.l.s4 1983009808
        %v5911 = vunpack.c.0.s8 %v5910
        %v5912 = vlaneseq
        %v5913 = vshrl.u32 %v5912, 7
        %v5914 = vsub.s32 %v5911, %v5913
        %v5915 = vrot.slane %v5901, %v5914
        %v5916 = vcombine.low %v4833, %v4929
        %v5917 = vcombine.high %v4833, %v4929
        %v5919 = vunpack.c.l.s4 1983009808
        %v5920 = vunpack.c.0.s8 %v5919
        %v5921 = vlaneseq
        %v5922 = vshrl.u32 %v5921, 7
        %v5923 = vsub.s32 %v5920, %v5922
        %v5924 = vrot.slane %v5916, %v5923
        %v5926 = vunpack.c.l.s4 1983009808
        %v5927 = vunpack.c.0.s8 %v5926
        %v5928 = vlaneseq
        %v5929 = vshrl.u32 %v5928, 7
        %v5930 = vsub.s32 %v5927, %v5929
        %v5931 = vrot.slane %v5917, %v5930
        %v5932 = vcombine.low %v5908, %v5924
        %v5933 = vcombine.high %v5908, %v5924
        %v5935 = vunpack.c.l.s4 1934713408
        %v5936 = vunpack.c.0.s8 %v5935
        %v5937 = vlaneseq
        %v5938 = vshrl.u32 %v5937, 7
        %v5939 = vsub.s32 %v5936, %v5938
        %v5940 = vrot.slane %v5932, %v5939
        %v5942 = vunpack.c.l.s4 1934713408
        %v5943 = vunpack.c.0.s8 %v5942
        %v5944 = vlaneseq
        %v5945 = vshrl.u32 %v5944, 7
        %v5946 = vsub.s32 %v5943, %v5945
        %v5947 = vrot.slane %v5933, %v5946
        %v5948 = vcombine.low %v5915, %v5931
        %v5949 = vcombine.high %v5915, %v5931
        %v5951 = vunpack.c.l.s4 1934713408
        %v5952 = vunpack.c.0.s8 %v5951
        %v5953 = vlaneseq
        %v5954 = vshrl.u32 %v5953, 7
        %v5955 = vsub.s32 %v5952, %v5954
        %v5956 = vrot.slane %v5948, %v5955
        %v5958 = vunpack.c.l.s4 1934713408
        %v5959 = vunpack.c.0.s8 %v5958
        %v5960 = vlaneseq
        %v5961 = vshrl.u32 %v5960, 7
        %v5962 = vsub.s32 %v5959, %v5961
        %v5963 = vrot.slane %v5949, %v5962
        %v5964 = vcombine.high %v5940, 0.0
        %v5965 = vcombine.high %v5947, 0.0
        %v5966 = vcombine.high %v5956, 0.0
        %v5967 = vcombine.high %v5963, 0.0
        %v5968 = vcombine.low %v1233, %v4883
        %v5969 = vcombine.high %v1233, %v4883
        %v5971 = vunpack.c.l.s4 1983009808
        %v5972 = vunpack.c.0.s8 %v5971
        %v5973 = vlaneseq
        %v5974 = vshrl.u32 %v5973, 7
        %v5975 = vsub.s32 %v5972, %v5974
        %v5976 = vrot.slane %v5968, %v5975
        %v5978 = vunpack.c.l.s4 1983009808
        %v5979 = vunpack.c.0.s8 %v5978
        %v5980 = vlaneseq
        %v5981 = vshrl.u32 %v5980, 7
        %v5982 = vsub.s32 %v5979, %v5981
        %v5983 = vrot.slane %v5969, %v5982
        %v5984 = vcombine.low %v4835, %v4931
        %v5985 = vcombine.high %v4835, %v4931
        %v5987 = vunpack.c.l.s4 1983009808
        %v5988 = vunpack.c.0.s8 %v5987
        %v5989 = vlaneseq
        %v5990 = vshrl.u32 %v5989, 7
        %v5991 = vsub.s32 %v5988, %v5990
        %v5992 = vrot.slane %v5984, %v5991
        %v5994 = vunpack.c.l.s4 1983009808
        %v5995 = vunpack.c.0.s8 %v5994
        %v5996 = vlaneseq
        %v5997 = vshrl.u32 %v5996, 7
        %v5998 = vsub.s32 %v5995, %v5997
        %v5999 = vrot.slane %v5985, %v5998
        %v6000 = vcombine.low %v5976, %v5992
        %v6001 = vcombine.high %v5976, %v5992
        %v6003 = vunpack.c.l.s4 1934713408
        %v6004 = vunpack.c.0.s8 %v6003
        %v6005 = vlaneseq
        %v6006 = vshrl.u32 %v6005, 7
        %v6007 = vsub.s32 %v6004, %v6006
        %v6008 = vrot.slane %v6000, %v6007
        %v6010 = vunpack.c.l.s4 1934713408
        %v6011 = vunpack.c.0.s8 %v6010
        %v6012 = vlaneseq
        %v6013 = vshrl.u32 %v6012, 7
        %v6014 = vsub.s32 %v6011, %v6013
        %v6015 = vrot.slane %v6001, %v6014
        %v6016 = vcombine.low %v5983, %v5999
        %v6017 = vcombine.high %v5983, %v5999
        %v6019 = vunpack.c.l.s4 1934713408
        %v6020 = vunpack.c.0.s8 %v6019
        %v6021 = vlaneseq
        %v6022 = vshrl.u32 %v6021, 7
        %v6023 = vsub.s32 %v6020, %v6022
        %v6024 = vrot.slane %v6016, %v6023
        %v6026 = vunpack.c.l.s4 1934713408
        %v6027 = vunpack.c.0.s8 %v6026
        %v6028 = vlaneseq
        %v6029 = vshrl.u32 %v6028, 7
        %v6030 = vsub.s32 %v6027, %v6029
        %v6031 = vrot.slane %v6017, %v6030
        %v6032 = vcombine.high %v6008, 0.0
        %v6033 = vcombine.high %v6015, 0.0
        %v6034 = vcombine.high %v6024, 0.0
        %v6035 = vcombine.high %v6031, 0.0
        %v6036 = vcombine.low %v4988, %v4995
        %v6038 = vunpack.c.l.s4 1983009808
        %v6039 = vunpack.c.0.s8 %v6038
        %v6040 = vlaneseq
        %v6041 = vshrl.u32 %v6040, 7
        %v6042 = vsub.s32 %v6039, %v6041
        %v6043 = vrot.slane %v6036, %v6042
        %v6044 = vcombine.low %v5012, %v5013
        %v6046 = vunpack.c.l.s4 1983009808
        %v6047 = vunpack.c.0.s8 %v6046
        %v6048 = vlaneseq
        %v6049 = vshrl.u32 %v6048, 7
        %v6050 = vsub.s32 %v6047, %v6049
        %v6051 = vrot.slane %v6044, %v6050
        %v6052 = vcombine.low %v5004, %v5011
        %v6054 = vunpack.c.l.s4 1983009808
        %v6055 = vunpack.c.0.s8 %v6054
        %v6056 = vlaneseq
        %v6057 = vshrl.u32 %v6056, 7
        %v6058 = vsub.s32 %v6055, %v6057
        %v6059 = vrot.slane %v6052, %v6058
        %v6060 = vcombine.low %v5014, %v5015
        %v6062 = vunpack.c.l.s4 1983009808
        %v6063 = vunpack.c.0.s8 %v6062
        %v6064 = vlaneseq
        %v6065 = vshrl.u32 %v6064, 7
        %v6066 = vsub.s32 %v6063, %v6065
        %v6067 = vrot.slane %v6060, %v6066
        %v6068 = vcombine.low %v6043, %v6051
        %v6069 = vcombine.high %v6043, %v6051
        %v6071 = vunpack.c.l.s4 1934713408
        %v6072 = vunpack.c.0.s8 %v6071
        %v6073 = vlaneseq
        %v6074 = vshrl.u32 %v6073, 7
        %v6075 = vsub.s32 %v6072, %v6074
        %v6076 = vrot.slane %v6068, %v6075
        %v6078 = vunpack.c.l.s4 1934713408
        %v6079 = vunpack.c.0.s8 %v6078
        %v6080 = vlaneseq
        %v6081 = vshrl.u32 %v6080, 7
        %v6082 = vsub.s32 %v6079, %v6081
        %v6083 = vrot.slane %v6069, %v6082
        %v6084 = vcombine.low %v6059, %v6067
        %v6085 = vcombine.high %v6059, %v6067
        %v6087 = vunpack.c.l.s4 1934713408
        %v6088 = vunpack.c.0.s8 %v6087
        %v6089 = vlaneseq
        %v6090 = vshrl.u32 %v6089, 7
        %v6091 = vsub.s32 %v6088, %v6090
        %v6092 = vrot.slane %v6084, %v6091
        %v6094 = vunpack.c.l.s4 1934713408
        %v6095 = vunpack.c.0.s8 %v6094
        %v6096 = vlaneseq
        %v6097 = vshrl.u32 %v6096, 7
        %v6098 = vsub.s32 %v6095, %v6097
        %v6099 = vrot.slane %v6085, %v6098
        %v6100 = vcombine.low %v6076, %v6092
        %v6101 = vcombine.high %v6076, %v6092
        %v6102 = vcombine.low %v6083, %v6099
        %v6103 = vcombine.high %v6083, %v6099
        %v6104 = vcombine.low %v5056, %v5063
        %v6106 = vunpack.c.l.s4 1983009808
        %v6107 = vunpack.c.0.s8 %v6106
        %v6108 = vlaneseq
        %v6109 = vshrl.u32 %v6108, 7
        %v6110 = vsub.s32 %v6107, %v6109
        %v6111 = vrot.slane %v6104, %v6110
        %v6112 = vcombine.low %v5080, %v5081
        %v6114 = vunpack.c.l.s4 1983009808
        %v6115 = vunpack.c.0.s8 %v6114
        %v6116 = vlaneseq
        %v6117 = vshrl.u32 %v6116, 7
        %v6118 = vsub.s32 %v6115, %v6117
        %v6119 = vrot.slane %v6112, %v6118
        %v6120 = vcombine.low %v5072, %v5079
        %v6122 = vunpack.c.l.s4 1983009808
        %v6123 = vunpack.c.0.s8 %v6122
        %v6124 = vlaneseq
        %v6125 = vshrl.u32 %v6124, 7
        %v6126 = vsub.s32 %v6123, %v6125
        %v6127 = vrot.slane %v6120, %v6126
        %v6128 = vcombine.low %v5082, %v5083
        %v6130 = vunpack.c.l.s4 1983009808
        %v6131 = vunpack.c.0.s8 %v6130
        %v6132 = vlaneseq
        %v6133 = vshrl.u32 %v6132, 7
        %v6134 = vsub.s32 %v6131, %v6133
        %v6135 = vrot.slane %v6128, %v6134
        %v6136 = vcombine.low %v6111, %v6119
        %v6137 = vcombine.high %v6111, %v6119
        %v6139 = vunpack.c.l.s4 1934713408
        %v6140 = vunpack.c.0.s8 %v6139
        %v6141 = vlaneseq
        %v6142 = vshrl.u32 %v6141, 7
        %v6143 = vsub.s32 %v6140, %v6142
        %v6144 = vrot.slane %v6136, %v6143
        %v6146 = vunpack.c.l.s4 1934713408
        %v6147 = vunpack.c.0.s8 %v6146
        %v6148 = vlaneseq
        %v6149 = vshrl.u32 %v6148, 7
        %v6150 = vsub.s32 %v6147, %v6149
        %v6151 = vrot.slane %v6137, %v6150
        %v6152 = vcombine.low %v6127, %v6135
        %v6153 = vcombine.high %v6127, %v6135
        %v6155 = vunpack.c.l.s4 1934713408
        %v6156 = vunpack.c.0.s8 %v6155
        %v6157 = vlaneseq
        %v6158 = vshrl.u32 %v6157, 7
        %v6159 = vsub.s32 %v6156, %v6158
        %v6160 = vrot.slane %v6152, %v6159
        %v6162 = vunpack.c.l.s4 1934713408
        %v6163 = vunpack.c.0.s8 %v6162
        %v6164 = vlaneseq
        %v6165 = vshrl.u32 %v6164, 7
        %v6166 = vsub.s32 %v6163, %v6165
        %v6167 = vrot.slane %v6153, %v6166
        %v6168 = vcombine.low %v6144, %v6160
        %v6169 = vcombine.high %v6144, %v6160
        %v6170 = vcombine.low %v6151, %v6167
        %v6171 = vcombine.high %v6151, %v6167
        %v6172 = vcombine.low %v5124, %v5131
        %v6174 = vunpack.c.l.s4 1983009808
        %v6175 = vunpack.c.0.s8 %v6174
        %v6176 = vlaneseq
        %v6177 = vshrl.u32 %v6176, 7
        %v6178 = vsub.s32 %v6175, %v6177
        %v6179 = vrot.slane %v6172, %v6178
        %v6180 = vcombine.low %v5148, %v5149
        %v6182 = vunpack.c.l.s4 1983009808
        %v6183 = vunpack.c.0.s8 %v6182
        %v6184 = vlaneseq
        %v6185 = vshrl.u32 %v6184, 7
        %v6186 = vsub.s32 %v6183, %v6185
        %v6187 = vrot.slane %v6180, %v6186
        %v6188 = vcombine.low %v5140, %v5147
        %v6190 = vunpack.c.l.s4 1983009808
        %v6191 = vunpack.c.0.s8 %v6190
        %v6192 = vlaneseq
        %v6193 = vshrl.u32 %v6192, 7
        %v6194 = vsub.s32 %v6191, %v6193
        %v6195 = vrot.slane %v6188, %v6194
        %v6196 = vcombine.low %v5150, %v5151
        %v6198 = vunpack.c.l.s4 1983009808
        %v6199 = vunpack.c.0.s8 %v6198
        %v6200 = vlaneseq
        %v6201 = vshrl.u32 %v6200, 7
        %v6202 = vsub.s32 %v6199, %v6201
        %v6203 = vrot.slane %v6196, %v6202
        %v6204 = vcombine.low %v6179, %v6187
        %v6205 = vcombine.high %v6179, %v6187
        %v6207 = vunpack.c.l.s4 1934713408
        %v6208 = vunpack.c.0.s8 %v6207
        %v6209 = vlaneseq
        %v6210 = vshrl.u32 %v6209, 7
        %v6211 = vsub.s32 %v6208, %v6210
        %v6212 = vrot.slane %v6204, %v6211
        %v6214 = vunpack.c.l.s4 1934713408
        %v6215 = vunpack.c.0.s8 %v6214
        %v6216 = vlaneseq
        %v6217 = vshrl.u32 %v6216, 7
        %v6218 = vsub.s32 %v6215, %v6217
        %v6219 = vrot.slane %v6205, %v6218
        %v6220 = vcombine.low %v6195, %v6203
        %v6221 = vcombine.high %v6195, %v6203
        %v6223 = vunpack.c.l.s4 1934713408
        %v6224 = vunpack.c.0.s8 %v6223
        %v6225 = vlaneseq
        %v6226 = vshrl.u32 %v6225, 7
        %v6227 = vsub.s32 %v6224, %v6226
        %v6228 = vrot.slane %v6220, %v6227
        %v6230 = vunpack.c.l.s4 1934713408
        %v6231 = vunpack.c.0.s8 %v6230
        %v6232 = vlaneseq
        %v6233 = vshrl.u32 %v6232, 7
        %v6234 = vsub.s32 %v6231, %v6233
        %v6235 = vrot.slane %v6221, %v6234
        %v6236 = vcombine.low %v6212, %v6228
        %v6237 = vcombine.high %v6212, %v6228
        %v6238 = vcombine.low %v6219, %v6235
        %v6239 = vcombine.high %v6219, %v6235
        %v6240 = vcombine.low %v5192, %v5199
        %v6242 = vunpack.c.l.s4 1983009808
        %v6243 = vunpack.c.0.s8 %v6242
        %v6244 = vlaneseq
        %v6245 = vshrl.u32 %v6244, 7
        %v6246 = vsub.s32 %v6243, %v6245
        %v6247 = vrot.slane %v6240, %v6246
        %v6248 = vcombine.low %v5216, %v5217
        %v6250 = vunpack.c.l.s4 1983009808
        %v6251 = vunpack.c.0.s8 %v6250
        %v6252 = vlaneseq
        %v6253 = vshrl.u32 %v6252, 7
        %v6254 = vsub.s32 %v6251, %v6253
        %v6255 = vrot.slane %v6248, %v6254
        %v6256 = vcombine.low %v5208, %v5215
        %v6258 = vunpack.c.l.s4 1983009808
        %v6259 = vunpack.c.0.s8 %v6258
        %v6260 = vlaneseq
        %v6261 = vshrl.u32 %v6260, 7
        %v6262 = vsub.s32 %v6259, %v6261
        %v6263 = vrot.slane %v6256, %v6262
        %v6264 = vcombine.low %v5218, %v5219
        %v6266 = vunpack.c.l.s4 1983009808
        %v6267 = vunpack.c.0.s8 %v6266
        %v6268 = vlaneseq
        %v6269 = vshrl.u32 %v6268, 7
        %v6270 = vsub.s32 %v6267, %v6269
        %v6271 = vrot.slane %v6264, %v6270
        %v6272 = vcombine.low %v6247, %v6255
        %v6273 = vcombine.high %v6247, %v6255
        %v6275 = vunpack.c.l.s4 1934713408
        %v6276 = vunpack.c.0.s8 %v6275
        %v6277 = vlaneseq
        %v6278 = vshrl.u32 %v6277, 7
        %v6279 = vsub.s32 %v6276, %v6278
        %v6280 = vrot.slane %v6272, %v6279
        %v6282 = vunpack.c.l.s4 1934713408
        %v6283 = vunpack.c.0.s8 %v6282
        %v6284 = vlaneseq
        %v6285 = vshrl.u32 %v6284, 7
        %v6286 = vsub.s32 %v6283, %v6285
        %v6287 = vrot.slane %v6273, %v6286
        %v6288 = vcombine.low %v6263, %v6271
        %v6289 = vcombine.high %v6263, %v6271
        %v6291 = vunpack.c.l.s4 1934713408
        %v6292 = vunpack.c.0.s8 %v6291
        %v6293 = vlaneseq
        %v6294 = vshrl.u32 %v6293, 7
        %v6295 = vsub.s32 %v6292, %v6294
        %v6296 = vrot.slane %v6288, %v6295
        %v6298 = vunpack.c.l.s4 1934713408
        %v6299 = vunpack.c.0.s8 %v6298
        %v6300 = vlaneseq
        %v6301 = vshrl.u32 %v6300, 7
        %v6302 = vsub.s32 %v6299, %v6301
        %v6303 = vrot.slane %v6289, %v6302
        %v6304 = vcombine.low %v6280, %v6296
        %v6305 = vcombine.high %v6280, %v6296
        %v6306 = vcombine.low %v6287, %v6303
        %v6307 = vcombine.high %v6287, %v6303
        %v6308 = vcombine.low %v5260, %v5267
        %v6310 = vunpack.c.l.s4 1983009808
        %v6311 = vunpack.c.0.s8 %v6310
        %v6312 = vlaneseq
        %v6313 = vshrl.u32 %v6312, 7
        %v6314 = vsub.s32 %v6311, %v6313
        %v6315 = vrot.slane %v6308, %v6314
        %v6316 = vcombine.low %v5284, %v5285
        %v6318 = vunpack.c.l.s4 1983009808
        %v6319 = vunpack.c.0.s8 %v6318
        %v6320 = vlaneseq
        %v6321 = vshrl.u32 %v6320, 7
        %v6322 = vsub.s32 %v6319, %v6321
        %v6323 = vrot.slane %v6316, %v6322
        %v6324 = vcombine.low %v5276, %v5283
        %v6326 = vunpack.c.l.s4 1983009808
        %v6327 = vunpack.c.0.s8 %v6326
        %v6328 = vlaneseq
        %v6329 = vshrl.u32 %v6328, 7
        %v6330 = vsub.s32 %v6327, %v6329
        %v6331 = vrot.slane %v6324, %v6330
        %v6332 = vcombine.low %v5286, %v5287
        %v6334 = vunpack.c.l.s4 1983009808
        %v6335 = vunpack.c.0.s8 %v6334
        %v6336 = vlaneseq
        %v6337 = vshrl.u32 %v6336, 7
        %v6338 = vsub.s32 %v6335, %v6337
        %v6339 = vrot.slane %v6332, %v6338
        %v6340 = vcombine.low %v6315, %v6323
        %v6341 = vcombine.high %v6315, %v6323
        %v6343 = vunpack.c.l.s4 1934713408
        %v6344 = vunpack.c.0.s8 %v6343
        %v6345 = vlaneseq
        %v6346 = vshrl.u32 %v6345, 7
        %v6347 = vsub.s32 %v6344, %v6346
        %v6348 = vrot.slane %v6340, %v6347
        %v6350 = vunpack.c.l.s4 1934713408
        %v6351 = vunpack.c.0.s8 %v6350
        %v6352 = vlaneseq
        %v6353 = vshrl.u32 %v6352, 7
        %v6354 = vsub.s32 %v6351, %v6353
        %v6355 = vrot.slane %v6341, %v6354
        %v6356 = vcombine.low %v6331, %v6339
        %v6357 = vcombine.high %v6331, %v6339
        %v6359 = vunpack.c.l.s4 1934713408
        %v6360 = vunpack.c.0.s8 %v6359
        %v6361 = vlaneseq
        %v6362 = vshrl.u32 %v6361, 7
        %v6363 = vsub.s32 %v6360, %v6362
        %v6364 = vrot.slane %v6356, %v6363
        %v6366 = vunpack.c.l.s4 1934713408
        %v6367 = vunpack.c.0.s8 %v6366
        %v6368 = vlaneseq
        %v6369 = vshrl.u32 %v6368, 7
        %v6370 = vsub.s32 %v6367, %v6369
        %v6371 = vrot.slane %v6357, %v6370
        %v6372 = vcombine.low %v6348, %v6364
        %v6373 = vcombine.high %v6348, %v6364
        %v6374 = vcombine.low %v6355, %v6371
        %v6375 = vcombine.high %v6355, %v6371
        %v6376 = vcombine.low %v5328, %v5335
        %v6378 = vunpack.c.l.s4 1983009808
        %v6379 = vunpack.c.0.s8 %v6378
        %v6380 = vlaneseq
        %v6381 = vshrl.u32 %v6380, 7
        %v6382 = vsub.s32 %v6379, %v6381
        %v6383 = vrot.slane %v6376, %v6382
        %v6384 = vcombine.low %v5352, %v5353
        %v6386 = vunpack.c.l.s4 1983009808
        %v6387 = vunpack.c.0.s8 %v6386
        %v6388 = vlaneseq
        %v6389 = vshrl.u32 %v6388, 7
        %v6390 = vsub.s32 %v6387, %v6389
        %v6391 = vrot.slane %v6384, %v6390
        %v6392 = vcombine.low %v5344, %v5351
        %v6394 = vunpack.c.l.s4 1983009808
        %v6395 = vunpack.c.0.s8 %v6394
        %v6396 = vlaneseq
        %v6397 = vshrl.u32 %v6396, 7
        %v6398 = vsub.s32 %v6395, %v6397
        %v6399 = vrot.slane %v6392, %v6398
        %v6400 = vcombine.low %v5354, %v5355
        %v6402 = vunpack.c.l.s4 1983009808
        %v6403 = vunpack.c.0.s8 %v6402
        %v6404 = vlaneseq
        %v6405 = vshrl.u32 %v6404, 7
        %v6406 = vsub.s32 %v6403, %v6405
        %v6407 = vrot.slane %v6400, %v6406
        %v6408 = vcombine.low %v6383, %v6391
        %v6409 = vcombine.high %v6383, %v6391
        %v6411 = vunpack.c.l.s4 1934713408
        %v6412 = vunpack.c.0.s8 %v6411
        %v6413 = vlaneseq
        %v6414 = vshrl.u32 %v6413, 7
        %v6415 = vsub.s32 %v6412, %v6414
        %v6416 = vrot.slane %v6408, %v6415
        %v6418 = vunpack.c.l.s4 1934713408
        %v6419 = vunpack.c.0.s8 %v6418
        %v6420 = vlaneseq
        %v6421 = vshrl.u32 %v6420, 7
        %v6422 = vsub.s32 %v6419, %v6421
        %v6423 = vrot.slane %v6409, %v6422
        %v6424 = vcombine.low %v6399, %v6407
        %v6425 = vcombine.high %v6399, %v6407
        %v6427 = vunpack.c.l.s4 1934713408
        %v6428 = vunpack.c.0.s8 %v6427
        %v6429 = vlaneseq
        %v6430 = vshrl.u32 %v6429, 7
        %v6431 = vsub.s32 %v6428, %v6430
        %v6432 = vrot.slane %v6424, %v6431
        %v6434 = vunpack.c.l.s4 1934713408
        %v6435 = vunpack.c.0.s8 %v6434
        %v6436 = vlaneseq
        %v6437 = vshrl.u32 %v6436, 7
        %v6438 = vsub.s32 %v6435, %v6437
        %v6439 = vrot.slane %v6425, %v6438
        %v6440 = vcombine.low %v6416, %v6432
        %v6441 = vcombine.high %v6416, %v6432
        %v6442 = vcombine.low %v6423, %v6439
        %v6443 = vcombine.high %v6423, %v6439
        %v6444 = vcombine.low %v5396, %v5403
        %v6446 = vunpack.c.l.s4 1983009808
        %v6447 = vunpack.c.0.s8 %v6446
        %v6448 = vlaneseq
        %v6449 = vshrl.u32 %v6448, 7
        %v6450 = vsub.s32 %v6447, %v6449
        %v6451 = vrot.slane %v6444, %v6450
        %v6452 = vcombine.low %v5420, %v5421
        %v6454 = vunpack.c.l.s4 1983009808
        %v6455 = vunpack.c.0.s8 %v6454
        %v6456 = vlaneseq
        %v6457 = vshrl.u32 %v6456, 7
        %v6458 = vsub.s32 %v6455, %v6457
        %v6459 = vrot.slane %v6452, %v6458
        %v6460 = vcombine.low %v5412, %v5419
        %v6462 = vunpack.c.l.s4 1983009808
        %v6463 = vunpack.c.0.s8 %v6462
        %v6464 = vlaneseq
        %v6465 = vshrl.u32 %v6464, 7
        %v6466 = vsub.s32 %v6463, %v6465
        %v6467 = vrot.slane %v6460, %v6466
        %v6468 = vcombine.low %v5422, %v5423
        %v6470 = vunpack.c.l.s4 1983009808
        %v6471 = vunpack.c.0.s8 %v6470
        %v6472 = vlaneseq
        %v6473 = vshrl.u32 %v6472, 7
        %v6474 = vsub.s32 %v6471, %v6473
        %v6475 = vrot.slane %v6468, %v6474
        %v6476 = vcombine.low %v6451, %v6459
        %v6477 = vcombine.high %v6451, %v6459
        %v6479 = vunpack.c.l.s4 1934713408
        %v6480 = vunpack.c.0.s8 %v6479
        %v6481 = vlaneseq
        %v6482 = vshrl.u32 %v6481, 7
        %v6483 = vsub.s32 %v6480, %v6482
        %v6484 = vrot.slane %v6476, %v6483
        %v6486 = vunpack.c.l.s4 1934713408
        %v6487 = vunpack.c.0.s8 %v6486
        %v6488 = vlaneseq
        %v6489 = vshrl.u32 %v6488, 7
        %v6490 = vsub.s32 %v6487, %v6489
        %v6491 = vrot.slane %v6477, %v6490
        %v6492 = vcombine.low %v6467, %v6475
        %v6493 = vcombine.high %v6467, %v6475
        %v6495 = vunpack.c.l.s4 1934713408
        %v6496 = vunpack.c.0.s8 %v6495
        %v6497 = vlaneseq
        %v6498 = vshrl.u32 %v6497, 7
        %v6499 = vsub.s32 %v6496, %v6498
        %v6500 = vrot.slane %v6492, %v6499
        %v6502 = vunpack.c.l.s4 1934713408
        %v6503 = vunpack.c.0.s8 %v6502
        %v6504 = vlaneseq
        %v6505 = vshrl.u32 %v6504, 7
        %v6506 = vsub.s32 %v6503, %v6505
        %v6507 = vrot.slane %v6493, %v6506
        %v6508 = vcombine.low %v6484, %v6500
        %v6509 = vcombine.high %v6484, %v6500
        %v6510 = vcombine.low %v6491, %v6507
        %v6511 = vcombine.high %v6491, %v6507
        %v6512 = vcombine.low %v5464, %v5471
        %v6514 = vunpack.c.l.s4 1983009808
        %v6515 = vunpack.c.0.s8 %v6514
        %v6516 = vlaneseq
        %v6517 = vshrl.u32 %v6516, 7
        %v6518 = vsub.s32 %v6515, %v6517
        %v6519 = vrot.slane %v6512, %v6518
        %v6520 = vcombine.low %v5488, %v5489
        %v6522 = vunpack.c.l.s4 1983009808
        %v6523 = vunpack.c.0.s8 %v6522
        %v6524 = vlaneseq
        %v6525 = vshrl.u32 %v6524, 7
        %v6526 = vsub.s32 %v6523, %v6525
        %v6527 = vrot.slane %v6520, %v6526
        %v6528 = vcombine.low %v5480, %v5487
        %v6530 = vunpack.c.l.s4 1983009808
        %v6531 = vunpack.c.0.s8 %v6530
        %v6532 = vlaneseq
        %v6533 = vshrl.u32 %v6532, 7
        %v6534 = vsub.s32 %v6531, %v6533
        %v6535 = vrot.slane %v6528, %v6534
        %v6536 = vcombine.low %v5490, %v5491
        %v6538 = vunpack.c.l.s4 1983009808
        %v6539 = vunpack.c.0.s8 %v6538
        %v6540 = vlaneseq
        %v6541 = vshrl.u32 %v6540, 7
        %v6542 = vsub.s32 %v6539, %v6541
        %v6543 = vrot.slane %v6536, %v6542
        %v6544 = vcombine.low %v6519, %v6527
        %v6545 = vcombine.high %v6519, %v6527
        %v6547 = vunpack.c.l.s4 1934713408
        %v6548 = vunpack.c.0.s8 %v6547
        %v6549 = vlaneseq
        %v6550 = vshrl.u32 %v6549, 7
        %v6551 = vsub.s32 %v6548, %v6550
        %v6552 = vrot.slane %v6544, %v6551
        %v6554 = vunpack.c.l.s4 1934713408
        %v6555 = vunpack.c.0.s8 %v6554
        %v6556 = vlaneseq
        %v6557 = vshrl.u32 %v6556, 7
        %v6558 = vsub.s32 %v6555, %v6557
        %v6559 = vrot.slane %v6545, %v6558
        %v6560 = vcombine.low %v6535, %v6543
        %v6561 = vcombine.high %v6535, %v6543
        %v6563 = vunpack.c.l.s4 1934713408
        %v6564 = vunpack.c.0.s8 %v6563
        %v6565 = vlaneseq
        %v6566 = vshrl.u32 %v6565, 7
        %v6567 = vsub.s32 %v6564, %v6566
        %v6568 = vrot.slane %v6560, %v6567
        %v6570 = vunpack.c.l.s4 1934713408
        %v6571 = vunpack.c.0.s8 %v6570
        %v6572 = vlaneseq
        %v6573 = vshrl.u32 %v6572, 7
        %v6574 = vsub.s32 %v6571, %v6573
        %v6575 = vrot.slane %v6561, %v6574
        %v6576 = vcombine.low %v6552, %v6568
        %v6577 = vcombine.high %v6552, %v6568
        %v6578 = vcombine.low %v6559, %v6575
        %v6579 = vcombine.high %v6559, %v6575
        %v6580 = vcombine.low %v5532, %v5539
        %v6582 = vunpack.c.l.s4 1983009808
        %v6583 = vunpack.c.0.s8 %v6582
        %v6584 = vlaneseq
        %v6585 = vshrl.u32 %v6584, 7
        %v6586 = vsub.s32 %v6583, %v6585
        %v6587 = vrot.slane %v6580, %v6586
        %v6588 = vcombine.low %v5556, %v5557
        %v6590 = vunpack.c.l.s4 1983009808
        %v6591 = vunpack.c.0.s8 %v6590
        %v6592 = vlaneseq
        %v6593 = vshrl.u32 %v6592, 7
        %v6594 = vsub.s32 %v6591, %v6593
        %v6595 = vrot.slane %v6588, %v6594
        %v6596 = vcombine.low %v5548, %v5555
        %v6598 = vunpack.c.l.s4 1983009808
        %v6599 = vunpack.c.0.s8 %v6598
        %v6600 = vlaneseq
        %v6601 = vshrl.u32 %v6600, 7
        %v6602 = vsub.s32 %v6599, %v6601
        %v6603 = vrot.slane %v6596, %v6602
        %v6604 = vcombine.low %v5558, %v5559
        %v6606 = vunpack.c.l.s4 1983009808
        %v6607 = vunpack.c.0.s8 %v6606
        %v6608 = vlaneseq
        %v6609 = vshrl.u32 %v6608, 7
        %v6610 = vsub.s32 %v6607, %v6609
        %v6611 = vrot.slane %v6604, %v6610
        %v6612 = vcombine.low %v6587, %v6595
        %v6613 = vcombine.high %v6587, %v6595
        %v6615 = vunpack.c.l.s4 1934713408
        %v6616 = vunpack.c.0.s8 %v6615
        %v6617 = vlaneseq
        %v6618 = vshrl.u32 %v6617, 7
        %v6619 = vsub.s32 %v6616, %v6618
        %v6620 = vrot.slane %v6612, %v6619
        %v6622 = vunpack.c.l.s4 1934713408
        %v6623 = vunpack.c.0.s8 %v6622
        %v6624 = vlaneseq
        %v6625 = vshrl.u32 %v6624, 7
        %v6626 = vsub.s32 %v6623, %v6625
        %v6627 = vrot.slane %v6613, %v6626
        %v6628 = vcombine.low %v6603, %v6611
        %v6629 = vcombine.high %v6603, %v6611
        %v6631 = vunpack.c.l.s4 1934713408
        %v6632 = vunpack.c.0.s8 %v6631
        %v6633 = vlaneseq
        %v6634 = vshrl.u32 %v6633, 7
        %v6635 = vsub.s32 %v6632, %v6634
        %v6636 = vrot.slane %v6628, %v6635
        %v6638 = vunpack.c.l.s4 1934713408
        %v6639 = vunpack.c.0.s8 %v6638
        %v6640 = vlaneseq
        %v6641 = vshrl.u32 %v6640, 7
        %v6642 = vsub.s32 %v6639, %v6641
        %v6643 = vrot.slane %v6629, %v6642
        %v6644 = vcombine.low %v6620, %v6636
        %v6645 = vcombine.high %v6620, %v6636
        %v6646 = vcombine.low %v6627, %v6643
        %v6647 = vcombine.high %v6627, %v6643
        %v6648 = vcombine.low %v5600, %v5607
        %v6650 = vunpack.c.l.s4 1983009808
        %v6651 = vunpack.c.0.s8 %v6650
        %v6652 = vlaneseq
        %v6653 = vshrl.u32 %v6652, 7
        %v6654 = vsub.s32 %v6651, %v6653
        %v6655 = vrot.slane %v6648, %v6654
        %v6656 = vcombine.low %v5624, %v5625
        %v6658 = vunpack.c.l.s4 1983009808
        %v6659 = vunpack.c.0.s8 %v6658
        %v6660 = vlaneseq
        %v6661 = vshrl.u32 %v6660, 7
        %v6662 = vsub.s32 %v6659, %v6661
        %v6663 = vrot.slane %v6656, %v6662
        %v6664 = vcombine.low %v5616, %v5623
        %v6666 = vunpack.c.l.s4 1983009808
        %v6667 = vunpack.c.0.s8 %v6666
        %v6668 = vlaneseq
        %v6669 = vshrl.u32 %v6668, 7
        %v6670 = vsub.s32 %v6667, %v6669
        %v6671 = vrot.slane %v6664, %v6670
        %v6672 = vcombine.low %v5626, %v5627
        %v6674 = vunpack.c.l.s4 1983009808
        %v6675 = vunpack.c.0.s8 %v6674
        %v6676 = vlaneseq
        %v6677 = vshrl.u32 %v6676, 7
        %v6678 = vsub.s32 %v6675, %v6677
        %v6679 = vrot.slane %v6672, %v6678
        %v6680 = vcombine.low %v6655, %v6663
        %v6681 = vcombine.high %v6655, %v6663
        %v6683 = vunpack.c.l.s4 1934713408
        %v6684 = vunpack.c.0.s8 %v6683
        %v6685 = vlaneseq
        %v6686 = vshrl.u32 %v6685, 7
        %v6687 = vsub.s32 %v6684, %v6686
        %v6688 = vrot.slane %v6680, %v6687
        %v6690 = vunpack.c.l.s4 1934713408
        %v6691 = vunpack.c.0.s8 %v6690
        %v6692 = vlaneseq
        %v6693 = vshrl.u32 %v6692, 7
        %v6694 = vsub.s32 %v6691, %v6693
        %v6695 = vrot.slane %v6681, %v6694
        %v6696 = vcombine.low %v6671, %v6679
        %v6697 = vcombine.high %v6671, %v6679
        %v6699 = vunpack.c.l.s4 1934713408
        %v6700 = vunpack.c.0.s8 %v6699
        %v6701 = vlaneseq
        %v6702 = vshrl.u32 %v6701, 7
        %v6703 = vsub.s32 %v6700, %v6702
        %v6704 = vrot.slane %v6696, %v6703
        %v6706 = vunpack.c.l.s4 1934713408
        %v6707 = vunpack.c.0.s8 %v6706
        %v6708 = vlaneseq
        %v6709 = vshrl.u32 %v6708, 7
        %v6710 = vsub.s32 %v6707, %v6709
        %v6711 = vrot.slane %v6697, %v6710
        %v6712 = vcombine.low %v6688, %v6704
        %v6713 = vcombine.high %v6688, %v6704
        %v6714 = vcombine.low %v6695, %v6711
        %v6715 = vcombine.high %v6695, %v6711
        %v6716 = vcombine.low %v5668, %v5675
        %v6718 = vunpack.c.l.s4 1983009808
        %v6719 = vunpack.c.0.s8 %v6718
        %v6720 = vlaneseq
        %v6721 = vshrl.u32 %v6720, 7
        %v6722 = vsub.s32 %v6719, %v6721
        %v6723 = vrot.slane %v6716, %v6722
        %v6724 = vcombine.low %v5692, %v5693
        %v6726 = vunpack.c.l.s4 1983009808
        %v6727 = vunpack.c.0.s8 %v6726
        %v6728 = vlaneseq
        %v6729 = vshrl.u32 %v6728, 7
        %v6730 = vsub.s32 %v6727, %v6729
        %v6731 = vrot.slane %v6724, %v6730
        %v6732 = vcombine.low %v5684, %v5691
        %v6734 = vunpack.c.l.s4 1983009808
        %v6735 = vunpack.c.0.s8 %v6734
        %v6736 = vlaneseq
        %v6737 = vshrl.u32 %v6736, 7
        %v6738 = vsub.s32 %v6735, %v6737
        %v6739 = vrot.slane %v6732, %v6738
        %v6740 = vcombine.low %v5694, %v5695
        %v6742 = vunpack.c.l.s4 1983009808
        %v6743 = vunpack.c.0.s8 %v6742
        %v6744 = vlaneseq
        %v6745 = vshrl.u32 %v6744, 7
        %v6746 = vsub.s32 %v6743, %v6745
        %v6747 = vrot.slane %v6740, %v6746
        %v6748 = vcombine.low %v6723, %v6731
        %v6749 = vcombine.high %v6723, %v6731
        %v6751 = vunpack.c.l.s4 1934713408
        %v6752 = vunpack.c.0.s8 %v6751
        %v6753 = vlaneseq
        %v6754 = vshrl.u32 %v6753, 7
        %v6755 = vsub.s32 %v6752, %v6754
        %v6756 = vrot.slane %v6748, %v6755
        %v6758 = vunpack.c.l.s4 1934713408
        %v6759 = vunpack.c.0.s8 %v6758
        %v6760 = vlaneseq
        %v6761 = vshrl.u32 %v6760, 7
        %v6762 = vsub.s32 %v6759, %v6761
        %v6763 = vrot.slane %v6749, %v6762
        %v6764 = vcombine.low %v6739, %v6747
        %v6765 = vcombine.high %v6739, %v6747
        %v6767 = vunpack.c.l.s4 1934713408
        %v6768 = vunpack.c.0.s8 %v6767
        %v6769 = vlaneseq
        %v6770 = vshrl.u32 %v6769, 7
        %v6771 = vsub.s32 %v6768, %v6770
        %v6772 = vrot.slane %v6764, %v6771
        %v6774 = vunpack.c.l.s4 1934713408
        %v6775 = vunpack.c.0.s8 %v6774
        %v6776 = vlaneseq
        %v6777 = vshrl.u32 %v6776, 7
        %v6778 = vsub.s32 %v6775, %v6777
        %v6779 = vrot.slane %v6765, %v6778
        %v6780 = vcombine.low %v6756, %v6772
        %v6781 = vcombine.high %v6756, %v6772
        %v6782 = vcombine.low %v6763, %v6779
        %v6783 = vcombine.high %v6763, %v6779
        %v6784 = vcombine.low %v5736, %v5743
        %v6786 = vunpack.c.l.s4 1983009808
        %v6787 = vunpack.c.0.s8 %v6786
        %v6788 = vlaneseq
        %v6789 = vshrl.u32 %v6788, 7
        %v6790 = vsub.s32 %v6787, %v6789
        %v6791 = vrot.slane %v6784, %v6790
        %v6792 = vcombine.low %v5760, %v5761
        %v6794 = vunpack.c.l.s4 1983009808
        %v6795 = vunpack.c.0.s8 %v6794
        %v6796 = vlaneseq
        %v6797 = vshrl.u32 %v6796, 7
        %v6798 = vsub.s32 %v6795, %v6797
        %v6799 = vrot.slane %v6792, %v6798
        %v6800 = vcombine.low %v5752, %v5759
        %v6802 = vunpack.c.l.s4 1983009808
        %v6803 = vunpack.c.0.s8 %v6802
        %v6804 = vlaneseq
        %v6805 = vshrl.u32 %v6804, 7
        %v6806 = vsub.s32 %v6803, %v6805
        %v6807 = vrot.slane %v6800, %v6806
        %v6808 = vcombine.low %v5762, %v5763
        %v6810 = vunpack.c.l.s4 1983009808
        %v6811 = vunpack.c.0.s8 %v6810
        %v6812 = vlaneseq
        %v6813 = vshrl.u32 %v6812, 7
        %v6814 = vsub.s32 %v6811, %v6813
        %v6815 = vrot.slane %v6808, %v6814
        %v6816 = vcombine.low %v6791, %v6799
        %v6817 = vcombine.high %v6791, %v6799
        %v6819 = vunpack.c.l.s4 1934713408
        %v6820 = vunpack.c.0.s8 %v6819
        %v6821 = vlaneseq
        %v6822 = vshrl.u32 %v6821, 7
        %v6823 = vsub.s32 %v6820, %v6822
        %v6824 = vrot.slane %v6816, %v6823
        %v6826 = vunpack.c.l.s4 1934713408
        %v6827 = vunpack.c.0.s8 %v6826
        %v6828 = vlaneseq
        %v6829 = vshrl.u32 %v6828, 7
        %v6830 = vsub.s32 %v6827, %v6829
        %v6831 = vrot.slane %v6817, %v6830
        %v6832 = vcombine.low %v6807, %v6815
        %v6833 = vcombine.high %v6807, %v6815
        %v6835 = vunpack.c.l.s4 1934713408
        %v6836 = vunpack.c.0.s8 %v6835
        %v6837 = vlaneseq
        %v6838 = vshrl.u32 %v6837, 7
        %v6839 = vsub.s32 %v6836, %v6838
        %v6840 = vrot.slane %v6832, %v6839
        %v6842 = vunpack.c.l.s4 1934713408
        %v6843 = vunpack.c.0.s8 %v6842
        %v6844 = vlaneseq
        %v6845 = vshrl.u32 %v6844, 7
        %v6846 = vsub.s32 %v6843, %v6845
        %v6847 = vrot.slane %v6833, %v6846
        %v6848 = vcombine.low %v6824, %v6840
        %v6849 = vcombine.high %v6824, %v6840
        %v6850 = vcombine.low %v6831, %v6847
        %v6851 = vcombine.high %v6831, %v6847
        %v6852 = vcombine.low %v5804, %v5811
        %v6854 = vunpack.c.l.s4 1983009808
        %v6855 = vunpack.c.0.s8 %v6854
        %v6856 = vlaneseq
        %v6857 = vshrl.u32 %v6856, 7
        %v6858 = vsub.s32 %v6855, %v6857
        %v6859 = vrot.slane %v6852, %v6858
        %v6860 = vcombine.low %v5828, %v5829
        %v6862 = vunpack.c.l.s4 1983009808
        %v6863 = vunpack.c.0.s8 %v6862
        %v6864 = vlaneseq
        %v6865 = vshrl.u32 %v6864, 7
        %v6866 = vsub.s32 %v6863, %v6865
        %v6867 = vrot.slane %v6860, %v6866
        %v6868 = vcombine.low %v5820, %v5827
        %v6870 = vunpack.c.l.s4 1983009808
        %v6871 = vunpack.c.0.s8 %v6870
        %v6872 = vlaneseq
        %v6873 = vshrl.u32 %v6872, 7
        %v6874 = vsub.s32 %v6871, %v6873
        %v6875 = vrot.slane %v6868, %v6874
        %v6876 = vcombine.low %v5830, %v5831
        %v6878 = vunpack.c.l.s4 1983009808
        %v6879 = vunpack.c.0.s8 %v6878
        %v6880 = vlaneseq
        %v6881 = vshrl.u32 %v6880, 7
        %v6882 = vsub.s32 %v6879, %v6881
        %v6883 = vrot.slane %v6876, %v6882
        %v6884 = vcombine.low %v6859, %v6867
        %v6885 = vcombine.high %v6859, %v6867
        %v6887 = vunpack.c.l.s4 1934713408
        %v6888 = vunpack.c.0.s8 %v6887
        %v6889 = vlaneseq
        %v6890 = vshrl.u32 %v6889, 7
        %v6891 = vsub.s32 %v6888, %v6890
        %v6892 = vrot.slane %v6884, %v6891
        %v6894 = vunpack.c.l.s4 1934713408
        %v6895 = vunpack.c.0.s8 %v6894
        %v6896 = vlaneseq
        %v6897 = vshrl.u32 %v6896, 7
        %v6898 = vsub.s32 %v6895, %v6897
        %v6899 = vrot.slane %v6885, %v6898
        %v6900 = vcombine.low %v6875, %v6883
        %v6901 = vcombine.high %v6875, %v6883
        %v6903 = vunpack.c.l.s4 1934713408
        %v6904 = vunpack.c.0.s8 %v6903
        %v6905 = vlaneseq
        %v6906 = vshrl.u32 %v6905, 7
        %v6907 = vsub.s32 %v6904, %v6906
        %v6908 = vrot.slane %v6900, %v6907
        %v6910 = vunpack.c.l.s4 1934713408
        %v6911 = vunpack.c.0.s8 %v6910
        %v6912 = vlaneseq
        %v6913 = vshrl.u32 %v6912, 7
        %v6914 = vsub.s32 %v6911, %v6913
        %v6915 = vrot.slane %v6901, %v6914
        %v6916 = vcombine.low %v6892, %v6908
        %v6917 = vcombine.high %v6892, %v6908
        %v6918 = vcombine.low %v6899, %v6915
        %v6919 = vcombine.high %v6899, %v6915
        %v6920 = vcombine.low %v5872, %v5879
        %v6922 = vunpack.c.l.s4 1983009808
        %v6923 = vunpack.c.0.s8 %v6922
        %v6924 = vlaneseq
        %v6925 = vshrl.u32 %v6924, 7
        %v6926 = vsub.s32 %v6923, %v6925
        %v6927 = vrot.slane %v6920, %v6926
        %v6928 = vcombine.low %v5896, %v5897
        %v6930 = vunpack.c.l.s4 1983009808
        %v6931 = vunpack.c.0.s8 %v6930
        %v6932 = vlaneseq
        %v6933 = vshrl.u32 %v6932, 7
        %v6934 = vsub.s32 %v6931, %v6933
        %v6935 = vrot.slane %v6928, %v6934
        %v6936 = vcombine.low %v5888, %v5895
        %v6938 = vunpack.c.l.s4 1983009808
        %v6939 = vunpack.c.0.s8 %v6938
        %v6940 = vlaneseq
        %v6941 = vshrl.u32 %v6940, 7
        %v6942 = vsub.s32 %v6939, %v6941
        %v6943 = vrot.slane %v6936, %v6942
        %v6944 = vcombine.low %v5898, %v5899
        %v6946 = vunpack.c.l.s4 1983009808
        %v6947 = vunpack.c.0.s8 %v6946
        %v6948 = vlaneseq
        %v6949 = vshrl.u32 %v6948, 7
        %v6950 = vsub.s32 %v6947, %v6949
        %v6951 = vrot.slane %v6944, %v6950
        %v6952 = vcombine.low %v6927, %v6935
        %v6953 = vcombine.high %v6927, %v6935
        %v6955 = vunpack.c.l.s4 1934713408
        %v6956 = vunpack.c.0.s8 %v6955
        %v6957 = vlaneseq
        %v6958 = vshrl.u32 %v6957, 7
        %v6959 = vsub.s32 %v6956, %v6958
        %v6960 = vrot.slane %v6952, %v6959
        %v6962 = vunpack.c.l.s4 1934713408
        %v6963 = vunpack.c.0.s8 %v6962
        %v6964 = vlaneseq
        %v6965 = vshrl.u32 %v6964, 7
        %v6966 = vsub.s32 %v6963, %v6965
        %v6967 = vrot.slane %v6953, %v6966
        %v6968 = vcombine.low %v6943, %v6951
        %v6969 = vcombine.high %v6943, %v6951
        %v6971 = vunpack.c.l.s4 1934713408
        %v6972 = vunpack.c.0.s8 %v6971
        %v6973 = vlaneseq
        %v6974 = vshrl.u32 %v6973, 7
        %v6975 = vsub.s32 %v6972, %v6974
        %v6976 = vrot.slane %v6968, %v6975
        %v6978 = vunpack.c.l.s4 1934713408
        %v6979 = vunpack.c.0.s8 %v6978
        %v6980 = vlaneseq
        %v6981 = vshrl.u32 %v6980, 7
        %v6982 = vsub.s32 %v6979, %v6981
        %v6983 = vrot.slane %v6969, %v6982
        %v6984 = vcombine.low %v6960, %v6976
        %v6985 = vcombine.high %v6960, %v6976
        %v6986 = vcombine.low %v6967, %v6983
        %v6987 = vcombine.high %v6967, %v6983
        %v6988 = vcombine.low %v5940, %v5947
        %v6990 = vunpack.c.l.s4 1983009808
        %v6991 = vunpack.c.0.s8 %v6990
        %v6992 = vlaneseq
        %v6993 = vshrl.u32 %v6992, 7
        %v6994 = vsub.s32 %v6991, %v6993
        %v6995 = vrot.slane %v6988, %v6994
        %v6996 = vcombine.low %v5964, %v5965
        %v6998 = vunpack.c.l.s4 1983009808
        %v6999 = vunpack.c.0.s8 %v6998
        %v7000 = vlaneseq
        %v7001 = vshrl.u32 %v7000, 7
        %v7002 = vsub.s32 %v6999, %v7001
        %v7003 = vrot.slane %v6996, %v7002
        %v7004 = vcombine.low %v5956, %v5963
        %v7006 = vunpack.c.l.s4 1983009808
        %v7007 = vunpack.c.0.s8 %v7006
        %v7008 = vlaneseq
        %v7009 = vshrl.u32 %v7008, 7
        %v7010 = vsub.s32 %v7007, %v7009
        %v7011 = vrot.slane %v7004, %v7010
        %v7012 = vcombine.low %v5966, %v5967
        %v7014 = vunpack.c.l.s4 1983009808
        %v7015 = vunpack.c.0.s8 %v7014
        %v7016 = vlaneseq
        %v7017 = vshrl.u32 %v7016, 7
        %v7018 = vsub.s32 %v7015, %v7017
        %v7019 = vrot.slane %v7012, %v7018
        %v7020 = vcombine.low %v6995, %v7003
        %v7021 = vcombine.high %v6995, %v7003
        %v7023 = vunpack.c.l.s4 1934713408
        %v7024 = vunpack.c.0.s8 %v7023
        %v7025 = vlaneseq
        %v7026 = vshrl.u32 %v7025, 7
        %v7027 = vsub.s32 %v7024, %v7026
        %v7028 = vrot.slane %v7020, %v7027
        %v7030 = vunpack.c.l.s4 1934713408
        %v7031 = vunpack.c.0.s8 %v7030
        %v7032 = vlaneseq
        %v7033 = vshrl.u32 %v7032, 7
        %v7034 = vsub.s32 %v7031, %v7033
        %v7035 = vrot.slane %v7021, %v7034
        %v7036 = vcombine.low %v7011, %v7019
        %v7037 = vcombine.high %v7011, %v7019
        %v7039 = vunpack.c.l.s4 1934713408
        %v7040 = vunpack.c.0.s8 %v7039
        %v7041 = vlaneseq
        %v7042 = vshrl.u32 %v7041, 7
        %v7043 = vsub.s32 %v7040, %v7042
        %v7044 = vrot.slane %v7036, %v7043
        %v7046 = vunpack.c.l.s4 1934713408
        %v7047 = vunpack.c.0.s8 %v7046
        %v7048 = vlaneseq
        %v7049 = vshrl.u32 %v7048, 7
        %v7050 = vsub.s32 %v7047, %v7049
        %v7051 = vrot.slane %v7037, %v7050
        %v7052 = vcombine.low %v7028, %v7044
        %v7053 = vcombine.high %v7028, %v7044
        %v7054 = vcombine.low %v7035, %v7051
        %v7055 = vcombine.high %v7035, %v7051
        %v7056 = vcombine.low %v6008, %v6015
        %v7058 = vunpack.c.l.s4 1983009808
        %v7059 = vunpack.c.0.s8 %v7058
        %v7060 = vlaneseq
        %v7061 = vshrl.u32 %v7060, 7
        %v7062 = vsub.s32 %v7059, %v7061
        %v7063 = vrot.slane %v7056, %v7062
        %v7064 = vcombine.low %v6032, %v6033
        %v7066 = vunpack.c.l.s4 1983009808
        %v7067 = vunpack.c.0.s8 %v7066
        %v7068 = vlaneseq
        %v7069 = vshrl.u32 %v7068, 7
        %v7070 = vsub.s32 %v7067, %v7069
        %v7071 = vrot.slane %v7064, %v7070
        %v7072 = vcombine.low %v6024, %v6031
        %v7074 = vunpack.c.l.s4 1983009808
        %v7075 = vunpack.c.0.s8 %v7074
        %v7076 = vlaneseq
        %v7077 = vshrl.u32 %v7076, 7
        %v7078 = vsub.s32 %v7075, %v7077
        %v7079 = vrot.slane %v7072, %v7078
        %v7080 = vcombine.low %v6034, %v6035
        %v7082 = vunpack.c.l.s4 1983009808
        %v7083 = vunpack.c.0.s8 %v7082
        %v7084 = vlaneseq
        %v7085 = vshrl.u32 %v7084, 7
        %v7086 = vsub.s32 %v7083, %v7085
        %v7087 = vrot.slane %v7080, %v7086
        %v7088 = vcombine.low %v7063, %v7071
        %v7089 = vcombine.high %v7063, %v7071
        %v7091 = vunpack.c.l.s4 1934713408
        %v7092 = vunpack.c.0.s8 %v7091
        %v7093 = vlaneseq
        %v7094 = vshrl.u32 %v7093, 7
        %v7095 = vsub.s32 %v7092, %v7094
        %v7096 = vrot.slane %v7088, %v7095
        %v7098 = vunpack.c.l.s4 1934713408
        %v7099 = vunpack.c.0.s8 %v7098
        %v7100 = vlaneseq
        %v7101 = vshrl.u32 %v7100, 7
        %v7102 = vsub.s32 %v7099, %v7101
        %v7103 = vrot.slane %v7089, %v7102
        %v7104 = vcombine.low %v7079, %v7087
        %v7105 = vcombine.high %v7079, %v7087
        %v7107 = vunpack.c.l.s4 1934713408
        %v7108 = vunpack.c.0.s8 %v7107
        %v7109 = vlaneseq
        %v7110 = vshrl.u32 %v7109, 7
        %v7111 = vsub.s32 %v7108, %v7110
        %v7112 = vrot.slane %v7104, %v7111
        %v7114 = vunpack.c.l.s4 1934713408
        %v7115 = vunpack.c.0.s8 %v7114
        %v7116 = vlaneseq
        %v7117 = vshrl.u32 %v7116, 7
        %v7118 = vsub.s32 %v7115, %v7117
        %v7119 = vrot.slane %v7105, %v7118
        %v7120 = vcombine.low %v7096, %v7112
        %v7121 = vcombine.high %v7096, %v7112
        %v7122 = vcombine.low %v7103, %v7119
        %v7123 = vcombine.high %v7103, %v7119
        %v7124 = vpack.c.bf16 %v6168, %v6100
        %v7125 = vpack.c.bf16 %v6304, %v6236
        %v7126 = vpack.c.bf16 %v6440, %v6372
        %v7127 = vpack.c.bf16 %v6576, %v6508
        %v7128 = vpack.c.bf16 %v6712, %v6644
        %v7129 = vpack.c.bf16 %v6848, %v6780
        %v7130 = vpack.c.bf16 %v6984, %v6916
        %v7131 = vpack.c.bf16 %v7120, %v7052
        %v7132 = vpack.c.bf16 %v6169, %v6101
        %v7133 = vpack.c.bf16 %v6305, %v6237
        %v7134 = vpack.c.bf16 %v6441, %v6373
        %v7135 = vpack.c.bf16 %v6577, %v6509
        %v7136 = vpack.c.bf16 %v6713, %v6645
        %v7137 = vpack.c.bf16 %v6849, %v6781
        %v7138 = vpack.c.bf16 %v6985, %v6917
        %v7139 = vpack.c.bf16 %v7121, %v7053
        %v7140 = vpack.c.bf16 %v6170, %v6102
        %v7141 = vpack.c.bf16 %v6306, %v6238
        %v7142 = vpack.c.bf16 %v6442, %v6374
        %v7143 = vpack.c.bf16 %v6578, %v6510
        %v7144 = vpack.c.bf16 %v6714, %v6646
        %v7145 = vpack.c.bf16 %v6850, %v6782
        %v7146 = vpack.c.bf16 %v6986, %v6918
        %v7147 = vpack.c.bf16 %v7122, %v7054
        %v7148 = vpack.c.bf16 %v6171, %v6103
        %v7149 = vpack.c.bf16 %v6307, %v6239
        %v7150 = vpack.c.bf16 %v6443, %v6375
        %v7151 = vpack.c.bf16 %v6579, %v6511
        %v7152 = vpack.c.bf16 %v6715, %v6647
        %v7153 = vpack.c.bf16 %v6851, %v6783
        %v7154 = vpack.c.bf16 %v6987, %v6919
        %v7155 = vpack.c.bf16 %v7123, %v7055
        %vm7156 = vcmask 261120
        %v7158 = vsel %vm7156, %v2404, 0
        %v7161 = vsel %vm7156, %v2405, 0
        %v7164 = vsel %vm7156, %v2406, 0
        %v7167 = vsel %vm7156, %v2407, 0
        %v7170 = vsel %vm7156, %v4756, 0
        %v7173 = vsel %vm7156, %v4757, 0
        %v7176 = vsel %vm7156, %v4758, 0
        %v7179 = vsel %vm7156, %v4759, 0
        %v7182 = vsel %vm7156, %v4760, 0
        %v7185 = vsel %vm7156, %v4761, 0
        %v7188 = vsel %vm7156, %v4762, 0
        %v7191 = vsel %vm7156, %v4763, 0
        %7193 = vmatprep.subr.bf16.mxu0 0
        %7194 = vmatpush1.bf16.xpose.msra.mxu0 %v7170
        %7195 = vmatprep.subr.bf16.mxu0 0
        %7196 = vmatpush1.bf16.xpose.msra.mxu0 %v7173
        %7197 = vmatprep.subr.bf16.mxu0 0
        %7198 = vmatpush1.bf16.xpose.msra.mxu0 %v7176
        %7199 = vmatprep.subr.bf16.mxu0 0
        %7200 = vmatpush1.bf16.xpose.msra.mxu0 %v7179
        %7201 = vmatprep.subr.bf16.mxu0 0
        %7202 = vmatpush1.bf16.xpose.msra.mxu0 %v7182
        %7203 = vmatprep.subr.bf16.mxu0 0
        %7204 = vmatpush1.bf16.xpose.msra.mxu0 %v7185
        %7205 = vmatprep.subr.bf16.mxu0 0
        %7206 = vmatpush1.bf16.xpose.msra.mxu0 %v7188
        %7207 = vmatprep.subr.bf16.mxu0 0
        %7208 = vmatpush1.bf16.xpose.msra.mxu0 %v7191
        %7209 = vmatprep.subr.bf16.mxu0 0
        %7210 = vmatpush1.bf16.xpose.msra.mxu0 0
        %7211 = vmatprep.subr.bf16.mxu0 0
        %7212 = vmatpush1.bf16.xpose.msra.mxu0 0
        %7213 = vmatprep.subr.bf16.mxu0 0
        %7214 = vmatpush1.bf16.xpose.msra.mxu0 0
        %7215 = vmatprep.subr.bf16.mxu0 0
        %7216 = vmatpush1.bf16.xpose.msra.mxu0 0
        %7217 = vmatprep.subr.bf16.mxu0 0
        %7218 = vmatpush1.bf16.xpose.msra.mxu0 0
        %7219 = vmatprep.subr.bf16.mxu0 0
        %7220 = vmatpush1.bf16.xpose.msra.mxu0 0
        %7221 = vmatprep.subr.bf16.mxu0 0
        %7222 = vmatpush1.bf16.xpose.msra.mxu0 0
        %7223 = vmatprep.subr.bf16.mxu0 0
        %7224 = vmatpush1.bf16.xpose.msra.mxu0 0
        %7225 = vmatprep.mubr.bf16.mxu0 0
        %7226 = vmatmul.mubr.bf16.gmra.mrb[0].mxu0 %v7158
        %v7227 = vpop.f32.mrb[0].mxu0
        %v7228 = vadd.f32 0.0, %v7227
        %v7229 = vpop.f32.mrb[0].mxu0
        %v7230 = vpop.f32.mrb[0].mxu0
        %v7231 = vadd.f32 0.0, %v7230
        %v7232 = vpop.f32.mrb[0].mxu0
        %7233 = vmatprep.mubr.bf16.mxu0 0
        %7234 = vmatmul.mubr.bf16.gmra.mrb[0].mxu0 %v7161
        %v7235 = vpop.f32.mrb[0].mxu0
        %v7236 = vadd.f32 0.0, %v7235
        %v7237 = vpop.f32.mrb[0].mxu0
        %v7238 = vpop.f32.mrb[0].mxu0
        %v7239 = vadd.f32 0.0, %v7238
        %v7240 = vpop.f32.mrb[0].mxu0
        %7241 = vmatprep.mubr.bf16.mxu0 0
        %7242 = vmatmul.mubr.bf16.gmra.mrb[0].mxu0 %v7164
        %v7243 = vpop.f32.mrb[0].mxu0
        %v7244 = vadd.f32 0.0, %v7243
        %v7245 = vpop.f32.mrb[0].mxu0
        %v7246 = vpop.f32.mrb[0].mxu0
        %v7247 = vadd.f32 0.0, %v7246
        %v7248 = vpop.f32.mrb[0].mxu0
        %7249 = vmatprep.mubr.bf16.mxu0 0
        %7250 = vmatmul.mubr.bf16.gmra.mrb[0].mxu0 %v7167
        %v7251 = vpop.f32.mrb[0].mxu0
        %v7252 = vadd.f32 0.0, %v7251
        %v7253 = vpop.f32.mrb[0].mxu0
        %v7254 = vpop.f32.mrb[0].mxu0
        %v7255 = vadd.f32 0.0, %v7254
        %v7256 = vpop.f32.mrb[0].mxu0
        %7257 = vdwg.mxu0
        %v7259 = vsel %vm7156, %v2408, 0
        %v7262 = vsel %vm7156, %v2409, 0
        %v7265 = vsel %vm7156, %v2410, 0
        %v7268 = vsel %vm7156, %v2411, 0
        %v7271 = vsel %vm7156, %v4764, 0
        %v7274 = vsel %vm7156, %v4765, 0
        %v7277 = vsel %vm7156, %v4766, 0
        %v7280 = vsel %vm7156, %v4767, 0
        %v7283 = vsel %vm7156, %v4768, 0
        %v7286 = vsel %vm7156, %v4769, 0
        %v7289 = vsel %vm7156, %v4770, 0
        %v7292 = vsel %vm7156, %v4771, 0
        %7294 = vmatprep.subr.bf16.mxu0 0
        %7295 = vmatpush1.bf16.xpose.msra.mxu0 %v7271
        %7296 = vmatprep.subr.bf16.mxu0 0
        %7297 = vmatpush1.bf16.xpose.msra.mxu0 %v7274
        %7298 = vmatprep.subr.bf16.mxu0 0
        %7299 = vmatpush1.bf16.xpose.msra.mxu0 %v7277
        %7300 = vmatprep.subr.bf16.mxu0 0
        %7301 = vmatpush1.bf16.xpose.msra.mxu0 %v7280
        %7302 = vmatprep.subr.bf16.mxu0 0
        %7303 = vmatpush1.bf16.xpose.msra.mxu0 %v7283
        %7304 = vmatprep.subr.bf16.mxu0 0
        %7305 = vmatpush1.bf16.xpose.msra.mxu0 %v7286
        %7306 = vmatprep.subr.bf16.mxu0 0
        %7307 = vmatpush1.bf16.xpose.msra.mxu0 %v7289
        %7308 = vmatprep.subr.bf16.mxu0 0
        %7309 = vmatpush1.bf16.xpose.msra.mxu0 %v7292
        %7310 = vmatprep.subr.bf16.mxu0 0
        %7311 = vmatpush1.bf16.xpose.msra.mxu0 0
        %7312 = vmatprep.subr.bf16.mxu0 0
        %7313 = vmatpush1.bf16.xpose.msra.mxu0 0
        %7314 = vmatprep.subr.bf16.mxu0 0
        %7315 = vmatpush1.bf16.xpose.msra.mxu0 0
        %7316 = vmatprep.subr.bf16.mxu0 0
        %7317 = vmatpush1.bf16.xpose.msra.mxu0 0
        %7318 = vmatprep.subr.bf16.mxu0 0
        %7319 = vmatpush1.bf16.xpose.msra.mxu0 0
        %7320 = vmatprep.subr.bf16.mxu0 0
        %7321 = vmatpush1.bf16.xpose.msra.mxu0 0
        %7322 = vmatprep.subr.bf16.mxu0 0
        %7323 = vmatpush1.bf16.xpose.msra.mxu0 0
        %7324 = vmatprep.subr.bf16.mxu0 0
        %7325 = vmatpush1.bf16.xpose.msra.mxu0 0
        %7326 = vmatprep.mubr.bf16.mxu0 0
        %7327 = vmatmul.mubr.bf16.gmra.mrb[0].mxu0 %v7259
        %v7328 = vpop.f32.mrb[0].mxu0
        %v7329 = vadd.f32 0.0, %v7328
        %v7330 = vpop.f32.mrb[0].mxu0
        %v7331 = vpop.f32.mrb[0].mxu0
        %v7332 = vadd.f32 0.0, %v7331
        %v7333 = vpop.f32.mrb[0].mxu0
        %7334 = vmatprep.mubr.bf16.mxu0 0
        %7335 = vmatmul.mubr.bf16.gmra.mrb[0].mxu0 %v7262
        %v7336 = vpop.f32.mrb[0].mxu0
        %v7337 = vadd.f32 0.0, %v7336
        %v7338 = vpop.f32.mrb[0].mxu0
        %v7339 = vpop.f32.mrb[0].mxu0
        %v7340 = vadd.f32 0.0, %v7339
        %v7341 = vpop.f32.mrb[0].mxu0
        %7342 = vmatprep.mubr.bf16.mxu0 0
        %7343 = vmatmul.mubr.bf16.gmra.mrb[0].mxu0 %v7265
        %v7344 = vpop.f32.mrb[0].mxu0
        %v7345 = vadd.f32 0.0, %v7344
        %v7346 = vpop.f32.mrb[0].mxu0
        %v7347 = vpop.f32.mrb[0].mxu0
        %v7348 = vadd.f32 0.0, %v7347
        %v7349 = vpop.f32.mrb[0].mxu0
        %7350 = vmatprep.mubr.bf16.mxu0 0
        %7351 = vmatmul.mubr.bf16.gmra.mrb[0].mxu0 %v7268
        %v7352 = vpop.f32.mrb[0].mxu0
        %v7353 = vadd.f32 0.0, %v7352
        %v7354 = vpop.f32.mrb[0].mxu0
        %v7355 = vpop.f32.mrb[0].mxu0
        %v7356 = vadd.f32 0.0, %v7355
        %v7357 = vpop.f32.mrb[0].mxu0
        %7358 = vdwg.mxu0
        %v7360 = vsel %vm7156, %v2412, 0
        %v7363 = vsel %vm7156, %v2413, 0
        %v7366 = vsel %vm7156, %v2414, 0
        %v7369 = vsel %vm7156, %v2415, 0
        %v7372 = vsel %vm7156, %v4772, 0
        %v7375 = vsel %vm7156, %v4773, 0
        %v7378 = vsel %vm7156, %v4774, 0
        %v7381 = vsel %vm7156, %v4775, 0
        %v7384 = vsel %vm7156, %v4776, 0
        %v7387 = vsel %vm7156, %v4777, 0
        %v7390 = vsel %vm7156, %v4778, 0
        %v7393 = vsel %vm7156, %v4779, 0
        %7395 = vmatprep.subr.bf16.mxu0 0
        %7396 = vmatpush1.bf16.xpose.msra.mxu0 %v7372
        %7397 = vmatprep.subr.bf16.mxu0 0
        %7398 = vmatpush1.bf16.xpose.msra.mxu0 %v7375
        %7399 = vmatprep.subr.bf16.mxu0 0
        %7400 = vmatpush1.bf16.xpose.msra.mxu0 %v7378
        %7401 = vmatprep.subr.bf16.mxu0 0
        %7402 = vmatpush1.bf16.xpose.msra.mxu0 %v7381
        %7403 = vmatprep.subr.bf16.mxu0 0
        %7404 = vmatpush1.bf16.xpose.msra.mxu0 %v7384
        %7405 = vmatprep.subr.bf16.mxu0 0
        %7406 = vmatpush1.bf16.xpose.msra.mxu0 %v7387
        %7407 = vmatprep.subr.bf16.mxu0 0
        %7408 = vmatpush1.bf16.xpose.msra.mxu0 %v7390
        %7409 = vmatprep.subr.bf16.mxu0 0
        %7410 = vmatpush1.bf16.xpose.msra.mxu0 %v7393
        %7411 = vmatprep.subr.bf16.mxu0 0
        %7412 = vmatpush1.bf16.xpose.msra.mxu0 0
        %7413 = vmatprep.subr.bf16.mxu0 0
        %7414 = vmatpush1.bf16.xpose.msra.mxu0 0
        %7415 = vmatprep.subr.bf16.mxu0 0
        %7416 = vmatpush1.bf16.xpose.msra.mxu0 0
        %7417 = vmatprep.subr.bf16.mxu0 0
        %7418 = vmatpush1.bf16.xpose.msra.mxu0 0
        %7419 = vmatprep.subr.bf16.mxu0 0
        %7420 = vmatpush1.bf16.xpose.msra.mxu0 0
        %7421 = vmatprep.subr.bf16.mxu0 0
        %7422 = vmatpush1.bf16.xpose.msra.mxu0 0
        %7423 = vmatprep.subr.bf16.mxu0 0
        %7424 = vmatpush1.bf16.xpose.msra.mxu0 0
        %7425 = vmatprep.subr.bf16.mxu0 0
        %7426 = vmatpush1.bf16.xpose.msra.mxu0 0
        %7427 = vmatprep.mubr.bf16.mxu0 0
        %7428 = vmatmul.mubr.bf16.gmra.mrb[0].mxu0 %v7360
        %v7429 = vpop.f32.mrb[0].mxu0
        %v7430 = vadd.f32 0.0, %v7429
        %v7431 = vpop.f32.mrb[0].mxu0
        %v7432 = vpop.f32.mrb[0].mxu0
        %v7433 = vadd.f32 0.0, %v7432
        %v7434 = vpop.f32.mrb[0].mxu0
        %7435 = vmatprep.mubr.bf16.mxu0 0
        %7436 = vmatmul.mubr.bf16.gmra.mrb[0].mxu0 %v7363
        %v7437 = vpop.f32.mrb[0].mxu0
        %v7438 = vadd.f32 0.0, %v7437
        %v7439 = vpop.f32.mrb[0].mxu0
        %v7440 = vpop.f32.mrb[0].mxu0
        %v7441 = vadd.f32 0.0, %v7440
        %v7442 = vpop.f32.mrb[0].mxu0
        %7443 = vmatprep.mubr.bf16.mxu0 0
        %7444 = vmatmul.mubr.bf16.gmra.mrb[0].mxu0 %v7366
        %v7445 = vpop.f32.mrb[0].mxu0
        %v7446 = vadd.f32 0.0, %v7445
        %v7447 = vpop.f32.mrb[0].mxu0
        %v7448 = vpop.f32.mrb[0].mxu0
        %v7449 = vadd.f32 0.0, %v7448
        %v7450 = vpop.f32.mrb[0].mxu0
        %7451 = vmatprep.mubr.bf16.mxu0 0
        %7452 = vmatmul.mubr.bf16.gmra.mrb[0].mxu0 %v7369
        %v7453 = vpop.f32.mrb[0].mxu0
        %v7454 = vadd.f32 0.0, %v7453
        %v7455 = vpop.f32.mrb[0].mxu0
        %v7456 = vpop.f32.mrb[0].mxu0
        %v7457 = vadd.f32 0.0, %v7456
        %v7458 = vpop.f32.mrb[0].mxu0
        %7459 = vdwg.mxu0
        %v7461 = vsel %vm7156, %v2416, 0
        %v7464 = vsel %vm7156, %v2417, 0
        %v7467 = vsel %vm7156, %v2418, 0
        %v7470 = vsel %vm7156, %v2419, 0
        %v7473 = vsel %vm7156, %v4780, 0
        %v7476 = vsel %vm7156, %v4781, 0
        %v7479 = vsel %vm7156, %v4782, 0
        %v7482 = vsel %vm7156, %v4783, 0
        %v7485 = vsel %vm7156, %v4784, 0
        %v7488 = vsel %vm7156, %v4785, 0
        %v7491 = vsel %vm7156, %v4786, 0
        %v7494 = vsel %vm7156, %v4787, 0
        %7496 = vmatprep.subr.bf16.mxu0 0
        %7497 = vmatpush1.bf16.xpose.msra.mxu0 %v7473
        %7498 = vmatprep.subr.bf16.mxu0 0
        %7499 = vmatpush1.bf16.xpose.msra.mxu0 %v7476
        %7500 = vmatprep.subr.bf16.mxu0 0
        %7501 = vmatpush1.bf16.xpose.msra.mxu0 %v7479
        %7502 = vmatprep.subr.bf16.mxu0 0
        %7503 = vmatpush1.bf16.xpose.msra.mxu0 %v7482
        %7504 = vmatprep.subr.bf16.mxu0 0
        %7505 = vmatpush1.bf16.xpose.msra.mxu0 %v7485
        %7506 = vmatprep.subr.bf16.mxu0 0
        %7507 = vmatpush1.bf16.xpose.msra.mxu0 %v7488
        %7508 = vmatprep.subr.bf16.mxu0 0
        %7509 = vmatpush1.bf16.xpose.msra.mxu0 %v7491
        %7510 = vmatprep.subr.bf16.mxu0 0
        %7511 = vmatpush1.bf16.xpose.msra.mxu0 %v7494
        %7512 = vmatprep.subr.bf16.mxu0 0
        %7513 = vmatpush1.bf16.xpose.msra.mxu0 0
        %7514 = vmatprep.subr.bf16.mxu0 0
        %7515 = vmatpush1.bf16.xpose.msra.mxu0 0
        %7516 = vmatprep.subr.bf16.mxu0 0
        %7517 = vmatpush1.bf16.xpose.msra.mxu0 0
        %7518 = vmatprep.subr.bf16.mxu0 0
        %7519 = vmatpush1.bf16.xpose.msra.mxu0 0
        %7520 = vmatprep.subr.bf16.mxu0 0
        %7521 = vmatpush1.bf16.xpose.msra.mxu0 0
        %7522 = vmatprep.subr.bf16.mxu0 0
        %7523 = vmatpush1.bf16.xpose.msra.mxu0 0
        %7524 = vmatprep.subr.bf16.mxu0 0
        %7525 = vmatpush1.bf16.xpose.msra.mxu0 0
        %7526 = vmatprep.subr.bf16.mxu0 0
        %7527 = vmatpush1.bf16.xpose.msra.mxu0 0
        %7528 = vmatprep.mubr.bf16.mxu0 0
        %7529 = vmatmul.mubr.bf16.gmra.mrb[0].mxu0 %v7461
        %v7530 = vpop.f32.mrb[0].mxu0
        %v7531 = vadd.f32 0.0, %v7530
        %v7532 = vpop.f32.mrb[0].mxu0
        %v7533 = vpop.f32.mrb[0].mxu0
        %v7534 = vadd.f32 0.0, %v7533
        %v7535 = vpop.f32.mrb[0].mxu0
        %7536 = vmatprep.mubr.bf16.mxu0 0
        %7537 = vmatmul.mubr.bf16.gmra.mrb[0].mxu0 %v7464
        %v7538 = vpop.f32.mrb[0].mxu0
        %v7539 = vadd.f32 0.0, %v7538
        %v7540 = vpop.f32.mrb[0].mxu0
        %v7541 = vpop.f32.mrb[0].mxu0
        %v7542 = vadd.f32 0.0, %v7541
        %v7543 = vpop.f32.mrb[0].mxu0
        %7544 = vmatprep.mubr.bf16.mxu0 0
        %7545 = vmatmul.mubr.bf16.gmra.mrb[0].mxu0 %v7467
        %v7546 = vpop.f32.mrb[0].mxu0
        %v7547 = vadd.f32 0.0, %v7546
        %v7548 = vpop.f32.mrb[0].mxu0
        %v7549 = vpop.f32.mrb[0].mxu0
        %v7550 = vadd.f32 0.0, %v7549
        %v7551 = vpop.f32.mrb[0].mxu0
        %7552 = vmatprep.mubr.bf16.mxu0 0
        %7553 = vmatmul.mubr.bf16.gmra.mrb[0].mxu0 %v7470
        %v7554 = vpop.f32.mrb[0].mxu0
        %v7555 = vadd.f32 0.0, %v7554
        %v7556 = vpop.f32.mrb[0].mxu0
        %v7557 = vpop.f32.mrb[0].mxu0
        %v7558 = vadd.f32 0.0, %v7557
        %v7559 = vpop.f32.mrb[0].mxu0
        %7560 = vdwg.mxu0
        %v7561 = vmul.f32 %v7228, 0.17677669
        %v7562 = vmul.f32 %v7231, 0.17677669
        %v7563 = vmul.f32 %v7236, 0.17677669
        %v7564 = vmul.f32 %v7239, 0.17677669
        %v7565 = vmul.f32 %v7244, 0.17677669
        %v7566 = vmul.f32 %v7247, 0.17677669
        %v7567 = vmul.f32 %v7252, 0.17677669
        %v7568 = vmul.f32 %v7255, 0.17677669
        %v7569 = vmul.f32 %v7329, 0.17677669
        %v7570 = vmul.f32 %v7332, 0.17677669
        %v7571 = vmul.f32 %v7337, 0.17677669
        %v7572 = vmul.f32 %v7340, 0.17677669
        %v7573 = vmul.f32 %v7345, 0.17677669
        %v7574 = vmul.f32 %v7348, 0.17677669
        %v7575 = vmul.f32 %v7353, 0.17677669
        %v7576 = vmul.f32 %v7356, 0.17677669
        %v7577 = vmul.f32 %v7430, 0.17677669
        %v7578 = vmul.f32 %v7433, 0.17677669
        %v7579 = vmul.f32 %v7438, 0.17677669
        %v7580 = vmul.f32 %v7441, 0.17677669
        %v7581 = vmul.f32 %v7446, 0.17677669
        %v7582 = vmul.f32 %v7449, 0.17677669
        %v7583 = vmul.f32 %v7454, 0.17677669
        %v7584 = vmul.f32 %v7457, 0.17677669
        %v7585 = vmul.f32 %v7531, 0.17677669
        %v7586 = vmul.f32 %v7534, 0.17677669
        %v7587 = vmul.f32 %v7539, 0.17677669
        %v7588 = vmul.f32 %v7542, 0.17677669
        %v7589 = vmul.f32 %v7547, 0.17677669
        %v7590 = vmul.f32 %v7550, 0.17677669
        %v7591 = vmul.f32 %v7555, 0.17677669
        %v7592 = vmul.f32 %v7558, 0.17677669
        %7593 = vmax.xlane.f32.xlu0 %v7561
        %v7594 = vpop.xlane.xlu0 %7593
        %7595 = vmax.xlane.f32.xlu0 %v7562
        %v7596 = vpop.xlane.xlu0 %7595
        %7597 = vmax.xlane.f32.xlu0 %v7563
        %v7598 = vpop.xlane.xlu0 %7597
        %7599 = vmax.xlane.f32.xlu0 %v7564
        %v7600 = vpop.xlane.xlu0 %7599
        %7601 = vmax.xlane.f32.xlu0 %v7565
        %v7602 = vpop.xlane.xlu0 %7601
        %7603 = vmax.xlane.f32.xlu0 %v7566
        %v7604 = vpop.xlane.xlu0 %7603
        %7605 = vmax.xlane.f32.xlu0 %v7567
        %v7606 = vpop.xlane.xlu0 %7605
        %7607 = vmax.xlane.f32.xlu0 %v7568
        %v7608 = vpop.xlane.xlu0 %7607
        %7609 = vmax.xlane.f32.xlu0 %v7569
        %v7610 = vpop.xlane.xlu0 %7609
        %7611 = vmax.xlane.f32.xlu0 %v7570
        %v7612 = vpop.xlane.xlu0 %7611
        %7613 = vmax.xlane.f32.xlu0 %v7571
        %v7614 = vpop.xlane.xlu0 %7613
        %7615 = vmax.xlane.f32.xlu0 %v7572
        %v7616 = vpop.xlane.xlu0 %7615
        %7617 = vmax.xlane.f32.xlu0 %v7573
        %v7618 = vpop.xlane.xlu0 %7617
        %7619 = vmax.xlane.f32.xlu0 %v7574
        %v7620 = vpop.xlane.xlu0 %7619
        %7621 = vmax.xlane.f32.xlu0 %v7575
        %v7622 = vpop.xlane.xlu0 %7621
        %7623 = vmax.xlane.f32.xlu0 %v7576
        %v7624 = vpop.xlane.xlu0 %7623
        %7625 = vmax.xlane.f32.xlu0 %v7577
        %v7626 = vpop.xlane.xlu0 %7625
        %7627 = vmax.xlane.f32.xlu0 %v7578
        %v7628 = vpop.xlane.xlu0 %7627
        %7629 = vmax.xlane.f32.xlu0 %v7579
        %v7630 = vpop.xlane.xlu0 %7629
        %7631 = vmax.xlane.f32.xlu0 %v7580
        %v7632 = vpop.xlane.xlu0 %7631
        %7633 = vmax.xlane.f32.xlu0 %v7581
        %v7634 = vpop.xlane.xlu0 %7633
        %7635 = vmax.xlane.f32.xlu0 %v7582
        %v7636 = vpop.xlane.xlu0 %7635
        %7637 = vmax.xlane.f32.xlu0 %v7583
        %v7638 = vpop.xlane.xlu0 %7637
        %7639 = vmax.xlane.f32.xlu0 %v7584
        %v7640 = vpop.xlane.xlu0 %7639
        %7641 = vmax.xlane.f32.xlu0 %v7585
        %v7642 = vpop.xlane.xlu0 %7641
        %7643 = vmax.xlane.f32.xlu0 %v7586
        %v7644 = vpop.xlane.xlu0 %7643
        %7645 = vmax.xlane.f32.xlu0 %v7587
        %v7646 = vpop.xlane.xlu0 %7645
        %7647 = vmax.xlane.f32.xlu0 %v7588
        %v7648 = vpop.xlane.xlu0 %7647
        %7649 = vmax.xlane.f32.xlu0 %v7589
        %v7650 = vpop.xlane.xlu0 %7649
        %7651 = vmax.xlane.f32.xlu0 %v7590
        %v7652 = vpop.xlane.xlu0 %7651
        %7653 = vmax.xlane.f32.xlu0 %v7591
        %v7654 = vpop.xlane.xlu0 %7653
        %7655 = vmax.xlane.f32.xlu0 %v7592
        %v7656 = vpop.xlane.xlu0 %7655
        %v7657 = vsub.f32 %v7561, %v7594
        %v7658 = vsub.f32 %v7562, %v7596
        %v7659 = vsub.f32 %v7563, %v7598
        %v7660 = vsub.f32 %v7564, %v7600
        %v7661 = vsub.f32 %v7565, %v7602
        %v7662 = vsub.f32 %v7566, %v7604
        %v7663 = vsub.f32 %v7567, %v7606
        %v7664 = vsub.f32 %v7568, %v7608
        %v7665 = vsub.f32 %v7569, %v7610
        %v7666 = vsub.f32 %v7570, %v7612
        %v7667 = vsub.f32 %v7571, %v7614
        %v7668 = vsub.f32 %v7572, %v7616
        %v7669 = vsub.f32 %v7573, %v7618
        %v7670 = vsub.f32 %v7574, %v7620
        %v7671 = vsub.f32 %v7575, %v7622
        %v7672 = vsub.f32 %v7576, %v7624
        %v7673 = vsub.f32 %v7577, %v7626
        %v7674 = vsub.f32 %v7578, %v7628
        %v7675 = vsub.f32 %v7579, %v7630
        %v7676 = vsub.f32 %v7580, %v7632
        %v7677 = vsub.f32 %v7581, %v7634
        %v7678 = vsub.f32 %v7582, %v7636
        %v7679 = vsub.f32 %v7583, %v7638
        %v7680 = vsub.f32 %v7584, %v7640
        %v7681 = vsub.f32 %v7585, %v7642
        %v7682 = vsub.f32 %v7586, %v7644
        %v7683 = vsub.f32 %v7587, %v7646
        %v7684 = vsub.f32 %v7588, %v7648
        %v7685 = vsub.f32 %v7589, %v7650
        %v7686 = vsub.f32 %v7590, %v7652
        %v7687 = vsub.f32 %v7591, %v7654
        %v7688 = vsub.f32 %v7592, %v7656
        %v7689 = vmul.f32 %v7657, 1.442695
        %v7690 = vpow.pop %v7689
        %v7691 = vmul.f32 %v7658, 1.442695
        %v7692 = vpow.pop %v7691
        %v7693 = vmul.f32 %v7659, 1.442695
        %v7694 = vpow.pop %v7693
        %v7695 = vmul.f32 %v7660, 1.442695
        %v7696 = vpow.pop %v7695
        %v7697 = vmul.f32 %v7661, 1.442695
        %v7698 = vpow.pop %v7697
        %v7699 = vmul.f32 %v7662, 1.442695
        %v7700 = vpow.pop %v7699
        %v7701 = vmul.f32 %v7663, 1.442695
        %v7702 = vpow.pop %v7701
        %v7703 = vmul.f32 %v7664, 1.442695
        %v7704 = vpow.pop %v7703
        %v7705 = vmul.f32 %v7665, 1.442695
        %v7706 = vpow.pop %v7705
        %v7707 = vmul.f32 %v7666, 1.442695
        %v7708 = vpow.pop %v7707
        %v7709 = vmul.f32 %v7667, 1.442695
        %v7710 = vpow.pop %v7709
        %v7711 = vmul.f32 %v7668, 1.442695
        %v7712 = vpow.pop %v7711
        %v7713 = vmul.f32 %v7669, 1.442695
        %v7714 = vpow.pop %v7713
        %v7715 = vmul.f32 %v7670, 1.442695
        %v7716 = vpow.pop %v7715
        %v7717 = vmul.f32 %v7671, 1.442695
        %v7718 = vpow.pop %v7717
        %v7719 = vmul.f32 %v7672, 1.442695
        %v7720 = vpow.pop %v7719
        %v7721 = vmul.f32 %v7673, 1.442695
        %v7722 = vpow.pop %v7721
        %v7723 = vmul.f32 %v7674, 1.442695
        %v7724 = vpow.pop %v7723
        %v7725 = vmul.f32 %v7675, 1.442695
        %v7726 = vpow.pop %v7725
        %v7727 = vmul.f32 %v7676, 1.442695
        %v7728 = vpow.pop %v7727
        %v7729 = vmul.f32 %v7677, 1.442695
        %v7730 = vpow.pop %v7729
        %v7731 = vmul.f32 %v7678, 1.442695
        %v7732 = vpow.pop %v7731
        %v7733 = vmul.f32 %v7679, 1.442695
        %v7734 = vpow.pop %v7733
        %v7735 = vmul.f32 %v7680, 1.442695
        %v7736 = vpow.pop %v7735
        %v7737 = vmul.f32 %v7681, 1.442695
        %v7738 = vpow.pop %v7737
        %v7739 = vmul.f32 %v7682, 1.442695
        %v7740 = vpow.pop %v7739
        %v7741 = vmul.f32 %v7683, 1.442695
        %v7742 = vpow.pop %v7741
        %v7743 = vmul.f32 %v7684, 1.442695
        %v7744 = vpow.pop %v7743
        %v7745 = vmul.f32 %v7685, 1.442695
        %v7746 = vpow.pop %v7745
        %v7747 = vmul.f32 %v7686, 1.442695
        %v7748 = vpow.pop %v7747
        %v7749 = vmul.f32 %v7687, 1.442695
        %v7750 = vpow.pop %v7749
        %v7751 = vmul.f32 %v7688, 1.442695
        %v7752 = vpow.pop %v7751
        %7753 = vadd.xlane.f32.xlu0 %v7690
        %v7754 = vpop.xlane.xlu0 %7753
        %7755 = vadd.xlane.f32.xlu0 %v7692
        %v7756 = vpop.xlane.xlu0 %7755
        %7757 = vadd.xlane.f32.xlu0 %v7694
        %v7758 = vpop.xlane.xlu0 %7757
        %7759 = vadd.xlane.f32.xlu0 %v7696
        %v7760 = vpop.xlane.xlu0 %7759
        %7761 = vadd.xlane.f32.xlu0 %v7698
        %v7762 = vpop.xlane.xlu0 %7761
        %7763 = vadd.xlane.f32.xlu0 %v7700
        %v7764 = vpop.xlane.xlu0 %7763
        %7765 = vadd.xlane.f32.xlu0 %v7702
        %v7766 = vpop.xlane.xlu0 %7765
        %7767 = vadd.xlane.f32.xlu0 %v7704
        %v7768 = vpop.xlane.xlu0 %7767
        %7769 = vadd.xlane.f32.xlu0 %v7706
        %v7770 = vpop.xlane.xlu0 %7769
        %7771 = vadd.xlane.f32.xlu0 %v7708
        %v7772 = vpop.xlane.xlu0 %7771
        %7773 = vadd.xlane.f32.xlu0 %v7710
        %v7774 = vpop.xlane.xlu0 %7773
        %7775 = vadd.xlane.f32.xlu0 %v7712
        %v7776 = vpop.xlane.xlu0 %7775
        %7777 = vadd.xlane.f32.xlu0 %v7714
        %v7778 = vpop.xlane.xlu0 %7777
        %7779 = vadd.xlane.f32.xlu0 %v7716
        %v7780 = vpop.xlane.xlu0 %7779
        %7781 = vadd.xlane.f32.xlu0 %v7718
        %v7782 = vpop.xlane.xlu0 %7781
        %7783 = vadd.xlane.f32.xlu0 %v7720
        %v7784 = vpop.xlane.xlu0 %7783
        %7785 = vadd.xlane.f32.xlu0 %v7722
        %v7786 = vpop.xlane.xlu0 %7785
        %7787 = vadd.xlane.f32.xlu0 %v7724
        %v7788 = vpop.xlane.xlu0 %7787
        %7789 = vadd.xlane.f32.xlu0 %v7726
        %v7790 = vpop.xlane.xlu0 %7789
        %7791 = vadd.xlane.f32.xlu0 %v7728
        %v7792 = vpop.xlane.xlu0 %7791
        %7793 = vadd.xlane.f32.xlu0 %v7730
        %v7794 = vpop.xlane.xlu0 %7793
        %7795 = vadd.xlane.f32.xlu0 %v7732
        %v7796 = vpop.xlane.xlu0 %7795
        %7797 = vadd.xlane.f32.xlu0 %v7734
        %v7798 = vpop.xlane.xlu0 %7797
        %7799 = vadd.xlane.f32.xlu0 %v7736
        %v7800 = vpop.xlane.xlu0 %7799
        %7801 = vadd.xlane.f32.xlu0 %v7738
        %v7802 = vpop.xlane.xlu0 %7801
        %7803 = vadd.xlane.f32.xlu0 %v7740
        %v7804 = vpop.xlane.xlu0 %7803
        %7805 = vadd.xlane.f32.xlu0 %v7742
        %v7806 = vpop.xlane.xlu0 %7805
        %7807 = vadd.xlane.f32.xlu0 %v7744
        %v7808 = vpop.xlane.xlu0 %7807
        %7809 = vadd.xlane.f32.xlu0 %v7746
        %v7810 = vpop.xlane.xlu0 %7809
        %7811 = vadd.xlane.f32.xlu0 %v7748
        %v7812 = vpop.xlane.xlu0 %7811
        %7813 = vadd.xlane.f32.xlu0 %v7750
        %v7814 = vpop.xlane.xlu0 %7813
        %7815 = vadd.xlane.f32.xlu0 %v7752
        %v7816 = vpop.xlane.xlu0 %7815
        %v7817 = vrcp.pop %v7754
        %v7818 = vrcp.pop %v7756
        %v7819 = vrcp.pop %v7758
        %v7820 = vrcp.pop %v7760
        %v7821 = vrcp.pop %v7762
        %v7822 = vrcp.pop %v7764
        %v7823 = vrcp.pop %v7766
        %v7824 = vrcp.pop %v7768
        %v7825 = vrcp.pop %v7770
        %v7826 = vrcp.pop %v7772
        %v7827 = vrcp.pop %v7774
        %v7828 = vrcp.pop %v7776
        %v7829 = vrcp.pop %v7778
        %v7830 = vrcp.pop %v7780
        %v7831 = vrcp.pop %v7782
        %v7832 = vrcp.pop %v7784
        %v7833 = vrcp.pop %v7786
        %v7834 = vrcp.pop %v7788
        %v7835 = vrcp.pop %v7790
        %v7836 = vrcp.pop %v7792
        %v7837 = vrcp.pop %v7794
        %v7838 = vrcp.pop %v7796
        %v7839 = vrcp.pop %v7798
        %v7840 = vrcp.pop %v7800
        %v7841 = vrcp.pop %v7802
        %v7842 = vrcp.pop %v7804
        %v7843 = vrcp.pop %v7806
        %v7844 = vrcp.pop %v7808
        %v7845 = vrcp.pop %v7810
        %v7846 = vrcp.pop %v7812
        %v7847 = vrcp.pop %v7814
        %v7848 = vrcp.pop %v7816
        %v7849 = vmul.f32 %v7690, %v7817
        %v7850 = vmul.f32 %v7692, %v7818
        %v7851 = vmul.f32 %v7694, %v7819
        %v7852 = vmul.f32 %v7696, %v7820
        %v7853 = vmul.f32 %v7698, %v7821
        %v7854 = vmul.f32 %v7700, %v7822
        %v7855 = vmul.f32 %v7702, %v7823
        %v7856 = vmul.f32 %v7704, %v7824
        %v7857 = vmul.f32 %v7706, %v7825
        %v7858 = vmul.f32 %v7708, %v7826
        %v7859 = vmul.f32 %v7710, %v7827
        %v7860 = vmul.f32 %v7712, %v7828
        %v7861 = vmul.f32 %v7714, %v7829
        %v7862 = vmul.f32 %v7716, %v7830
        %v7863 = vmul.f32 %v7718, %v7831
        %v7864 = vmul.f32 %v7720, %v7832
        %v7865 = vmul.f32 %v7722, %v7833
        %v7866 = vmul.f32 %v7724, %v7834
        %v7867 = vmul.f32 %v7726, %v7835
        %v7868 = vmul.f32 %v7728, %v7836
        %v7869 = vmul.f32 %v7730, %v7837
        %v7870 = vmul.f32 %v7732, %v7838
        %v7871 = vmul.f32 %v7734, %v7839
        %v7872 = vmul.f32 %v7736, %v7840
        %v7873 = vmul.f32 %v7738, %v7841
        %v7874 = vmul.f32 %v7740, %v7842
        %v7875 = vmul.f32 %v7742, %v7843
        %v7876 = vmul.f32 %v7744, %v7844
        %v7877 = vmul.f32 %v7746, %v7845
        %v7878 = vmul.f32 %v7748, %v7846
        %v7879 = vmul.f32 %v7750, %v7847
        %v7880 = vmul.f32 %v7752, %v7848
        %v7881 = vpack.c.bf16 %v7850, %v7849
        %v7882 = vpack.c.bf16 %v7852, %v7851
        %v7883 = vpack.c.bf16 %v7854, %v7853
        %v7884 = vpack.c.bf16 %v7856, %v7855
        %v7885 = vpack.c.bf16 %v7858, %v7857
        %v7886 = vpack.c.bf16 %v7860, %v7859
        %v7887 = vpack.c.bf16 %v7862, %v7861
        %v7888 = vpack.c.bf16 %v7864, %v7863
        %v7889 = vpack.c.bf16 %v7866, %v7865
        %v7890 = vpack.c.bf16 %v7868, %v7867
        %v7891 = vpack.c.bf16 %v7870, %v7869
        %v7892 = vpack.c.bf16 %v7872, %v7871
        %v7893 = vpack.c.bf16 %v7874, %v7873
        %v7894 = vpack.c.bf16 %v7876, %v7875
        %v7895 = vpack.c.bf16 %v7878, %v7877
        %v7896 = vpack.c.bf16 %v7880, %v7879
        %7897 = vmatprep.subr.bf16.mxu0 0
        %7898 = vmatpush1.bf16.msra.mxu0 %v7124
        %7899 = vmatprep.subr.bf16.mxu0 0
        %7900 = vmatpush1.bf16.msra.mxu0 %v7125
        %7901 = vmatprep.subr.bf16.mxu0 0
        %7902 = vmatpush1.bf16.msra.mxu0 %v7126
        %7903 = vmatprep.subr.bf16.mxu0 0
        %7904 = vmatpush1.bf16.msra.mxu0 %v7127
        %7905 = vmatprep.subr.bf16.mxu0 0
        %7906 = vmatpush1.bf16.msra.mxu0 %v7128
        %7907 = vmatprep.subr.bf16.mxu0 0
        %7908 = vmatpush1.bf16.msra.mxu0 %v7129
        %7909 = vmatprep.subr.bf16.mxu0 0
        %7910 = vmatpush1.bf16.msra.mxu0 %v7130
        %7911 = vmatprep.subr.bf16.mxu0 0
        %7912 = vmatpush1.bf16.msra.mxu0 %v7131
        %7913 = vmatprep.subr.bf16.mxu0 0
        %7914 = vmatpush1.bf16.msra.mxu0 0
        %7915 = vmatprep.subr.bf16.mxu0 0
        %7916 = vmatpush1.bf16.msra.mxu0 0
        %7917 = vmatprep.subr.bf16.mxu0 0
        %7918 = vmatpush1.bf16.msra.mxu0 0
        %7919 = vmatprep.subr.bf16.mxu0 0
        %7920 = vmatpush1.bf16.msra.mxu0 0
        %7921 = vmatprep.subr.bf16.mxu0 0
        %7922 = vmatpush1.bf16.msra.mxu0 0
        %7923 = vmatprep.subr.bf16.mxu0 0
        %7924 = vmatpush1.bf16.msra.mxu0 0
        %7925 = vmatprep.subr.bf16.mxu0 0
        %7926 = vmatpush1.bf16.msra.mxu0 0
        %7927 = vmatprep.subr.bf16.mxu0 0
        %7928 = vmatpush1.bf16.msra.mxu0 0
        %7929 = vmatprep.mubr.bf16.mxu0 0
        %7930 = vmatmul.mubr.bf16.gmra.mrb[0].mxu0 %v7881
        %v7931 = vpop.f32.mrb[0].mxu0
        %v7932 = vadd.f32 0.0, %v7931
        %v7933 = vpop.f32.mrb[0].mxu0
        %v7934 = vpop.f32.mrb[0].mxu0
        %v7935 = vadd.f32 0.0, %v7934
        %v7936 = vpop.f32.mrb[0].mxu0
        %7937 = vmatprep.mubr.bf16.mxu0 0
        %7938 = vmatmul.mubr.bf16.gmra.mrb[0].mxu0 %v7882
        %v7939 = vpop.f32.mrb[0].mxu0
        %v7940 = vadd.f32 0.0, %v7939
        %v7941 = vpop.f32.mrb[0].mxu0
        %v7942 = vpop.f32.mrb[0].mxu0
        %v7943 = vadd.f32 0.0, %v7942
        %v7944 = vpop.f32.mrb[0].mxu0
        %7945 = vmatprep.mubr.bf16.mxu0 0
        %7946 = vmatmul.mubr.bf16.gmra.mrb[0].mxu0 %v7883
        %v7947 = vpop.f32.mrb[0].mxu0
        %v7948 = vadd.f32 0.0, %v7947
        %v7949 = vpop.f32.mrb[0].mxu0
        %v7950 = vpop.f32.mrb[0].mxu0
        %v7951 = vadd.f32 0.0, %v7950
        %v7952 = vpop.f32.mrb[0].mxu0
        %7953 = vmatprep.mubr.bf16.mxu0 0
        %7954 = vmatmul.mubr.bf16.gmra.mrb[0].mxu0 %v7884
        %v7955 = vpop.f32.mrb[0].mxu0
        %v7956 = vadd.f32 0.0, %v7955
        %v7957 = vpop.f32.mrb[0].mxu0
        %v7958 = vpop.f32.mrb[0].mxu0
        %v7959 = vadd.f32 0.0, %v7958
        %v7960 = vpop.f32.mrb[0].mxu0
        %7961 = vdwg.mxu0
        %7962 = vmatprep.subr.bf16.mxu0 0
        %7963 = vmatpush1.bf16.msra.mxu0 %v7132
        %7964 = vmatprep.subr.bf16.mxu0 0
        %7965 = vmatpush1.bf16.msra.mxu0 %v7133
        %7966 = vmatprep.subr.bf16.mxu0 0
        %7967 = vmatpush1.bf16.msra.mxu0 %v7134
        %7968 = vmatprep.subr.bf16.mxu0 0
        %7969 = vmatpush1.bf16.msra.mxu0 %v7135
        %7970 = vmatprep.subr.bf16.mxu0 0
        %7971 = vmatpush1.bf16.msra.mxu0 %v7136
        %7972 = vmatprep.subr.bf16.mxu0 0
        %7973 = vmatpush1.bf16.msra.mxu0 %v7137
        %7974 = vmatprep.subr.bf16.mxu0 0
        %7975 = vmatpush1.bf16.msra.mxu0 %v7138
        %7976 = vmatprep.subr.bf16.mxu0 0
        %7977 = vmatpush1.bf16.msra.mxu0 %v7139
        %7978 = vmatprep.subr.bf16.mxu0 0
        %7979 = vmatpush1.bf16.msra.mxu0 0
        %7980 = vmatprep.subr.bf16.mxu0 0
        %7981 = vmatpush1.bf16.msra.mxu0 0
        %7982 = vmatprep.subr.bf16.mxu0 0
        %7983 = vmatpush1.bf16.msra.mxu0 0
        %7984 = vmatprep.subr.bf16.mxu0 0
        %7985 = vmatpush1.bf16.msra.mxu0 0
        %7986 = vmatprep.subr.bf16.mxu0 0
        %7987 = vmatpush1.bf16.msra.mxu0 0
        %7988 = vmatprep.subr.bf16.mxu0 0
        %7989 = vmatpush1.bf16.msra.mxu0 0
        %7990 = vmatprep.subr.bf16.mxu0 0
        %7991 = vmatpush1.bf16.msra.mxu0 0
        %7992 = vmatprep.subr.bf16.mxu0 0
        %7993 = vmatpush1.bf16.msra.mxu0 0
        %7994 = vmatprep.mubr.bf16.mxu0 0
        %7995 = vmatmul.mubr.bf16.gmra.mrb[0].mxu0 %v7885
        %v7996 = vpop.f32.mrb[0].mxu0
        %v7997 = vadd.f32 0.0, %v7996
        %v7998 = vpop.f32.mrb[0].mxu0
        %v7999 = vpop.f32.mrb[0].mxu0
        %v8000 = vadd.f32 0.0, %v7999
        %v8001 = vpop.f32.mrb[0].mxu0
        %8002 = vmatprep.mubr.bf16.mxu0 0
        %8003 = vmatmul.mubr.bf16.gmra.mrb[0].mxu0 %v7886
        %v8004 = vpop.f32.mrb[0].mxu0
        %v8005 = vadd.f32 0.0, %v8004
        %v8006 = vpop.f32.mrb[0].mxu0
        %v8007 = vpop.f32.mrb[0].mxu0
        %v8008 = vadd.f32 0.0, %v8007
        %v8009 = vpop.f32.mrb[0].mxu0
        %8010 = vmatprep.mubr.bf16.mxu0 0
        %8011 = vmatmul.mubr.bf16.gmra.mrb[0].mxu0 %v7887
        %v8012 = vpop.f32.mrb[0].mxu0
        %v8013 = vadd.f32 0.0, %v8012
        %v8014 = vpop.f32.mrb[0].mxu0
        %v8015 = vpop.f32.mrb[0].mxu0
        %v8016 = vadd.f32 0.0, %v8015
        %v8017 = vpop.f32.mrb[0].mxu0
        %8018 = vmatprep.mubr.bf16.mxu0 0
        %8019 = vmatmul.mubr.bf16.gmra.mrb[0].mxu0 %v7888
        %v8020 = vpop.f32.mrb[0].mxu0
        %v8021 = vadd.f32 0.0, %v8020
        %v8022 = vpop.f32.mrb[0].mxu0
        %v8023 = vpop.f32.mrb[0].mxu0
        %v8024 = vadd.f32 0.0, %v8023
        %v8025 = vpop.f32.mrb[0].mxu0
        %8026 = vdwg.mxu0
        %8027 = vmatprep.subr.bf16.mxu0 0
        %8028 = vmatpush1.bf16.msra.mxu0 %v7140
        %8029 = vmatprep.subr.bf16.mxu0 0
        %8030 = vmatpush1.bf16.msra.mxu0 %v7141
        %8031 = vmatprep.subr.bf16.mxu0 0
        %8032 = vmatpush1.bf16.msra.mxu0 %v7142
        %8033 = vmatprep.subr.bf16.mxu0 0
        %8034 = vmatpush1.bf16.msra.mxu0 %v7143
        %8035 = vmatprep.subr.bf16.mxu0 0
        %8036 = vmatpush1.bf16.msra.mxu0 %v7144
        %8037 = vmatprep.subr.bf16.mxu0 0
        %8038 = vmatpush1.bf16.msra.mxu0 %v7145
        %8039 = vmatprep.subr.bf16.mxu0 0
        %8040 = vmatpush1.bf16.msra.mxu0 %v7146
        %8041 = vmatprep.subr.bf16.mxu0 0
        %8042 = vmatpush1.bf16.msra.mxu0 %v7147
        %8043 = vmatprep.subr.bf16.mxu0 0
        %8044 = vmatpush1.bf16.msra.mxu0 0
        %8045 = vmatprep.subr.bf16.mxu0 0
        %8046 = vmatpush1.bf16.msra.mxu0 0
        %8047 = vmatprep.subr.bf16.mxu0 0
        %8048 = vmatpush1.bf16.msra.mxu0 0
        %8049 = vmatprep.subr.bf16.mxu0 0
        %8050 = vmatpush1.bf16.msra.mxu0 0
        %8051 = vmatprep.subr.bf16.mxu0 0
        %8052 = vmatpush1.bf16.msra.mxu0 0
        %8053 = vmatprep.subr.bf16.mxu0 0
        %8054 = vmatpush1.bf16.msra.mxu0 0
        %8055 = vmatprep.subr.bf16.mxu0 0
        %8056 = vmatpush1.bf16.msra.mxu0 0
        %8057 = vmatprep.subr.bf16.mxu0 0
        %8058 = vmatpush1.bf16.msra.mxu0 0
        %8059 = vmatprep.mubr.bf16.mxu0 0
        %8060 = vmatmul.mubr.bf16.gmra.mrb[0].mxu0 %v7889
        %v8061 = vpop.f32.mrb[0].mxu0
        %v8062 = vadd.f32 0.0, %v8061
        %v8063 = vpop.f32.mrb[0].mxu0
        %v8064 = vpop.f32.mrb[0].mxu0
        %v8065 = vadd.f32 0.0, %v8064
        %v8066 = vpop.f32.mrb[0].mxu0
        %8067 = vmatprep.mubr.bf16.mxu0 0
        %8068 = vmatmul.mubr.bf16.gmra.mrb[0].mxu0 %v7890
        %v8069 = vpop.f32.mrb[0].mxu0
        %v8070 = vadd.f32 0.0, %v8069
        %v8071 = vpop.f32.mrb[0].mxu0
        %v8072 = vpop.f32.mrb[0].mxu0
        %v8073 = vadd.f32 0.0, %v8072
        %v8074 = vpop.f32.mrb[0].mxu0
        %8075 = vmatprep.mubr.bf16.mxu0 0
        %8076 = vmatmul.mubr.bf16.gmra.mrb[0].mxu0 %v7891
        %v8077 = vpop.f32.mrb[0].mxu0
        %v8078 = vadd.f32 0.0, %v8077
        %v8079 = vpop.f32.mrb[0].mxu0
        %v8080 = vpop.f32.mrb[0].mxu0
        %v8081 = vadd.f32 0.0, %v8080
        %v8082 = vpop.f32.mrb[0].mxu0
        %8083 = vmatprep.mubr.bf16.mxu0 0
        %8084 = vmatmul.mubr.bf16.gmra.mrb[0].mxu0 %v7892
        %v8085 = vpop.f32.mrb[0].mxu0
        %v8086 = vadd.f32 0.0, %v8085
        %v8087 = vpop.f32.mrb[0].mxu0
        %v8088 = vpop.f32.mrb[0].mxu0
        %v8089 = vadd.f32 0.0, %v8088
        %v8090 = vpop.f32.mrb[0].mxu0
        %8091 = vdwg.mxu0
        %8092 = vmatprep.subr.bf16.mxu0 0
        %8093 = vmatpush1.bf16.msra.mxu0 %v7148
        %8094 = vmatprep.subr.bf16.mxu0 0
        %8095 = vmatpush1.bf16.msra.mxu0 %v7149
        %8096 = vmatprep.subr.bf16.mxu0 0
        %8097 = vmatpush1.bf16.msra.mxu0 %v7150
        %8098 = vmatprep.subr.bf16.mxu0 0
        %8099 = vmatpush1.bf16.msra.mxu0 %v7151
        %8100 = vmatprep.subr.bf16.mxu0 0
        %8101 = vmatpush1.bf16.msra.mxu0 %v7152
        %8102 = vmatprep.subr.bf16.mxu0 0
        %8103 = vmatpush1.bf16.msra.mxu0 %v7153
        %8104 = vmatprep.subr.bf16.mxu0 0
        %8105 = vmatpush1.bf16.msra.mxu0 %v7154
        %8106 = vmatprep.subr.bf16.mxu0 0
        %8107 = vmatpush1.bf16.msra.mxu0 %v7155
        %8108 = vmatprep.subr.bf16.mxu0 0
        %8109 = vmatpush1.bf16.msra.mxu0 0
        %8110 = vmatprep.subr.bf16.mxu0 0
        %8111 = vmatpush1.bf16.msra.mxu0 0
        %8112 = vmatprep.subr.bf16.mxu0 0
        %8113 = vmatpush1.bf16.msra.mxu0 0
        %8114 = vmatprep.subr.bf16.mxu0 0
        %8115 = vmatpush1.bf16.msra.mxu0 0
        %8116 = vmatprep.subr.bf16.mxu0 0
        %8117 = vmatpush1.bf16.msra.mxu0 0
        %8118 = vmatprep.subr.bf16.mxu0 0
        %8119 = vmatpush1.bf16.msra.mxu0 0
        %8120 = vmatprep.subr.bf16.mxu0 0
        %8121 = vmatpush1.bf16.msra.mxu0 0
        %8122 = vmatprep.subr.bf16.mxu0 0
        %8123 = vmatpush1.bf16.msra.mxu0 0
        %8124 = vmatprep.mubr.bf16.mxu0 0
        %8125 = vmatmul.mubr.bf16.gmra.mrb[0].mxu0 %v7893
        %v8126 = vpop.f32.mrb[0].mxu0
        %v8127 = vadd.f32 0.0, %v8126
        %v8128 = vpop.f32.mrb[0].mxu0
        %v8129 = vpop.f32.mrb[0].mxu0
        %v8130 = vadd.f32 0.0, %v8129
        %v8131 = vpop.f32.mrb[0].mxu0
        %8132 = vmatprep.mubr.bf16.mxu0 0
        %8133 = vmatmul.mubr.bf16.gmra.mrb[0].mxu0 %v7894
        %v8134 = vpop.f32.mrb[0].mxu0
        %v8135 = vadd.f32 0.0, %v8134
        %v8136 = vpop.f32.mrb[0].mxu0
        %v8137 = vpop.f32.mrb[0].mxu0
        %v8138 = vadd.f32 0.0, %v8137
        %v8139 = vpop.f32.mrb[0].mxu0
        %8140 = vmatprep.mubr.bf16.mxu0 0
        %8141 = vmatmul.mubr.bf16.gmra.mrb[0].mxu0 %v7895
        %v8142 = vpop.f32.mrb[0].mxu0
        %v8143 = vadd.f32 0.0, %v8142
        %v8144 = vpop.f32.mrb[0].mxu0
        %v8145 = vpop.f32.mrb[0].mxu0
        %v8146 = vadd.f32 0.0, %v8145
        %v8147 = vpop.f32.mrb[0].mxu0
        %8148 = vmatprep.mubr.bf16.mxu0 0
        %8149 = vmatmul.mubr.bf16.gmra.mrb[0].mxu0 %v7896
        %v8150 = vpop.f32.mrb[0].mxu0
        %v8151 = vadd.f32 0.0, %v8150
        %v8152 = vpop.f32.mrb[0].mxu0
        %v8153 = vpop.f32.mrb[0].mxu0
        %v8154 = vadd.f32 0.0, %v8153
        %v8155 = vpop.f32.mrb[0].mxu0
        %8156 = vdwg.mxu0
        %v8157 = vcombine.low %v7932, %v8062
        %v8158 = vcombine.high %v7932, %v8062
        %v8160 = vunpack.c.l.s4 1983009808
        %v8161 = vunpack.c.0.s8 %v8160
        %v8162 = vlaneseq
        %v8163 = vshrl.u32 %v8162, 7
        %v8164 = vsub.s32 %v8161, %v8163
        %v8165 = vrot.slane %v8157, %v8164
        %v8167 = vunpack.c.l.s4 1983009808
        %v8168 = vunpack.c.0.s8 %v8167
        %v8169 = vlaneseq
        %v8170 = vshrl.u32 %v8169, 7
        %v8171 = vsub.s32 %v8168, %v8170
        %v8172 = vrot.slane %v8158, %v8171
        %v8173 = vcombine.low %v7997, %v8127
        %v8174 = vcombine.high %v7997, %v8127
        %v8176 = vunpack.c.l.s4 1983009808
        %v8177 = vunpack.c.0.s8 %v8176
        %v8178 = vlaneseq
        %v8179 = vshrl.u32 %v8178, 7
        %v8180 = vsub.s32 %v8177, %v8179
        %v8181 = vrot.slane %v8173, %v8180
        %v8183 = vunpack.c.l.s4 1983009808
        %v8184 = vunpack.c.0.s8 %v8183
        %v8185 = vlaneseq
        %v8186 = vshrl.u32 %v8185, 7
        %v8187 = vsub.s32 %v8184, %v8186
        %v8188 = vrot.slane %v8174, %v8187
        %v8189 = vcombine.low %v8165, %v8181
        %v8190 = vcombine.high %v8165, %v8181
        %v8192 = vunpack.c.l.s4 1934713408
        %v8193 = vunpack.c.0.s8 %v8192
        %v8194 = vlaneseq
        %v8195 = vshrl.u32 %v8194, 7
        %v8196 = vsub.s32 %v8193, %v8195
        %v8197 = vrot.slane %v8189, %v8196
        %v8199 = vunpack.c.l.s4 1934713408
        %v8200 = vunpack.c.0.s8 %v8199
        %v8201 = vlaneseq
        %v8202 = vshrl.u32 %v8201, 7
        %v8203 = vsub.s32 %v8200, %v8202
        %v8204 = vrot.slane %v8190, %v8203
        %v8205 = vcombine.low %v8172, %v8188
        %v8206 = vcombine.high %v8172, %v8188
        %v8208 = vunpack.c.l.s4 1934713408
        %v8209 = vunpack.c.0.s8 %v8208
        %v8210 = vlaneseq
        %v8211 = vshrl.u32 %v8210, 7
        %v8212 = vsub.s32 %v8209, %v8211
        %v8213 = vrot.slane %v8205, %v8212
        %v8215 = vunpack.c.l.s4 1934713408
        %v8216 = vunpack.c.0.s8 %v8215
        %v8217 = vlaneseq
        %v8218 = vshrl.u32 %v8217, 7
        %v8219 = vsub.s32 %v8216, %v8218
        %v8220 = vrot.slane %v8206, %v8219
        %v8221 = vcombine.high %v8197, 0.0
        %v8222 = vcombine.high %v8204, 0.0
        %v8223 = vcombine.high %v8213, 0.0
        %v8224 = vcombine.high %v8220, 0.0
        %v8225 = vcombine.low %v7935, %v8065
        %v8226 = vcombine.high %v7935, %v8065
        %v8228 = vunpack.c.l.s4 1983009808
        %v8229 = vunpack.c.0.s8 %v8228
        %v8230 = vlaneseq
        %v8231 = vshrl.u32 %v8230, 7
        %v8232 = vsub.s32 %v8229, %v8231
        %v8233 = vrot.slane %v8225, %v8232
        %v8235 = vunpack.c.l.s4 1983009808
        %v8236 = vunpack.c.0.s8 %v8235
        %v8237 = vlaneseq
        %v8238 = vshrl.u32 %v8237, 7
        %v8239 = vsub.s32 %v8236, %v8238
        %v8240 = vrot.slane %v8226, %v8239
        %v8241 = vcombine.low %v8000, %v8130
        %v8242 = vcombine.high %v8000, %v8130
        %v8244 = vunpack.c.l.s4 1983009808
        %v8245 = vunpack.c.0.s8 %v8244
        %v8246 = vlaneseq
        %v8247 = vshrl.u32 %v8246, 7
        %v8248 = vsub.s32 %v8245, %v8247
        %v8249 = vrot.slane %v8241, %v8248
        %v8251 = vunpack.c.l.s4 1983009808
        %v8252 = vunpack.c.0.s8 %v8251
        %v8253 = vlaneseq
        %v8254 = vshrl.u32 %v8253, 7
        %v8255 = vsub.s32 %v8252, %v8254
        %v8256 = vrot.slane %v8242, %v8255
        %v8257 = vcombine.low %v8233, %v8249
        %v8258 = vcombine.high %v8233, %v8249
        %v8260 = vunpack.c.l.s4 1934713408
        %v8261 = vunpack.c.0.s8 %v8260
        %v8262 = vlaneseq
        %v8263 = vshrl.u32 %v8262, 7
        %v8264 = vsub.s32 %v8261, %v8263
        %v8265 = vrot.slane %v8257, %v8264
        %v8267 = vunpack.c.l.s4 1934713408
        %v8268 = vunpack.c.0.s8 %v8267
        %v8269 = vlaneseq
        %v8270 = vshrl.u32 %v8269, 7
        %v8271 = vsub.s32 %v8268, %v8270
        %v8272 = vrot.slane %v8258, %v8271
        %v8273 = vcombine.low %v8240, %v8256
        %v8274 = vcombine.high %v8240, %v8256
        %v8276 = vunpack.c.l.s4 1934713408
        %v8277 = vunpack.c.0.s8 %v8276
        %v8278 = vlaneseq
        %v8279 = vshrl.u32 %v8278, 7
        %v8280 = vsub.s32 %v8277, %v8279
        %v8281 = vrot.slane %v8273, %v8280
        %v8283 = vunpack.c.l.s4 1934713408
        %v8284 = vunpack.c.0.s8 %v8283
        %v8285 = vlaneseq
        %v8286 = vshrl.u32 %v8285, 7
        %v8287 = vsub.s32 %v8284, %v8286
        %v8288 = vrot.slane %v8274, %v8287
        %v8289 = vcombine.high %v8265, 0.0
        %v8290 = vcombine.high %v8272, 0.0
        %v8291 = vcombine.high %v8281, 0.0
        %v8292 = vcombine.high %v8288, 0.0
        %v8293 = vcombine.low %v7940, %v8070
        %v8294 = vcombine.high %v7940, %v8070
        %v8296 = vunpack.c.l.s4 1983009808
        %v8297 = vunpack.c.0.s8 %v8296
        %v8298 = vlaneseq
        %v8299 = vshrl.u32 %v8298, 7
        %v8300 = vsub.s32 %v8297, %v8299
        %v8301 = vrot.slane %v8293, %v8300
        %v8303 = vunpack.c.l.s4 1983009808
        %v8304 = vunpack.c.0.s8 %v8303
        %v8305 = vlaneseq
        %v8306 = vshrl.u32 %v8305, 7
        %v8307 = vsub.s32 %v8304, %v8306
        %v8308 = vrot.slane %v8294, %v8307
        %v8309 = vcombine.low %v8005, %v8135
        %v8310 = vcombine.high %v8005, %v8135
        %v8312 = vunpack.c.l.s4 1983009808
        %v8313 = vunpack.c.0.s8 %v8312
        %v8314 = vlaneseq
        %v8315 = vshrl.u32 %v8314, 7
        %v8316 = vsub.s32 %v8313, %v8315
        %v8317 = vrot.slane %v8309, %v8316
        %v8319 = vunpack.c.l.s4 1983009808
        %v8320 = vunpack.c.0.s8 %v8319
        %v8321 = vlaneseq
        %v8322 = vshrl.u32 %v8321, 7
        %v8323 = vsub.s32 %v8320, %v8322
        %v8324 = vrot.slane %v8310, %v8323
        %v8325 = vcombine.low %v8301, %v8317
        %v8326 = vcombine.high %v8301, %v8317
        %v8328 = vunpack.c.l.s4 1934713408
        %v8329 = vunpack.c.0.s8 %v8328
        %v8330 = vlaneseq
        %v8331 = vshrl.u32 %v8330, 7
        %v8332 = vsub.s32 %v8329, %v8331
        %v8333 = vrot.slane %v8325, %v8332
        %v8335 = vunpack.c.l.s4 1934713408
        %v8336 = vunpack.c.0.s8 %v8335
        %v8337 = vlaneseq
        %v8338 = vshrl.u32 %v8337, 7
        %v8339 = vsub.s32 %v8336, %v8338
        %v8340 = vrot.slane %v8326, %v8339
        %v8341 = vcombine.low %v8308, %v8324
        %v8342 = vcombine.high %v8308, %v8324
        %v8344 = vunpack.c.l.s4 1934713408
        %v8345 = vunpack.c.0.s8 %v8344
        %v8346 = vlaneseq
        %v8347 = vshrl.u32 %v8346, 7
        %v8348 = vsub.s32 %v8345, %v8347
        %v8349 = vrot.slane %v8341, %v8348
        %v8351 = vunpack.c.l.s4 1934713408
        %v8352 = vunpack.c.0.s8 %v8351
        %v8353 = vlaneseq
        %v8354 = vshrl.u32 %v8353, 7
        %v8355 = vsub.s32 %v8352, %v8354
        %v8356 = vrot.slane %v8342, %v8355
        %v8357 = vcombine.high %v8333, 0.0
        %v8358 = vcombine.high %v8340, 0.0
        %v8359 = vcombine.high %v8349, 0.0
        %v8360 = vcombine.high %v8356, 0.0
        %v8361 = vcombine.low %v7943, %v8073
        %v8362 = vcombine.high %v7943, %v8073
        %v8364 = vunpack.c.l.s4 1983009808
        %v8365 = vunpack.c.0.s8 %v8364
        %v8366 = vlaneseq
        %v8367 = vshrl.u32 %v8366, 7
        %v8368 = vsub.s32 %v8365, %v8367
        %v8369 = vrot.slane %v8361, %v8368
        %v8371 = vunpack.c.l.s4 1983009808
        %v8372 = vunpack.c.0.s8 %v8371
        %v8373 = vlaneseq
        %v8374 = vshrl.u32 %v8373, 7
        %v8375 = vsub.s32 %v8372, %v8374
        %v8376 = vrot.slane %v8362, %v8375
        %v8377 = vcombine.low %v8008, %v8138
        %v8378 = vcombine.high %v8008, %v8138
        %v8380 = vunpack.c.l.s4 1983009808
        %v8381 = vunpack.c.0.s8 %v8380
        %v8382 = vlaneseq
        %v8383 = vshrl.u32 %v8382, 7
        %v8384 = vsub.s32 %v8381, %v8383
        %v8385 = vrot.slane %v8377, %v8384
        %v8387 = vunpack.c.l.s4 1983009808
        %v8388 = vunpack.c.0.s8 %v8387
        %v8389 = vlaneseq
        %v8390 = vshrl.u32 %v8389, 7
        %v8391 = vsub.s32 %v8388, %v8390
        %v8392 = vrot.slane %v8378, %v8391
        %v8393 = vcombine.low %v8369, %v8385
        %v8394 = vcombine.high %v8369, %v8385
        %v8396 = vunpack.c.l.s4 1934713408
        %v8397 = vunpack.c.0.s8 %v8396
        %v8398 = vlaneseq
        %v8399 = vshrl.u32 %v8398, 7
        %v8400 = vsub.s32 %v8397, %v8399
        %v8401 = vrot.slane %v8393, %v8400
        %v8403 = vunpack.c.l.s4 1934713408
        %v8404 = vunpack.c.0.s8 %v8403
        %v8405 = vlaneseq
        %v8406 = vshrl.u32 %v8405, 7
        %v8407 = vsub.s32 %v8404, %v8406
        %v8408 = vrot.slane %v8394, %v8407
        %v8409 = vcombine.low %v8376, %v8392
        %v8410 = vcombine.high %v8376, %v8392
        %v8412 = vunpack.c.l.s4 1934713408
        %v8413 = vunpack.c.0.s8 %v8412
        %v8414 = vlaneseq
        %v8415 = vshrl.u32 %v8414, 7
        %v8416 = vsub.s32 %v8413, %v8415
        %v8417 = vrot.slane %v8409, %v8416
        %v8419 = vunpack.c.l.s4 1934713408
        %v8420 = vunpack.c.0.s8 %v8419
        %v8421 = vlaneseq
        %v8422 = vshrl.u32 %v8421, 7
        %v8423 = vsub.s32 %v8420, %v8422
        %v8424 = vrot.slane %v8410, %v8423
        %v8425 = vcombine.high %v8401, 0.0
        %v8426 = vcombine.high %v8408, 0.0
        %v8427 = vcombine.high %v8417, 0.0
        %v8428 = vcombine.high %v8424, 0.0
        %v8429 = vcombine.low %v7948, %v8078
        %v8430 = vcombine.high %v7948, %v8078
        %v8432 = vunpack.c.l.s4 1983009808
        %v8433 = vunpack.c.0.s8 %v8432
        %v8434 = vlaneseq
        %v8435 = vshrl.u32 %v8434, 7
        %v8436 = vsub.s32 %v8433, %v8435
        %v8437 = vrot.slane %v8429, %v8436
        %v8439 = vunpack.c.l.s4 1983009808
        %v8440 = vunpack.c.0.s8 %v8439
        %v8441 = vlaneseq
        %v8442 = vshrl.u32 %v8441, 7
        %v8443 = vsub.s32 %v8440, %v8442
        %v8444 = vrot.slane %v8430, %v8443
        %v8445 = vcombine.low %v8013, %v8143
        %v8446 = vcombine.high %v8013, %v8143
        %v8448 = vunpack.c.l.s4 1983009808
        %v8449 = vunpack.c.0.s8 %v8448
        %v8450 = vlaneseq
        %v8451 = vshrl.u32 %v8450, 7
        %v8452 = vsub.s32 %v8449, %v8451
        %v8453 = vrot.slane %v8445, %v8452
        %v8455 = vunpack.c.l.s4 1983009808
        %v8456 = vunpack.c.0.s8 %v8455
        %v8457 = vlaneseq
        %v8458 = vshrl.u32 %v8457, 7
        %v8459 = vsub.s32 %v8456, %v8458
        %v8460 = vrot.slane %v8446, %v8459
        %v8461 = vcombine.low %v8437, %v8453
        %v8462 = vcombine.high %v8437, %v8453
        %v8464 = vunpack.c.l.s4 1934713408
        %v8465 = vunpack.c.0.s8 %v8464
        %v8466 = vlaneseq
        %v8467 = vshrl.u32 %v8466, 7
        %v8468 = vsub.s32 %v8465, %v8467
        %v8469 = vrot.slane %v8461, %v8468
        %v8471 = vunpack.c.l.s4 1934713408
        %v8472 = vunpack.c.0.s8 %v8471
        %v8473 = vlaneseq
        %v8474 = vshrl.u32 %v8473, 7
        %v8475 = vsub.s32 %v8472, %v8474
        %v8476 = vrot.slane %v8462, %v8475
        %v8477 = vcombine.low %v8444, %v8460
        %v8478 = vcombine.high %v8444, %v8460
        %v8480 = vunpack.c.l.s4 1934713408
        %v8481 = vunpack.c.0.s8 %v8480
        %v8482 = vlaneseq
        %v8483 = vshrl.u32 %v8482, 7
        %v8484 = vsub.s32 %v8481, %v8483
        %v8485 = vrot.slane %v8477, %v8484
        %v8487 = vunpack.c.l.s4 1934713408
        %v8488 = vunpack.c.0.s8 %v8487
        %v8489 = vlaneseq
        %v8490 = vshrl.u32 %v8489, 7
        %v8491 = vsub.s32 %v8488, %v8490
        %v8492 = vrot.slane %v8478, %v8491
        %v8493 = vcombine.high %v8469, 0.0
        %v8494 = vcombine.high %v8476, 0.0
        %v8495 = vcombine.high %v8485, 0.0
        %v8496 = vcombine.high %v8492, 0.0
        %v8497 = vcombine.low %v7951, %v8081
        %v8498 = vcombine.high %v7951, %v8081
        %v8500 = vunpack.c.l.s4 1983009808
        %v8501 = vunpack.c.0.s8 %v8500
        %v8502 = vlaneseq
        %v8503 = vshrl.u32 %v8502, 7
        %v8504 = vsub.s32 %v8501, %v8503
        %v8505 = vrot.slane %v8497, %v8504
        %v8507 = vunpack.c.l.s4 1983009808
        %v8508 = vunpack.c.0.s8 %v8507
        %v8509 = vlaneseq
        %v8510 = vshrl.u32 %v8509, 7
        %v8511 = vsub.s32 %v8508, %v8510
        %v8512 = vrot.slane %v8498, %v8511
        %v8513 = vcombine.low %v8016, %v8146
        %v8514 = vcombine.high %v8016, %v8146
        %v8516 = vunpack.c.l.s4 1983009808
        %v8517 = vunpack.c.0.s8 %v8516
        %v8518 = vlaneseq
        %v8519 = vshrl.u32 %v8518, 7
        %v8520 = vsub.s32 %v8517, %v8519
        %v8521 = vrot.slane %v8513, %v8520
        %v8523 = vunpack.c.l.s4 1983009808
        %v8524 = vunpack.c.0.s8 %v8523
        %v8525 = vlaneseq
        %v8526 = vshrl.u32 %v8525, 7
        %v8527 = vsub.s32 %v8524, %v8526
        %v8528 = vrot.slane %v8514, %v8527
        %v8529 = vcombine.low %v8505, %v8521
        %v8530 = vcombine.high %v8505, %v8521
        %v8532 = vunpack.c.l.s4 1934713408
        %v8533 = vunpack.c.0.s8 %v8532
        %v8534 = vlaneseq
        %v8535 = vshrl.u32 %v8534, 7
        %v8536 = vsub.s32 %v8533, %v8535
        %v8537 = vrot.slane %v8529, %v8536
        %v8539 = vunpack.c.l.s4 1934713408
        %v8540 = vunpack.c.0.s8 %v8539
        %v8541 = vlaneseq
        %v8542 = vshrl.u32 %v8541, 7
        %v8543 = vsub.s32 %v8540, %v8542
        %v8544 = vrot.slane %v8530, %v8543
        %v8545 = vcombine.low %v8512, %v8528
        %v8546 = vcombine.high %v8512, %v8528
        %v8548 = vunpack.c.l.s4 1934713408
        %v8549 = vunpack.c.0.s8 %v8548
        %v8550 = vlaneseq
        %v8551 = vshrl.u32 %v8550, 7
        %v8552 = vsub.s32 %v8549, %v8551
        %v8553 = vrot.slane %v8545, %v8552
        %v8555 = vunpack.c.l.s4 1934713408
        %v8556 = vunpack.c.0.s8 %v8555
        %v8557 = vlaneseq
        %v8558 = vshrl.u32 %v8557, 7
        %v8559 = vsub.s32 %v8556, %v8558
        %v8560 = vrot.slane %v8546, %v8559
        %v8561 = vcombine.high %v8537, 0.0
        %v8562 = vcombine.high %v8544, 0.0
        %v8563 = vcombine.high %v8553, 0.0
        %v8564 = vcombine.high %v8560, 0.0
        %v8565 = vcombine.low %v7956, %v8086
        %v8566 = vcombine.high %v7956, %v8086
        %v8568 = vunpack.c.l.s4 1983009808
        %v8569 = vunpack.c.0.s8 %v8568
        %v8570 = vlaneseq
        %v8571 = vshrl.u32 %v8570, 7
        %v8572 = vsub.s32 %v8569, %v8571
        %v8573 = vrot.slane %v8565, %v8572
        %v8575 = vunpack.c.l.s4 1983009808
        %v8576 = vunpack.c.0.s8 %v8575
        %v8577 = vlaneseq
        %v8578 = vshrl.u32 %v8577, 7
        %v8579 = vsub.s32 %v8576, %v8578
        %v8580 = vrot.slane %v8566, %v8579
        %v8581 = vcombine.low %v8021, %v8151
        %v8582 = vcombine.high %v8021, %v8151
        %v8584 = vunpack.c.l.s4 1983009808
        %v8585 = vunpack.c.0.s8 %v8584
        %v8586 = vlaneseq
        %v8587 = vshrl.u32 %v8586, 7
        %v8588 = vsub.s32 %v8585, %v8587
        %v8589 = vrot.slane %v8581, %v8588
        %v8591 = vunpack.c.l.s4 1983009808
        %v8592 = vunpack.c.0.s8 %v8591
        %v8593 = vlaneseq
        %v8594 = vshrl.u32 %v8593, 7
        %v8595 = vsub.s32 %v8592, %v8594
        %v8596 = vrot.slane %v8582, %v8595
        %v8597 = vcombine.low %v8573, %v8589
        %v8598 = vcombine.high %v8573, %v8589
        %v8600 = vunpack.c.l.s4 1934713408
        %v8601 = vunpack.c.0.s8 %v8600
        %v8602 = vlaneseq
        %v8603 = vshrl.u32 %v8602, 7
        %v8604 = vsub.s32 %v8601, %v8603
        %v8605 = vrot.slane %v8597, %v8604
        %v8607 = vunpack.c.l.s4 1934713408
        %v8608 = vunpack.c.0.s8 %v8607
        %v8609 = vlaneseq
        %v8610 = vshrl.u32 %v8609, 7
        %v8611 = vsub.s32 %v8608, %v8610
        %v8612 = vrot.slane %v8598, %v8611
        %v8613 = vcombine.low %v8580, %v8596
        %v8614 = vcombine.high %v8580, %v8596
        %v8616 = vunpack.c.l.s4 1934713408
        %v8617 = vunpack.c.0.s8 %v8616
        %v8618 = vlaneseq
        %v8619 = vshrl.u32 %v8618, 7
        %v8620 = vsub.s32 %v8617, %v8619
        %v8621 = vrot.slane %v8613, %v8620
        %v8623 = vunpack.c.l.s4 1934713408
        %v8624 = vunpack.c.0.s8 %v8623
        %v8625 = vlaneseq
        %v8626 = vshrl.u32 %v8625, 7
        %v8627 = vsub.s32 %v8624, %v8626
        %v8628 = vrot.slane %v8614, %v8627
        %v8629 = vcombine.high %v8605, 0.0
        %v8630 = vcombine.high %v8612, 0.0
        %v8631 = vcombine.high %v8621, 0.0
        %v8632 = vcombine.high %v8628, 0.0
        %v8633 = vcombine.low %v7959, %v8089
        %v8634 = vcombine.high %v7959, %v8089
        %v8636 = vunpack.c.l.s4 1983009808
        %v8637 = vunpack.c.0.s8 %v8636
        %v8638 = vlaneseq
        %v8639 = vshrl.u32 %v8638, 7
        %v8640 = vsub.s32 %v8637, %v8639
        %v8641 = vrot.slane %v8633, %v8640
        %v8643 = vunpack.c.l.s4 1983009808
        %v8644 = vunpack.c.0.s8 %v8643
        %v8645 = vlaneseq
        %v8646 = vshrl.u32 %v8645, 7
        %v8647 = vsub.s32 %v8644, %v8646
        %v8648 = vrot.slane %v8634, %v8647
        %v8649 = vcombine.low %v8024, %v8154
        %v8650 = vcombine.high %v8024, %v8154
        %v8652 = vunpack.c.l.s4 1983009808
        %v8653 = vunpack.c.0.s8 %v8652
        %v8654 = vlaneseq
        %v8655 = vshrl.u32 %v8654, 7
        %v8656 = vsub.s32 %v8653, %v8655
        %v8657 = vrot.slane %v8649, %v8656
        %v8659 = vunpack.c.l.s4 1983009808
        %v8660 = vunpack.c.0.s8 %v8659
        %v8661 = vlaneseq
        %v8662 = vshrl.u32 %v8661, 7
        %v8663 = vsub.s32 %v8660, %v8662
        %v8664 = vrot.slane %v8650, %v8663
        %v8665 = vcombine.low %v8641, %v8657
        %v8666 = vcombine.high %v8641, %v8657
        %v8668 = vunpack.c.l.s4 1934713408
        %v8669 = vunpack.c.0.s8 %v8668
        %v8670 = vlaneseq
        %v8671 = vshrl.u32 %v8670, 7
        %v8672 = vsub.s32 %v8669, %v8671
        %v8673 = vrot.slane %v8665, %v8672
        %v8675 = vunpack.c.l.s4 1934713408
        %v8676 = vunpack.c.0.s8 %v8675
        %v8677 = vlaneseq
        %v8678 = vshrl.u32 %v8677, 7
        %v8679 = vsub.s32 %v8676, %v8678
        %v8680 = vrot.slane %v8666, %v8679
        %v8681 = vcombine.low %v8648, %v8664
        %v8682 = vcombine.high %v8648, %v8664
        %v8684 = vunpack.c.l.s4 1934713408
        %v8685 = vunpack.c.0.s8 %v8684
        %v8686 = vlaneseq
        %v8687 = vshrl.u32 %v8686, 7
        %v8688 = vsub.s32 %v8685, %v8687
        %v8689 = vrot.slane %v8681, %v8688
        %v8691 = vunpack.c.l.s4 1934713408
        %v8692 = vunpack.c.0.s8 %v8691
        %v8693 = vlaneseq
        %v8694 = vshrl.u32 %v8693, 7
        %v8695 = vsub.s32 %v8692, %v8694
        %v8696 = vrot.slane %v8682, %v8695
        %v8697 = vcombine.high %v8673, 0.0
        %v8698 = vcombine.high %v8680, 0.0
        %v8699 = vcombine.high %v8689, 0.0
        %v8700 = vcombine.high %v8696, 0.0
        %v8701 = vcombine.low %v8197, %v8204
        %v8703 = vunpack.c.l.s4 1983009808
        %v8704 = vunpack.c.0.s8 %v8703
        %v8705 = vlaneseq
        %v8706 = vshrl.u32 %v8705, 7
        %v8707 = vsub.s32 %v8704, %v8706
        %v8708 = vrot.slane %v8701, %v8707
        %v8709 = vcombine.low %v8221, %v8222
        %v8711 = vunpack.c.l.s4 1983009808
        %v8712 = vunpack.c.0.s8 %v8711
        %v8713 = vlaneseq
        %v8714 = vshrl.u32 %v8713, 7
        %v8715 = vsub.s32 %v8712, %v8714
        %v8716 = vrot.slane %v8709, %v8715
        %v8717 = vcombine.low %v8213, %v8220
        %v8719 = vunpack.c.l.s4 1983009808
        %v8720 = vunpack.c.0.s8 %v8719
        %v8721 = vlaneseq
        %v8722 = vshrl.u32 %v8721, 7
        %v8723 = vsub.s32 %v8720, %v8722
        %v8724 = vrot.slane %v8717, %v8723
        %v8725 = vcombine.low %v8223, %v8224
        %v8727 = vunpack.c.l.s4 1983009808
        %v8728 = vunpack.c.0.s8 %v8727
        %v8729 = vlaneseq
        %v8730 = vshrl.u32 %v8729, 7
        %v8731 = vsub.s32 %v8728, %v8730
        %v8732 = vrot.slane %v8725, %v8731
        %v8733 = vcombine.low %v8708, %v8716
        %v8734 = vcombine.high %v8708, %v8716
        %v8736 = vunpack.c.l.s4 1934713408
        %v8737 = vunpack.c.0.s8 %v8736
        %v8738 = vlaneseq
        %v8739 = vshrl.u32 %v8738, 7
        %v8740 = vsub.s32 %v8737, %v8739
        %v8741 = vrot.slane %v8733, %v8740
        %v8743 = vunpack.c.l.s4 1934713408
        %v8744 = vunpack.c.0.s8 %v8743
        %v8745 = vlaneseq
        %v8746 = vshrl.u32 %v8745, 7
        %v8747 = vsub.s32 %v8744, %v8746
        %v8748 = vrot.slane %v8734, %v8747
        %v8749 = vcombine.low %v8724, %v8732
        %v8750 = vcombine.high %v8724, %v8732
        %v8752 = vunpack.c.l.s4 1934713408
        %v8753 = vunpack.c.0.s8 %v8752
        %v8754 = vlaneseq
        %v8755 = vshrl.u32 %v8754, 7
        %v8756 = vsub.s32 %v8753, %v8755
        %v8757 = vrot.slane %v8749, %v8756
        %v8759 = vunpack.c.l.s4 1934713408
        %v8760 = vunpack.c.0.s8 %v8759
        %v8761 = vlaneseq
        %v8762 = vshrl.u32 %v8761, 7
        %v8763 = vsub.s32 %v8760, %v8762
        %v8764 = vrot.slane %v8750, %v8763
        %v8765 = vcombine.low %v8741, %v8757
        %v8766 = vcombine.high %v8741, %v8757
        %v8767 = vcombine.low %v8748, %v8764
        %v8768 = vcombine.high %v8748, %v8764
        %v8769 = vcombine.low %v8265, %v8272
        %v8771 = vunpack.c.l.s4 1983009808
        %v8772 = vunpack.c.0.s8 %v8771
        %v8773 = vlaneseq
        %v8774 = vshrl.u32 %v8773, 7
        %v8775 = vsub.s32 %v8772, %v8774
        %v8776 = vrot.slane %v8769, %v8775
        %v8777 = vcombine.low %v8289, %v8290
        %v8779 = vunpack.c.l.s4 1983009808
        %v8780 = vunpack.c.0.s8 %v8779
        %v8781 = vlaneseq
        %v8782 = vshrl.u32 %v8781, 7
        %v8783 = vsub.s32 %v8780, %v8782
        %v8784 = vrot.slane %v8777, %v8783
        %v8785 = vcombine.low %v8281, %v8288
        %v8787 = vunpack.c.l.s4 1983009808
        %v8788 = vunpack.c.0.s8 %v8787
        %v8789 = vlaneseq
        %v8790 = vshrl.u32 %v8789, 7
        %v8791 = vsub.s32 %v8788, %v8790
        %v8792 = vrot.slane %v8785, %v8791
        %v8793 = vcombine.low %v8291, %v8292
        %v8795 = vunpack.c.l.s4 1983009808
        %v8796 = vunpack.c.0.s8 %v8795
        %v8797 = vlaneseq
        %v8798 = vshrl.u32 %v8797, 7
        %v8799 = vsub.s32 %v8796, %v8798
        %v8800 = vrot.slane %v8793, %v8799
        %v8801 = vcombine.low %v8776, %v8784
        %v8802 = vcombine.high %v8776, %v8784
        %v8804 = vunpack.c.l.s4 1934713408
        %v8805 = vunpack.c.0.s8 %v8804
        %v8806 = vlaneseq
        %v8807 = vshrl.u32 %v8806, 7
        %v8808 = vsub.s32 %v8805, %v8807
        %v8809 = vrot.slane %v8801, %v8808
        %v8811 = vunpack.c.l.s4 1934713408
        %v8812 = vunpack.c.0.s8 %v8811
        %v8813 = vlaneseq
        %v8814 = vshrl.u32 %v8813, 7
        %v8815 = vsub.s32 %v8812, %v8814
        %v8816 = vrot.slane %v8802, %v8815
        %v8817 = vcombine.low %v8792, %v8800
        %v8818 = vcombine.high %v8792, %v8800
        %v8820 = vunpack.c.l.s4 1934713408
        %v8821 = vunpack.c.0.s8 %v8820
        %v8822 = vlaneseq
        %v8823 = vshrl.u32 %v8822, 7
        %v8824 = vsub.s32 %v8821, %v8823
        %v8825 = vrot.slane %v8817, %v8824
        %v8827 = vunpack.c.l.s4 1934713408
        %v8828 = vunpack.c.0.s8 %v8827
        %v8829 = vlaneseq
        %v8830 = vshrl.u32 %v8829, 7
        %v8831 = vsub.s32 %v8828, %v8830
        %v8832 = vrot.slane %v8818, %v8831
        %v8833 = vcombine.low %v8809, %v8825
        %v8834 = vcombine.high %v8809, %v8825
        %v8835 = vcombine.low %v8816, %v8832
        %v8836 = vcombine.high %v8816, %v8832
        %v8837 = vcombine.low %v8333, %v8340
        %v8839 = vunpack.c.l.s4 1983009808
        %v8840 = vunpack.c.0.s8 %v8839
        %v8841 = vlaneseq
        %v8842 = vshrl.u32 %v8841, 7
        %v8843 = vsub.s32 %v8840, %v8842
        %v8844 = vrot.slane %v8837, %v8843
        %v8845 = vcombine.low %v8357, %v8358
        %v8847 = vunpack.c.l.s4 1983009808
        %v8848 = vunpack.c.0.s8 %v8847
        %v8849 = vlaneseq
        %v8850 = vshrl.u32 %v8849, 7
        %v8851 = vsub.s32 %v8848, %v8850
        %v8852 = vrot.slane %v8845, %v8851
        %v8853 = vcombine.low %v8349, %v8356
        %v8855 = vunpack.c.l.s4 1983009808
        %v8856 = vunpack.c.0.s8 %v8855
        %v8857 = vlaneseq
        %v8858 = vshrl.u32 %v8857, 7
        %v8859 = vsub.s32 %v8856, %v8858
        %v8860 = vrot.slane %v8853, %v8859
        %v8861 = vcombine.low %v8359, %v8360
        %v8863 = vunpack.c.l.s4 1983009808
        %v8864 = vunpack.c.0.s8 %v8863
        %v8865 = vlaneseq
        %v8866 = vshrl.u32 %v8865, 7
        %v8867 = vsub.s32 %v8864, %v8866
        %v8868 = vrot.slane %v8861, %v8867
        %v8869 = vcombine.low %v8844, %v8852
        %v8870 = vcombine.high %v8844, %v8852
        %v8872 = vunpack.c.l.s4 1934713408
        %v8873 = vunpack.c.0.s8 %v8872
        %v8874 = vlaneseq
        %v8875 = vshrl.u32 %v8874, 7
        %v8876 = vsub.s32 %v8873, %v8875
        %v8877 = vrot.slane %v8869, %v8876
        %v8879 = vunpack.c.l.s4 1934713408
        %v8880 = vunpack.c.0.s8 %v8879
        %v8881 = vlaneseq
        %v8882 = vshrl.u32 %v8881, 7
        %v8883 = vsub.s32 %v8880, %v8882
        %v8884 = vrot.slane %v8870, %v8883
        %v8885 = vcombine.low %v8860, %v8868
        %v8886 = vcombine.high %v8860, %v8868
        %v8888 = vunpack.c.l.s4 1934713408
        %v8889 = vunpack.c.0.s8 %v8888
        %v8890 = vlaneseq
        %v8891 = vshrl.u32 %v8890, 7
        %v8892 = vsub.s32 %v8889, %v8891
        %v8893 = vrot.slane %v8885, %v8892
        %v8895 = vunpack.c.l.s4 1934713408
        %v8896 = vunpack.c.0.s8 %v8895
        %v8897 = vlaneseq
        %v8898 = vshrl.u32 %v8897, 7
        %v8899 = vsub.s32 %v8896, %v8898
        %v8900 = vrot.slane %v8886, %v8899
        %v8901 = vcombine.low %v8877, %v8893
        %v8902 = vcombine.high %v8877, %v8893
        %v8903 = vcombine.low %v8884, %v8900
        %v8904 = vcombine.high %v8884, %v8900
        %v8905 = vcombine.low %v8401, %v8408
        %v8907 = vunpack.c.l.s4 1983009808
        %v8908 = vunpack.c.0.s8 %v8907
        %v8909 = vlaneseq
        %v8910 = vshrl.u32 %v8909, 7
        %v8911 = vsub.s32 %v8908, %v8910
        %v8912 = vrot.slane %v8905, %v8911
        %v8913 = vcombine.low %v8425, %v8426
        %v8915 = vunpack.c.l.s4 1983009808
        %v8916 = vunpack.c.0.s8 %v8915
        %v8917 = vlaneseq
        %v8918 = vshrl.u32 %v8917, 7
        %v8919 = vsub.s32 %v8916, %v8918
        %v8920 = vrot.slane %v8913, %v8919
        %v8921 = vcombine.low %v8417, %v8424
        %v8923 = vunpack.c.l.s4 1983009808
        %v8924 = vunpack.c.0.s8 %v8923
        %v8925 = vlaneseq
        %v8926 = vshrl.u32 %v8925, 7
        %v8927 = vsub.s32 %v8924, %v8926
        %v8928 = vrot.slane %v8921, %v8927
        %v8929 = vcombine.low %v8427, %v8428
        %v8931 = vunpack.c.l.s4 1983009808
        %v8932 = vunpack.c.0.s8 %v8931
        %v8933 = vlaneseq
        %v8934 = vshrl.u32 %v8933, 7
        %v8935 = vsub.s32 %v8932, %v8934
        %v8936 = vrot.slane %v8929, %v8935
        %v8937 = vcombine.low %v8912, %v8920
        %v8938 = vcombine.high %v8912, %v8920
        %v8940 = vunpack.c.l.s4 1934713408
        %v8941 = vunpack.c.0.s8 %v8940
        %v8942 = vlaneseq
        %v8943 = vshrl.u32 %v8942, 7
        %v8944 = vsub.s32 %v8941, %v8943
        %v8945 = vrot.slane %v8937, %v8944
        %v8947 = vunpack.c.l.s4 1934713408
        %v8948 = vunpack.c.0.s8 %v8947
        %v8949 = vlaneseq
        %v8950 = vshrl.u32 %v8949, 7
        %v8951 = vsub.s32 %v8948, %v8950
        %v8952 = vrot.slane %v8938, %v8951
        %v8953 = vcombine.low %v8928, %v8936
        %v8954 = vcombine.high %v8928, %v8936
        %v8956 = vunpack.c.l.s4 1934713408
        %v8957 = vunpack.c.0.s8 %v8956
        %v8958 = vlaneseq
        %v8959 = vshrl.u32 %v8958, 7
        %v8960 = vsub.s32 %v8957, %v8959
        %v8961 = vrot.slane %v8953, %v8960
        %v8963 = vunpack.c.l.s4 1934713408
        %v8964 = vunpack.c.0.s8 %v8963
        %v8965 = vlaneseq
        %v8966 = vshrl.u32 %v8965, 7
        %v8967 = vsub.s32 %v8964, %v8966
        %v8968 = vrot.slane %v8954, %v8967
        %v8969 = vcombine.low %v8945, %v8961
        %v8970 = vcombine.high %v8945, %v8961
        %v8971 = vcombine.low %v8952, %v8968
        %v8972 = vcombine.high %v8952, %v8968
        %v8973 = vcombine.low %v8469, %v8476
        %v8975 = vunpack.c.l.s4 1983009808
        %v8976 = vunpack.c.0.s8 %v8975
        %v8977 = vlaneseq
        %v8978 = vshrl.u32 %v8977, 7
        %v8979 = vsub.s32 %v8976, %v8978
        %v8980 = vrot.slane %v8973, %v8979
        %v8981 = vcombine.low %v8493, %v8494
        %v8983 = vunpack.c.l.s4 1983009808
        %v8984 = vunpack.c.0.s8 %v8983
        %v8985 = vlaneseq
        %v8986 = vshrl.u32 %v8985, 7
        %v8987 = vsub.s32 %v8984, %v8986
        %v8988 = vrot.slane %v8981, %v8987
        %v8989 = vcombine.low %v8485, %v8492
        %v8991 = vunpack.c.l.s4 1983009808
        %v8992 = vunpack.c.0.s8 %v8991
        %v8993 = vlaneseq
        %v8994 = vshrl.u32 %v8993, 7
        %v8995 = vsub.s32 %v8992, %v8994
        %v8996 = vrot.slane %v8989, %v8995
        %v8997 = vcombine.low %v8495, %v8496
        %v8999 = vunpack.c.l.s4 1983009808
        %v9000 = vunpack.c.0.s8 %v8999
        %v9001 = vlaneseq
        %v9002 = vshrl.u32 %v9001, 7
        %v9003 = vsub.s32 %v9000, %v9002
        %v9004 = vrot.slane %v8997, %v9003
        %v9005 = vcombine.low %v8980, %v8988
        %v9006 = vcombine.high %v8980, %v8988
        %v9008 = vunpack.c.l.s4 1934713408
        %v9009 = vunpack.c.0.s8 %v9008
        %v9010 = vlaneseq
        %v9011 = vshrl.u32 %v9010, 7
        %v9012 = vsub.s32 %v9009, %v9011
        %v9013 = vrot.slane %v9005, %v9012
        %v9015 = vunpack.c.l.s4 1934713408
        %v9016 = vunpack.c.0.s8 %v9015
        %v9017 = vlaneseq
        %v9018 = vshrl.u32 %v9017, 7
        %v9019 = vsub.s32 %v9016, %v9018
        %v9020 = vrot.slane %v9006, %v9019
        %v9021 = vcombine.low %v8996, %v9004
        %v9022 = vcombine.high %v8996, %v9004
        %v9024 = vunpack.c.l.s4 1934713408
        %v9025 = vunpack.c.0.s8 %v9024
        %v9026 = vlaneseq
        %v9027 = vshrl.u32 %v9026, 7
        %v9028 = vsub.s32 %v9025, %v9027
        %v9029 = vrot.slane %v9021, %v9028
        %v9031 = vunpack.c.l.s4 1934713408
        %v9032 = vunpack.c.0.s8 %v9031
        %v9033 = vlaneseq
        %v9034 = vshrl.u32 %v9033, 7
        %v9035 = vsub.s32 %v9032, %v9034
        %v9036 = vrot.slane %v9022, %v9035
        %v9037 = vcombine.low %v9013, %v9029
        %v9038 = vcombine.high %v9013, %v9029
        %v9039 = vcombine.low %v9020, %v9036
        %v9040 = vcombine.high %v9020, %v9036
        %v9041 = vcombine.low %v8537, %v8544
        %v9043 = vunpack.c.l.s4 1983009808
        %v9044 = vunpack.c.0.s8 %v9043
        %v9045 = vlaneseq
        %v9046 = vshrl.u32 %v9045, 7
        %v9047 = vsub.s32 %v9044, %v9046
        %v9048 = vrot.slane %v9041, %v9047
        %v9049 = vcombine.low %v8561, %v8562
        %v9051 = vunpack.c.l.s4 1983009808
        %v9052 = vunpack.c.0.s8 %v9051
        %v9053 = vlaneseq
        %v9054 = vshrl.u32 %v9053, 7
        %v9055 = vsub.s32 %v9052, %v9054
        %v9056 = vrot.slane %v9049, %v9055
        %v9057 = vcombine.low %v8553, %v8560
        %v9059 = vunpack.c.l.s4 1983009808
        %v9060 = vunpack.c.0.s8 %v9059
        %v9061 = vlaneseq
        %v9062 = vshrl.u32 %v9061, 7
        %v9063 = vsub.s32 %v9060, %v9062
        %v9064 = vrot.slane %v9057, %v9063
        %v9065 = vcombine.low %v8563, %v8564
        %v9067 = vunpack.c.l.s4 1983009808
        %v9068 = vunpack.c.0.s8 %v9067
        %v9069 = vlaneseq
        %v9070 = vshrl.u32 %v9069, 7
        %v9071 = vsub.s32 %v9068, %v9070
        %v9072 = vrot.slane %v9065, %v9071
        %v9073 = vcombine.low %v9048, %v9056
        %v9074 = vcombine.high %v9048, %v9056
        %v9076 = vunpack.c.l.s4 1934713408
        %v9077 = vunpack.c.0.s8 %v9076
        %v9078 = vlaneseq
        %v9079 = vshrl.u32 %v9078, 7
        %v9080 = vsub.s32 %v9077, %v9079
        %v9081 = vrot.slane %v9073, %v9080
        %v9083 = vunpack.c.l.s4 1934713408
        %v9084 = vunpack.c.0.s8 %v9083
        %v9085 = vlaneseq
        %v9086 = vshrl.u32 %v9085, 7
        %v9087 = vsub.s32 %v9084, %v9086
        %v9088 = vrot.slane %v9074, %v9087
        %v9089 = vcombine.low %v9064, %v9072
        %v9090 = vcombine.high %v9064, %v9072
        %v9092 = vunpack.c.l.s4 1934713408
        %v9093 = vunpack.c.0.s8 %v9092
        %v9094 = vlaneseq
        %v9095 = vshrl.u32 %v9094, 7
        %v9096 = vsub.s32 %v9093, %v9095
        %v9097 = vrot.slane %v9089, %v9096
        %v9099 = vunpack.c.l.s4 1934713408
        %v9100 = vunpack.c.0.s8 %v9099
        %v9101 = vlaneseq
        %v9102 = vshrl.u32 %v9101, 7
        %v9103 = vsub.s32 %v9100, %v9102
        %v9104 = vrot.slane %v9090, %v9103
        %v9105 = vcombine.low %v9081, %v9097
        %v9106 = vcombine.high %v9081, %v9097
        %v9107 = vcombine.low %v9088, %v9104
        %v9108 = vcombine.high %v9088, %v9104
        %v9109 = vcombine.low %v8605, %v8612
        %v9111 = vunpack.c.l.s4 1983009808
        %v9112 = vunpack.c.0.s8 %v9111
        %v9113 = vlaneseq
        %v9114 = vshrl.u32 %v9113, 7
        %v9115 = vsub.s32 %v9112, %v9114
        %v9116 = vrot.slane %v9109, %v9115
        %v9117 = vcombine.low %v8629, %v8630
        %v9119 = vunpack.c.l.s4 1983009808
        %v9120 = vunpack.c.0.s8 %v9119
        %v9121 = vlaneseq
        %v9122 = vshrl.u32 %v9121, 7
        %v9123 = vsub.s32 %v9120, %v9122
        %v9124 = vrot.slane %v9117, %v9123
        %v9125 = vcombine.low %v8621, %v8628
        %v9127 = vunpack.c.l.s4 1983009808
        %v9128 = vunpack.c.0.s8 %v9127
        %v9129 = vlaneseq
        %v9130 = vshrl.u32 %v9129, 7
        %v9131 = vsub.s32 %v9128, %v9130
        %v9132 = vrot.slane %v9125, %v9131
        %v9133 = vcombine.low %v8631, %v8632
        %v9135 = vunpack.c.l.s4 1983009808
        %v9136 = vunpack.c.0.s8 %v9135
        %v9137 = vlaneseq
        %v9138 = vshrl.u32 %v9137, 7
        %v9139 = vsub.s32 %v9136, %v9138
        %v9140 = vrot.slane %v9133, %v9139
        %v9141 = vcombine.low %v9116, %v9124
        %v9142 = vcombine.high %v9116, %v9124
        %v9144 = vunpack.c.l.s4 1934713408
        %v9145 = vunpack.c.0.s8 %v9144
        %v9146 = vlaneseq
        %v9147 = vshrl.u32 %v9146, 7
        %v9148 = vsub.s32 %v9145, %v9147
        %v9149 = vrot.slane %v9141, %v9148
        %v9151 = vunpack.c.l.s4 1934713408
        %v9152 = vunpack.c.0.s8 %v9151
        %v9153 = vlaneseq
        %v9154 = vshrl.u32 %v9153, 7
        %v9155 = vsub.s32 %v9152, %v9154
        %v9156 = vrot.slane %v9142, %v9155
        %v9157 = vcombine.low %v9132, %v9140
        %v9158 = vcombine.high %v9132, %v9140
        %v9160 = vunpack.c.l.s4 1934713408
        %v9161 = vunpack.c.0.s8 %v9160
        %v9162 = vlaneseq
        %v9163 = vshrl.u32 %v9162, 7
        %v9164 = vsub.s32 %v9161, %v9163
        %v9165 = vrot.slane %v9157, %v9164
        %v9167 = vunpack.c.l.s4 1934713408
        %v9168 = vunpack.c.0.s8 %v9167
        %v9169 = vlaneseq
        %v9170 = vshrl.u32 %v9169, 7
        %v9171 = vsub.s32 %v9168, %v9170
        %v9172 = vrot.slane %v9158, %v9171
        %v9173 = vcombine.low %v9149, %v9165
        %v9174 = vcombine.high %v9149, %v9165
        %v9175 = vcombine.low %v9156, %v9172
        %v9176 = vcombine.high %v9156, %v9172
        %v9177 = vcombine.low %v8673, %v8680
        %v9179 = vunpack.c.l.s4 1983009808
        %v9180 = vunpack.c.0.s8 %v9179
        %v9181 = vlaneseq
        %v9182 = vshrl.u32 %v9181, 7
        %v9183 = vsub.s32 %v9180, %v9182
        %v9184 = vrot.slane %v9177, %v9183
        %v9185 = vcombine.low %v8697, %v8698
        %v9187 = vunpack.c.l.s4 1983009808
        %v9188 = vunpack.c.0.s8 %v9187
        %v9189 = vlaneseq
        %v9190 = vshrl.u32 %v9189, 7
        %v9191 = vsub.s32 %v9188, %v9190
        %v9192 = vrot.slane %v9185, %v9191
        %v9193 = vcombine.low %v8689, %v8696
        %v9195 = vunpack.c.l.s4 1983009808
        %v9196 = vunpack.c.0.s8 %v9195
        %v9197 = vlaneseq
        %v9198 = vshrl.u32 %v9197, 7
        %v9199 = vsub.s32 %v9196, %v9198
        %v9200 = vrot.slane %v9193, %v9199
        %v9201 = vcombine.low %v8699, %v8700
        %v9203 = vunpack.c.l.s4 1983009808
        %v9204 = vunpack.c.0.s8 %v9203
        %v9205 = vlaneseq
        %v9206 = vshrl.u32 %v9205, 7
        %v9207 = vsub.s32 %v9204, %v9206
        %v9208 = vrot.slane %v9201, %v9207
        %v9209 = vcombine.low %v9184, %v9192
        %v9210 = vcombine.high %v9184, %v9192
        %v9212 = vunpack.c.l.s4 1934713408
        %v9213 = vunpack.c.0.s8 %v9212
        %v9214 = vlaneseq
        %v9215 = vshrl.u32 %v9214, 7
        %v9216 = vsub.s32 %v9213, %v9215
        %v9217 = vrot.slane %v9209, %v9216
        %v9219 = vunpack.c.l.s4 1934713408
        %v9220 = vunpack.c.0.s8 %v9219
        %v9221 = vlaneseq
        %v9222 = vshrl.u32 %v9221, 7
        %v9223 = vsub.s32 %v9220, %v9222
        %v9224 = vrot.slane %v9210, %v9223
        %v9225 = vcombine.low %v9200, %v9208
        %v9226 = vcombine.high %v9200, %v9208
        %v9228 = vunpack.c.l.s4 1934713408
        %v9229 = vunpack.c.0.s8 %v9228
        %v9230 = vlaneseq
        %v9231 = vshrl.u32 %v9230, 7
        %v9232 = vsub.s32 %v9229, %v9231
        %v9233 = vrot.slane %v9225, %v9232
        %v9235 = vunpack.c.l.s4 1934713408
        %v9236 = vunpack.c.0.s8 %v9235
        %v9237 = vlaneseq
        %v9238 = vshrl.u32 %v9237, 7
        %v9239 = vsub.s32 %v9236, %v9238
        %v9240 = vrot.slane %v9226, %v9239
        %v9241 = vcombine.low %v9217, %v9233
        %v9242 = vcombine.high %v9217, %v9233
        %v9243 = vcombine.low %v9224, %v9240
        %v9244 = vcombine.high %v9224, %v9240
        %9253 = vrot.lane.b32.xlu0 %v8766, 32
        %v9254 = vpop.permute.xlu0 %9253
        %9255 = vrot.lane.b32.xlu0 %v8834, 32
        %v9256 = vpop.permute.xlu0 %9255
        %9257 = vrot.lane.b32.xlu0 %v8902, 32
        %v9258 = vpop.permute.xlu0 %9257
        %9259 = vrot.lane.b32.xlu0 %v8970, 32
        %v9260 = vpop.permute.xlu0 %9259
        %9261 = vrot.lane.b32.xlu0 %v9038, 32
        %v9262 = vpop.permute.xlu0 %9261
        %9263 = vrot.lane.b32.xlu0 %v9106, 32
        %v9264 = vpop.permute.xlu0 %9263
        %9265 = vrot.lane.b32.xlu0 %v9174, 32
        %v9266 = vpop.permute.xlu0 %9265
        %9267 = vrot.lane.b32.xlu0 %v9242, 32
        %v9268 = vpop.permute.xlu0 %9267
        %9285 = vrot.lane.b32.xlu0 %v8767, 64
        %v9286 = vpop.permute.xlu0 %9285
        %9287 = vrot.lane.b32.xlu0 %v8835, 64
        %v9288 = vpop.permute.xlu0 %9287
        %9289 = vrot.lane.b32.xlu0 %v8903, 64
        %v9290 = vpop.permute.xlu0 %9289
        %9291 = vrot.lane.b32.xlu0 %v8971, 64
        %v9292 = vpop.permute.xlu0 %9291
        %9293 = vrot.lane.b32.xlu0 %v9039, 64
        %v9294 = vpop.permute.xlu0 %9293
        %9295 = vrot.lane.b32.xlu0 %v9107, 64
        %v9296 = vpop.permute.xlu0 %9295
        %9297 = vrot.lane.b32.xlu0 %v9175, 64
        %v9298 = vpop.permute.xlu0 %9297
        %9299 = vrot.lane.b32.xlu0 %v9243, 64
        %v9300 = vpop.permute.xlu0 %9299
        %9317 = vrot.lane.b32.xlu0 %v8768, 96
        %v9318 = vpop.permute.xlu0 %9317
        %9319 = vrot.lane.b32.xlu0 %v8836, 96
        %v9320 = vpop.permute.xlu0 %9319
        %9321 = vrot.lane.b32.xlu0 %v8904, 96
        %v9322 = vpop.permute.xlu0 %9321
        %9323 = vrot.lane.b32.xlu0 %v8972, 96
        %v9324 = vpop.permute.xlu0 %9323
        %9325 = vrot.lane.b32.xlu0 %v9040, 96
        %v9326 = vpop.permute.xlu0 %9325
        %9327 = vrot.lane.b32.xlu0 %v9108, 96
        %v9328 = vpop.permute.xlu0 %9327
        %9329 = vrot.lane.b32.xlu0 %v9176, 96
        %v9330 = vpop.permute.xlu0 %9329
        %9331 = vrot.lane.b32.xlu0 %v9244, 96
        %v9332 = vpop.permute.xlu0 %9331
        %v9341 = vsel %vm7156, %v8765, %v9254
        %v9342 = vsel %vm7156, %v8833, %v9256
        %v9343 = vsel %vm7156, %v8901, %v9258
        %v9344 = vsel %vm7156, %v8969, %v9260
        %v9345 = vsel %vm7156, %v9037, %v9262
        %v9346 = vsel %vm7156, %v9105, %v9264
        %v9347 = vsel %vm7156, %v9173, %v9266
        %v9348 = vsel %vm7156, %v9241, %v9268
        %vm9349 = vcmask 523264
        %v9350 = vsel %vm9349, %v9341, %v9286
        %v9351 = vsel %vm9349, %v9342, %v9288
        %v9352 = vsel %vm9349, %v9343, %v9290
        %v9353 = vsel %vm9349, %v9344, %v9292
        %v9354 = vsel %vm9349, %v9345, %v9294
        %v9355 = vsel %vm9349, %v9346, %v9296
        %v9356 = vsel %vm9349, %v9347, %v9298
        %v9357 = vsel %vm9349, %v9348, %v9300
        %vm9358 = vcmask 785408
        %v9359 = vsel %vm9358, %v9350, %v9318
        %v9360 = vsel %vm9358, %v9351, %v9320
        %v9361 = vsel %vm9358, %v9352, %v9322
        %v9362 = vsel %vm9358, %v9353, %v9324
        %v9363 = vsel %vm9358, %v9354, %v9326
        %v9364 = vsel %vm9358, %v9355, %v9328
        %v9365 = vsel %vm9358, %v9356, %v9330
        %v9366 = vsel %vm9358, %v9357, %v9332
        %v9367 = vpack.c.bf16 %v9360, %v9359
        %v9368 = vpack.c.bf16 %v9362, %v9361
        %v9369 = vpack.c.bf16 %v9364, %v9363
        %v9370 = vpack.c.bf16 %v9366, %v9365
        %v9371 = vld [vmem:[#allocation13] sm:$0xf]
        %v9372 = vld [vmem:[#allocation13 + $0x4] sm:$0xf]
        %v9373 = vld [vmem:[#allocation13 + $0x8] sm:$0xf]
        %v9374 = vld [vmem:[#allocation13 + $0xc] sm:$0xf]
        %v9375 = vld [vmem:[#allocation13 + $0x10] sm:$0xf]
        %v9376 = vld [vmem:[#allocation13 + $0x14] sm:$0xf]
        %v9377 = vld [vmem:[#allocation13 + $0x18] sm:$0xf]
        %v9378 = vld [vmem:[#allocation13 + $0x1c] sm:$0xf]
        %v9379 = vld [vmem:[#allocation13 + $0x20] sm:$0xf]
        %v9380 = vld [vmem:[#allocation13 + $0x24] sm:$0xf]
        %v9381 = vld [vmem:[#allocation13 + $0x28] sm:$0xf]
        %v9382 = vld [vmem:[#allocation13 + $0x2c] sm:$0xf]
        %v9383 = vld [vmem:[#allocation13 + $0x30] sm:$0xf]
        %v9384 = vld [vmem:[#allocation13 + $0x34] sm:$0xf]
        %v9385 = vld [vmem:[#allocation13 + $0x38] sm:$0xf]
        %v9386 = vld [vmem:[#allocation13 + $0x3c] sm:$0xf]
        %v9387 = vld [vmem:[%s7] sm:$0x1]
        %v9389 = vlaneseq
        %v9390 = vshrl.u32 %v9389, 7
        %v9391 = vsub.s32 0, %v9390
        %v9392 = vrot.slane %v9387, %v9391
        %v9410 = vunpack.c.l.b16 %v9371
        %v9411 = vunpack.c.l.b16 %v9372
        %v9412 = vunpack.c.l.b16 %v9373
        %v9413 = vunpack.c.l.b16 %v9374
        %v9414 = vunpack.c.l.b16 %v9375
        %v9415 = vunpack.c.l.b16 %v9376
        %v9416 = vunpack.c.l.b16 %v9377
        %v9417 = vunpack.c.l.b16 %v9378
        %v9418 = vunpack.c.l.b16 %v9379
        %v9419 = vunpack.c.l.b16 %v9380
        %v9420 = vunpack.c.l.b16 %v9381
        %v9421 = vunpack.c.l.b16 %v9382
        %v9422 = vunpack.c.l.b16 %v9383
        %v9423 = vunpack.c.l.b16 %v9384
        %v9424 = vunpack.c.l.b16 %v9385
        %v9425 = vunpack.c.l.b16 %v9386
        %v9426 = vpack.c.b16 %v9411, %v9410
        %v9427 = vpack.c.b16 %v9413, %v9412
        %v9428 = vpack.c.b16 %v9415, %v9414
        %v9429 = vpack.c.b16 %v9417, %v9416
        %v9430 = vpack.c.b16 %v9419, %v9418
        %v9431 = vpack.c.b16 %v9421, %v9420
        %v9432 = vpack.c.b16 %v9423, %v9422
        %v9433 = vpack.c.b16 %v9425, %v9424
        %9442 = vmatprep.subr.bf16.mxu0 0
        %9443 = vmatpush1.bf16.msra.mxu0 %v9426
        %9444 = vmatprep.subr.bf16.mxu0 0
        %9445 = vmatpush1.bf16.msra.mxu0 %v9427
        %9446 = vmatprep.subr.bf16.mxu0 0
        %9447 = vmatpush1.bf16.msra.mxu0 %v9428
        %9448 = vmatprep.subr.bf16.mxu0 0
        %9449 = vmatpush1.bf16.msra.mxu0 %v9429
        %9450 = vmatprep.subr.bf16.mxu0 0
        %9451 = vmatpush1.bf16.msra.mxu0 %v9430
        %9452 = vmatprep.subr.bf16.mxu0 0
        %9453 = vmatpush1.bf16.msra.mxu0 %v9431
        %9454 = vmatprep.subr.bf16.mxu0 0
        %9455 = vmatpush1.bf16.msra.mxu0 %v9432
        %9456 = vmatprep.subr.bf16.mxu0 0
        %9457 = vmatpush1.bf16.msra.mxu0 %v9433
        %9458 = vmatprep.subr.bf16.mxu0 0
        %9459 = vmatpush1.bf16.msra.mxu0 0
        %9460 = vmatprep.subr.bf16.mxu0 0
        %9461 = vmatpush1.bf16.msra.mxu0 0
        %9462 = vmatprep.subr.bf16.mxu0 0
        %9463 = vmatpush1.bf16.msra.mxu0 0
        %9464 = vmatprep.subr.bf16.mxu0 0
        %9465 = vmatpush1.bf16.msra.mxu0 0
        %9466 = vmatprep.subr.bf16.mxu0 0
        %9467 = vmatpush1.bf16.msra.mxu0 0
        %9468 = vmatprep.subr.bf16.mxu0 0
        %9469 = vmatpush1.bf16.msra.mxu0 0
        %9470 = vmatprep.subr.bf16.mxu0 0
        %9471 = vmatpush1.bf16.msra.mxu0 0
        %9472 = vmatprep.subr.bf16.mxu0 0
        %9473 = vmatpush1.bf16.msra.mxu0 0
        %9474 = vmatprep.mubr.bf16.mxu0 0
        %9475 = vmatmul.mubr.bf16.gmra.mrb[0].mxu0 %v9367
        %v9476 = vpop.f32.mrb[0].mxu0
        %v9477 = vadd.f32 %v9392, %v9476
        %v9478 = vpop.f32.mrb[0].mxu0
        %v9479 = vpop.f32.mrb[0].mxu0
        %v9480 = vadd.f32 %v9392, %v9479
        %v9481 = vpop.f32.mrb[0].mxu0
        %9482 = vmatprep.mubr.bf16.mxu0 0
        %9483 = vmatmul.mubr.bf16.gmra.mrb[0].mxu0 %v9368
        %v9484 = vpop.f32.mrb[0].mxu0
        %v9485 = vadd.f32 %v9392, %v9484
        %v9486 = vpop.f32.mrb[0].mxu0
        %v9487 = vpop.f32.mrb[0].mxu0
        %v9488 = vadd.f32 %v9392, %v9487
        %v9489 = vpop.f32.mrb[0].mxu0
        %9490 = vmatprep.mubr.bf16.mxu0 0
        %9491 = vmatmul.mubr.bf16.gmra.mrb[0].mxu0 %v9369
        %v9492 = vpop.f32.mrb[0].mxu0
        %v9493 = vadd.f32 %v9392, %v9492
        %v9494 = vpop.f32.mrb[0].mxu0
        %v9495 = vpop.f32.mrb[0].mxu0
        %v9496 = vadd.f32 %v9392, %v9495
        %v9497 = vpop.f32.mrb[0].mxu0
        %9498 = vmatprep.mubr.bf16.mxu0 0
        %9499 = vmatmul.mubr.bf16.gmra.mrb[0].mxu0 %v9370
        %v9500 = vpop.f32.mrb[0].mxu0
        %v9501 = vadd.f32 %v9392, %v9500
        %v9502 = vpop.f32.mrb[0].mxu0
        %v9503 = vpop.f32.mrb[0].mxu0
        %v9504 = vadd.f32 %v9392, %v9503
        %v9505 = vpop.f32.mrb[0].mxu0
        %9506 = vdwg.mxu0
        %v9507 = vadd.f32 %v9477, %v757
        %v9508 = vadd.f32 %v9480, %v758
        %v9509 = vadd.f32 %v9485, %v759
        %v9510 = vadd.f32 %v9488, %v760
        %v9511 = vadd.f32 %v9493, %v761
        %v9512 = vadd.f32 %v9496, %v762
        %v9513 = vadd.f32 %v9501, %v763
        %v9514 = vadd.f32 %v9504, %v764
        %v9515 = vld [vmem:[%s8] sm:$0x1]
        %v9516 = vld [vmem:[%s9] sm:$0x1]
        %9517 = vadd.xlane.f32.xlu0 %v9507
        %v9518 = vpop.xlane.xlu0 %9517
        %9519 = vadd.xlane.f32.xlu0 %v9508
        %v9520 = vpop.xlane.xlu0 %9519
        %9521 = vadd.xlane.f32.xlu0 %v9509
        %v9522 = vpop.xlane.xlu0 %9521
        %9523 = vadd.xlane.f32.xlu0 %v9510
        %v9524 = vpop.xlane.xlu0 %9523
        %9525 = vadd.xlane.f32.xlu0 %v9511
        %v9526 = vpop.xlane.xlu0 %9525
        %9527 = vadd.xlane.f32.xlu0 %v9512
        %v9528 = vpop.xlane.xlu0 %9527
        %9529 = vadd.xlane.f32.xlu0 %v9513
        %v9530 = vpop.xlane.xlu0 %9529
        %9531 = vadd.xlane.f32.xlu0 %v9514
        %v9532 = vpop.xlane.xlu0 %9531
        %v9533 = vrcp.pop 128.0
        %v9534 = vmul.f32 %v9518, %v9533
        %v9535 = vmul.f32 %v9520, %v9533
        %v9536 = vmul.f32 %v9522, %v9533
        %v9537 = vmul.f32 %v9524, %v9533
        %v9538 = vmul.f32 %v9526, %v9533
        %v9539 = vmul.f32 %v9528, %v9533
        %v9540 = vmul.f32 %v9530, %v9533
        %v9541 = vmul.f32 %v9532, %v9533
        %v9542 = vsub.f32 %v9507, %v9534
        %v9543 = vsub.f32 %v9508, %v9535
        %v9544 = vsub.f32 %v9509, %v9536
        %v9545 = vsub.f32 %v9510, %v9537
        %v9546 = vsub.f32 %v9511, %v9538
        %v9547 = vsub.f32 %v9512, %v9539
        %v9548 = vsub.f32 %v9513, %v9540
        %v9549 = vsub.f32 %v9514, %v9541
        %v9550 = vmul.f32 %v9542, %v9542
        %v9551 = vmul.f32 %v9543, %v9543
        %v9552 = vmul.f32 %v9544, %v9544
        %v9553 = vmul.f32 %v9545, %v9545
        %v9554 = vmul.f32 %v9546, %v9546
        %v9555 = vmul.f32 %v9547, %v9547
        %v9556 = vmul.f32 %v9548, %v9548
        %v9557 = vmul.f32 %v9549, %v9549
        %9558 = vadd.xlane.f32.xlu0 %v9550
        %v9559 = vpop.xlane.xlu0 %9558
        %9560 = vadd.xlane.f32.xlu0 %v9551
        %v9561 = vpop.xlane.xlu0 %9560
        %9562 = vadd.xlane.f32.xlu0 %v9552
        %v9563 = vpop.xlane.xlu0 %9562
        %9564 = vadd.xlane.f32.xlu0 %v9553
        %v9565 = vpop.xlane.xlu0 %9564
        %9566 = vadd.xlane.f32.xlu0 %v9554
        %v9567 = vpop.xlane.xlu0 %9566
        %9568 = vadd.xlane.f32.xlu0 %v9555
        %v9569 = vpop.xlane.xlu0 %9568
        %9570 = vadd.xlane.f32.xlu0 %v9556
        %v9571 = vpop.xlane.xlu0 %9570
        %9572 = vadd.xlane.f32.xlu0 %v9557
        %v9573 = vpop.xlane.xlu0 %9572
        %v9574 = vmul.f32 %v9559, %v9533
        %v9575 = vmul.f32 %v9561, %v9533
        %v9576 = vmul.f32 %v9563, %v9533
        %v9577 = vmul.f32 %v9565, %v9533
        %v9578 = vmul.f32 %v9567, %v9533
        %v9579 = vmul.f32 %v9569, %v9533
        %v9580 = vmul.f32 %v9571, %v9533
        %v9581 = vmul.f32 %v9573, %v9533
        %v9582 = vadd.f32 %v9574, 1e-05
        %v9583 = vadd.f32 %v9575, 1e-05
        %v9584 = vadd.f32 %v9576, 1e-05
        %v9585 = vadd.f32 %v9577, 1e-05
        %v9586 = vadd.f32 %v9578, 1e-05
        %v9587 = vadd.f32 %v9579, 1e-05
        %v9588 = vadd.f32 %v9580, 1e-05
        %v9589 = vadd.f32 %v9581, 1e-05
        %v9590 = vrsqrt.pop %v9582
        %v9591 = vrsqrt.pop %v9583
        %v9592 = vrsqrt.pop %v9584
        %v9593 = vrsqrt.pop %v9585
        %v9594 = vrsqrt.pop %v9586
        %v9595 = vrsqrt.pop %v9587
        %v9596 = vrsqrt.pop %v9588
        %v9597 = vrsqrt.pop %v9589
        %v9598 = vmul.f32 %v9542, %v9590
        %v9599 = vmul.f32 %v9543, %v9591
        %v9600 = vmul.f32 %v9544, %v9592
        %v9601 = vmul.f32 %v9545, %v9593
        %v9602 = vmul.f32 %v9546, %v9594
        %v9603 = vmul.f32 %v9547, %v9595
        %v9604 = vmul.f32 %v9548, %v9596
        %v9605 = vmul.f32 %v9549, %v9597
        %v9607 = vlaneseq
        %v9608 = vshrl.u32 %v9607, 7
        %v9609 = vsub.s32 0, %v9608
        %v9610 = vrot.slane %v9515, %v9609
        %v9612 = vmul.f32 %v9598, %v9610
        %v9613 = vmul.f32 %v9599, %v9610
        %v9614 = vmul.f32 %v9600, %v9610
        %v9615 = vmul.f32 %v9601, %v9610
        %v9616 = vmul.f32 %v9602, %v9610
        %v9617 = vmul.f32 %v9603, %v9610
        %v9618 = vmul.f32 %v9604, %v9610
        %v9619 = vmul.f32 %v9605, %v9610
        %v9621 = vlaneseq
        %v9622 = vshrl.u32 %v9621, 7
        %v9623 = vsub.s32 0, %v9622
        %v9624 = vrot.slane %v9516, %v9623
        %v9626 = vadd.f32 %v9612, %v9624
        %v9627 = vadd.f32 %v9613, %v9624
        %v9628 = vadd.f32 %v9614, %v9624
        %v9629 = vadd.f32 %v9615, %v9624
        %v9630 = vadd.f32 %v9616, %v9624
        %v9631 = vadd.f32 %v9617, %v9624
        %v9632 = vadd.f32 %v9618, %v9624
        %v9633 = vadd.f32 %v9619, %v9624
        %v9634 = vpack.c.bf16 %v9627, %v9626
        %v9635 = vpack.c.bf16 %v9629, %v9628
        %v9636 = vpack.c.bf16 %v9631, %v9630
        %v9637 = vpack.c.bf16 %v9633, %v9632
        %v9638 = vld [vmem:[%s13] sm:$0x1]
        %v9640 = vlaneseq
        %v9641 = vshrl.u32 %v9640, 7
        %v9642 = vsub.s32 0, %v9641
        %v9643 = vrot.slane %v9638, %v9642
        %v9645 = vld [vmem:[#allocation14] sm:$0xff]
        %v9646 = vld [vmem:[#allocation14 + $0x8] sm:$0xff]
        %v9647 = vld [vmem:[#allocation14 + $0x10] sm:$0xff]
        %v9648 = vld [vmem:[#allocation14 + $0x18] sm:$0xff]
        %v9649 = vld [vmem:[#allocation14 + $0x20] sm:$0xff]
        %v9650 = vld [vmem:[#allocation14 + $0x28] sm:$0xff]
        %v9651 = vld [vmem:[#allocation14 + $0x30] sm:$0xff]
        %v9652 = vld [vmem:[#allocation14 + $0x38] sm:$0xff]
        %v9653 = vld [vmem:[#allocation14 + $0x40] sm:$0xff]
        %v9654 = vld [vmem:[#allocation14 + $0x48] sm:$0xff]
        %v9655 = vld [vmem:[#allocation14 + $0x50] sm:$0xff]
        %v9656 = vld [vmem:[#allocation14 + $0x58] sm:$0xff]
        %v9657 = vld [vmem:[#allocation14 + $0x60] sm:$0xff]
        %v9658 = vld [vmem:[#allocation14 + $0x68] sm:$0xff]
        %v9659 = vld [vmem:[#allocation14 + $0x70] sm:$0xff]
        %v9660 = vld [vmem:[#allocation14 + $0x78] sm:$0xff]
        %v9661 = vld [vmem:[#allocation14 + $0x80] sm:$0xff]
        %v9662 = vld [vmem:[#allocation14 + $0x88] sm:$0xff]
        %v9663 = vld [vmem:[#allocation14 + $0x90] sm:$0xff]
        %v9664 = vld [vmem:[#allocation14 + $0x98] sm:$0xff]
        %v9665 = vld [vmem:[#allocation14 + $0xa0] sm:$0xff]
        %v9666 = vld [vmem:[#allocation14 + $0xa8] sm:$0xff]
        %v9667 = vld [vmem:[#allocation14 + $0xb0] sm:$0xff]
        %v9668 = vld [vmem:[#allocation14 + $0xb8] sm:$0xff]
        %v9669 = vld [vmem:[#allocation14 + $0xc0] sm:$0xff]
        %v9670 = vld [vmem:[#allocation14 + $0xc8] sm:$0xff]
        %v9671 = vld [vmem:[#allocation14 + $0xd0] sm:$0xff]
        %v9672 = vld [vmem:[#allocation14 + $0xd8] sm:$0xff]
        %v9673 = vld [vmem:[#allocation14 + $0xe0] sm:$0xff]
        %v9674 = vld [vmem:[#allocation14 + $0xe8] sm:$0xff]
        %v9675 = vld [vmem:[#allocation14 + $0xf0] sm:$0xff]
        %v9676 = vld [vmem:[#allocation14 + $0xf8] sm:$0xff]
        %v9677 = vld [vmem:[%s11] sm:$0xf]
        %v9679 = vlaneseq
        %v9680 = vshrl.u32 %v9679, 7
        %v9681 = vsub.s32 0, %v9680
        %v9682 = vrot.slane %v9677, %v9681
        %v9683 = vlaneseq
        %v9684 = vshrl.u32 %v9683, 7
        %v9685 = vsub.s32 1, %v9684
        %v9686 = vrot.slane %v9677, %v9685
        %v9687 = vlaneseq
        %v9688 = vshrl.u32 %v9687, 7
        %v9689 = vsub.s32 2, %v9688
        %v9690 = vrot.slane %v9677, %v9689
        %v9691 = vlaneseq
        %v9692 = vshrl.u32 %v9691, 7
        %v9693 = vsub.s32 3, %v9692
        %v9694 = vrot.slane %v9677, %v9693
        %v9731 = vunpack.c.l.b16 %v9645
        %v9732 = vunpack.c.h.b16 %v9645
        %v9733 = vunpack.c.l.b16 %v9646
        %v9734 = vunpack.c.h.b16 %v9646
        %v9735 = vunpack.c.l.b16 %v9647
        %v9736 = vunpack.c.h.b16 %v9647
        %v9737 = vunpack.c.l.b16 %v9648
        %v9738 = vunpack.c.h.b16 %v9648
        %v9739 = vunpack.c.l.b16 %v9649
        %v9740 = vunpack.c.h.b16 %v9649
        %v9741 = vunpack.c.l.b16 %v9650
        %v9742 = vunpack.c.h.b16 %v9650
        %v9743 = vunpack.c.l.b16 %v9651
        %v9744 = vunpack.c.h.b16 %v9651
        %v9745 = vunpack.c.l.b16 %v9652
        %v9746 = vunpack.c.h.b16 %v9652
        %v9747 = vunpack.c.l.b16 %v9653
        %v9748 = vunpack.c.h.b16 %v9653
        %v9749 = vunpack.c.l.b16 %v9654
        %v9750 = vunpack.c.h.b16 %v9654
        %v9751 = vunpack.c.l.b16 %v9655
        %v9752 = vunpack.c.h.b16 %v9655
        %v9753 = vunpack.c.l.b16 %v9656
        %v9754 = vunpack.c.h.b16 %v9656
        %v9755 = vunpack.c.l.b16 %v9657
        %v9756 = vunpack.c.h.b16 %v9657
        %v9757 = vunpack.c.l.b16 %v9658
        %v9758 = vunpack.c.h.b16 %v9658
        %v9759 = vunpack.c.l.b16 %v9659
        %v9760 = vunpack.c.h.b16 %v9659
        %v9761 = vunpack.c.l.b16 %v9660
        %v9762 = vunpack.c.h.b16 %v9660
        %v9763 = vunpack.c.l.b16 %v9661
        %v9764 = vunpack.c.h.b16 %v9661
        %v9765 = vunpack.c.l.b16 %v9662
        %v9766 = vunpack.c.h.b16 %v9662
        %v9767 = vunpack.c.l.b16 %v9663
        %v9768 = vunpack.c.h.b16 %v9663
        %v9769 = vunpack.c.l.b16 %v9664
        %v9770 = vunpack.c.h.b16 %v9664
        %v9771 = vunpack.c.l.b16 %v9665
        %v9772 = vunpack.c.h.b16 %v9665
        %v9773 = vunpack.c.l.b16 %v9666
        %v9774 = vunpack.c.h.b16 %v9666
        %v9775 = vunpack.c.l.b16 %v9667
        %v9776 = vunpack.c.h.b16 %v9667
        %v9777 = vunpack.c.l.b16 %v9668
        %v9778 = vunpack.c.h.b16 %v9668
        %v9779 = vunpack.c.l.b16 %v9669
        %v9780 = vunpack.c.h.b16 %v9669
        %v9781 = vunpack.c.l.b16 %v9670
        %v9782 = vunpack.c.h.b16 %v9670
        %v9783 = vunpack.c.l.b16 %v9671
        %v9784 = vunpack.c.h.b16 %v9671
        %v9785 = vunpack.c.l.b16 %v9672
        %v9786 = vunpack.c.h.b16 %v9672
        %v9787 = vunpack.c.l.b16 %v9673
        %v9788 = vunpack.c.h.b16 %v9673
        %v9789 = vunpack.c.l.b16 %v9674
        %v9790 = vunpack.c.h.b16 %v9674
        %v9791 = vunpack.c.l.b16 %v9675
        %v9792 = vunpack.c.h.b16 %v9675
        %v9793 = vunpack.c.l.b16 %v9676
        %v9794 = vunpack.c.h.b16 %v9676
        %v9795 = vpack.c.b16 %v9735, %v9731
        %v9796 = vpack.c.b16 %v9736, %v9732
        %v9797 = vpack.c.b16 %v9737, %v9733
        %v9798 = vpack.c.b16 %v9738, %v9734
        %v9799 = vpack.c.b16 %v9743, %v9739
        %v9800 = vpack.c.b16 %v9744, %v9740
        %v9801 = vpack.c.b16 %v9745, %v9741
        %v9802 = vpack.c.b16 %v9746, %v9742
        %v9803 = vpack.c.b16 %v9751, %v9747
        %v9804 = vpack.c.b16 %v9752, %v9748
        %v9805 = vpack.c.b16 %v9753, %v9749
        %v9806 = vpack.c.b16 %v9754, %v9750
        %v9807 = vpack.c.b16 %v9759, %v9755
        %v9808 = vpack.c.b16 %v9760, %v9756
        %v9809 = vpack.c.b16 %v9761, %v9757
        %v9810 = vpack.c.b16 %v9762, %v9758
        %v9811 = vpack.c.b16 %v9767, %v9763
        %v9812 = vpack.c.b16 %v9768, %v9764
        %v9813 = vpack.c.b16 %v9769, %v9765
        %v9814 = vpack.c.b16 %v9770, %v9766
        %v9815 = vpack.c.b16 %v9775, %v9771
        %v9816 = vpack.c.b16 %v9776, %v9772
        %v9817 = vpack.c.b16 %v9777, %v9773
        %v9818 = vpack.c.b16 %v9778, %v9774
        %v9819 = vpack.c.b16 %v9783, %v9779
        %v9820 = vpack.c.b16 %v9784, %v9780
        %v9821 = vpack.c.b16 %v9785, %v9781
        %v9822 = vpack.c.b16 %v9786, %v9782
        %v9823 = vpack.c.b16 %v9791, %v9787
        %v9824 = vpack.c.b16 %v9792, %v9788
        %v9825 = vpack.c.b16 %v9793, %v9789
        %v9826 = vpack.c.b16 %v9794, %v9790
        %9859 = vmatprep.subr.bf16.mxu0 %v9796
        %9860 = vmatpush1.bf16.msra.mxu0 %v9795
        %9861 = vmatprep.subr.bf16.mxu0 %v9800
        %9862 = vmatpush1.bf16.msra.mxu0 %v9799
        %9863 = vmatprep.subr.bf16.mxu0 %v9804
        %9864 = vmatpush1.bf16.msra.mxu0 %v9803
        %9865 = vmatprep.subr.bf16.mxu0 %v9808
        %9866 = vmatpush1.bf16.msra.mxu0 %v9807
        %9867 = vmatprep.subr.bf16.mxu0 %v9812
        %9868 = vmatpush1.bf16.msra.mxu0 %v9811
        %9869 = vmatprep.subr.bf16.mxu0 %v9816
        %9870 = vmatpush1.bf16.msra.mxu0 %v9815
        %9871 = vmatprep.subr.bf16.mxu0 %v9820
        %9872 = vmatpush1.bf16.msra.mxu0 %v9819
        %9873 = vmatprep.subr.bf16.mxu0 %v9824
        %9874 = vmatpush1.bf16.msra.mxu0 %v9823
        %9875 = vmatprep.subr.bf16.mxu0 0
        %9876 = vmatpush1.bf16.msra.mxu0 0
        %9877 = vmatprep.subr.bf16.mxu0 0
        %9878 = vmatpush1.bf16.msra.mxu0 0
        %9879 = vmatprep.subr.bf16.mxu0 0
        %9880 = vmatpush1.bf16.msra.mxu0 0
        %9881 = vmatprep.subr.bf16.mxu0 0
        %9882 = vmatpush1.bf16.msra.mxu0 0
        %9883 = vmatprep.subr.bf16.mxu0 0
        %9884 = vmatpush1.bf16.msra.mxu0 0
        %9885 = vmatprep.subr.bf16.mxu0 0
        %9886 = vmatpush1.bf16.msra.mxu0 0
        %9887 = vmatprep.subr.bf16.mxu0 0
        %9888 = vmatpush1.bf16.msra.mxu0 0
        %9889 = vmatprep.subr.bf16.mxu0 0
        %9890 = vmatpush1.bf16.msra.mxu0 0
        %9891 = vmatprep.mubr.bf16.mxu0 0
        %9892 = vmatmul.mubr.bf16.gmra.mrb[0].mxu0 %v9634
        %v9893 = vpop.f32.mrb[0].mxu0
        %v9894 = vadd.f32 %v9682, %v9893
        %v9895 = vpop.f32.mrb[0].mxu0
        %v9896 = vadd.f32 %v9686, %v9895
        %v9897 = vpop.f32.mrb[0].mxu0
        %v9898 = vadd.f32 %v9682, %v9897
        %v9899 = vpop.f32.mrb[0].mxu0
        %v9900 = vadd.f32 %v9686, %v9899
        %9901 = vmatprep.mubr.bf16.mxu0 0
        %9902 = vmatmul.mubr.bf16.gmra.mrb[0].mxu0 %v9635
        %v9903 = vpop.f32.mrb[0].mxu0
        %v9904 = vadd.f32 %v9682, %v9903
        %v9905 = vpop.f32.mrb[0].mxu0
        %v9906 = vadd.f32 %v9686, %v9905
        %v9907 = vpop.f32.mrb[0].mxu0
        %v9908 = vadd.f32 %v9682, %v9907
        %v9909 = vpop.f32.mrb[0].mxu0
        %v9910 = vadd.f32 %v9686, %v9909
        %9911 = vmatprep.mubr.bf16.mxu0 0
        %9912 = vmatmul.mubr.bf16.gmra.mrb[0].mxu0 %v9636
        %v9913 = vpop.f32.mrb[0].mxu0
        %v9914 = vadd.f32 %v9682, %v9913
        %v9915 = vpop.f32.mrb[0].mxu0
        %v9916 = vadd.f32 %v9686, %v9915
        %v9917 = vpop.f32.mrb[0].mxu0
        %v9918 = vadd.f32 %v9682, %v9917
        %v9919 = vpop.f32.mrb[0].mxu0
        %v9920 = vadd.f32 %v9686, %v9919
        %9921 = vmatprep.mubr.bf16.mxu0 0
        %9922 = vmatmul.mubr.bf16.gmra.mrb[0].mxu0 %v9637
        %v9923 = vpop.f32.mrb[0].mxu0
        %v9924 = vadd.f32 %v9682, %v9923
        %v9925 = vpop.f32.mrb[0].mxu0
        %v9926 = vadd.f32 %v9686, %v9925
        %v9927 = vpop.f32.mrb[0].mxu0
        %v9928 = vadd.f32 %v9682, %v9927
        %v9929 = vpop.f32.mrb[0].mxu0
        %v9930 = vadd.f32 %v9686, %v9929
        %9931 = vdwg.mxu0
        %9932 = vmatprep.subr.bf16.mxu0 %v9798
        %9933 = vmatpush1.bf16.msra.mxu0 %v9797
        %9934 = vmatprep.subr.bf16.mxu0 %v9802
        %9935 = vmatpush1.bf16.msra.mxu0 %v9801
        %9936 = vmatprep.subr.bf16.mxu0 %v9806
        %9937 = vmatpush1.bf16.msra.mxu0 %v9805
        %9938 = vmatprep.subr.bf16.mxu0 %v9810
        %9939 = vmatpush1.bf16.msra.mxu0 %v9809
        %9940 = vmatprep.subr.bf16.mxu0 %v9814
        %9941 = vmatpush1.bf16.msra.mxu0 %v9813
        %9942 = vmatprep.subr.bf16.mxu0 %v9818
        %9943 = vmatpush1.bf16.msra.mxu0 %v9817
        %9944 = vmatprep.subr.bf16.mxu0 %v9822
        %9945 = vmatpush1.bf16.msra.mxu0 %v9821
        %9946 = vmatprep.subr.bf16.mxu0 %v9826
        %9947 = vmatpush1.bf16.msra.mxu0 %v9825
        %9948 = vmatprep.subr.bf16.mxu0 0
        %9949 = vmatpush1.bf16.msra.mxu0 0
        %9950 = vmatprep.subr.bf16.mxu0 0
        %9951 = vmatpush1.bf16.msra.mxu0 0
        %9952 = vmatprep.subr.bf16.mxu0 0
        %9953 = vmatpush1.bf16.msra.mxu0 0
        %9954 = vmatprep.subr.bf16.mxu0 0
        %9955 = vmatpush1.bf16.msra.mxu0 0
        %9956 = vmatprep.subr.bf16.mxu0 0
        %9957 = vmatpush1.bf16.msra.mxu0 0
        %9958 = vmatprep.subr.bf16.mxu0 0
        %9959 = vmatpush1.bf16.msra.mxu0 0
        %9960 = vmatprep.subr.bf16.mxu0 0
        %9961 = vmatpush1.bf16.msra.mxu0 0
        %9962 = vmatprep.subr.bf16.mxu0 0
        %9963 = vmatpush1.bf16.msra.mxu0 0
        %9964 = vmatprep.mubr.bf16.mxu0 0
        %9965 = vmatmul.mubr.bf16.gmra.mrb[0].mxu0 %v9634
        %v9966 = vpop.f32.mrb[0].mxu0
        %v9967 = vadd.f32 %v9690, %v9966
        %v9968 = vpop.f32.mrb[0].mxu0
        %v9969 = vadd.f32 %v9694, %v9968
        %v9970 = vpop.f32.mrb[0].mxu0
        %v9971 = vadd.f32 %v9690, %v9970
        %v9972 = vpop.f32.mrb[0].mxu0
        %v9973 = vadd.f32 %v9694, %v9972
        %9974 = vmatprep.mubr.bf16.mxu0 0
        %9975 = vmatmul.mubr.bf16.gmra.mrb[0].mxu0 %v9635
        %v9976 = vpop.f32.mrb[0].mxu0
        %v9977 = vadd.f32 %v9690, %v9976
        %v9978 = vpop.f32.mrb[0].mxu0
        %v9979 = vadd.f32 %v9694, %v9978
        %v9980 = vpop.f32.mrb[0].mxu0
        %v9981 = vadd.f32 %v9690, %v9980
        %v9982 = vpop.f32.mrb[0].mxu0
        %v9983 = vadd.f32 %v9694, %v9982
        %9984 = vmatprep.mubr.bf16.mxu0 0
        %9985 = vmatmul.mubr.bf16.gmra.mrb[0].mxu0 %v9636
        %v9986 = vpop.f32.mrb[0].mxu0
        %v9987 = vadd.f32 %v9690, %v9986
        %v9988 = vpop.f32.mrb[0].mxu0
        %v9989 = vadd.f32 %v9694, %v9988
        %v9990 = vpop.f32.mrb[0].mxu0
        %v9991 = vadd.f32 %v9690, %v9990
        %v9992 = vpop.f32.mrb[0].mxu0
        %v9993 = vadd.f32 %v9694, %v9992
        %9994 = vmatprep.mubr.bf16.mxu0 0
        %9995 = vmatmul.mubr.bf16.gmra.mrb[0].mxu0 %v9637
        %v9996 = vpop.f32.mrb[0].mxu0
        %v9997 = vadd.f32 %v9690, %v9996
        %v9998 = vpop.f32.mrb[0].mxu0
        %v9999 = vadd.f32 %v9694, %v9998
        %v10000 = vpop.f32.mrb[0].mxu0
        %v10001 = vadd.f32 %v9690, %v10000
        %v10002 = vpop.f32.mrb[0].mxu0
        %v10003 = vadd.f32 %v9694, %v10002
        %10004 = vdwg.mxu0
        %v10005 = vmax.f32 %v9894, 0.0
        %v10006 = vmax.f32 %v9896, 0.0
        %v10007 = vmax.f32 %v9967, 0.0
        %v10008 = vmax.f32 %v9969, 0.0
        %v10009 = vmax.f32 %v9898, 0.0
        %v10010 = vmax.f32 %v9900, 0.0
        %v10011 = vmax.f32 %v9971, 0.0
        %v10012 = vmax.f32 %v9973, 0.0
        %v10013 = vmax.f32 %v9904, 0.0
        %v10014 = vmax.f32 %v9906, 0.0
        %v10015 = vmax.f32 %v9977, 0.0
        %v10016 = vmax.f32 %v9979, 0.0
        %v10017 = vmax.f32 %v9908, 0.0
        %v10018 = vmax.f32 %v9910, 0.0
        %v10019 = vmax.f32 %v9981, 0.0
        %v10020 = vmax.f32 %v9983, 0.0
        %v10021 = vmax.f32 %v9914, 0.0
        %v10022 = vmax.f32 %v9916, 0.0
        %v10023 = vmax.f32 %v9987, 0.0
        %v10024 = vmax.f32 %v9989, 0.0
        %v10025 = vmax.f32 %v9918, 0.0
        %v10026 = vmax.f32 %v9920, 0.0
        %v10027 = vmax.f32 %v9991, 0.0
        %v10028 = vmax.f32 %v9993, 0.0
        %v10029 = vmax.f32 %v9924, 0.0
        %v10030 = vmax.f32 %v9926, 0.0
        %v10031 = vmax.f32 %v9997, 0.0
        %v10032 = vmax.f32 %v9999, 0.0
        %v10033 = vmax.f32 %v9928, 0.0
        %v10034 = vmax.f32 %v9930, 0.0
        %v10035 = vmax.f32 %v10001, 0.0
        %v10036 = vmax.f32 %v10003, 0.0
        %v10037 = vpack.c.bf16 %v10009, %v10005
        %v10038 = vpack.c.bf16 %v10010, %v10006
        %v10039 = vpack.c.bf16 %v10011, %v10007
        %v10040 = vpack.c.bf16 %v10012, %v10008
        %v10041 = vpack.c.bf16 %v10017, %v10013
        %v10042 = vpack.c.bf16 %v10018, %v10014
        %v10043 = vpack.c.bf16 %v10019, %v10015
        %v10044 = vpack.c.bf16 %v10020, %v10016
        %v10045 = vpack.c.bf16 %v10025, %v10021
        %v10046 = vpack.c.bf16 %v10026, %v10022
        %v10047 = vpack.c.bf16 %v10027, %v10023
        %v10048 = vpack.c.bf16 %v10028, %v10024
        %v10049 = vpack.c.bf16 %v10033, %v10029
        %v10050 = vpack.c.bf16 %v10034, %v10030
        %v10051 = vpack.c.bf16 %v10035, %v10031
        %v10052 = vpack.c.bf16 %v10036, %v10032
        %v10053 = vld [vmem:[#allocation16] sm:$0xf]
        %v10054 = vld [vmem:[#allocation16 + $0x4] sm:$0xf]
        %v10055 = vld [vmem:[#allocation16 + $0x8] sm:$0xf]
        %v10056 = vld [vmem:[#allocation16 + $0xc] sm:$0xf]
        %v10057 = vld [vmem:[#allocation16 + $0x10] sm:$0xf]
        %v10058 = vld [vmem:[#allocation16 + $0x14] sm:$0xf]
        %v10059 = vld [vmem:[#allocation16 + $0x18] sm:$0xf]
        %v10060 = vld [vmem:[#allocation16 + $0x1c] sm:$0xf]
        %v10061 = vld [vmem:[#allocation16 + $0x20] sm:$0xf]
        %v10062 = vld [vmem:[#allocation16 + $0x24] sm:$0xf]
        %v10063 = vld [vmem:[#allocation16 + $0x28] sm:$0xf]
        %v10064 = vld [vmem:[#allocation16 + $0x2c] sm:$0xf]
        %v10065 = vld [vmem:[#allocation16 + $0x30] sm:$0xf]
        %v10066 = vld [vmem:[#allocation16 + $0x34] sm:$0xf]
        %v10067 = vld [vmem:[#allocation16 + $0x38] sm:$0xf]
        %v10068 = vld [vmem:[#allocation16 + $0x3c] sm:$0xf]
        %v10069 = vld [vmem:[#allocation16 + $0x40] sm:$0xf]
        %v10070 = vld [vmem:[#allocation16 + $0x44] sm:$0xf]
        %v10071 = vld [vmem:[#allocation16 + $0x48] sm:$0xf]
        %v10072 = vld [vmem:[#allocation16 + $0x4c] sm:$0xf]
        %v10073 = vld [vmem:[#allocation16 + $0x50] sm:$0xf]
        %v10074 = vld [vmem:[#allocation16 + $0x54] sm:$0xf]
        %v10075 = vld [vmem:[#allocation16 + $0x58] sm:$0xf]
        %v10076 = vld [vmem:[#allocation16 + $0x5c] sm:$0xf]
        %v10077 = vld [vmem:[#allocation16 + $0x60] sm:$0xf]
        %v10078 = vld [vmem:[#allocation16 + $0x64] sm:$0xf]
        %v10079 = vld [vmem:[#allocation16 + $0x68] sm:$0xf]
        %v10080 = vld [vmem:[#allocation16 + $0x6c] sm:$0xf]
        %v10081 = vld [vmem:[#allocation16 + $0x70] sm:$0xf]
        %v10082 = vld [vmem:[#allocation16 + $0x74] sm:$0xf]
        %v10083 = vld [vmem:[#allocation16 + $0x78] sm:$0xf]
        %v10084 = vld [vmem:[#allocation16 + $0x7c] sm:$0xf]
        %v10085 = vld [vmem:[#allocation16 + $0x80] sm:$0xf]
        %v10086 = vld [vmem:[#allocation16 + $0x84] sm:$0xf]
        %v10087 = vld [vmem:[#allocation16 + $0x88] sm:$0xf]
        %v10088 = vld [vmem:[#allocation16 + $0x8c] sm:$0xf]
        %v10089 = vld [vmem:[#allocation16 + $0x90] sm:$0xf]
        %v10090 = vld [vmem:[#allocation16 + $0x94] sm:$0xf]
        %v10091 = vld [vmem:[#allocation16 + $0x98] sm:$0xf]
        %v10092 = vld [vmem:[#allocation16 + $0x9c] sm:$0xf]
        %v10093 = vld [vmem:[#allocation16 + $0xa0] sm:$0xf]
        %v10094 = vld [vmem:[#allocation16 + $0xa4] sm:$0xf]
        %v10095 = vld [vmem:[#allocation16 + $0xa8] sm:$0xf]
        %v10096 = vld [vmem:[#allocation16 + $0xac] sm:$0xf]
        %v10097 = vld [vmem:[#allocation16 + $0xb0] sm:$0xf]
        %v10098 = vld [vmem:[#allocation16 + $0xb4] sm:$0xf]
        %v10099 = vld [vmem:[#allocation16 + $0xb8] sm:$0xf]
        %v10100 = vld [vmem:[#allocation16 + $0xbc] sm:$0xf]
        %v10101 = vld [vmem:[#allocation16 + $0xc0] sm:$0xf]
        %v10102 = vld [vmem:[#allocation16 + $0xc4] sm:$0xf]
        %v10103 = vld [vmem:[#allocation16 + $0xc8] sm:$0xf]
        %v10104 = vld [vmem:[#allocation16 + $0xcc] sm:$0xf]
        %v10105 = vld [vmem:[#allocation16 + $0xd0] sm:$0xf]
        %v10106 = vld [vmem:[#allocation16 + $0xd4] sm:$0xf]
        %v10107 = vld [vmem:[#allocation16 + $0xd8] sm:$0xf]
        %v10108 = vld [vmem:[#allocation16 + $0xdc] sm:$0xf]
        %v10109 = vld [vmem:[#allocation16 + $0xe0] sm:$0xf]
        %v10110 = vld [vmem:[#allocation16 + $0xe4] sm:$0xf]
        %v10111 = vld [vmem:[#allocation16 + $0xe8] sm:$0xf]
        %v10112 = vld [vmem:[#allocation16 + $0xec] sm:$0xf]
        %v10113 = vld [vmem:[#allocation16 + $0xf0] sm:$0xf]
        %v10114 = vld [vmem:[#allocation16 + $0xf4] sm:$0xf]
        %v10115 = vld [vmem:[#allocation16 + $0xf8] sm:$0xf]
        %v10116 = vld [vmem:[#allocation16 + $0xfc] sm:$0xf]
        %v10181 = vunpack.c.l.b16 %v10053
        %v10182 = vunpack.c.l.b16 %v10054
        %v10183 = vunpack.c.l.b16 %v10055
        %v10184 = vunpack.c.l.b16 %v10056
        %v10185 = vunpack.c.l.b16 %v10057
        %v10186 = vunpack.c.l.b16 %v10058
        %v10187 = vunpack.c.l.b16 %v10059
        %v10188 = vunpack.c.l.b16 %v10060
        %v10189 = vunpack.c.l.b16 %v10061
        %v10190 = vunpack.c.l.b16 %v10062
        %v10191 = vunpack.c.l.b16 %v10063
        %v10192 = vunpack.c.l.b16 %v10064
        %v10193 = vunpack.c.l.b16 %v10065
        %v10194 = vunpack.c.l.b16 %v10066
        %v10195 = vunpack.c.l.b16 %v10067
        %v10196 = vunpack.c.l.b16 %v10068
        %v10197 = vunpack.c.l.b16 %v10069
        %v10198 = vunpack.c.l.b16 %v10070
        %v10199 = vunpack.c.l.b16 %v10071
        %v10200 = vunpack.c.l.b16 %v10072
        %v10201 = vunpack.c.l.b16 %v10073
        %v10202 = vunpack.c.l.b16 %v10074
        %v10203 = vunpack.c.l.b16 %v10075
        %v10204 = vunpack.c.l.b16 %v10076
        %v10205 = vunpack.c.l.b16 %v10077
        %v10206 = vunpack.c.l.b16 %v10078
        %v10207 = vunpack.c.l.b16 %v10079
        %v10208 = vunpack.c.l.b16 %v10080
        %v10209 = vunpack.c.l.b16 %v10081
        %v10210 = vunpack.c.l.b16 %v10082
        %v10211 = vunpack.c.l.b16 %v10083
        %v10212 = vunpack.c.l.b16 %v10084
        %v10213 = vunpack.c.l.b16 %v10085
        %v10214 = vunpack.c.l.b16 %v10086
        %v10215 = vunpack.c.l.b16 %v10087
        %v10216 = vunpack.c.l.b16 %v10088
        %v10217 = vunpack.c.l.b16 %v10089
        %v10218 = vunpack.c.l.b16 %v10090
        %v10219 = vunpack.c.l.b16 %v10091
        %v10220 = vunpack.c.l.b16 %v10092
        %v10221 = vunpack.c.l.b16 %v10093
        %v10222 = vunpack.c.l.b16 %v10094
        %v10223 = vunpack.c.l.b16 %v10095
        %v10224 = vunpack.c.l.b16 %v10096
        %v10225 = vunpack.c.l.b16 %v10097
        %v10226 = vunpack.c.l.b16 %v10098
        %v10227 = vunpack.c.l.b16 %v10099
        %v10228 = vunpack.c.l.b16 %v10100
        %v10229 = vunpack.c.l.b16 %v10101
        %v10230 = vunpack.c.l.b16 %v10102
        %v10231 = vunpack.c.l.b16 %v10103
        %v10232 = vunpack.c.l.b16 %v10104
        %v10233 = vunpack.c.l.b16 %v10105
        %v10234 = vunpack.c.l.b16 %v10106
        %v10235 = vunpack.c.l.b16 %v10107
        %v10236 = vunpack.c.l.b16 %v10108
        %v10237 = vunpack.c.l.b16 %v10109
        %v10238 = vunpack.c.l.b16 %v10110
        %v10239 = vunpack.c.l.b16 %v10111
        %v10240 = vunpack.c.l.b16 %v10112
        %v10241 = vunpack.c.l.b16 %v10113
        %v10242 = vunpack.c.l.b16 %v10114
        %v10243 = vunpack.c.l.b16 %v10115
        %v10244 = vunpack.c.l.b16 %v10116
        %v10245 = vpack.c.b16 %v10182, %v10181
        %v10246 = vpack.c.b16 %v10184, %v10183
        %v10247 = vpack.c.b16 %v10186, %v10185
        %v10248 = vpack.c.b16 %v10188, %v10187
        %v10249 = vpack.c.b16 %v10190, %v10189
        %v10250 = vpack.c.b16 %v10192, %v10191
        %v10251 = vpack.c.b16 %v10194, %v10193
        %v10252 = vpack.c.b16 %v10196, %v10195
        %v10253 = vpack.c.b16 %v10198, %v10197
        %v10254 = vpack.c.b16 %v10200, %v10199
        %v10255 = vpack.c.b16 %v10202, %v10201
        %v10256 = vpack.c.b16 %v10204, %v10203
        %v10257 = vpack.c.b16 %v10206, %v10205
        %v10258 = vpack.c.b16 %v10208, %v10207
        %v10259 = vpack.c.b16 %v10210, %v10209
        %v10260 = vpack.c.b16 %v10212, %v10211
        %v10261 = vpack.c.b16 %v10214, %v10213
        %v10262 = vpack.c.b16 %v10216, %v10215
        %v10263 = vpack.c.b16 %v10218, %v10217
        %v10264 = vpack.c.b16 %v10220, %v10219
        %v10265 = vpack.c.b16 %v10222, %v10221
        %v10266 = vpack.c.b16 %v10224, %v10223
        %v10267 = vpack.c.b16 %v10226, %v10225
        %v10268 = vpack.c.b16 %v10228, %v10227
        %v10269 = vpack.c.b16 %v10230, %v10229
        %v10270 = vpack.c.b16 %v10232, %v10231
        %v10271 = vpack.c.b16 %v10234, %v10233
        %v10272 = vpack.c.b16 %v10236, %v10235
        %v10273 = vpack.c.b16 %v10238, %v10237
        %v10274 = vpack.c.b16 %v10240, %v10239
        %v10275 = vpack.c.b16 %v10242, %v10241
        %v10276 = vpack.c.b16 %v10244, %v10243
        %10309 = vmatprep.subr.bf16.mxu0 0
        %10310 = vmatpush1.bf16.msra.mxu0 %v10245
        %10311 = vmatprep.subr.bf16.mxu0 0
        %10312 = vmatpush1.bf16.msra.mxu0 %v10246
        %10313 = vmatprep.subr.bf16.mxu0 0
        %10314 = vmatpush1.bf16.msra.mxu0 %v10247
        %10315 = vmatprep.subr.bf16.mxu0 0
        %10316 = vmatpush1.bf16.msra.mxu0 %v10248
        %10317 = vmatprep.subr.bf16.mxu0 0
        %10318 = vmatpush1.bf16.msra.mxu0 %v10249
        %10319 = vmatprep.subr.bf16.mxu0 0
        %10320 = vmatpush1.bf16.msra.mxu0 %v10250
        %10321 = vmatprep.subr.bf16.mxu0 0
        %10322 = vmatpush1.bf16.msra.mxu0 %v10251
        %10323 = vmatprep.subr.bf16.mxu0 0
        %10324 = vmatpush1.bf16.msra.mxu0 %v10252
        %10325 = vmatprep.subr.bf16.mxu0 0
        %10326 = vmatpush1.bf16.msra.mxu0 %v10253
        %10327 = vmatprep.subr.bf16.mxu0 0
        %10328 = vmatpush1.bf16.msra.mxu0 %v10254
        %10329 = vmatprep.subr.bf16.mxu0 0
        %10330 = vmatpush1.bf16.msra.mxu0 %v10255
        %10331 = vmatprep.subr.bf16.mxu0 0
        %10332 = vmatpush1.bf16.msra.mxu0 %v10256
        %10333 = vmatprep.subr.bf16.mxu0 0
        %10334 = vmatpush1.bf16.msra.mxu0 %v10257
        %10335 = vmatprep.subr.bf16.mxu0 0
        %10336 = vmatpush1.bf16.msra.mxu0 %v10258
        %10337 = vmatprep.subr.bf16.mxu0 0
        %10338 = vmatpush1.bf16.msra.mxu0 %v10259
        %10339 = vmatprep.subr.bf16.mxu0 0
        %10340 = vmatpush1.bf16.msra.mxu0 %v10260
        %10341 = vmatprep.mubr.bf16.mxu0 %v10038
        %10342 = vmatmul.mubr.bf16.gmra.mrb[0].mxu0 %v10037
        %v10343 = vpop.f32.mrb[0].mxu0
        %v10344 = vadd.f32 0.0, %v10343
        %v10345 = vpop.f32.mrb[0].mxu0
        %v10346 = vpop.f32.mrb[0].mxu0
        %v10347 = vadd.f32 0.0, %v10346
        %v10348 = vpop.f32.mrb[0].mxu0
        %10349 = vmatprep.mubr.bf16.mxu0 %v10042
        %10350 = vmatmul.mubr.bf16.gmra.mrb[0].mxu0 %v10041
        %v10351 = vpop.f32.mrb[0].mxu0
        %v10352 = vadd.f32 0.0, %v10351
        %v10353 = vpop.f32.mrb[0].mxu0
        %v10354 = vpop.f32.mrb[0].mxu0
        %v10355 = vadd.f32 0.0, %v10354
        %v10356 = vpop.f32.mrb[0].mxu0
        %10357 = vmatprep.mubr.bf16.mxu0 %v10046
        %10358 = vmatmul.mubr.bf16.gmra.mrb[0].mxu0 %v10045
        %v10359 = vpop.f32.mrb[0].mxu0
        %v10360 = vadd.f32 0.0, %v10359
        %v10361 = vpop.f32.mrb[0].mxu0
        %v10362 = vpop.f32.mrb[0].mxu0
        %v10363 = vadd.f32 0.0, %v10362
        %v10364 = vpop.f32.mrb[0].mxu0
        %10365 = vmatprep.mubr.bf16.mxu0 %v10050
        %10366 = vmatmul.mubr.bf16.gmra.mrb[0].mxu0 %v10049
        %v10367 = vpop.f32.mrb[0].mxu0
        %v10368 = vadd.f32 0.0, %v10367
        %v10369 = vpop.f32.mrb[0].mxu0
        %v10370 = vpop.f32.mrb[0].mxu0
        %v10371 = vadd.f32 0.0, %v10370
        %v10372 = vpop.f32.mrb[0].mxu0
        %10373 = vdwg.mxu0
        %10374 = vmatprep.subr.bf16.mxu0 0
        %10375 = vmatpush1.bf16.msra.mxu0 %v10261
        %10376 = vmatprep.subr.bf16.mxu0 0
        %10377 = vmatpush1.bf16.msra.mxu0 %v10262
        %10378 = vmatprep.subr.bf16.mxu0 0
        %10379 = vmatpush1.bf16.msra.mxu0 %v10263
        %10380 = vmatprep.subr.bf16.mxu0 0
        %10381 = vmatpush1.bf16.msra.mxu0 %v10264
        %10382 = vmatprep.subr.bf16.mxu0 0
        %10383 = vmatpush1.bf16.msra.mxu0 %v10265
        %10384 = vmatprep.subr.bf16.mxu0 0
        %10385 = vmatpush1.bf16.msra.mxu0 %v10266
        %10386 = vmatprep.subr.bf16.mxu0 0
        %10387 = vmatpush1.bf16.msra.mxu0 %v10267
        %10388 = vmatprep.subr.bf16.mxu0 0
        %10389 = vmatpush1.bf16.msra.mxu0 %v10268
        %10390 = vmatprep.subr.bf16.mxu0 0
        %10391 = vmatpush1.bf16.msra.mxu0 %v10269
        %10392 = vmatprep.subr.bf16.mxu0 0
        %10393 = vmatpush1.bf16.msra.mxu0 %v10270
        %10394 = vmatprep.subr.bf16.mxu0 0
        %10395 = vmatpush1.bf16.msra.mxu0 %v10271
        %10396 = vmatprep.subr.bf16.mxu0 0
        %10397 = vmatpush1.bf16.msra.mxu0 %v10272
        %10398 = vmatprep.subr.bf16.mxu0 0
        %10399 = vmatpush1.bf16.msra.mxu0 %v10273
        %10400 = vmatprep.subr.bf16.mxu0 0
        %10401 = vmatpush1.bf16.msra.mxu0 %v10274
        %10402 = vmatprep.subr.bf16.mxu0 0
        %10403 = vmatpush1.bf16.msra.mxu0 %v10275
        %10404 = vmatprep.subr.bf16.mxu0 0
        %10405 = vmatpush1.bf16.msra.mxu0 %v10276
        %10406 = vmatprep.mubr.bf16.mxu0 %v10040
        %10407 = vmatmul.mubr.bf16.gmra.mrb[0].mxu0 %v10039
        %v10408 = vpop.f32.mrb[0].mxu0
        %v10409 = vadd.f32 %v10344, %v10408
        %v10410 = vpop.f32.mrb[0].mxu0
        %v10411 = vpop.f32.mrb[0].mxu0
        %v10412 = vadd.f32 %v10347, %v10411
        %v10413 = vpop.f32.mrb[0].mxu0
        %10414 = vmatprep.mubr.bf16.mxu0 %v10044
        %10415 = vmatmul.mubr.bf16.gmra.mrb[0].mxu0 %v10043
        %v10416 = vpop.f32.mrb[0].mxu0
        %v10417 = vadd.f32 %v10352, %v10416
        %v10418 = vpop.f32.mrb[0].mxu0
        %v10419 = vpop.f32.mrb[0].mxu0
        %v10420 = vadd.f32 %v10355, %v10419
        %v10421 = vpop.f32.mrb[0].mxu0
        %10422 = vmatprep.mubr.bf16.mxu0 %v10048
        %10423 = vmatmul.mubr.bf16.gmra.mrb[0].mxu0 %v10047
        %v10424 = vpop.f32.mrb[0].mxu0
        %v10425 = vadd.f32 %v10360, %v10424
        %v10426 = vpop.f32.mrb[0].mxu0
        %v10427 = vpop.f32.mrb[0].mxu0
        %v10428 = vadd.f32 %v10363, %v10427
        %v10429 = vpop.f32.mrb[0].mxu0
        %10430 = vmatprep.mubr.bf16.mxu0 %v10052
        %10431 = vmatmul.mubr.bf16.gmra.mrb[0].mxu0 %v10051
        %v10432 = vpop.f32.mrb[0].mxu0
        %v10433 = vadd.f32 %v10368, %v10432
        %v10434 = vpop.f32.mrb[0].mxu0
        %v10435 = vpop.f32.mrb[0].mxu0
        %v10436 = vadd.f32 %v10371, %v10435
        %v10437 = vpop.f32.mrb[0].mxu0
        %10438 = vdwg.mxu0
        %v10439 = vadd.f32 %v9643, %v10409
        %v10440 = vadd.f32 %v9643, %v10412
        %v10441 = vadd.f32 %v9643, %v10417
        %v10442 = vadd.f32 %v9643, %v10420
        %v10443 = vadd.f32 %v9643, %v10425
        %v10444 = vadd.f32 %v9643, %v10428
        %v10445 = vadd.f32 %v9643, %v10433
        %v10446 = vadd.f32 %v9643, %v10436
        %v10447 = vadd.f32 %v10439, %v9626
        %v10448 = vadd.f32 %v10440, %v9627
        %v10449 = vadd.f32 %v10441, %v9628
        %v10450 = vadd.f32 %v10442, %v9629
        %v10451 = vadd.f32 %v10443, %v9630
        %v10452 = vadd.f32 %v10444, %v9631
        %v10453 = vadd.f32 %v10445, %v9632
        %v10454 = vadd.f32 %v10446, %v9633
        %v10455 = vld [vmem:[%s14] sm:$0x1]
        %v10456 = vld [vmem:[%s15] sm:$0x1]
        %10457 = vadd.xlane.f32.xlu0 %v10447
        %v10458 = vpop.xlane.xlu0 %10457
        %10459 = vadd.xlane.f32.xlu0 %v10448
        %v10460 = vpop.xlane.xlu0 %10459
        %10461 = vadd.xlane.f32.xlu0 %v10449
        %v10462 = vpop.xlane.xlu0 %10461
        %10463 = vadd.xlane.f32.xlu0 %v10450
        %v10464 = vpop.xlane.xlu0 %10463
        %10465 = vadd.xlane.f32.xlu0 %v10451
        %v10466 = vpop.xlane.xlu0 %10465
        %10467 = vadd.xlane.f32.xlu0 %v10452
        %v10468 = vpop.xlane.xlu0 %10467
        %10469 = vadd.xlane.f32.xlu0 %v10453
        %v10470 = vpop.xlane.xlu0 %10469
        %10471 = vadd.xlane.f32.xlu0 %v10454
        %v10472 = vpop.xlane.xlu0 %10471
        %v10473 = vmul.f32 %v10458, %v9533
        %v10474 = vmul.f32 %v10460, %v9533
        %v10475 = vmul.f32 %v10462, %v9533
        %v10476 = vmul.f32 %v10464, %v9533
        %v10477 = vmul.f32 %v10466, %v9533
        %v10478 = vmul.f32 %v10468, %v9533
        %v10479 = vmul.f32 %v10470, %v9533
        %v10480 = vmul.f32 %v10472, %v9533
        %v10481 = vsub.f32 %v10447, %v10473
        %v10482 = vsub.f32 %v10448, %v10474
        %v10483 = vsub.f32 %v10449, %v10475
        %v10484 = vsub.f32 %v10450, %v10476
        %v10485 = vsub.f32 %v10451, %v10477
        %v10486 = vsub.f32 %v10452, %v10478
        %v10487 = vsub.f32 %v10453, %v10479
        %v10488 = vsub.f32 %v10454, %v10480
        %v10489 = vmul.f32 %v10481, %v10481
        %v10490 = vmul.f32 %v10482, %v10482
        %v10491 = vmul.f32 %v10483, %v10483
        %v10492 = vmul.f32 %v10484, %v10484
        %v10493 = vmul.f32 %v10485, %v10485
        %v10494 = vmul.f32 %v10486, %v10486
        %v10495 = vmul.f32 %v10487, %v10487
        %v10496 = vmul.f32 %v10488, %v10488
        %10497 = vadd.xlane.f32.xlu0 %v10489
        %v10498 = vpop.xlane.xlu0 %10497
        %10499 = vadd.xlane.f32.xlu0 %v10490
        %v10500 = vpop.xlane.xlu0 %10499
        %10501 = vadd.xlane.f32.xlu0 %v10491
        %v10502 = vpop.xlane.xlu0 %10501
        %10503 = vadd.xlane.f32.xlu0 %v10492
        %v10504 = vpop.xlane.xlu0 %10503
        %10505 = vadd.xlane.f32.xlu0 %v10493
        %v10506 = vpop.xlane.xlu0 %10505
        %10507 = vadd.xlane.f32.xlu0 %v10494
        %v10508 = vpop.xlane.xlu0 %10507
        %10509 = vadd.xlane.f32.xlu0 %v10495
        %v10510 = vpop.xlane.xlu0 %10509
        %10511 = vadd.xlane.f32.xlu0 %v10496
        %v10512 = vpop.xlane.xlu0 %10511
        %v10513 = vmul.f32 %v10498, %v9533
        %v10514 = vmul.f32 %v10500, %v9533
        %v10515 = vmul.f32 %v10502, %v9533
        %v10516 = vmul.f32 %v10504, %v9533
        %v10517 = vmul.f32 %v10506, %v9533
        %v10518 = vmul.f32 %v10508, %v9533
        %v10519 = vmul.f32 %v10510, %v9533
        %v10520 = vmul.f32 %v10512, %v9533
        %v10521 = vadd.f32 %v10513, 1e-05
        %v10522 = vadd.f32 %v10514, 1e-05
        %v10523 = vadd.f32 %v10515, 1e-05
        %v10524 = vadd.f32 %v10516, 1e-05
        %v10525 = vadd.f32 %v10517, 1e-05
        %v10526 = vadd.f32 %v10518, 1e-05
        %v10527 = vadd.f32 %v10519, 1e-05
        %v10528 = vadd.f32 %v10520, 1e-05
        %v10529 = vrsqrt.pop %v10521
        %v10530 = vrsqrt.pop %v10522
        %v10531 = vrsqrt.pop %v10523
        %v10532 = vrsqrt.pop %v10524
        %v10533 = vrsqrt.pop %v10525
        %v10534 = vrsqrt.pop %v10526
        %v10535 = vrsqrt.pop %v10527
        %v10536 = vrsqrt.pop %v10528
        %v10537 = vmul.f32 %v10481, %v10529
        %v10538 = vmul.f32 %v10482, %v10530
        %v10539 = vmul.f32 %v10483, %v10531
        %v10540 = vmul.f32 %v10484, %v10532
        %v10541 = vmul.f32 %v10485, %v10533
        %v10542 = vmul.f32 %v10486, %v10534
        %v10543 = vmul.f32 %v10487, %v10535
        %v10544 = vmul.f32 %v10488, %v10536
        %v10546 = vlaneseq
        %v10547 = vshrl.u32 %v10546, 7
        %v10548 = vsub.s32 0, %v10547
        %v10549 = vrot.slane %v10455, %v10548
        %v10551 = vmul.f32 %v10537, %v10549
        %v10552 = vmul.f32 %v10538, %v10549
        %v10553 = vmul.f32 %v10539, %v10549
        %v10554 = vmul.f32 %v10540, %v10549
        %v10555 = vmul.f32 %v10541, %v10549
        %v10556 = vmul.f32 %v10542, %v10549
        %v10557 = vmul.f32 %v10543, %v10549
        %v10558 = vmul.f32 %v10544, %v10549
        %v10560 = vlaneseq
        %v10561 = vshrl.u32 %v10560, 7
        %v10562 = vsub.s32 0, %v10561
        %v10563 = vrot.slane %v10456, %v10562
        %v10565 = vadd.f32 %v10551, %v10563
        %v10566 = vadd.f32 %v10552, %v10563
        %v10567 = vadd.f32 %v10553, %v10563
        %v10568 = vadd.f32 %v10554, %v10563
        %v10569 = vadd.f32 %v10555, %v10563
        %v10570 = vadd.f32 %v10556, %v10563
        %v10571 = vadd.f32 %v10557, %v10563
        %v10572 = vadd.f32 %v10558, %v10563
        %10573 = vst [vmem:[%s721] sm:$0xff] %v10565
        %10574 = vst [vmem:[%s721 + $0x8] sm:$0xff] %v10566
        %10575 = vst [vmem:[%s721 + $0x10] sm:$0xff] %v10567
        %10576 = vst [vmem:[%s721 + $0x18] sm:$0xff] %v10568
        %10577 = vst [vmem:[%s721 + $0x20] sm:$0xff] %v10569
        %10578 = vst [vmem:[%s721 + $0x28] sm:$0xff] %v10570
        %10579 = vst [vmem:[%s721 + $0x30] sm:$0xff] %v10571
        %10580 = vst [vmem:[%s721 + $0x38] sm:$0xff] %v10572
        %s10581 = sand.u32 %s414, 1
        %s10582 = scalar_lea.sflag [#allocation4], %s10581
        %s10583 = sand.u32 %s414, 1
        %s10584 = smul.addr %s10583, 64
        %s10585 = scalar_lea.vmem [#allocation17], %s10584
        // Predicated region
        $region121: #{tpu_custom_call.1} parent=83 // pred_check
          %p10586 = pneg %p424
        $region122: #{tpu_custom_call.1} parent=83 // pred_check_branch
          %10588 = sbr.rel (%p10586) target = $region124
        $region123: #{tpu_custom_call.1} parent=83 // pred_region
          %s10589 = smul.u32 8, %s44
          %s10591 = ssub.s32 1024, 1024
          %10592 = vsyncadd %s10582, %s10591
          %s10593 = smul.addr %s43, 16
          %s10594 = sadd.s32 %s10589, %s10593
          %s10595 = smul.addr %s10594, 128
          %s10596 = scalar_lea.hbm %s16, %s10595
          %s10597 = sshll.u32 %s10585, 4
          %s10598 = int_to_ptr.vmem [resolvable:$true] %s10597
          %10603 = dma.vmem_to_hbm [thread:$0]  %s10598, 1024, %s10596, %s10582, 128, 128, 8
        $region124: #{tpu_custom_call.1} parent=83 // pred_fallthru
          _
      $region84: #{tpu_custom_call.1} parent=5 // pred_fallthru
        _
      %p10604 = scmp.le.s32.totalorder 2, %s34
      // Predicated region
      $region125: #{tpu_custom_call.1} parent=5 // pred_check
        %p10605 = pneg %p10604
      $region126: #{tpu_custom_call.1} parent=5 // pred_check_branch
        %10607 = sbr.rel (%p10605) target = $region128
      $region127: #{tpu_custom_call.1} parent=5 // pred_region
        %s10608 = ssub.s32 %s34, 2
        // Predicated region
        $region129: #{tpu_custom_call.1} parent=127 // pred_check
          %p10609 = pneg %p430
        $region130: #{tpu_custom_call.1} parent=127 // pred_check_branch
          %10611 = sbr.rel (%p10609) target = $region132
        $region131: #{tpu_custom_call.1} parent=127 // pred_region
          %s10612 = sand.u32 %s415, 1
          %s10613 = scalar_lea.sflag [#allocation4], %s10612
          %s10614 = sand.u32 %s415, 1
          %s10615 = smul.addr %s10614, 64
          %s10616 = scalar_lea.vmem [#allocation17], %s10615
          %10617 = dma.done %s10613, 1024
        $region132: #{tpu_custom_call.1} parent=127 // pred_fallthru
          _
      $region128: #{tpu_custom_call.1} parent=5 // pred_fallthru
        _
    $region6: #{tpu_custom_call.1} parent=1 // loop_footer
      %s38 = sadd.s32 1, %s34
    $region7: #{tpu_custom_call.1} parent=1 // loop_footer_branch
      %33 = sbr.rel target = $region3
    $region8: #{tpu_custom_call.1} parent=1 // loop_exit
      _
    %10618 = vsyncpa [#allocation3], 1
    %s10619 = scalar_lea.sflag [#allocation3], 1
    %10620 = vsyncpa %s10619, 1
    %10621 = vsyncpa [#allocation6], 1
    %s10622 = scalar_lea.sflag [#allocation6], 1
    %10623 = vsyncpa %s10622, 1
    %10624 = vsyncpa [#allocation9], 1
    %10625 = vsyncpa [#allocation12], 1
    %10626 = vsyncpa [#allocation15], 1
    %10627 = vsyncpa [#allocation4], 1
    %s10628 = scalar_lea.sflag [#allocation4], 1
    %10629 = vsyncpa %s10628, 1

</llo_original>
